<compile_context>
chip_gen: v6e
topology: v6e:2x2x1
jax: 0.10.0
libtpu: 0.0.40
codegen_flags: <defaults>
</compile_context>

<pallas_src>
import jax
import jax.numpy as jnp
from jax import lax
from jax.experimental import pallas as pl
from jax.experimental.pallas import tpu as pltpu

# Small, self-consistent shapes (stand-ins for the CSV-derived sizes).
BATCH_SIZE = 8
HIDDEN_SIZE = 16
NUM_CLASSES = 20
INPUT_SIZE = NUM_CLASSES + 1
SEQ_LEN = 8
NUM_LAYERS = 2
OUT_PAD = 128          # lane-pad the output projection so the final store is unmasked


def dkt_lstm_kernel(q_ref, ans_ref,
                    wih1q_ref, wih1a_ref, b1_ref,
                    whh1_ref, wih2_ref, whh2_ref, b2_ref,
                    wout_ref, bout_ref,
                    h0_ref, c0_ref,
                    out_ref, hn_ref, cn_ref):
    """Whole sequence in one invocation (everything resident in VMEM).

    q_ref/ans_ref : (T*B, 1) time-major question ids (int32) / answers (f32)
    wih1q         : (4, C, H)  layer-1 input weight, per gate (i, f, g, o)
    wih1a         : (4, 1, H)  layer-1 input weight row for the answer column
    b1            : (4, 1, H)  combined b_ih + b_hh, layer 1
    whh1          : (4, H, H)  layer-1 recurrent weight, per gate
    wih2 / whh2   : (4, H, H)  layer-2 input / recurrent weights, per gate
    b2            : (4, 1, H)  combined b_ih + b_hh, layer 2
    wout/bout     : (H, 128) / (1, 128) lane-padded output projection
    h0/c0         : (2, B, H)
    out_ref       : (T*B, 128) time-major padded logits; hn/cn: (2, B, H)
    """
    TB = q_ref.shape[0]
    C = wih1q_ref.shape[1]
    H = whh1_ref.shape[1]
    T = SEQ_LEN
    B = TB // T

    q = q_ref[...]                                           # (T*B, 1) int32
    ans = ans_ref[...]                                       # (T*B, 1) f32

    # ---- Hoisted layer-1 input transform: build one-hot in-kernel, one small
    # MXU call per gate for the whole sequence; answer column is a rank-1 FMA.
    class_ids = lax.broadcasted_iota(jnp.int32, (TB, C), 1)
    onehot = (class_ids == q).astype(jnp.float32)            # (T*B, C)

    def gate_x(g):
        return (jnp.dot(onehot, wih1q_ref[g],
                        preferred_element_type=jnp.float32)  # (T*B, H)
                + ans * wih1a_ref[g] + b1_ref[g])

    gx_i, gx_f, gx_g, gx_o = gate_x(0), gate_x(1), gate_x(2), gate_x(3)

    # Per-gate weights, loaded once before the recurrence.
    w1 = [whh1_ref[g] for g in range(4)]
    wi2 = [wih2_ref[g] for g in range(4)]
    wh2 = [whh2_ref[g] for g in range(4)]
    b2 = [b2_ref[g] for g in range(4)]

    def sig(x):
        # EUP tanh + cheap VPU affine (exactly sigmoid); avoids any VPU divide.
        return 0.5 * jnp.tanh(0.5 * x) + 0.5

    def dot(a, b):
        return jnp.dot(a, b, preferred_element_type=jnp.float32)

    h1, c1 = h0_ref[0], c0_ref[0]
    h2, c2 = h0_ref[1], c0_ref[1]

    # ---- Fully-unrolled serial recurrence (T is a small static constant).
    h2_steps = []
    for t in range(T):
        lo = t * B                     # sublane slice at a multiple of 8: free

        # Layer 1: 4 independent per-gate recurrent dots; results lane-aligned.
        gi = gx_i[lo:lo + B] + dot(h1, w1[0])
        gf = gx_f[lo:lo + B] + dot(h1, w1[1])
        gg = gx_g[lo:lo + B] + dot(h1, w1[2])
        go = gx_o[lo:lo + B] + dot(h1, w1[3])
        c1 = sig(gf) * c1 + sig(gi) * jnp.tanh(gg)
        h1 = sig(go) * jnp.tanh(c1)

        # Layer 2: no lane concat — per-gate (input + recurrent) dot pairs.
        # TODO(synk): inter-layer dropout (train mode) intentionally omitted.
        gi = b2[0] + dot(h1, wi2[0]) + dot(h2, wh2[0])
        gf = b2[1] + dot(h1, wi2[1]) + dot(h2, wh2[1])
        gg = b2[2] + dot(h1, wi2[2]) + dot(h2, wh2[2])
        go = b2[3] + dot(h1, wi2[3]) + dot(h2, wh2[3])
        c2 = sig(gf) * c2 + sig(gi) * jnp.tanh(gg)
        h2 = sig(go) * jnp.tanh(c2)

        h2_steps.append(h2)            # register-resident, no scratch store

    # ---- Hoisted output projection: sublane-stack the per-step h2 tiles
    # (cheap vreg grouping), one matmul, one unmasked 128-lane store.
    hseq = jnp.concatenate(h2_steps, axis=0)                  # (T*B, H)
    out_ref[...] = (jnp.dot(hseq, wout_ref[...],
                            preferred_element_type=jnp.float32)
                    + bout_ref[...])

    hn_ref[0] = h1
    hn_ref[1] = h2
    cn_ref[0] = c1
    cn_ref[1] = c2


def init_params(key):
    """Deterministic PyTorch-like init: U(-1/sqrt(H), 1/sqrt(H)).

    Stored transposed relative to PyTorch (so math is x @ W), in the original
    PyTorch gate order (i, f, g, o). Kernel-layout params are derived from
    these by `prepare_kernel_params`.
    """
    k = 1.0 / jnp.sqrt(jnp.float32(HIDDEN_SIZE))
    keys = jax.random.split(key, 12)

    def u(kk, shape):
        return jax.random.uniform(kk, shape, jnp.float32, -k, k)

    wih1 = u(keys[0], (INPUT_SIZE, 4 * HIDDEN_SIZE))
    whh1 = u(keys[1], (HIDDEN_SIZE, 4 * HIDDEN_SIZE))
    b1 = u(keys[2], (4 * HIDDEN_SIZE,)) + u(keys[3], (4 * HIDDEN_SIZE,))
    wih2 = u(keys[4], (HIDDEN_SIZE, 4 * HIDDEN_SIZE))
    whh2 = u(keys[5], (HIDDEN_SIZE, 4 * HIDDEN_SIZE))
    b2 = u(keys[6], (4 * HIDDEN_SIZE,)) + u(keys[7], (4 * HIDDEN_SIZE,))
    wout = u(keys[8], (HIDDEN_SIZE, NUM_CLASSES))
    bout = u(keys[9], (NUM_CLASSES,))
    return dict(
        wih1=wih1, whh1=whh1, b1=b1.reshape(1, -1),
        wih2=wih2, whh2=whh2, b2=b2.reshape(1, -1),
        wout=wout, bout=bout.reshape(1, -1),
    )


def prepare_kernel_params(p):
    """Split every gate into its own lane-aligned (in, H) block, split the
    layer-1 input weight into one-hot rows + answer row, and lane-pad the
    output projection to 128 columns."""
    H = HIDDEN_SIZE

    def per_gate(w):  # (R, 4H) -> (4, R, H), PyTorch gate order (i, f, g, o)
        return jnp.stack([w[:, g * H:(g + 1) * H] for g in range(4)], axis=0)

    wih1 = per_gate(p["wih1"])                       # (4, C+1, H)
    wout_pad = jnp.zeros((H, OUT_PAD), jnp.float32).at[:, :NUM_CLASSES].set(p["wout"])
    bout_pad = jnp.zeros((1, OUT_PAD), jnp.float32).at[:, :NUM_CLASSES].set(p["bout"])
    return dict(
        wih1q=wih1[:, :NUM_CLASSES, :],              # (4, C, H)
        wih1a=wih1[:, NUM_CLASSES:, :],              # (4, 1, H) answer column
        b1=per_gate(p["b1"]),                        # (4, 1, H)
        whh1=per_gate(p["whh1"]),                    # (4, H, H)
        wih2=per_gate(p["wih2"]),                    # (4, H, H)
        whh2=per_gate(p["whh2"]),                    # (4, H, H)
        b2=per_gate(p["b2"]),                        # (4, 1, H)
        wout=wout_pad, bout=bout_pad,
    )


@jax.jit
def model_forward(questions, answers, kparams, hidden):
    h0, c0 = hidden
    # Only tiny (B,T) arrays are reshaped/transposed on the wrapper side.
    q_flat = jnp.transpose(questions).reshape(SEQ_LEN * BATCH_SIZE, 1).astype(jnp.int32)
    a_flat = jnp.transpose(answers).astype(jnp.float32).reshape(SEQ_LEN * BATCH_SIZE, 1)

    out_flat, hn, cn = pl.pallas_call(
        dkt_lstm_kernel,
        out_shape=(
            jax.ShapeDtypeStruct((SEQ_LEN * BATCH_SIZE, OUT_PAD), jnp.float32),
            jax.ShapeDtypeStruct((NUM_LAYERS, BATCH_SIZE, HIDDEN_SIZE), jnp.float32),
            jax.ShapeDtypeStruct((NUM_LAYERS, BATCH_SIZE, HIDDEN_SIZE), jnp.float32),
        ),
        in_specs=[pl.BlockSpec(memory_space=pltpu.MemorySpace.VMEM)] * 13,
        out_specs=(pl.BlockSpec(memory_space=pltpu.MemorySpace.VMEM),) * 3,
    )(q_flat, a_flat,
      kparams["wih1q"], kparams["wih1a"], kparams["b1"],
      kparams["whh1"], kparams["wih2"], kparams["whh2"], kparams["b2"],
      kparams["wout"], kparams["bout"],
      h0, c0)

    out = out_flat[:, :NUM_CLASSES].reshape(SEQ_LEN, BATCH_SIZE, NUM_CLASSES)
    return jnp.transpose(out, (1, 0, 2)), (hn, cn)


def reference_forward(questions, answers, params, hidden):
    """Pure-JAX reference (same eval-mode LSTM math, original gate order)."""
    h0, c0 = hidden
    onehot = jax.nn.one_hot(questions, NUM_CLASSES, dtype=jnp.float32)
    x = jnp.concatenate([onehot, answers.astype(jnp.float32)[..., None]], axis=2)
    H = HIDDEN_SIZE

    def cell(x_t, h, c, wih, whh, b):
        g = x_t @ wih + h @ whh + b
        i = jax.nn.sigmoid(g[:, :H])
        f = jax.nn.sigmoid(g[:, H:2 * H])
        gg = jnp.tanh(g[:, 2 * H:3 * H])
        o = jax.nn.sigmoid(g[:, 3 * H:])
        c = f * c + i * gg
        return o * jnp.tanh(c), c

    def step(carry, x_t):
        h1, c1, h2, c2 = carry
        h1, c1 = cell(x_t, h1, c1, params["wih1"], params["whh1"], params["b1"])
        h2, c2 = cell(h1, h2, c2, params["wih2"], params["whh2"], params["b2"])
        out_t = h2 @ params["wout"] + params["bout"]
        return (h1, c1, h2, c2), out_t

    (h1, c1, h2, c2), out = lax.scan(step, (h0[0], c0[0], h0[1], c0[1]),
                                     jnp.transpose(x, (1, 0, 2)))
    return (jnp.transpose(out, (1, 0, 2)),
            (jnp.stack([h1, h2]), jnp.stack([c1, c2])))


if __name__ == "__main__":
    key = jax.random.PRNGKey(0)
    k_params, k_q, k_a = jax.random.split(key, 3)

    params = init_params(k_params)
    kparams = prepare_kernel_params(params)
    questions = jax.random.randint(k_q, (BATCH_SIZE, SEQ_LEN), 0, NUM_CLASSES,
                                   dtype=jnp.int32)
    answers = jax.random.bernoulli(k_a, 0.5, (BATCH_SIZE, SEQ_LEN)).astype(jnp.float32)
    hidden = (jnp.zeros((NUM_LAYERS, BATCH_SIZE, HIDDEN_SIZE), jnp.float32),
              jnp.zeros((NUM_LAYERS, BATCH_SIZE, HIDDEN_SIZE), jnp.float32))

    out, (hn, cn) = model_forward(questions, answers, kparams, hidden)
    jax.block_until_ready(out)
    jax.block_until_ready(hn)
    jax.block_until_ready(cn)

    out_ref, (hn_ref, cn_ref) = reference_forward(questions, answers, params, hidden)
    assert out.shape == (BATCH_SIZE, SEQ_LEN, NUM_CLASSES)
    assert hn.shape == (NUM_LAYERS, BATCH_SIZE, HIDDEN_SIZE)
    assert cn.shape == (NUM_LAYERS, BATCH_SIZE, HIDDEN_SIZE)
    assert jnp.allclose(out, out_ref, atol=1e-5, rtol=1e-5)
    assert jnp.allclose(hn, hn_ref, atol=1e-5, rtol=1e-5)
    assert jnp.allclose(cn, cn_ref, atol=1e-5, rtol=1e-5)

    print("KERNEL_OK")
</pallas_src>

<mosaic_0001>
module attributes {stable_mosaic.version = 11 : i64} {
  func.func @dkt_lstm_kernel(%arg0: memref<64x1xi32, #tpu.memory_space<vmem>>, %arg1: memref<64x1xf32, #tpu.memory_space<vmem>>, %arg2: memref<4x20x16xf32, #tpu.memory_space<vmem>>, %arg3: memref<4x1x16xf32, #tpu.memory_space<vmem>>, %arg4: memref<4x1x16xf32, #tpu.memory_space<vmem>>, %arg5: memref<4x16x16xf32, #tpu.memory_space<vmem>>, %arg6: memref<4x16x16xf32, #tpu.memory_space<vmem>>, %arg7: memref<4x16x16xf32, #tpu.memory_space<vmem>>, %arg8: memref<4x1x16xf32, #tpu.memory_space<vmem>>, %arg9: memref<16x128xf32, #tpu.memory_space<vmem>>, %arg10: memref<1x128xf32, #tpu.memory_space<vmem>>, %arg11: memref<2x8x16xf32, #tpu.memory_space<vmem>>, %arg12: memref<2x8x16xf32, #tpu.memory_space<vmem>>, %arg13: memref<64x128xf32, #tpu.memory_space<vmem>>, %arg14: memref<2x8x16xf32, #tpu.memory_space<vmem>>, %arg15: memref<2x8x16xf32, #tpu.memory_space<vmem>>) attributes {dimension_semantics = [], scalar_prefetch = 0 : i64, scratch_operands = 0 : i64, tpu.core_type = #tpu.core_type<tc>} {
    %c0 = arith.constant 0 : index
    %c0_0 = arith.constant 0 : index
    %0 = vector.load %arg0[%c0, %c0_0] : memref<64x1xi32, #tpu.memory_space<vmem>>, vector<64x1xi32>
    %c0_1 = arith.constant 0 : index
    %c0_2 = arith.constant 0 : index
    %1 = vector.load %arg1[%c0_1, %c0_2] : memref<64x1xf32, #tpu.memory_space<vmem>>, vector<64x1xf32>
    %2 = tpu.iota {dimensions = array<i32: 1>} : vector<64x20xi32>
    %3 = vector.broadcast %0 : vector<64x1xi32> to vector<64x20xi32>
    %4 = arith.cmpi eq, %2, %3 : vector<64x20xi32>
    %5 = arith.extui %4 : vector<64x20xi1> to vector<64x20xi32>
    %6 = arith.sitofp %5 : vector<64x20xi32> to vector<64x20xf32>
    %c0_3 = arith.constant 0 : index
    %c0_4 = arith.constant 0 : index
    %c0_5 = arith.constant 0 : index
    %7 = vector.load %arg2[%c0_3, %c0_4, %c0_5] : memref<4x20x16xf32, #tpu.memory_space<vmem>>, vector<1x20x16xf32>
    %8 = vector.shape_cast %7 : vector<1x20x16xf32> to vector<20x16xf32>
    %cst = arith.constant dense<0.000000e+00> : vector<64x16xf32>
    %9 = tpu.matmul %6, %8, %cst {dimension_numbers = #tpu.dot_dimension_numbers<[1], [0], [0], [1], [0, 0, 1, 1], [], []>} : vector<64x20xf32>, vector<20x16xf32>, vector<64x16xf32> -> vector<64x16xf32>
    %c0_6 = arith.constant 0 : index
    %c0_7 = arith.constant 0 : index
    %c0_8 = arith.constant 0 : index
    %10 = vector.load %arg3[%c0_6, %c0_7, %c0_8] : memref<4x1x16xf32, #tpu.memory_space<vmem>>, vector<1x1x16xf32>
    %11 = vector.shape_cast %10 : vector<1x1x16xf32> to vector<1x16xf32>
    %12 = vector.broadcast %1 : vector<64x1xf32> to vector<64x16xf32>
    %13 = vector.broadcast %11 : vector<1x16xf32> to vector<64x16xf32>
    %14 = arith.mulf %12, %13 : vector<64x16xf32>
    %15 = arith.addf %9, %14 : vector<64x16xf32>
    %c0_9 = arith.constant 0 : index
    %c0_10 = arith.constant 0 : index
    %c0_11 = arith.constant 0 : index
    %16 = vector.load %arg4[%c0_9, %c0_10, %c0_11] : memref<4x1x16xf32, #tpu.memory_space<vmem>>, vector<1x1x16xf32>
    %17 = vector.shape_cast %16 : vector<1x1x16xf32> to vector<1x16xf32>
    %18 = vector.broadcast %17 : vector<1x16xf32> to vector<64x16xf32>
    %19 = arith.addf %15, %18 : vector<64x16xf32>
    %c1 = arith.constant 1 : index
    %c0_12 = arith.constant 0 : index
    %c0_13 = arith.constant 0 : index
    %20 = vector.load %arg2[%c1, %c0_12, %c0_13] : memref<4x20x16xf32, #tpu.memory_space<vmem>>, vector<1x20x16xf32>
    %21 = vector.shape_cast %20 : vector<1x20x16xf32> to vector<20x16xf32>
    %cst_14 = arith.constant dense<0.000000e+00> : vector<64x16xf32>
    %22 = tpu.matmul %6, %21, %cst_14 {dimension_numbers = #tpu.dot_dimension_numbers<[1], [0], [0], [1], [0, 0, 1, 1], [], []>} : vector<64x20xf32>, vector<20x16xf32>, vector<64x16xf32> -> vector<64x16xf32>
    %c1_15 = arith.constant 1 : index
    %c0_16 = arith.constant 0 : index
    %c0_17 = arith.constant 0 : index
    %23 = vector.load %arg3[%c1_15, %c0_16, %c0_17] : memref<4x1x16xf32, #tpu.memory_space<vmem>>, vector<1x1x16xf32>
    %24 = vector.shape_cast %23 : vector<1x1x16xf32> to vector<1x16xf32>
    %25 = vector.broadcast %1 : vector<64x1xf32> to vector<64x16xf32>
    %26 = vector.broadcast %24 : vector<1x16xf32> to vector<64x16xf32>
    %27 = arith.mulf %25, %26 : vector<64x16xf32>
    %28 = arith.addf %22, %27 : vector<64x16xf32>
    %c1_18 = arith.constant 1 : index
    %c0_19 = arith.constant 0 : index
    %c0_20 = arith.constant 0 : index
    %29 = vector.load %arg4[%c1_18, %c0_19, %c0_20] : memref<4x1x16xf32, #tpu.memory_space<vmem>>, vector<1x1x16xf32>
    %30 = vector.shape_cast %29 : vector<1x1x16xf32> to vector<1x16xf32>
    %31 = vector.broadcast %30 : vector<1x16xf32> to vector<64x16xf32>
    %32 = arith.addf %28, %31 : vector<64x16xf32>
    %c2 = arith.constant 2 : index
    %c0_21 = arith.constant 0 : index
    %c0_22 = arith.constant 0 : index
    %33 = vector.load %arg2[%c2, %c0_21, %c0_22] : memref<4x20x16xf32, #tpu.memory_space<vmem>>, vector<1x20x16xf32>
    %34 = vector.shape_cast %33 : vector<1x20x16xf32> to vector<20x16xf32>
    %cst_23 = arith.constant dense<0.000000e+00> : vector<64x16xf32>
    %35 = tpu.matmul %6, %34, %cst_23 {dimension_numbers = #tpu.dot_dimension_numbers<[1], [0], [0], [1], [0, 0, 1, 1], [], []>} : vector<64x20xf32>, vector<20x16xf32>, vector<64x16xf32> -> vector<64x16xf32>
    %c2_24 = arith.constant 2 : index
    %c0_25 = arith.constant 0 : index
    %c0_26 = arith.constant 0 : index
    %36 = vector.load %arg3[%c2_24, %c0_25, %c0_26] : memref<4x1x16xf32, #tpu.memory_space<vmem>>, vector<1x1x16xf32>
    %37 = vector.shape_cast %36 : vector<1x1x16xf32> to vector<1x16xf32>
    %38 = vector.broadcast %1 : vector<64x1xf32> to vector<64x16xf32>
    %39 = vector.broadcast %37 : vector<1x16xf32> to vector<64x16xf32>
    %40 = arith.mulf %38, %39 : vector<64x16xf32>
    %41 = arith.addf %35, %40 : vector<64x16xf32>
    %c2_27 = arith.constant 2 : index
    %c0_28 = arith.constant 0 : index
    %c0_29 = arith.constant 0 : index
    %42 = vector.load %arg4[%c2_27, %c0_28, %c0_29] : memref<4x1x16xf32, #tpu.memory_space<vmem>>, vector<1x1x16xf32>
    %43 = vector.shape_cast %42 : vector<1x1x16xf32> to vector<1x16xf32>
    %44 = vector.broadcast %43 : vector<1x16xf32> to vector<64x16xf32>
    %45 = arith.addf %41, %44 : vector<64x16xf32>
    %c3 = arith.constant 3 : index
    %c0_30 = arith.constant 0 : index
    %c0_31 = arith.constant 0 : index
    %46 = vector.load %arg2[%c3, %c0_30, %c0_31] : memref<4x20x16xf32, #tpu.memory_space<vmem>>, vector<1x20x16xf32>
    %47 = vector.shape_cast %46 : vector<1x20x16xf32> to vector<20x16xf32>
    %cst_32 = arith.constant dense<0.000000e+00> : vector<64x16xf32>
    %48 = tpu.matmul %6, %47, %cst_32 {dimension_numbers = #tpu.dot_dimension_numbers<[1], [0], [0], [1], [0, 0, 1, 1], [], []>} : vector<64x20xf32>, vector<20x16xf32>, vector<64x16xf32> -> vector<64x16xf32>
    %c3_33 = arith.constant 3 : index
    %c0_34 = arith.constant 0 : index
    %c0_35 = arith.constant 0 : index
    %49 = vector.load %arg3[%c3_33, %c0_34, %c0_35] : memref<4x1x16xf32, #tpu.memory_space<vmem>>, vector<1x1x16xf32>
    %50 = vector.shape_cast %49 : vector<1x1x16xf32> to vector<1x16xf32>
    %51 = vector.broadcast %1 : vector<64x1xf32> to vector<64x16xf32>
    %52 = vector.broadcast %50 : vector<1x16xf32> to vector<64x16xf32>
    %53 = arith.mulf %51, %52 : vector<64x16xf32>
    %54 = arith.addf %48, %53 : vector<64x16xf32>
    %c3_36 = arith.constant 3 : index
    %c0_37 = arith.constant 0 : index
    %c0_38 = arith.constant 0 : index
    %55 = vector.load %arg4[%c3_36, %c0_37, %c0_38] : memref<4x1x16xf32, #tpu.memory_space<vmem>>, vector<1x1x16xf32>
    %56 = vector.shape_cast %55 : vector<1x1x16xf32> to vector<1x16xf32>
    %57 = vector.broadcast %56 : vector<1x16xf32> to vector<64x16xf32>
    %58 = arith.addf %54, %57 : vector<64x16xf32>
    %c0_39 = arith.constant 0 : index
    %c0_40 = arith.constant 0 : index
    %c0_41 = arith.constant 0 : index
    %59 = vector.load %arg5[%c0_39, %c0_40, %c0_41] : memref<4x16x16xf32, #tpu.memory_space<vmem>>, vector<1x16x16xf32>
    %60 = vector.shape_cast %59 : vector<1x16x16xf32> to vector<16x16xf32>
    %c1_42 = arith.constant 1 : index
    %c0_43 = arith.constant 0 : index
    %c0_44 = arith.constant 0 : index
    %61 = vector.load %arg5[%c1_42, %c0_43, %c0_44] : memref<4x16x16xf32, #tpu.memory_space<vmem>>, vector<1x16x16xf32>
    %62 = vector.shape_cast %61 : vector<1x16x16xf32> to vector<16x16xf32>
    %c2_45 = arith.constant 2 : index
    %c0_46 = arith.constant 0 : index
    %c0_47 = arith.constant 0 : index
    %63 = vector.load %arg5[%c2_45, %c0_46, %c0_47] : memref<4x16x16xf32, #tpu.memory_space<vmem>>, vector<1x16x16xf32>
    %64 = vector.shape_cast %63 : vector<1x16x16xf32> to vector<16x16xf32>
    %c3_48 = arith.constant 3 : index
    %c0_49 = arith.constant 0 : index
    %c0_50 = arith.constant 0 : index
    %65 = vector.load %arg5[%c3_48, %c0_49, %c0_50] : memref<4x16x16xf32, #tpu.memory_space<vmem>>, vector<1x16x16xf32>
    %66 = vector.shape_cast %65 : vector<1x16x16xf32> to vector<16x16xf32>
    %c0_51 = arith.constant 0 : index
    %c0_52 = arith.constant 0 : index
    %c0_53 = arith.constant 0 : index
    %67 = vector.load %arg6[%c0_51, %c0_52, %c0_53] : memref<4x16x16xf32, #tpu.memory_space<vmem>>, vector<1x16x16xf32>
    %68 = vector.shape_cast %67 : vector<1x16x16xf32> to vector<16x16xf32>
    %c1_54 = arith.constant 1 : index
    %c0_55 = arith.constant 0 : index
    %c0_56 = arith.constant 0 : index
    %69 = vector.load %arg6[%c1_54, %c0_55, %c0_56] : memref<4x16x16xf32, #tpu.memory_space<vmem>>, vector<1x16x16xf32>
    %70 = vector.shape_cast %69 : vector<1x16x16xf32> to vector<16x16xf32>
    %c2_57 = arith.constant 2 : index
    %c0_58 = arith.constant 0 : index
    %c0_59 = arith.constant 0 : index
    %71 = vector.load %arg6[%c2_57, %c0_58, %c0_59] : memref<4x16x16xf32, #tpu.memory_space<vmem>>, vector<1x16x16xf32>
    %72 = vector.shape_cast %71 : vector<1x16x16xf32> to vector<16x16xf32>
    %c3_60 = arith.constant 3 : index
    %c0_61 = arith.constant 0 : index
    %c0_62 = arith.constant 0 : index
    %73 = vector.load %arg6[%c3_60, %c0_61, %c0_62] : memref<4x16x16xf32, #tpu.memory_space<vmem>>, vector<1x16x16xf32>
    %74 = vector.shape_cast %73 : vector<1x16x16xf32> to vector<16x16xf32>
    %c0_63 = arith.constant 0 : index
    %c0_64 = arith.constant 0 : index
    %c0_65 = arith.constant 0 : index
    %75 = vector.load %arg7[%c0_63, %c0_64, %c0_65] : memref<4x16x16xf32, #tpu.memory_space<vmem>>, vector<1x16x16xf32>
    %76 = vector.shape_cast %75 : vector<1x16x16xf32> to vector<16x16xf32>
    %c1_66 = arith.constant 1 : index
    %c0_67 = arith.constant 0 : index
    %c0_68 = arith.constant 0 : index
    %77 = vector.load %arg7[%c1_66, %c0_67, %c0_68] : memref<4x16x16xf32, #tpu.memory_space<vmem>>, vector<1x16x16xf32>
    %78 = vector.shape_cast %77 : vector<1x16x16xf32> to vector<16x16xf32>
    %c2_69 = arith.constant 2 : index
    %c0_70 = arith.constant 0 : index
    %c0_71 = arith.constant 0 : index
    %79 = vector.load %arg7[%c2_69, %c0_70, %c0_71] : memref<4x16x16xf32, #tpu.memory_space<vmem>>, vector<1x16x16xf32>
    %80 = vector.shape_cast %79 : vector<1x16x16xf32> to vector<16x16xf32>
    %c3_72 = arith.constant 3 : index
    %c0_73 = arith.constant 0 : index
    %c0_74 = arith.constant 0 : index
    %81 = vector.load %arg7[%c3_72, %c0_73, %c0_74] : memref<4x16x16xf32, #tpu.memory_space<vmem>>, vector<1x16x16xf32>
    %82 = vector.shape_cast %81 : vector<1x16x16xf32> to vector<16x16xf32>
    %c0_75 = arith.constant 0 : index
    %c0_76 = arith.constant 0 : index
    %c0_77 = arith.constant 0 : index
    %83 = vector.load %arg8[%c0_75, %c0_76, %c0_77] : memref<4x1x16xf32, #tpu.memory_space<vmem>>, vector<1x1x16xf32>
    %84 = vector.shape_cast %83 : vector<1x1x16xf32> to vector<1x16xf32>
    %c1_78 = arith.constant 1 : index
    %c0_79 = arith.constant 0 : index
    %c0_80 = arith.constant 0 : index
    %85 = vector.load %arg8[%c1_78, %c0_79, %c0_80] : memref<4x1x16xf32, #tpu.memory_space<vmem>>, vector<1x1x16xf32>
    %86 = vector.shape_cast %85 : vector<1x1x16xf32> to vector<1x16xf32>
    %c2_81 = arith.constant 2 : index
    %c0_82 = arith.constant 0 : index
    %c0_83 = arith.constant 0 : index
    %87 = vector.load %arg8[%c2_81, %c0_82, %c0_83] : memref<4x1x16xf32, #tpu.memory_space<vmem>>, vector<1x1x16xf32>
    %88 = vector.shape_cast %87 : vector<1x1x16xf32> to vector<1x16xf32>
    %c3_84 = arith.constant 3 : index
    %c0_85 = arith.constant 0 : index
    %c0_86 = arith.constant 0 : index
    %89 = vector.load %arg8[%c3_84, %c0_85, %c0_86] : memref<4x1x16xf32, #tpu.memory_space<vmem>>, vector<1x1x16xf32>
    %90 = vector.shape_cast %89 : vector<1x1x16xf32> to vector<1x16xf32>
    %c0_87 = arith.constant 0 : index
    %c0_88 = arith.constant 0 : index
    %c0_89 = arith.constant 0 : index
    %91 = vector.load %arg11[%c0_87, %c0_88, %c0_89] : memref<2x8x16xf32, #tpu.memory_space<vmem>>, vector<1x8x16xf32>
    %92 = vector.shape_cast %91 : vector<1x8x16xf32> to vector<8x16xf32>
    %c0_90 = arith.constant 0 : index
    %c0_91 = arith.constant 0 : index
    %c0_92 = arith.constant 0 : index
    %93 = vector.load %arg12[%c0_90, %c0_91, %c0_92] : memref<2x8x16xf32, #tpu.memory_space<vmem>>, vector<1x8x16xf32>
    %94 = vector.shape_cast %93 : vector<1x8x16xf32> to vector<8x16xf32>
    %c1_93 = arith.constant 1 : index
    %c0_94 = arith.constant 0 : index
    %c0_95 = arith.constant 0 : index
    %95 = vector.load %arg11[%c1_93, %c0_94, %c0_95] : memref<2x8x16xf32, #tpu.memory_space<vmem>>, vector<1x8x16xf32>
    %96 = vector.shape_cast %95 : vector<1x8x16xf32> to vector<8x16xf32>
    %c1_96 = arith.constant 1 : index
    %c0_97 = arith.constant 0 : index
    %c0_98 = arith.constant 0 : index
    %97 = vector.load %arg12[%c1_96, %c0_97, %c0_98] : memref<2x8x16xf32, #tpu.memory_space<vmem>>, vector<1x8x16xf32>
    %98 = vector.shape_cast %97 : vector<1x8x16xf32> to vector<8x16xf32>
    %99 = vector.extract_strided_slice %19 {offsets = [0, 0], sizes = [8, 16], strides = [1, 1]} : vector<64x16xf32> to vector<8x16xf32>
    %cst_99 = arith.constant dense<0.000000e+00> : vector<8x16xf32>
    %100 = tpu.matmul %92, %60, %cst_99 {dimension_numbers = #tpu.dot_dimension_numbers<[1], [0], [0], [1], [0, 0, 1, 1], [], []>} : vector<8x16xf32>, vector<16x16xf32>, vector<8x16xf32> -> vector<8x16xf32>
    %101 = arith.addf %99, %100 : vector<8x16xf32>
    %102 = vector.extract_strided_slice %32 {offsets = [0, 0], sizes = [8, 16], strides = [1, 1]} : vector<64x16xf32> to vector<8x16xf32>
    %cst_100 = arith.constant dense<0.000000e+00> : vector<8x16xf32>
    %103 = tpu.matmul %92, %62, %cst_100 {dimension_numbers = #tpu.dot_dimension_numbers<[1], [0], [0], [1], [0, 0, 1, 1], [], []>} : vector<8x16xf32>, vector<16x16xf32>, vector<8x16xf32> -> vector<8x16xf32>
    %104 = arith.addf %102, %103 : vector<8x16xf32>
    %105 = vector.extract_strided_slice %45 {offsets = [0, 0], sizes = [8, 16], strides = [1, 1]} : vector<64x16xf32> to vector<8x16xf32>
    %cst_101 = arith.constant dense<0.000000e+00> : vector<8x16xf32>
    %106 = tpu.matmul %92, %64, %cst_101 {dimension_numbers = #tpu.dot_dimension_numbers<[1], [0], [0], [1], [0, 0, 1, 1], [], []>} : vector<8x16xf32>, vector<16x16xf32>, vector<8x16xf32> -> vector<8x16xf32>
    %107 = arith.addf %105, %106 : vector<8x16xf32>
    %108 = vector.extract_strided_slice %58 {offsets = [0, 0], sizes = [8, 16], strides = [1, 1]} : vector<64x16xf32> to vector<8x16xf32>
    %cst_102 = arith.constant dense<0.000000e+00> : vector<8x16xf32>
    %109 = tpu.matmul %92, %66, %cst_102 {dimension_numbers = #tpu.dot_dimension_numbers<[1], [0], [0], [1], [0, 0, 1, 1], [], []>} : vector<8x16xf32>, vector<16x16xf32>, vector<8x16xf32> -> vector<8x16xf32>
    %110 = arith.addf %108, %109 : vector<8x16xf32>
    %cst_103 = arith.constant 5.000000e-01 : f32
    %111 = vector.broadcast %cst_103 : f32 to vector<8x16xf32>
    %112 = arith.mulf %111, %104 : vector<8x16xf32>
    %113 = math.tanh %112 : vector<8x16xf32>
    %cst_104 = arith.constant 5.000000e-01 : f32
    %114 = vector.broadcast %cst_104 : f32 to vector<8x16xf32>
    %115 = arith.mulf %114, %113 : vector<8x16xf32>
    %cst_105 = arith.constant 5.000000e-01 : f32
    %116 = vector.broadcast %cst_105 : f32 to vector<8x16xf32>
    %117 = arith.addf %115, %116 : vector<8x16xf32>
    %118 = arith.mulf %117, %94 : vector<8x16xf32>
    %cst_106 = arith.constant 5.000000e-01 : f32
    %119 = vector.broadcast %cst_106 : f32 to vector<8x16xf32>
    %120 = arith.mulf %119, %101 : vector<8x16xf32>
    %121 = math.tanh %120 : vector<8x16xf32>
    %cst_107 = arith.constant 5.000000e-01 : f32
    %122 = vector.broadcast %cst_107 : f32 to vector<8x16xf32>
    %123 = arith.mulf %122, %121 : vector<8x16xf32>
    %cst_108 = arith.constant 5.000000e-01 : f32
    %124 = vector.broadcast %cst_108 : f32 to vector<8x16xf32>
    %125 = arith.addf %123, %124 : vector<8x16xf32>
    %126 = math.tanh %107 : vector<8x16xf32>
    %127 = arith.mulf %125, %126 : vector<8x16xf32>
    %128 = arith.addf %118, %127 : vector<8x16xf32>
    %cst_109 = arith.constant 5.000000e-01 : f32
    %129 = vector.broadcast %cst_109 : f32 to vector<8x16xf32>
    %130 = arith.mulf %129, %110 : vector<8x16xf32>
    %131 = math.tanh %130 : vector<8x16xf32>
    %cst_110 = arith.constant 5.000000e-01 : f32
    %132 = vector.broadcast %cst_110 : f32 to vector<8x16xf32>
    %133 = arith.mulf %132, %131 : vector<8x16xf32>
    %cst_111 = arith.constant 5.000000e-01 : f32
    %134 = vector.broadcast %cst_111 : f32 to vector<8x16xf32>
    %135 = arith.addf %133, %134 : vector<8x16xf32>
    %136 = math.tanh %128 : vector<8x16xf32>
    %137 = arith.mulf %135, %136 : vector<8x16xf32>
    %cst_112 = arith.constant dense<0.000000e+00> : vector<8x16xf32>
    %138 = tpu.matmul %137, %68, %cst_112 {dimension_numbers = #tpu.dot_dimension_numbers<[1], [0], [0], [1], [0, 0, 1, 1], [], []>} : vector<8x16xf32>, vector<16x16xf32>, vector<8x16xf32> -> vector<8x16xf32>
    %139 = vector.broadcast %84 : vector<1x16xf32> to vector<8x16xf32>
    %140 = arith.addf %139, %138 : vector<8x16xf32>
    %cst_113 = arith.constant dense<0.000000e+00> : vector<8x16xf32>
    %141 = tpu.matmul %96, %76, %cst_113 {dimension_numbers = #tpu.dot_dimension_numbers<[1], [0], [0], [1], [0, 0, 1, 1], [], []>} : vector<8x16xf32>, vector<16x16xf32>, vector<8x16xf32> -> vector<8x16xf32>
    %142 = arith.addf %140, %141 : vector<8x16xf32>
    %cst_114 = arith.constant dense<0.000000e+00> : vector<8x16xf32>
    %143 = tpu.matmul %137, %70, %cst_114 {dimension_numbers = #tpu.dot_dimension_numbers<[1], [0], [0], [1], [0, 0, 1, 1], [], []>} : vector<8x16xf32>, vector<16x16xf32>, vector<8x16xf32> -> vector<8x16xf32>
    %144 = vector.broadcast %86 : vector<1x16xf32> to vector<8x16xf32>
    %145 = arith.addf %144, %143 : vector<8x16xf32>
    %cst_115 = arith.constant dense<0.000000e+00> : vector<8x16xf32>
    %146 = tpu.matmul %96, %78, %cst_115 {dimension_numbers = #tpu.dot_dimension_numbers<[1], [0], [0], [1], [0, 0, 1, 1], [], []>} : vector<8x16xf32>, vector<16x16xf32>, vector<8x16xf32> -> vector<8x16xf32>
    %147 = arith.addf %145, %146 : vector<8x16xf32>
    %cst_116 = arith.constant dense<0.000000e+00> : vector<8x16xf32>
    %148 = tpu.matmul %137, %72, %cst_116 {dimension_numbers = #tpu.dot_dimension_numbers<[1], [0], [0], [1], [0, 0, 1, 1], [], []>} : vector<8x16xf32>, vector<16x16xf32>, vector<8x16xf32> -> vector<8x16xf32>
    %149 = vector.broadcast %88 : vector<1x16xf32> to vector<8x16xf32>
    %150 = arith.addf %149, %148 : vector<8x16xf32>
    %cst_117 = arith.constant dense<0.000000e+00> : vector<8x16xf32>
    %151 = tpu.matmul %96, %80, %cst_117 {dimension_numbers = #tpu.dot_dimension_numbers<[1], [0], [0], [1], [0, 0, 1, 1], [], []>} : vector<8x16xf32>, vector<16x16xf32>, vector<8x16xf32> -> vector<8x16xf32>
    %152 = arith.addf %150, %151 : vector<8x16xf32>
    %cst_118 = arith.constant dense<0.000000e+00> : vector<8x16xf32>
    %153 = tpu.matmul %137, %74, %cst_118 {dimension_numbers = #tpu.dot_dimension_numbers<[1], [0], [0], [1], [0, 0, 1, 1], [], []>} : vector<8x16xf32>, vector<16x16xf32>, vector<8x16xf32> -> vector<8x16xf32>
    %154 = vector.broadcast %90 : vector<1x16xf32> to vector<8x16xf32>
    %155 = arith.addf %154, %153 : vector<8x16xf32>
    %cst_119 = arith.constant dense<0.000000e+00> : vector<8x16xf32>
    %156 = tpu.matmul %96, %82, %cst_119 {dimension_numbers = #tpu.dot_dimension_numbers<[1], [0], [0], [1], [0, 0, 1, 1], [], []>} : vector<8x16xf32>, vector<16x16xf32>, vector<8x16xf32> -> vector<8x16xf32>
    %157 = arith.addf %155, %156 : vector<8x16xf32>
    %cst_120 = arith.constant 5.000000e-01 : f32
    %158 = vector.broadcast %cst_120 : f32 to vector<8x16xf32>
    %159 = arith.mulf %158, %147 : vector<8x16xf32>
    %160 = math.tanh %159 : vector<8x16xf32>
    %cst_121 = arith.constant 5.000000e-01 : f32
    %161 = vector.broadcast %cst_121 : f32 to vector<8x16xf32>
    %162 = arith.mulf %161, %160 : vector<8x16xf32>
    %cst_122 = arith.constant 5.000000e-01 : f32
    %163 = vector.broadcast %cst_122 : f32 to vector<8x16xf32>
    %164 = arith.addf %162, %163 : vector<8x16xf32>
    %165 = arith.mulf %164, %98 : vector<8x16xf32>
    %cst_123 = arith.constant 5.000000e-01 : f32
    %166 = vector.broadcast %cst_123 : f32 to vector<8x16xf32>
    %167 = arith.mulf %166, %142 : vector<8x16xf32>
    %168 = math.tanh %167 : vector<8x16xf32>
    %cst_124 = arith.constant 5.000000e-01 : f32
    %169 = vector.broadcast %cst_124 : f32 to vector<8x16xf32>
    %170 = arith.mulf %169, %168 : vector<8x16xf32>
    %cst_125 = arith.constant 5.000000e-01 : f32
    %171 = vector.broadcast %cst_125 : f32 to vector<8x16xf32>
    %172 = arith.addf %170, %171 : vector<8x16xf32>
    %173 = math.tanh %152 : vector<8x16xf32>
    %174 = arith.mulf %172, %173 : vector<8x16xf32>
    %175 = arith.addf %165, %174 : vector<8x16xf32>
    %cst_126 = arith.constant 5.000000e-01 : f32
    %176 = vector.broadcast %cst_126 : f32 to vector<8x16xf32>
    %177 = arith.mulf %176, %157 : vector<8x16xf32>
    %178 = math.tanh %177 : vector<8x16xf32>
    %cst_127 = arith.constant 5.000000e-01 : f32
    %179 = vector.broadcast %cst_127 : f32 to vector<8x16xf32>
    %180 = arith.mulf %179, %178 : vector<8x16xf32>
    %cst_128 = arith.constant 5.000000e-01 : f32
    %181 = vector.broadcast %cst_128 : f32 to vector<8x16xf32>
    %182 = arith.addf %180, %181 : vector<8x16xf32>
    %183 = math.tanh %175 : vector<8x16xf32>
    %184 = arith.mulf %182, %183 : vector<8x16xf32>
    %185 = vector.extract_strided_slice %19 {offsets = [8, 0], sizes = [8, 16], strides = [1, 1]} : vector<64x16xf32> to vector<8x16xf32>
    %cst_129 = arith.constant dense<0.000000e+00> : vector<8x16xf32>
    %186 = tpu.matmul %137, %60, %cst_129 {dimension_numbers = #tpu.dot_dimension_numbers<[1], [0], [0], [1], [0, 0, 1, 1], [], []>} : vector<8x16xf32>, vector<16x16xf32>, vector<8x16xf32> -> vector<8x16xf32>
    %187 = arith.addf %185, %186 : vector<8x16xf32>
    %188 = vector.extract_strided_slice %32 {offsets = [8, 0], sizes = [8, 16], strides = [1, 1]} : vector<64x16xf32> to vector<8x16xf32>
    %cst_130 = arith.constant dense<0.000000e+00> : vector<8x16xf32>
    %189 = tpu.matmul %137, %62, %cst_130 {dimension_numbers = #tpu.dot_dimension_numbers<[1], [0], [0], [1], [0, 0, 1, 1], [], []>} : vector<8x16xf32>, vector<16x16xf32>, vector<8x16xf32> -> vector<8x16xf32>
    %190 = arith.addf %188, %189 : vector<8x16xf32>
    %191 = vector.extract_strided_slice %45 {offsets = [8, 0], sizes = [8, 16], strides = [1, 1]} : vector<64x16xf32> to vector<8x16xf32>
    %cst_131 = arith.constant dense<0.000000e+00> : vector<8x16xf32>
    %192 = tpu.matmul %137, %64, %cst_131 {dimension_numbers = #tpu.dot_dimension_numbers<[1], [0], [0], [1], [0, 0, 1, 1], [], []>} : vector<8x16xf32>, vector<16x16xf32>, vector<8x16xf32> -> vector<8x16xf32>
    %193 = arith.addf %191, %192 : vector<8x16xf32>
    %194 = vector.extract_strided_slice %58 {offsets = [8, 0], sizes = [8, 16], strides = [1, 1]} : vector<64x16xf32> to vector<8x16xf32>
    %cst_132 = arith.constant dense<0.000000e+00> : vector<8x16xf32>
    %195 = tpu.matmul %137, %66, %cst_132 {dimension_numbers = #tpu.dot_dimension_numbers<[1], [0], [0], [1], [0, 0, 1, 1], [], []>} : vector<8x16xf32>, vector<16x16xf32>, vector<8x16xf32> -> vector<8x16xf32>
    %196 = arith.addf %194, %195 : vector<8x16xf32>
    %cst_133 = arith.constant 5.000000e-01 : f32
    %197 = vector.broadcast %cst_133 : f32 to vector<8x16xf32>
    %198 = arith.mulf %197, %190 : vector<8x16xf32>
    %199 = math.tanh %198 : vector<8x16xf32>
    %cst_134 = arith.constant 5.000000e-01 : f32
    %200 = vector.broadcast %cst_134 : f32 to vector<8x16xf32>
    %201 = arith.mulf %200, %199 : vector<8x16xf32>
    %cst_135 = arith.constant 5.000000e-01 : f32
    %202 = vector.broadcast %cst_135 : f32 to vector<8x16xf32>
    %203 = arith.addf %201, %202 : vector<8x16xf32>
    %204 = arith.mulf %203, %128 : vector<8x16xf32>
    %cst_136 = arith.constant 5.000000e-01 : f32
    %205 = vector.broadcast %cst_136 : f32 to vector<8x16xf32>
    %206 = arith.mulf %205, %187 : vector<8x16xf32>
    %207 = math.tanh %206 : vector<8x16xf32>
    %cst_137 = arith.constant 5.000000e-01 : f32
    %208 = vector.broadcast %cst_137 : f32 to vector<8x16xf32>
    %209 = arith.mulf %208, %207 : vector<8x16xf32>
    %cst_138 = arith.constant 5.000000e-01 : f32
    %210 = vector.broadcast %cst_138 : f32 to vector<8x16xf32>
    %211 = arith.addf %209, %210 : vector<8x16xf32>
    %212 = math.tanh %193 : vector<8x16xf32>
    %213 = arith.mulf %211, %212 : vector<8x16xf32>
    %214 = arith.addf %204, %213 : vector<8x16xf32>
    %cst_139 = arith.constant 5.000000e-01 : f32
    %215 = vector.broadcast %cst_139 : f32 to vector<8x16xf32>
    %216 = arith.mulf %215, %196 : vector<8x16xf32>
    %217 = math.tanh %216 : vector<8x16xf32>
    %cst_140 = arith.constant 5.000000e-01 : f32
    %218 = vector.broadcast %cst_140 : f32 to vector<8x16xf32>
    %219 = arith.mulf %218, %217 : vector<8x16xf32>
    %cst_141 = arith.constant 5.000000e-01 : f32
    %220 = vector.broadcast %cst_141 : f32 to vector<8x16xf32>
    %221 = arith.addf %219, %220 : vector<8x16xf32>
    %222 = math.tanh %214 : vector<8x16xf32>
    %223 = arith.mulf %221, %222 : vector<8x16xf32>
    %cst_142 = arith.constant dense<0.000000e+00> : vector<8x16xf32>
    %224 = tpu.matmul %223, %68, %cst_142 {dimension_numbers = #tpu.dot_dimension_numbers<[1], [0], [0], [1], [0, 0, 1, 1], [], []>} : vector<8x16xf32>, vector<16x16xf32>, vector<8x16xf32> -> vector<8x16xf32>
    %225 = vector.broadcast %84 : vector<1x16xf32> to vector<8x16xf32>
    %226 = arith.addf %225, %224 : vector<8x16xf32>
    %cst_143 = arith.constant dense<0.000000e+00> : vector<8x16xf32>
    %227 = tpu.matmul %184, %76, %cst_143 {dimension_numbers = #tpu.dot_dimension_numbers<[1], [0], [0], [1], [0, 0, 1, 1], [], []>} : vector<8x16xf32>, vector<16x16xf32>, vector<8x16xf32> -> vector<8x16xf32>
    %228 = arith.addf %226, %227 : vector<8x16xf32>
    %cst_144 = arith.constant dense<0.000000e+00> : vector<8x16xf32>
    %229 = tpu.matmul %223, %70, %cst_144 {dimension_numbers = #tpu.dot_dimension_numbers<[1], [0], [0], [1], [0, 0, 1, 1], [], []>} : vector<8x16xf32>, vector<16x16xf32>, vector<8x16xf32> -> vector<8x16xf32>
    %230 = vector.broadcast %86 : vector<1x16xf32> to vector<8x16xf32>
    %231 = arith.addf %230, %229 : vector<8x16xf32>
    %cst_145 = arith.constant dense<0.000000e+00> : vector<8x16xf32>
    %232 = tpu.matmul %184, %78, %cst_145 {dimension_numbers = #tpu.dot_dimension_numbers<[1], [0], [0], [1], [0, 0, 1, 1], [], []>} : vector<8x16xf32>, vector<16x16xf32>, vector<8x16xf32> -> vector<8x16xf32>
    %233 = arith.addf %231, %232 : vector<8x16xf32>
    %cst_146 = arith.constant dense<0.000000e+00> : vector<8x16xf32>
    %234 = tpu.matmul %223, %72, %cst_146 {dimension_numbers = #tpu.dot_dimension_numbers<[1], [0], [0], [1], [0, 0, 1, 1], [], []>} : vector<8x16xf32>, vector<16x16xf32>, vector<8x16xf32> -> vector<8x16xf32>
    %235 = vector.broadcast %88 : vector<1x16xf32> to vector<8x16xf32>
    %236 = arith.addf %235, %234 : vector<8x16xf32>
    %cst_147 = arith.constant dense<0.000000e+00> : vector<8x16xf32>
    %237 = tpu.matmul %184, %80, %cst_147 {dimension_numbers = #tpu.dot_dimension_numbers<[1], [0], [0], [1], [0, 0, 1, 1], [], []>} : vector<8x16xf32>, vector<16x16xf32>, vector<8x16xf32> -> vector<8x16xf32>
    %238 = arith.addf %236, %237 : vector<8x16xf32>
    %cst_148 = arith.constant dense<0.000000e+00> : vector<8x16xf32>
    %239 = tpu.matmul %223, %74, %cst_148 {dimension_numbers = #tpu.dot_dimension_numbers<[1], [0], [0], [1], [0, 0, 1, 1], [], []>} : vector<8x16xf32>, vector<16x16xf32>, vector<8x16xf32> -> vector<8x16xf32>
    %240 = vector.broadcast %90 : vector<1x16xf32> to vector<8x16xf32>
    %241 = arith.addf %240, %239 : vector<8x16xf32>
    %cst_149 = arith.constant dense<0.000000e+00> : vector<8x16xf32>
    %242 = tpu.matmul %184, %82, %cst_149 {dimension_numbers = #tpu.dot_dimension_numbers<[1], [0], [0], [1], [0, 0, 1, 1], [], []>} : vector<8x16xf32>, vector<16x16xf32>, vector<8x16xf32> -> vector<8x16xf32>
    %243 = arith.addf %241, %242 : vector<8x16xf32>
    %cst_150 = arith.constant 5.000000e-01 : f32
    %244 = vector.broadcast %cst_150 : f32 to vector<8x16xf32>
    %245 = arith.mulf %244, %233 : vector<8x16xf32>
    %246 = math.tanh %245 : vector<8x16xf32>
    %cst_151 = arith.constant 5.000000e-01 : f32
    %247 = vector.broadcast %cst_151 : f32 to vector<8x16xf32>
    %248 = arith.mulf %247, %246 : vector<8x16xf32>
    %cst_152 = arith.constant 5.000000e-01 : f32
    %249 = vector.broadcast %cst_152 : f32 to vector<8x16xf32>
    %250 = arith.addf %248, %249 : vector<8x16xf32>
    %251 = arith.mulf %250, %175 : vector<8x16xf32>
    %cst_153 = arith.constant 5.000000e-01 : f32
    %252 = vector.broadcast %cst_153 : f32 to vector<8x16xf32>
    %253 = arith.mulf %252, %228 : vector<8x16xf32>
    %254 = math.tanh %253 : vector<8x16xf32>
    %cst_154 = arith.constant 5.000000e-01 : f32
    %255 = vector.broadcast %cst_154 : f32 to vector<8x16xf32>
    %256 = arith.mulf %255, %254 : vector<8x16xf32>
    %cst_155 = arith.constant 5.000000e-01 : f32
    %257 = vector.broadcast %cst_155 : f32 to vector<8x16xf32>
    %258 = arith.addf %256, %257 : vector<8x16xf32>
    %259 = math.tanh %238 : vector<8x16xf32>
    %260 = arith.mulf %258, %259 : vector<8x16xf32>
    %261 = arith.addf %251, %260 : vector<8x16xf32>
    %cst_156 = arith.constant 5.000000e-01 : f32
    %262 = vector.broadcast %cst_156 : f32 to vector<8x16xf32>
    %263 = arith.mulf %262, %243 : vector<8x16xf32>
    %264 = math.tanh %263 : vector<8x16xf32>
    %cst_157 = arith.constant 5.000000e-01 : f32
    %265 = vector.broadcast %cst_157 : f32 to vector<8x16xf32>
    %266 = arith.mulf %265, %264 : vector<8x16xf32>
    %cst_158 = arith.constant 5.000000e-01 : f32
    %267 = vector.broadcast %cst_158 : f32 to vector<8x16xf32>
    %268 = arith.addf %266, %267 : vector<8x16xf32>
    %269 = math.tanh %261 : vector<8x16xf32>
    %270 = arith.mulf %268, %269 : vector<8x16xf32>
    %271 = vector.extract_strided_slice %19 {offsets = [16, 0], sizes = [8, 16], strides = [1, 1]} : vector<64x16xf32> to vector<8x16xf32>
    %cst_159 = arith.constant dense<0.000000e+00> : vector<8x16xf32>
    %272 = tpu.matmul %223, %60, %cst_159 {dimension_numbers = #tpu.dot_dimension_numbers<[1], [0], [0], [1], [0, 0, 1, 1], [], []>} : vector<8x16xf32>, vector<16x16xf32>, vector<8x16xf32> -> vector<8x16xf32>
    %273 = arith.addf %271, %272 : vector<8x16xf32>
    %274 = vector.extract_strided_slice %32 {offsets = [16, 0], sizes = [8, 16], strides = [1, 1]} : vector<64x16xf32> to vector<8x16xf32>
    %cst_160 = arith.constant dense<0.000000e+00> : vector<8x16xf32>
    %275 = tpu.matmul %223, %62, %cst_160 {dimension_numbers = #tpu.dot_dimension_numbers<[1], [0], [0], [1], [0, 0, 1, 1], [], []>} : vector<8x16xf32>, vector<16x16xf32>, vector<8x16xf32> -> vector<8x16xf32>
    %276 = arith.addf %274, %275 : vector<8x16xf32>
    %277 = vector.extract_strided_slice %45 {offsets = [16, 0], sizes = [8, 16], strides = [1, 1]} : vector<64x16xf32> to vector<8x16xf32>
    %cst_161 = arith.constant dense<0.000000e+00> : vector<8x16xf32>
    %278 = tpu.matmul %223, %64, %cst_161 {dimension_numbers = #tpu.dot_dimension_numbers<[1], [0], [0], [1], [0, 0, 1, 1], [], []>} : vector<8x16xf32>, vector<16x16xf32>, vector<8x16xf32> -> vector<8x16xf32>
    %279 = arith.addf %277, %278 : vector<8x16xf32>
    %280 = vector.extract_strided_slice %58 {offsets = [16, 0], sizes = [8, 16], strides = [1, 1]} : vector<64x16xf32> to vector<8x16xf32>
    %cst_162 = arith.constant dense<0.000000e+00> : vector<8x16xf32>
    %281 = tpu.matmul %223, %66, %cst_162 {dimension_numbers = #tpu.dot_dimension_numbers<[1], [0], [0], [1], [0, 0, 1, 1], [], []>} : vector<8x16xf32>, vector<16x16xf32>, vector<8x16xf32> -> vector<8x16xf32>
    %282 = arith.addf %280, %281 : vector<8x16xf32>
    %cst_163 = arith.constant 5.000000e-01 : f32
    %283 = vector.broadcast %cst_163 : f32 to vector<8x16xf32>
    %284 = arith.mulf %283, %276 : vector<8x16xf32>
    %285 = math.tanh %284 : vector<8x16xf32>
    %cst_164 = arith.constant 5.000000e-01 : f32
    %286 = vector.broadcast %cst_164 : f32 to vector<8x16xf32>
    %287 = arith.mulf %286, %285 : vector<8x16xf32>
    %cst_165 = arith.constant 5.000000e-01 : f32
    %288 = vector.broadcast %cst_165 : f32 to vector<8x16xf32>
    %289 = arith.addf %287, %288 : vector<8x16xf32>
    %290 = arith.mulf %289, %214 : vector<8x16xf32>
    %cst_166 = arith.constant 5.000000e-01 : f32
    %291 = vector.broadcast %cst_166 : f32 to vector<8x16xf32>
    %292 = arith.mulf %291, %273 : vector<8x16xf32>
    %293 = math.tanh %292 : vector<8x16xf32>
    %cst_167 = arith.constant 5.000000e-01 : f32
    %294 = vector.broadcast %cst_167 : f32 to vector<8x16xf32>
    %295 = arith.mulf %294, %293 : vector<8x16xf32>
    %cst_168 = arith.constant 5.000000e-01 : f32
    %296 = vector.broadcast %cst_168 : f32 to vector<8x16xf32>
    %297 = arith.addf %295, %296 : vector<8x16xf32>
    %298 = math.tanh %279 : vector<8x16xf32>
    %299 = arith.mulf %297, %298 : vector<8x16xf32>
    %300 = arith.addf %290, %299 : vector<8x16xf32>
    %cst_169 = arith.constant 5.000000e-01 : f32
    %301 = vector.broadcast %cst_169 : f32 to vector<8x16xf32>
    %302 = arith.mulf %301, %282 : vector<8x16xf32>
    %303 = math.tanh %302 : vector<8x16xf32>
    %cst_170 = arith.constant 5.000000e-01 : f32
    %304 = vector.broadcast %cst_170 : f32 to vector<8x16xf32>
    %305 = arith.mulf %304, %303 : vector<8x16xf32>
    %cst_171 = arith.constant 5.000000e-01 : f32
    %306 = vector.broadcast %cst_171 : f32 to vector<8x16xf32>
    %307 = arith.addf %305, %306 : vector<8x16xf32>
    %308 = math.tanh %300 : vector<8x16xf32>
    %309 = arith.mulf %307, %308 : vector<8x16xf32>
    %cst_172 = arith.constant dense<0.000000e+00> : vector<8x16xf32>
    %310 = tpu.matmul %309, %68, %cst_172 {dimension_numbers = #tpu.dot_dimension_numbers<[1], [0], [0], [1], [0, 0, 1, 1], [], []>} : vector<8x16xf32>, vector<16x16xf32>, vector<8x16xf32> -> vector<8x16xf32>
    %311 = vector.broadcast %84 : vector<1x16xf32> to vector<8x16xf32>
    %312 = arith.addf %311, %310 : vector<8x16xf32>
    %cst_173 = arith.constant dense<0.000000e+00> : vector<8x16xf32>
    %313 = tpu.matmul %270, %76, %cst_173 {dimension_numbers = #tpu.dot_dimension_numbers<[1], [0], [0], [1], [0, 0, 1, 1], [], []>} : vector<8x16xf32>, vector<16x16xf32>, vector<8x16xf32> -> vector<8x16xf32>
    %314 = arith.addf %312, %313 : vector<8x16xf32>
    %cst_174 = arith.constant dense<0.000000e+00> : vector<8x16xf32>
    %315 = tpu.matmul %309, %70, %cst_174 {dimension_numbers = #tpu.dot_dimension_numbers<[1], [0], [0], [1], [0, 0, 1, 1], [], []>} : vector<8x16xf32>, vector<16x16xf32>, vector<8x16xf32> -> vector<8x16xf32>
    %316 = vector.broadcast %86 : vector<1x16xf32> to vector<8x16xf32>
    %317 = arith.addf %316, %315 : vector<8x16xf32>
    %cst_175 = arith.constant dense<0.000000e+00> : vector<8x16xf32>
    %318 = tpu.matmul %270, %78, %cst_175 {dimension_numbers = #tpu.dot_dimension_numbers<[1], [0], [0], [1], [0, 0, 1, 1], [], []>} : vector<8x16xf32>, vector<16x16xf32>, vector<8x16xf32> -> vector<8x16xf32>
    %319 = arith.addf %317, %318 : vector<8x16xf32>
    %cst_176 = arith.constant dense<0.000000e+00> : vector<8x16xf32>
    %320 = tpu.matmul %309, %72, %cst_176 {dimension_numbers = #tpu.dot_dimension_numbers<[1], [0], [0], [1], [0, 0, 1, 1], [], []>} : vector<8x16xf32>, vector<16x16xf32>, vector<8x16xf32> -> vector<8x16xf32>
    %321 = vector.broadcast %88 : vector<1x16xf32> to vector<8x16xf32>
    %322 = arith.addf %321, %320 : vector<8x16xf32>
    %cst_177 = arith.constant dense<0.000000e+00> : vector<8x16xf32>
    %323 = tpu.matmul %270, %80, %cst_177 {dimension_numbers = #tpu.dot_dimension_numbers<[1], [0], [0], [1], [0, 0, 1, 1], [], []>} : vector<8x16xf32>, vector<16x16xf32>, vector<8x16xf32> -> vector<8x16xf32>
    %324 = arith.addf %322, %323 : vector<8x16xf32>
    %cst_178 = arith.constant dense<0.000000e+00> : vector<8x16xf32>
    %325 = tpu.matmul %309, %74, %cst_178 {dimension_numbers = #tpu.dot_dimension_numbers<[1], [0], [0], [1], [0, 0, 1, 1], [], []>} : vector<8x16xf32>, vector<16x16xf32>, vector<8x16xf32> -> vector<8x16xf32>
    %326 = vector.broadcast %90 : vector<1x16xf32> to vector<8x16xf32>
    %327 = arith.addf %326, %325 : vector<8x16xf32>
    %cst_179 = arith.constant dense<0.000000e+00> : vector<8x16xf32>
    %328 = tpu.matmul %270, %82, %cst_179 {dimension_numbers = #tpu.dot_dimension_numbers<[1], [0], [0], [1], [0, 0, 1, 1], [], []>} : vector<8x16xf32>, vector<16x16xf32>, vector<8x16xf32> -> vector<8x16xf32>
    %329 = arith.addf %327, %328 : vector<8x16xf32>
    %cst_180 = arith.constant 5.000000e-01 : f32
    %330 = vector.broadcast %cst_180 : f32 to vector<8x16xf32>
    %331 = arith.mulf %330, %319 : vector<8x16xf32>
    %332 = math.tanh %331 : vector<8x16xf32>
    %cst_181 = arith.constant 5.000000e-01 : f32
    %333 = vector.broadcast %cst_181 : f32 to vector<8x16xf32>
    %334 = arith.mulf %333, %332 : vector<8x16xf32>
    %cst_182 = arith.constant 5.000000e-01 : f32
    %335 = vector.broadcast %cst_182 : f32 to vector<8x16xf32>
    %336 = arith.addf %334, %335 : vector<8x16xf32>
    %337 = arith.mulf %336, %261 : vector<8x16xf32>
    %cst_183 = arith.constant 5.000000e-01 : f32
    %338 = vector.broadcast %cst_183 : f32 to vector<8x16xf32>
    %339 = arith.mulf %338, %314 : vector<8x16xf32>
    %340 = math.tanh %339 : vector<8x16xf32>
    %cst_184 = arith.constant 5.000000e-01 : f32
    %341 = vector.broadcast %cst_184 : f32 to vector<8x16xf32>
    %342 = arith.mulf %341, %340 : vector<8x16xf32>
    %cst_185 = arith.constant 5.000000e-01 : f32
    %343 = vector.broadcast %cst_185 : f32 to vector<8x16xf32>
    %344 = arith.addf %342, %343 : vector<8x16xf32>
    %345 = math.tanh %324 : vector<8x16xf32>
    %346 = arith.mulf %344, %345 : vector<8x16xf32>
    %347 = arith.addf %337, %346 : vector<8x16xf32>
    %cst_186 = arith.constant 5.000000e-01 : f32
    %348 = vector.broadcast %cst_186 : f32 to vector<8x16xf32>
    %349 = arith.mulf %348, %329 : vector<8x16xf32>
    %350 = math.tanh %349 : vector<8x16xf32>
    %cst_187 = arith.constant 5.000000e-01 : f32
    %351 = vector.broadcast %cst_187 : f32 to vector<8x16xf32>
    %352 = arith.mulf %351, %350 : vector<8x16xf32>
    %cst_188 = arith.constant 5.000000e-01 : f32
    %353 = vector.broadcast %cst_188 : f32 to vector<8x16xf32>
    %354 = arith.addf %352, %353 : vector<8x16xf32>
    %355 = math.tanh %347 : vector<8x16xf32>
    %356 = arith.mulf %354, %355 : vector<8x16xf32>
    %357 = vector.extract_strided_slice %19 {offsets = [24, 0], sizes = [8, 16], strides = [1, 1]} : vector<64x16xf32> to vector<8x16xf32>
    %cst_189 = arith.constant dense<0.000000e+00> : vector<8x16xf32>
    %358 = tpu.matmul %309, %60, %cst_189 {dimension_numbers = #tpu.dot_dimension_numbers<[1], [0], [0], [1], [0, 0, 1, 1], [], []>} : vector<8x16xf32>, vector<16x16xf32>, vector<8x16xf32> -> vector<8x16xf32>
    %359 = arith.addf %357, %358 : vector<8x16xf32>
    %360 = vector.extract_strided_slice %32 {offsets = [24, 0], sizes = [8, 16], strides = [1, 1]} : vector<64x16xf32> to vector<8x16xf32>
    %cst_190 = arith.constant dense<0.000000e+00> : vector<8x16xf32>
    %361 = tpu.matmul %309, %62, %cst_190 {dimension_numbers = #tpu.dot_dimension_numbers<[1], [0], [0], [1], [0, 0, 1, 1], [], []>} : vector<8x16xf32>, vector<16x16xf32>, vector<8x16xf32> -> vector<8x16xf32>
    %362 = arith.addf %360, %361 : vector<8x16xf32>
    %363 = vector.extract_strided_slice %45 {offsets = [24, 0], sizes = [8, 16], strides = [1, 1]} : vector<64x16xf32> to vector<8x16xf32>
    %cst_191 = arith.constant dense<0.000000e+00> : vector<8x16xf32>
    %364 = tpu.matmul %309, %64, %cst_191 {dimension_numbers = #tpu.dot_dimension_numbers<[1], [0], [0], [1], [0, 0, 1, 1], [], []>} : vector<8x16xf32>, vector<16x16xf32>, vector<8x16xf32> -> vector<8x16xf32>
    %365 = arith.addf %363, %364 : vector<8x16xf32>
    %366 = vector.extract_strided_slice %58 {offsets = [24, 0], sizes = [8, 16], strides = [1, 1]} : vector<64x16xf32> to vector<8x16xf32>
    %cst_192 = arith.constant dense<0.000000e+00> : vector<8x16xf32>
    %367 = tpu.matmul %309, %66, %cst_192 {dimension_numbers = #tpu.dot_dimension_numbers<[1], [0], [0], [1], [0, 0, 1, 1], [], []>} : vector<8x16xf32>, vector<16x16xf32>, vector<8x16xf32> -> vector<8x16xf32>
    %368 = arith.addf %366, %367 : vector<8x16xf32>
    %cst_193 = arith.constant 5.000000e-01 : f32
    %369 = vector.broadcast %cst_193 : f32 to vector<8x16xf32>
    %370 = arith.mulf %369, %362 : vector<8x16xf32>
    %371 = math.tanh %370 : vector<8x16xf32>
    %cst_194 = arith.constant 5.000000e-01 : f32
    %372 = vector.broadcast %cst_194 : f32 to vector<8x16xf32>
    %373 = arith.mulf %372, %371 : vector<8x16xf32>
    %cst_195 = arith.constant 5.000000e-01 : f32
    %374 = vector.broadcast %cst_195 : f32 to vector<8x16xf32>
    %375 = arith.addf %373, %374 : vector<8x16xf32>
    %376 = arith.mulf %375, %300 : vector<8x16xf32>
    %cst_196 = arith.constant 5.000000e-01 : f32
    %377 = vector.broadcast %cst_196 : f32 to vector<8x16xf32>
    %378 = arith.mulf %377, %359 : vector<8x16xf32>
    %379 = math.tanh %378 : vector<8x16xf32>
    %cst_197 = arith.constant 5.000000e-01 : f32
    %380 = vector.broadcast %cst_197 : f32 to vector<8x16xf32>
    %381 = arith.mulf %380, %379 : vector<8x16xf32>
    %cst_198 = arith.constant 5.000000e-01 : f32
    %382 = vector.broadcast %cst_198 : f32 to vector<8x16xf32>
    %383 = arith.addf %381, %382 : vector<8x16xf32>
    %384 = math.tanh %365 : vector<8x16xf32>
    %385 = arith.mulf %383, %384 : vector<8x16xf32>
    %386 = arith.addf %376, %385 : vector<8x16xf32>
    %cst_199 = arith.constant 5.000000e-01 : f32
    %387 = vector.broadcast %cst_199 : f32 to vector<8x16xf32>
    %388 = arith.mulf %387, %368 : vector<8x16xf32>
    %389 = math.tanh %388 : vector<8x16xf32>
    %cst_200 = arith.constant 5.000000e-01 : f32
    %390 = vector.broadcast %cst_200 : f32 to vector<8x16xf32>
    %391 = arith.mulf %390, %389 : vector<8x16xf32>
    %cst_201 = arith.constant 5.000000e-01 : f32
    %392 = vector.broadcast %cst_201 : f32 to vector<8x16xf32>
    %393 = arith.addf %391, %392 : vector<8x16xf32>
    %394 = math.tanh %386 : vector<8x16xf32>
    %395 = arith.mulf %393, %394 : vector<8x16xf32>
    %cst_202 = arith.constant dense<0.000000e+00> : vector<8x16xf32>
    %396 = tpu.matmul %395, %68, %cst_202 {dimension_numbers = #tpu.dot_dimension_numbers<[1], [0], [0], [1], [0, 0, 1, 1], [], []>} : vector<8x16xf32>, vector<16x16xf32>, vector<8x16xf32> -> vector<8x16xf32>
    %397 = vector.broadcast %84 : vector<1x16xf32> to vector<8x16xf32>
    %398 = arith.addf %397, %396 : vector<8x16xf32>
    %cst_203 = arith.constant dense<0.000000e+00> : vector<8x16xf32>
    %399 = tpu.matmul %356, %76, %cst_203 {dimension_numbers = #tpu.dot_dimension_numbers<[1], [0], [0], [1], [0, 0, 1, 1], [], []>} : vector<8x16xf32>, vector<16x16xf32>, vector<8x16xf32> -> vector<8x16xf32>
    %400 = arith.addf %398, %399 : vector<8x16xf32>
    %cst_204 = arith.constant dense<0.000000e+00> : vector<8x16xf32>
    %401 = tpu.matmul %395, %70, %cst_204 {dimension_numbers = #tpu.dot_dimension_numbers<[1], [0], [0], [1], [0, 0, 1, 1], [], []>} : vector<8x16xf32>, vector<16x16xf32>, vector<8x16xf32> -> vector<8x16xf32>
    %402 = vector.broadcast %86 : vector<1x16xf32> to vector<8x16xf32>
    %403 = arith.addf %402, %401 : vector<8x16xf32>
    %cst_205 = arith.constant dense<0.000000e+00> : vector<8x16xf32>
    %404 = tpu.matmul %356, %78, %cst_205 {dimension_numbers = #tpu.dot_dimension_numbers<[1], [0], [0], [1], [0, 0, 1, 1], [], []>} : vector<8x16xf32>, vector<16x16xf32>, vector<8x16xf32> -> vector<8x16xf32>
    %405 = arith.addf %403, %404 : vector<8x16xf32>
    %cst_206 = arith.constant dense<0.000000e+00> : vector<8x16xf32>
    %406 = tpu.matmul %395, %72, %cst_206 {dimension_numbers = #tpu.dot_dimension_numbers<[1], [0], [0], [1], [0, 0, 1, 1], [], []>} : vector<8x16xf32>, vector<16x16xf32>, vector<8x16xf32> -> vector<8x16xf32>
    %407 = vector.broadcast %88 : vector<1x16xf32> to vector<8x16xf32>
    %408 = arith.addf %407, %406 : vector<8x16xf32>
    %cst_207 = arith.constant dense<0.000000e+00> : vector<8x16xf32>
    %409 = tpu.matmul %356, %80, %cst_207 {dimension_numbers = #tpu.dot_dimension_numbers<[1], [0], [0], [1], [0, 0, 1, 1], [], []>} : vector<8x16xf32>, vector<16x16xf32>, vector<8x16xf32> -> vector<8x16xf32>
    %410 = arith.addf %408, %409 : vector<8x16xf32>
    %cst_208 = arith.constant dense<0.000000e+00> : vector<8x16xf32>
    %411 = tpu.matmul %395, %74, %cst_208 {dimension_numbers = #tpu.dot_dimension_numbers<[1], [0], [0], [1], [0, 0, 1, 1], [], []>} : vector<8x16xf32>, vector<16x16xf32>, vector<8x16xf32> -> vector<8x16xf32>
    %412 = vector.broadcast %90 : vector<1x16xf32> to vector<8x16xf32>
    %413 = arith.addf %412, %411 : vector<8x16xf32>
    %cst_209 = arith.constant dense<0.000000e+00> : vector<8x16xf32>
    %414 = tpu.matmul %356, %82, %cst_209 {dimension_numbers = #tpu.dot_dimension_numbers<[1], [0], [0], [1], [0, 0, 1, 1], [], []>} : vector<8x16xf32>, vector<16x16xf32>, vector<8x16xf32> -> vector<8x16xf32>
    %415 = arith.addf %413, %414 : vector<8x16xf32>
    %cst_210 = arith.constant 5.000000e-01 : f32
    %416 = vector.broadcast %cst_210 : f32 to vector<8x16xf32>
    %417 = arith.mulf %416, %405 : vector<8x16xf32>
    %418 = math.tanh %417 : vector<8x16xf32>
    %cst_211 = arith.constant 5.000000e-01 : f32
    %419 = vector.broadcast %cst_211 : f32 to vector<8x16xf32>
    %420 = arith.mulf %419, %418 : vector<8x16xf32>
    %cst_212 = arith.constant 5.000000e-01 : f32
    %421 = vector.broadcast %cst_212 : f32 to vector<8x16xf32>
    %422 = arith.addf %420, %421 : vector<8x16xf32>
    %423 = arith.mulf %422, %347 : vector<8x16xf32>
    %cst_213 = arith.constant 5.000000e-01 : f32
    %424 = vector.broadcast %cst_213 : f32 to vector<8x16xf32>
    %425 = arith.mulf %424, %400 : vector<8x16xf32>
    %426 = math.tanh %425 : vector<8x16xf32>
    %cst_214 = arith.constant 5.000000e-01 : f32
    %427 = vector.broadcast %cst_214 : f32 to vector<8x16xf32>
    %428 = arith.mulf %427, %426 : vector<8x16xf32>
    %cst_215 = arith.constant 5.000000e-01 : f32
    %429 = vector.broadcast %cst_215 : f32 to vector<8x16xf32>
    %430 = arith.addf %428, %429 : vector<8x16xf32>
    %431 = math.tanh %410 : vector<8x16xf32>
    %432 = arith.mulf %430, %431 : vector<8x16xf32>
    %433 = arith.addf %423, %432 : vector<8x16xf32>
    %cst_216 = arith.constant 5.000000e-01 : f32
    %434 = vector.broadcast %cst_216 : f32 to vector<8x16xf32>
    %435 = arith.mulf %434, %415 : vector<8x16xf32>
    %436 = math.tanh %435 : vector<8x16xf32>
    %cst_217 = arith.constant 5.000000e-01 : f32
    %437 = vector.broadcast %cst_217 : f32 to vector<8x16xf32>
    %438 = arith.mulf %437, %436 : vector<8x16xf32>
    %cst_218 = arith.constant 5.000000e-01 : f32
    %439 = vector.broadcast %cst_218 : f32 to vector<8x16xf32>
    %440 = arith.addf %438, %439 : vector<8x16xf32>
    %441 = math.tanh %433 : vector<8x16xf32>
    %442 = arith.mulf %440, %441 : vector<8x16xf32>
    %443 = vector.extract_strided_slice %19 {offsets = [32, 0], sizes = [8, 16], strides = [1, 1]} : vector<64x16xf32> to vector<8x16xf32>
    %cst_219 = arith.constant dense<0.000000e+00> : vector<8x16xf32>
    %444 = tpu.matmul %395, %60, %cst_219 {dimension_numbers = #tpu.dot_dimension_numbers<[1], [0], [0], [1], [0, 0, 1, 1], [], []>} : vector<8x16xf32>, vector<16x16xf32>, vector<8x16xf32> -> vector<8x16xf32>
    %445 = arith.addf %443, %444 : vector<8x16xf32>
    %446 = vector.extract_strided_slice %32 {offsets = [32, 0], sizes = [8, 16], strides = [1, 1]} : vector<64x16xf32> to vector<8x16xf32>
    %cst_220 = arith.constant dense<0.000000e+00> : vector<8x16xf32>
    %447 = tpu.matmul %395, %62, %cst_220 {dimension_numbers = #tpu.dot_dimension_numbers<[1], [0], [0], [1], [0, 0, 1, 1], [], []>} : vector<8x16xf32>, vector<16x16xf32>, vector<8x16xf32> -> vector<8x16xf32>
    %448 = arith.addf %446, %447 : vector<8x16xf32>
    %449 = vector.extract_strided_slice %45 {offsets = [32, 0], sizes = [8, 16], strides = [1, 1]} : vector<64x16xf32> to vector<8x16xf32>
    %cst_221 = arith.constant dense<0.000000e+00> : vector<8x16xf32>
    %450 = tpu.matmul %395, %64, %cst_221 {dimension_numbers = #tpu.dot_dimension_numbers<[1], [0], [0], [1], [0, 0, 1, 1], [], []>} : vector<8x16xf32>, vector<16x16xf32>, vector<8x16xf32> -> vector<8x16xf32>
    %451 = arith.addf %449, %450 : vector<8x16xf32>
    %452 = vector.extract_strided_slice %58 {offsets = [32, 0], sizes = [8, 16], strides = [1, 1]} : vector<64x16xf32> to vector<8x16xf32>
    %cst_222 = arith.constant dense<0.000000e+00> : vector<8x16xf32>
    %453 = tpu.matmul %395, %66, %cst_222 {dimension_numbers = #tpu.dot_dimension_numbers<[1], [0], [0], [1], [0, 0, 1, 1], [], []>} : vector<8x16xf32>, vector<16x16xf32>, vector<8x16xf32> -> vector<8x16xf32>
    %454 = arith.addf %452, %453 : vector<8x16xf32>
    %cst_223 = arith.constant 5.000000e-01 : f32
    %455 = vector.broadcast %cst_223 : f32 to vector<8x16xf32>
    %456 = arith.mulf %455, %448 : vector<8x16xf32>
    %457 = math.tanh %456 : vector<8x16xf32>
    %cst_224 = arith.constant 5.000000e-01 : f32
    %458 = vector.broadcast %cst_224 : f32 to vector<8x16xf32>
    %459 = arith.mulf %458, %457 : vector<8x16xf32>
    %cst_225 = arith.constant 5.000000e-01 : f32
    %460 = vector.broadcast %cst_225 : f32 to vector<8x16xf32>
    %461 = arith.addf %459, %460 : vector<8x16xf32>
    %462 = arith.mulf %461, %386 : vector<8x16xf32>
    %cst_226 = arith.constant 5.000000e-01 : f32
    %463 = vector.broadcast %cst_226 : f32 to vector<8x16xf32>
    %464 = arith.mulf %463, %445 : vector<8x16xf32>
    %465 = math.tanh %464 : vector<8x16xf32>
    %cst_227 = arith.constant 5.000000e-01 : f32
    %466 = vector.broadcast %cst_227 : f32 to vector<8x16xf32>
    %467 = arith.mulf %466, %465 : vector<8x16xf32>
    %cst_228 = arith.constant 5.000000e-01 : f32
    %468 = vector.broadcast %cst_228 : f32 to vector<8x16xf32>
    %469 = arith.addf %467, %468 : vector<8x16xf32>
    %470 = math.tanh %451 : vector<8x16xf32>
    %471 = arith.mulf %469, %470 : vector<8x16xf32>
    %472 = arith.addf %462, %471 : vector<8x16xf32>
    %cst_229 = arith.constant 5.000000e-01 : f32
    %473 = vector.broadcast %cst_229 : f32 to vector<8x16xf32>
    %474 = arith.mulf %473, %454 : vector<8x16xf32>
    %475 = math.tanh %474 : vector<8x16xf32>
    %cst_230 = arith.constant 5.000000e-01 : f32
    %476 = vector.broadcast %cst_230 : f32 to vector<8x16xf32>
    %477 = arith.mulf %476, %475 : vector<8x16xf32>
    %cst_231 = arith.constant 5.000000e-01 : f32
    %478 = vector.broadcast %cst_231 : f32 to vector<8x16xf32>
    %479 = arith.addf %477, %478 : vector<8x16xf32>
    %480 = math.tanh %472 : vector<8x16xf32>
    %481 = arith.mulf %479, %480 : vector<8x16xf32>
    %cst_232 = arith.constant dense<0.000000e+00> : vector<8x16xf32>
    %482 = tpu.matmul %481, %68, %cst_232 {dimension_numbers = #tpu.dot_dimension_numbers<[1], [0], [0], [1], [0, 0, 1, 1], [], []>} : vector<8x16xf32>, vector<16x16xf32>, vector<8x16xf32> -> vector<8x16xf32>
    %483 = vector.broadcast %84 : vector<1x16xf32> to vector<8x16xf32>
    %484 = arith.addf %483, %482 : vector<8x16xf32>
    %cst_233 = arith.constant dense<0.000000e+00> : vector<8x16xf32>
    %485 = tpu.matmul %442, %76, %cst_233 {dimension_numbers = #tpu.dot_dimension_numbers<[1], [0], [0], [1], [0, 0, 1, 1], [], []>} : vector<8x16xf32>, vector<16x16xf32>, vector<8x16xf32> -> vector<8x16xf32>
    %486 = arith.addf %484, %485 : vector<8x16xf32>
    %cst_234 = arith.constant dense<0.000000e+00> : vector<8x16xf32>
    %487 = tpu.matmul %481, %70, %cst_234 {dimension_numbers = #tpu.dot_dimension_numbers<[1], [0], [0], [1], [0, 0, 1, 1], [], []>} : vector<8x16xf32>, vector<16x16xf32>, vector<8x16xf32> -> vector<8x16xf32>
    %488 = vector.broadcast %86 : vector<1x16xf32> to vector<8x16xf32>
    %489 = arith.addf %488, %487 : vector<8x16xf32>
    %cst_235 = arith.constant dense<0.000000e+00> : vector<8x16xf32>
    %490 = tpu.matmul %442, %78, %cst_235 {dimension_numbers = #tpu.dot_dimension_numbers<[1], [0], [0], [1], [0, 0, 1, 1], [], []>} : vector<8x16xf32>, vector<16x16xf32>, vector<8x16xf32> -> vector<8x16xf32>
    %491 = arith.addf %489, %490 : vector<8x16xf32>
    %cst_236 = arith.constant dense<0.000000e+00> : vector<8x16xf32>
    %492 = tpu.matmul %481, %72, %cst_236 {dimension_numbers = #tpu.dot_dimension_numbers<[1], [0], [0], [1], [0, 0, 1, 1], [], []>} : vector<8x16xf32>, vector<16x16xf32>, vector<8x16xf32> -> vector<8x16xf32>
    %493 = vector.broadcast %88 : vector<1x16xf32> to vector<8x16xf32>
    %494 = arith.addf %493, %492 : vector<8x16xf32>
    %cst_237 = arith.constant dense<0.000000e+00> : vector<8x16xf32>
    %495 = tpu.matmul %442, %80, %cst_237 {dimension_numbers = #tpu.dot_dimension_numbers<[1], [0], [0], [1], [0, 0, 1, 1], [], []>} : vector<8x16xf32>, vector<16x16xf32>, vector<8x16xf32> -> vector<8x16xf32>
    %496 = arith.addf %494, %495 : vector<8x16xf32>
    %cst_238 = arith.constant dense<0.000000e+00> : vector<8x16xf32>
    %497 = tpu.matmul %481, %74, %cst_238 {dimension_numbers = #tpu.dot_dimension_numbers<[1], [0], [0], [1], [0, 0, 1, 1], [], []>} : vector<8x16xf32>, vector<16x16xf32>, vector<8x16xf32> -> vector<8x16xf32>
    %498 = vector.broadcast %90 : vector<1x16xf32> to vector<8x16xf32>
    %499 = arith.addf %498, %497 : vector<8x16xf32>
    %cst_239 = arith.constant dense<0.000000e+00> : vector<8x16xf32>
    %500 = tpu.matmul %442, %82, %cst_239 {dimension_numbers = #tpu.dot_dimension_numbers<[1], [0], [0], [1], [0, 0, 1, 1], [], []>} : vector<8x16xf32>, vector<16x16xf32>, vector<8x16xf32> -> vector<8x16xf32>
    %501 = arith.addf %499, %500 : vector<8x16xf32>
    %cst_240 = arith.constant 5.000000e-01 : f32
    %502 = vector.broadcast %cst_240 : f32 to vector<8x16xf32>
    %503 = arith.mulf %502, %491 : vector<8x16xf32>
    %504 = math.tanh %503 : vector<8x16xf32>
    %cst_241 = arith.constant 5.000000e-01 : f32
    %505 = vector.broadcast %cst_241 : f32 to vector<8x16xf32>
    %506 = arith.mulf %505, %504 : vector<8x16xf32>
    %cst_242 = arith.constant 5.000000e-01 : f32
    %507 = vector.broadcast %cst_242 : f32 to vector<8x16xf32>
    %508 = arith.addf %506, %507 : vector<8x16xf32>
    %509 = arith.mulf %508, %433 : vector<8x16xf32>
    %cst_243 = arith.constant 5.000000e-01 : f32
    %510 = vector.broadcast %cst_243 : f32 to vector<8x16xf32>
    %511 = arith.mulf %510, %486 : vector<8x16xf32>
    %512 = math.tanh %511 : vector<8x16xf32>
    %cst_244 = arith.constant 5.000000e-01 : f32
    %513 = vector.broadcast %cst_244 : f32 to vector<8x16xf32>
    %514 = arith.mulf %513, %512 : vector<8x16xf32>
    %cst_245 = arith.constant 5.000000e-01 : f32
    %515 = vector.broadcast %cst_245 : f32 to vector<8x16xf32>
    %516 = arith.addf %514, %515 : vector<8x16xf32>
    %517 = math.tanh %496 : vector<8x16xf32>
    %518 = arith.mulf %516, %517 : vector<8x16xf32>
    %519 = arith.addf %509, %518 : vector<8x16xf32>
    %cst_246 = arith.constant 5.000000e-01 : f32
    %520 = vector.broadcast %cst_246 : f32 to vector<8x16xf32>
    %521 = arith.mulf %520, %501 : vector<8x16xf32>
    %522 = math.tanh %521 : vector<8x16xf32>
    %cst_247 = arith.constant 5.000000e-01 : f32
    %523 = vector.broadcast %cst_247 : f32 to vector<8x16xf32>
    %524 = arith.mulf %523, %522 : vector<8x16xf32>
    %cst_248 = arith.constant 5.000000e-01 : f32
    %525 = vector.broadcast %cst_248 : f32 to vector<8x16xf32>
    %526 = arith.addf %524, %525 : vector<8x16xf32>
    %527 = math.tanh %519 : vector<8x16xf32>
    %528 = arith.mulf %526, %527 : vector<8x16xf32>
    %529 = vector.extract_strided_slice %19 {offsets = [40, 0], sizes = [8, 16], strides = [1, 1]} : vector<64x16xf32> to vector<8x16xf32>
    %cst_249 = arith.constant dense<0.000000e+00> : vector<8x16xf32>
    %530 = tpu.matmul %481, %60, %cst_249 {dimension_numbers = #tpu.dot_dimension_numbers<[1], [0], [0], [1], [0, 0, 1, 1], [], []>} : vector<8x16xf32>, vector<16x16xf32>, vector<8x16xf32> -> vector<8x16xf32>
    %531 = arith.addf %529, %530 : vector<8x16xf32>
    %532 = vector.extract_strided_slice %32 {offsets = [40, 0], sizes = [8, 16], strides = [1, 1]} : vector<64x16xf32> to vector<8x16xf32>
    %cst_250 = arith.constant dense<0.000000e+00> : vector<8x16xf32>
    %533 = tpu.matmul %481, %62, %cst_250 {dimension_numbers = #tpu.dot_dimension_numbers<[1], [0], [0], [1], [0, 0, 1, 1], [], []>} : vector<8x16xf32>, vector<16x16xf32>, vector<8x16xf32> -> vector<8x16xf32>
    %534 = arith.addf %532, %533 : vector<8x16xf32>
    %535 = vector.extract_strided_slice %45 {offsets = [40, 0], sizes = [8, 16], strides = [1, 1]} : vector<64x16xf32> to vector<8x16xf32>
    %cst_251 = arith.constant dense<0.000000e+00> : vector<8x16xf32>
    %536 = tpu.matmul %481, %64, %cst_251 {dimension_numbers = #tpu.dot_dimension_numbers<[1], [0], [0], [1], [0, 0, 1, 1], [], []>} : vector<8x16xf32>, vector<16x16xf32>, vector<8x16xf32> -> vector<8x16xf32>
    %537 = arith.addf %535, %536 : vector<8x16xf32>
    %538 = vector.extract_strided_slice %58 {offsets = [40, 0], sizes = [8, 16], strides = [1, 1]} : vector<64x16xf32> to vector<8x16xf32>
    %cst_252 = arith.constant dense<0.000000e+00> : vector<8x16xf32>
    %539 = tpu.matmul %481, %66, %cst_252 {dimension_numbers = #tpu.dot_dimension_numbers<[1], [0], [0], [1], [0, 0, 1, 1], [], []>} : vector<8x16xf32>, vector<16x16xf32>, vector<8x16xf32> -> vector<8x16xf32>
    %540 = arith.addf %538, %539 : vector<8x16xf32>
    %cst_253 = arith.constant 5.000000e-01 : f32
    %541 = vector.broadcast %cst_253 : f32 to vector<8x16xf32>
    %542 = arith.mulf %541, %534 : vector<8x16xf32>
    %543 = math.tanh %542 : vector<8x16xf32>
    %cst_254 = arith.constant 5.000000e-01 : f32
    %544 = vector.broadcast %cst_254 : f32 to vector<8x16xf32>
    %545 = arith.mulf %544, %543 : vector<8x16xf32>
    %cst_255 = arith.constant 5.000000e-01 : f32
    %546 = vector.broadcast %cst_255 : f32 to vector<8x16xf32>
    %547 = arith.addf %545, %546 : vector<8x16xf32>
    %548 = arith.mulf %547, %472 : vector<8x16xf32>
    %cst_256 = arith.constant 5.000000e-01 : f32
    %549 = vector.broadcast %cst_256 : f32 to vector<8x16xf32>
    %550 = arith.mulf %549, %531 : vector<8x16xf32>
    %551 = math.tanh %550 : vector<8x16xf32>
    %cst_257 = arith.constant 5.000000e-01 : f32
    %552 = vector.broadcast %cst_257 : f32 to vector<8x16xf32>
    %553 = arith.mulf %552, %551 : vector<8x16xf32>
    %cst_258 = arith.constant 5.000000e-01 : f32
    %554 = vector.broadcast %cst_258 : f32 to vector<8x16xf32>
    %555 = arith.addf %553, %554 : vector<8x16xf32>
    %556 = math.tanh %537 : vector<8x16xf32>
    %557 = arith.mulf %555, %556 : vector<8x16xf32>
    %558 = arith.addf %548, %557 : vector<8x16xf32>
    %cst_259 = arith.constant 5.000000e-01 : f32
    %559 = vector.broadcast %cst_259 : f32 to vector<8x16xf32>
    %560 = arith.mulf %559, %540 : vector<8x16xf32>
    %561 = math.tanh %560 : vector<8x16xf32>
    %cst_260 = arith.constant 5.000000e-01 : f32
    %562 = vector.broadcast %cst_260 : f32 to vector<8x16xf32>
    %563 = arith.mulf %562, %561 : vector<8x16xf32>
    %cst_261 = arith.constant 5.000000e-01 : f32
    %564 = vector.broadcast %cst_261 : f32 to vector<8x16xf32>
    %565 = arith.addf %563, %564 : vector<8x16xf32>
    %566 = math.tanh %558 : vector<8x16xf32>
    %567 = arith.mulf %565, %566 : vector<8x16xf32>
    %cst_262 = arith.constant dense<0.000000e+00> : vector<8x16xf32>
    %568 = tpu.matmul %567, %68, %cst_262 {dimension_numbers = #tpu.dot_dimension_numbers<[1], [0], [0], [1], [0, 0, 1, 1], [], []>} : vector<8x16xf32>, vector<16x16xf32>, vector<8x16xf32> -> vector<8x16xf32>
    %569 = vector.broadcast %84 : vector<1x16xf32> to vector<8x16xf32>
    %570 = arith.addf %569, %568 : vector<8x16xf32>
    %cst_263 = arith.constant dense<0.000000e+00> : vector<8x16xf32>
    %571 = tpu.matmul %528, %76, %cst_263 {dimension_numbers = #tpu.dot_dimension_numbers<[1], [0], [0], [1], [0, 0, 1, 1], [], []>} : vector<8x16xf32>, vector<16x16xf32>, vector<8x16xf32> -> vector<8x16xf32>
    %572 = arith.addf %570, %571 : vector<8x16xf32>
    %cst_264 = arith.constant dense<0.000000e+00> : vector<8x16xf32>
    %573 = tpu.matmul %567, %70, %cst_264 {dimension_numbers = #tpu.dot_dimension_numbers<[1], [0], [0], [1], [0, 0, 1, 1], [], []>} : vector<8x16xf32>, vector<16x16xf32>, vector<8x16xf32> -> vector<8x16xf32>
    %574 = vector.broadcast %86 : vector<1x16xf32> to vector<8x16xf32>
    %575 = arith.addf %574, %573 : vector<8x16xf32>
    %cst_265 = arith.constant dense<0.000000e+00> : vector<8x16xf32>
    %576 = tpu.matmul %528, %78, %cst_265 {dimension_numbers = #tpu.dot_dimension_numbers<[1], [0], [0], [1], [0, 0, 1, 1], [], []>} : vector<8x16xf32>, vector<16x16xf32>, vector<8x16xf32> -> vector<8x16xf32>
    %577 = arith.addf %575, %576 : vector<8x16xf32>
    %cst_266 = arith.constant dense<0.000000e+00> : vector<8x16xf32>
    %578 = tpu.matmul %567, %72, %cst_266 {dimension_numbers = #tpu.dot_dimension_numbers<[1], [0], [0], [1], [0, 0, 1, 1], [], []>} : vector<8x16xf32>, vector<16x16xf32>, vector<8x16xf32> -> vector<8x16xf32>
    %579 = vector.broadcast %88 : vector<1x16xf32> to vector<8x16xf32>
    %580 = arith.addf %579, %578 : vector<8x16xf32>
    %cst_267 = arith.constant dense<0.000000e+00> : vector<8x16xf32>
    %581 = tpu.matmul %528, %80, %cst_267 {dimension_numbers = #tpu.dot_dimension_numbers<[1], [0], [0], [1], [0, 0, 1, 1], [], []>} : vector<8x16xf32>, vector<16x16xf32>, vector<8x16xf32> -> vector<8x16xf32>
    %582 = arith.addf %580, %581 : vector<8x16xf32>
    %cst_268 = arith.constant dense<0.000000e+00> : vector<8x16xf32>
    %583 = tpu.matmul %567, %74, %cst_268 {dimension_numbers = #tpu.dot_dimension_numbers<[1], [0], [0], [1], [0, 0, 1, 1], [], []>} : vector<8x16xf32>, vector<16x16xf32>, vector<8x16xf32> -> vector<8x16xf32>
    %584 = vector.broadcast %90 : vector<1x16xf32> to vector<8x16xf32>
    %585 = arith.addf %584, %583 : vector<8x16xf32>
    %cst_269 = arith.constant dense<0.000000e+00> : vector<8x16xf32>
    %586 = tpu.matmul %528, %82, %cst_269 {dimension_numbers = #tpu.dot_dimension_numbers<[1], [0], [0], [1], [0, 0, 1, 1], [], []>} : vector<8x16xf32>, vector<16x16xf32>, vector<8x16xf32> -> vector<8x16xf32>
    %587 = arith.addf %585, %586 : vector<8x16xf32>
    %cst_270 = arith.constant 5.000000e-01 : f32
    %588 = vector.broadcast %cst_270 : f32 to vector<8x16xf32>
    %589 = arith.mulf %588, %577 : vector<8x16xf32>
    %590 = math.tanh %589 : vector<8x16xf32>
    %cst_271 = arith.constant 5.000000e-01 : f32
    %591 = vector.broadcast %cst_271 : f32 to vector<8x16xf32>
    %592 = arith.mulf %591, %590 : vector<8x16xf32>
    %cst_272 = arith.constant 5.000000e-01 : f32
    %593 = vector.broadcast %cst_272 : f32 to vector<8x16xf32>
    %594 = arith.addf %592, %593 : vector<8x16xf32>
    %595 = arith.mulf %594, %519 : vector<8x16xf32>
    %cst_273 = arith.constant 5.000000e-01 : f32
    %596 = vector.broadcast %cst_273 : f32 to vector<8x16xf32>
    %597 = arith.mulf %596, %572 : vector<8x16xf32>
    %598 = math.tanh %597 : vector<8x16xf32>
    %cst_274 = arith.constant 5.000000e-01 : f32
    %599 = vector.broadcast %cst_274 : f32 to vector<8x16xf32>
    %600 = arith.mulf %599, %598 : vector<8x16xf32>
    %cst_275 = arith.constant 5.000000e-01 : f32
    %601 = vector.broadcast %cst_275 : f32 to vector<8x16xf32>
    %602 = arith.addf %600, %601 : vector<8x16xf32>
    %603 = math.tanh %582 : vector<8x16xf32>
    %604 = arith.mulf %602, %603 : vector<8x16xf32>
    %605 = arith.addf %595, %604 : vector<8x16xf32>
    %cst_276 = arith.constant 5.000000e-01 : f32
    %606 = vector.broadcast %cst_276 : f32 to vector<8x16xf32>
    %607 = arith.mulf %606, %587 : vector<8x16xf32>
    %608 = math.tanh %607 : vector<8x16xf32>
    %cst_277 = arith.constant 5.000000e-01 : f32
    %609 = vector.broadcast %cst_277 : f32 to vector<8x16xf32>
    %610 = arith.mulf %609, %608 : vector<8x16xf32>
    %cst_278 = arith.constant 5.000000e-01 : f32
    %611 = vector.broadcast %cst_278 : f32 to vector<8x16xf32>
    %612 = arith.addf %610, %611 : vector<8x16xf32>
    %613 = math.tanh %605 : vector<8x16xf32>
    %614 = arith.mulf %612, %613 : vector<8x16xf32>
    %615 = vector.extract_strided_slice %19 {offsets = [48, 0], sizes = [8, 16], strides = [1, 1]} : vector<64x16xf32> to vector<8x16xf32>
    %cst_279 = arith.constant dense<0.000000e+00> : vector<8x16xf32>
    %616 = tpu.matmul %567, %60, %cst_279 {dimension_numbers = #tpu.dot_dimension_numbers<[1], [0], [0], [1], [0, 0, 1, 1], [], []>} : vector<8x16xf32>, vector<16x16xf32>, vector<8x16xf32> -> vector<8x16xf32>
    %617 = arith.addf %615, %616 : vector<8x16xf32>
    %618 = vector.extract_strided_slice %32 {offsets = [48, 0], sizes = [8, 16], strides = [1, 1]} : vector<64x16xf32> to vector<8x16xf32>
    %cst_280 = arith.constant dense<0.000000e+00> : vector<8x16xf32>
    %619 = tpu.matmul %567, %62, %cst_280 {dimension_numbers = #tpu.dot_dimension_numbers<[1], [0], [0], [1], [0, 0, 1, 1], [], []>} : vector<8x16xf32>, vector<16x16xf32>, vector<8x16xf32> -> vector<8x16xf32>
    %620 = arith.addf %618, %619 : vector<8x16xf32>
    %621 = vector.extract_strided_slice %45 {offsets = [48, 0], sizes = [8, 16], strides = [1, 1]} : vector<64x16xf32> to vector<8x16xf32>
    %cst_281 = arith.constant dense<0.000000e+00> : vector<8x16xf32>
    %622 = tpu.matmul %567, %64, %cst_281 {dimension_numbers = #tpu.dot_dimension_numbers<[1], [0], [0], [1], [0, 0, 1, 1], [], []>} : vector<8x16xf32>, vector<16x16xf32>, vector<8x16xf32> -> vector<8x16xf32>
    %623 = arith.addf %621, %622 : vector<8x16xf32>
    %624 = vector.extract_strided_slice %58 {offsets = [48, 0], sizes = [8, 16], strides = [1, 1]} : vector<64x16xf32> to vector<8x16xf32>
    %cst_282 = arith.constant dense<0.000000e+00> : vector<8x16xf32>
    %625 = tpu.matmul %567, %66, %cst_282 {dimension_numbers = #tpu.dot_dimension_numbers<[1], [0], [0], [1], [0, 0, 1, 1], [], []>} : vector<8x16xf32>, vector<16x16xf32>, vector<8x16xf32> -> vector<8x16xf32>
    %626 = arith.addf %624, %625 : vector<8x16xf32>
    %cst_283 = arith.constant 5.000000e-01 : f32
    %627 = vector.broadcast %cst_283 : f32 to vector<8x16xf32>
    %628 = arith.mulf %627, %620 : vector<8x16xf32>
    %629 = math.tanh %628 : vector<8x16xf32>
    %cst_284 = arith.constant 5.000000e-01 : f32
    %630 = vector.broadcast %cst_284 : f32 to vector<8x16xf32>
    %631 = arith.mulf %630, %629 : vector<8x16xf32>
    %cst_285 = arith.constant 5.000000e-01 : f32
    %632 = vector.broadcast %cst_285 : f32 to vector<8x16xf32>
    %633 = arith.addf %631, %632 : vector<8x16xf32>
    %634 = arith.mulf %633, %558 : vector<8x16xf32>
    %cst_286 = arith.constant 5.000000e-01 : f32
    %635 = vector.broadcast %cst_286 : f32 to vector<8x16xf32>
    %636 = arith.mulf %635, %617 : vector<8x16xf32>
    %637 = math.tanh %636 : vector<8x16xf32>
    %cst_287 = arith.constant 5.000000e-01 : f32
    %638 = vector.broadcast %cst_287 : f32 to vector<8x16xf32>
    %639 = arith.mulf %638, %637 : vector<8x16xf32>
    %cst_288 = arith.constant 5.000000e-01 : f32
    %640 = vector.broadcast %cst_288 : f32 to vector<8x16xf32>
    %641 = arith.addf %639, %640 : vector<8x16xf32>
    %642 = math.tanh %623 : vector<8x16xf32>
    %643 = arith.mulf %641, %642 : vector<8x16xf32>
    %644 = arith.addf %634, %643 : vector<8x16xf32>
    %cst_289 = arith.constant 5.000000e-01 : f32
    %645 = vector.broadcast %cst_289 : f32 to vector<8x16xf32>
    %646 = arith.mulf %645, %626 : vector<8x16xf32>
    %647 = math.tanh %646 : vector<8x16xf32>
    %cst_290 = arith.constant 5.000000e-01 : f32
    %648 = vector.broadcast %cst_290 : f32 to vector<8x16xf32>
    %649 = arith.mulf %648, %647 : vector<8x16xf32>
    %cst_291 = arith.constant 5.000000e-01 : f32
    %650 = vector.broadcast %cst_291 : f32 to vector<8x16xf32>
    %651 = arith.addf %649, %650 : vector<8x16xf32>
    %652 = math.tanh %644 : vector<8x16xf32>
    %653 = arith.mulf %651, %652 : vector<8x16xf32>
    %cst_292 = arith.constant dense<0.000000e+00> : vector<8x16xf32>
    %654 = tpu.matmul %653, %68, %cst_292 {dimension_numbers = #tpu.dot_dimension_numbers<[1], [0], [0], [1], [0, 0, 1, 1], [], []>} : vector<8x16xf32>, vector<16x16xf32>, vector<8x16xf32> -> vector<8x16xf32>
    %655 = vector.broadcast %84 : vector<1x16xf32> to vector<8x16xf32>
    %656 = arith.addf %655, %654 : vector<8x16xf32>
    %cst_293 = arith.constant dense<0.000000e+00> : vector<8x16xf32>
    %657 = tpu.matmul %614, %76, %cst_293 {dimension_numbers = #tpu.dot_dimension_numbers<[1], [0], [0], [1], [0, 0, 1, 1], [], []>} : vector<8x16xf32>, vector<16x16xf32>, vector<8x16xf32> -> vector<8x16xf32>
    %658 = arith.addf %656, %657 : vector<8x16xf32>
    %cst_294 = arith.constant dense<0.000000e+00> : vector<8x16xf32>
    %659 = tpu.matmul %653, %70, %cst_294 {dimension_numbers = #tpu.dot_dimension_numbers<[1], [0], [0], [1], [0, 0, 1, 1], [], []>} : vector<8x16xf32>, vector<16x16xf32>, vector<8x16xf32> -> vector<8x16xf32>
    %660 = vector.broadcast %86 : vector<1x16xf32> to vector<8x16xf32>
    %661 = arith.addf %660, %659 : vector<8x16xf32>
    %cst_295 = arith.constant dense<0.000000e+00> : vector<8x16xf32>
    %662 = tpu.matmul %614, %78, %cst_295 {dimension_numbers = #tpu.dot_dimension_numbers<[1], [0], [0], [1], [0, 0, 1, 1], [], []>} : vector<8x16xf32>, vector<16x16xf32>, vector<8x16xf32> -> vector<8x16xf32>
    %663 = arith.addf %661, %662 : vector<8x16xf32>
    %cst_296 = arith.constant dense<0.000000e+00> : vector<8x16xf32>
    %664 = tpu.matmul %653, %72, %cst_296 {dimension_numbers = #tpu.dot_dimension_numbers<[1], [0], [0], [1], [0, 0, 1, 1], [], []>} : vector<8x16xf32>, vector<16x16xf32>, vector<8x16xf32> -> vector<8x16xf32>
    %665 = vector.broadcast %88 : vector<1x16xf32> to vector<8x16xf32>
    %666 = arith.addf %665, %664 : vector<8x16xf32>
    %cst_297 = arith.constant dense<0.000000e+00> : vector<8x16xf32>
    %667 = tpu.matmul %614, %80, %cst_297 {dimension_numbers = #tpu.dot_dimension_numbers<[1], [0], [0], [1], [0, 0, 1, 1], [], []>} : vector<8x16xf32>, vector<16x16xf32>, vector<8x16xf32> -> vector<8x16xf32>
    %668 = arith.addf %666, %667 : vector<8x16xf32>
    %cst_298 = arith.constant dense<0.000000e+00> : vector<8x16xf32>
    %669 = tpu.matmul %653, %74, %cst_298 {dimension_numbers = #tpu.dot_dimension_numbers<[1], [0], [0], [1], [0, 0, 1, 1], [], []>} : vector<8x16xf32>, vector<16x16xf32>, vector<8x16xf32> -> vector<8x16xf32>
    %670 = vector.broadcast %90 : vector<1x16xf32> to vector<8x16xf32>
    %671 = arith.addf %670, %669 : vector<8x16xf32>
    %cst_299 = arith.constant dense<0.000000e+00> : vector<8x16xf32>
    %672 = tpu.matmul %614, %82, %cst_299 {dimension_numbers = #tpu.dot_dimension_numbers<[1], [0], [0], [1], [0, 0, 1, 1], [], []>} : vector<8x16xf32>, vector<16x16xf32>, vector<8x16xf32> -> vector<8x16xf32>
    %673 = arith.addf %671, %672 : vector<8x16xf32>
    %cst_300 = arith.constant 5.000000e-01 : f32
    %674 = vector.broadcast %cst_300 : f32 to vector<8x16xf32>
    %675 = arith.mulf %674, %663 : vector<8x16xf32>
    %676 = math.tanh %675 : vector<8x16xf32>
    %cst_301 = arith.constant 5.000000e-01 : f32
    %677 = vector.broadcast %cst_301 : f32 to vector<8x16xf32>
    %678 = arith.mulf %677, %676 : vector<8x16xf32>
    %cst_302 = arith.constant 5.000000e-01 : f32
    %679 = vector.broadcast %cst_302 : f32 to vector<8x16xf32>
    %680 = arith.addf %678, %679 : vector<8x16xf32>
    %681 = arith.mulf %680, %605 : vector<8x16xf32>
    %cst_303 = arith.constant 5.000000e-01 : f32
    %682 = vector.broadcast %cst_303 : f32 to vector<8x16xf32>
    %683 = arith.mulf %682, %658 : vector<8x16xf32>
    %684 = math.tanh %683 : vector<8x16xf32>
    %cst_304 = arith.constant 5.000000e-01 : f32
    %685 = vector.broadcast %cst_304 : f32 to vector<8x16xf32>
    %686 = arith.mulf %685, %684 : vector<8x16xf32>
    %cst_305 = arith.constant 5.000000e-01 : f32
    %687 = vector.broadcast %cst_305 : f32 to vector<8x16xf32>
    %688 = arith.addf %686, %687 : vector<8x16xf32>
    %689 = math.tanh %668 : vector<8x16xf32>
    %690 = arith.mulf %688, %689 : vector<8x16xf32>
    %691 = arith.addf %681, %690 : vector<8x16xf32>
    %cst_306 = arith.constant 5.000000e-01 : f32
    %692 = vector.broadcast %cst_306 : f32 to vector<8x16xf32>
    %693 = arith.mulf %692, %673 : vector<8x16xf32>
    %694 = math.tanh %693 : vector<8x16xf32>
    %cst_307 = arith.constant 5.000000e-01 : f32
    %695 = vector.broadcast %cst_307 : f32 to vector<8x16xf32>
    %696 = arith.mulf %695, %694 : vector<8x16xf32>
    %cst_308 = arith.constant 5.000000e-01 : f32
    %697 = vector.broadcast %cst_308 : f32 to vector<8x16xf32>
    %698 = arith.addf %696, %697 : vector<8x16xf32>
    %699 = math.tanh %691 : vector<8x16xf32>
    %700 = arith.mulf %698, %699 : vector<8x16xf32>
    %701 = vector.extract_strided_slice %19 {offsets = [56, 0], sizes = [8, 16], strides = [1, 1]} : vector<64x16xf32> to vector<8x16xf32>
    %cst_309 = arith.constant dense<0.000000e+00> : vector<8x16xf32>
    %702 = tpu.matmul %653, %60, %cst_309 {dimension_numbers = #tpu.dot_dimension_numbers<[1], [0], [0], [1], [0, 0, 1, 1], [], []>} : vector<8x16xf32>, vector<16x16xf32>, vector<8x16xf32> -> vector<8x16xf32>
    %703 = arith.addf %701, %702 : vector<8x16xf32>
    %704 = vector.extract_strided_slice %32 {offsets = [56, 0], sizes = [8, 16], strides = [1, 1]} : vector<64x16xf32> to vector<8x16xf32>
    %cst_310 = arith.constant dense<0.000000e+00> : vector<8x16xf32>
    %705 = tpu.matmul %653, %62, %cst_310 {dimension_numbers = #tpu.dot_dimension_numbers<[1], [0], [0], [1], [0, 0, 1, 1], [], []>} : vector<8x16xf32>, vector<16x16xf32>, vector<8x16xf32> -> vector<8x16xf32>
    %706 = arith.addf %704, %705 : vector<8x16xf32>
    %707 = vector.extract_strided_slice %45 {offsets = [56, 0], sizes = [8, 16], strides = [1, 1]} : vector<64x16xf32> to vector<8x16xf32>
    %cst_311 = arith.constant dense<0.000000e+00> : vector<8x16xf32>
    %708 = tpu.matmul %653, %64, %cst_311 {dimension_numbers = #tpu.dot_dimension_numbers<[1], [0], [0], [1], [0, 0, 1, 1], [], []>} : vector<8x16xf32>, vector<16x16xf32>, vector<8x16xf32> -> vector<8x16xf32>
    %709 = arith.addf %707, %708 : vector<8x16xf32>
    %710 = vector.extract_strided_slice %58 {offsets = [56, 0], sizes = [8, 16], strides = [1, 1]} : vector<64x16xf32> to vector<8x16xf32>
    %cst_312 = arith.constant dense<0.000000e+00> : vector<8x16xf32>
    %711 = tpu.matmul %653, %66, %cst_312 {dimension_numbers = #tpu.dot_dimension_numbers<[1], [0], [0], [1], [0, 0, 1, 1], [], []>} : vector<8x16xf32>, vector<16x16xf32>, vector<8x16xf32> -> vector<8x16xf32>
    %712 = arith.addf %710, %711 : vector<8x16xf32>
    %cst_313 = arith.constant 5.000000e-01 : f32
    %713 = vector.broadcast %cst_313 : f32 to vector<8x16xf32>
    %714 = arith.mulf %713, %706 : vector<8x16xf32>
    %715 = math.tanh %714 : vector<8x16xf32>
    %cst_314 = arith.constant 5.000000e-01 : f32
    %716 = vector.broadcast %cst_314 : f32 to vector<8x16xf32>
    %717 = arith.mulf %716, %715 : vector<8x16xf32>
    %cst_315 = arith.constant 5.000000e-01 : f32
    %718 = vector.broadcast %cst_315 : f32 to vector<8x16xf32>
    %719 = arith.addf %717, %718 : vector<8x16xf32>
    %720 = arith.mulf %719, %644 : vector<8x16xf32>
    %cst_316 = arith.constant 5.000000e-01 : f32
    %721 = vector.broadcast %cst_316 : f32 to vector<8x16xf32>
    %722 = arith.mulf %721, %703 : vector<8x16xf32>
    %723 = math.tanh %722 : vector<8x16xf32>
    %cst_317 = arith.constant 5.000000e-01 : f32
    %724 = vector.broadcast %cst_317 : f32 to vector<8x16xf32>
    %725 = arith.mulf %724, %723 : vector<8x16xf32>
    %cst_318 = arith.constant 5.000000e-01 : f32
    %726 = vector.broadcast %cst_318 : f32 to vector<8x16xf32>
    %727 = arith.addf %725, %726 : vector<8x16xf32>
    %728 = math.tanh %709 : vector<8x16xf32>
    %729 = arith.mulf %727, %728 : vector<8x16xf32>
    %730 = arith.addf %720, %729 : vector<8x16xf32>
    %cst_319 = arith.constant 5.000000e-01 : f32
    %731 = vector.broadcast %cst_319 : f32 to vector<8x16xf32>
    %732 = arith.mulf %731, %712 : vector<8x16xf32>
    %733 = math.tanh %732 : vector<8x16xf32>
    %cst_320 = arith.constant 5.000000e-01 : f32
    %734 = vector.broadcast %cst_320 : f32 to vector<8x16xf32>
    %735 = arith.mulf %734, %733 : vector<8x16xf32>
    %cst_321 = arith.constant 5.000000e-01 : f32
    %736 = vector.broadcast %cst_321 : f32 to vector<8x16xf32>
    %737 = arith.addf %735, %736 : vector<8x16xf32>
    %738 = math.tanh %730 : vector<8x16xf32>
    %739 = arith.mulf %737, %738 : vector<8x16xf32>
    %cst_322 = arith.constant dense<0.000000e+00> : vector<8x16xf32>
    %740 = tpu.matmul %739, %68, %cst_322 {dimension_numbers = #tpu.dot_dimension_numbers<[1], [0], [0], [1], [0, 0, 1, 1], [], []>} : vector<8x16xf32>, vector<16x16xf32>, vector<8x16xf32> -> vector<8x16xf32>
    %741 = vector.broadcast %84 : vector<1x16xf32> to vector<8x16xf32>
    %742 = arith.addf %741, %740 : vector<8x16xf32>
    %cst_323 = arith.constant dense<0.000000e+00> : vector<8x16xf32>
    %743 = tpu.matmul %700, %76, %cst_323 {dimension_numbers = #tpu.dot_dimension_numbers<[1], [0], [0], [1], [0, 0, 1, 1], [], []>} : vector<8x16xf32>, vector<16x16xf32>, vector<8x16xf32> -> vector<8x16xf32>
    %744 = arith.addf %742, %743 : vector<8x16xf32>
    %cst_324 = arith.constant dense<0.000000e+00> : vector<8x16xf32>
    %745 = tpu.matmul %739, %70, %cst_324 {dimension_numbers = #tpu.dot_dimension_numbers<[1], [0], [0], [1], [0, 0, 1, 1], [], []>} : vector<8x16xf32>, vector<16x16xf32>, vector<8x16xf32> -> vector<8x16xf32>
    %746 = vector.broadcast %86 : vector<1x16xf32> to vector<8x16xf32>
    %747 = arith.addf %746, %745 : vector<8x16xf32>
    %cst_325 = arith.constant dense<0.000000e+00> : vector<8x16xf32>
    %748 = tpu.matmul %700, %78, %cst_325 {dimension_numbers = #tpu.dot_dimension_numbers<[1], [0], [0], [1], [0, 0, 1, 1], [], []>} : vector<8x16xf32>, vector<16x16xf32>, vector<8x16xf32> -> vector<8x16xf32>
    %749 = arith.addf %747, %748 : vector<8x16xf32>
    %cst_326 = arith.constant dense<0.000000e+00> : vector<8x16xf32>
    %750 = tpu.matmul %739, %72, %cst_326 {dimension_numbers = #tpu.dot_dimension_numbers<[1], [0], [0], [1], [0, 0, 1, 1], [], []>} : vector<8x16xf32>, vector<16x16xf32>, vector<8x16xf32> -> vector<8x16xf32>
    %751 = vector.broadcast %88 : vector<1x16xf32> to vector<8x16xf32>
    %752 = arith.addf %751, %750 : vector<8x16xf32>
    %cst_327 = arith.constant dense<0.000000e+00> : vector<8x16xf32>
    %753 = tpu.matmul %700, %80, %cst_327 {dimension_numbers = #tpu.dot_dimension_numbers<[1], [0], [0], [1], [0, 0, 1, 1], [], []>} : vector<8x16xf32>, vector<16x16xf32>, vector<8x16xf32> -> vector<8x16xf32>
    %754 = arith.addf %752, %753 : vector<8x16xf32>
    %cst_328 = arith.constant dense<0.000000e+00> : vector<8x16xf32>
    %755 = tpu.matmul %739, %74, %cst_328 {dimension_numbers = #tpu.dot_dimension_numbers<[1], [0], [0], [1], [0, 0, 1, 1], [], []>} : vector<8x16xf32>, vector<16x16xf32>, vector<8x16xf32> -> vector<8x16xf32>
    %756 = vector.broadcast %90 : vector<1x16xf32> to vector<8x16xf32>
    %757 = arith.addf %756, %755 : vector<8x16xf32>
    %cst_329 = arith.constant dense<0.000000e+00> : vector<8x16xf32>
    %758 = tpu.matmul %700, %82, %cst_329 {dimension_numbers = #tpu.dot_dimension_numbers<[1], [0], [0], [1], [0, 0, 1, 1], [], []>} : vector<8x16xf32>, vector<16x16xf32>, vector<8x16xf32> -> vector<8x16xf32>
    %759 = arith.addf %757, %758 : vector<8x16xf32>
    %cst_330 = arith.constant 5.000000e-01 : f32
    %760 = vector.broadcast %cst_330 : f32 to vector<8x16xf32>
    %761 = arith.mulf %760, %749 : vector<8x16xf32>
    %762 = math.tanh %761 : vector<8x16xf32>
    %cst_331 = arith.constant 5.000000e-01 : f32
    %763 = vector.broadcast %cst_331 : f32 to vector<8x16xf32>
    %764 = arith.mulf %763, %762 : vector<8x16xf32>
    %cst_332 = arith.constant 5.000000e-01 : f32
    %765 = vector.broadcast %cst_332 : f32 to vector<8x16xf32>
    %766 = arith.addf %764, %765 : vector<8x16xf32>
    %767 = arith.mulf %766, %691 : vector<8x16xf32>
    %cst_333 = arith.constant 5.000000e-01 : f32
    %768 = vector.broadcast %cst_333 : f32 to vector<8x16xf32>
    %769 = arith.mulf %768, %744 : vector<8x16xf32>
    %770 = math.tanh %769 : vector<8x16xf32>
    %cst_334 = arith.constant 5.000000e-01 : f32
    %771 = vector.broadcast %cst_334 : f32 to vector<8x16xf32>
    %772 = arith.mulf %771, %770 : vector<8x16xf32>
    %cst_335 = arith.constant 5.000000e-01 : f32
    %773 = vector.broadcast %cst_335 : f32 to vector<8x16xf32>
    %774 = arith.addf %772, %773 : vector<8x16xf32>
    %775 = math.tanh %754 : vector<8x16xf32>
    %776 = arith.mulf %774, %775 : vector<8x16xf32>
    %777 = arith.addf %767, %776 : vector<8x16xf32>
    %cst_336 = arith.constant 5.000000e-01 : f32
    %778 = vector.broadcast %cst_336 : f32 to vector<8x16xf32>
    %779 = arith.mulf %778, %759 : vector<8x16xf32>
    %780 = math.tanh %779 : vector<8x16xf32>
    %cst_337 = arith.constant 5.000000e-01 : f32
    %781 = vector.broadcast %cst_337 : f32 to vector<8x16xf32>
    %782 = arith.mulf %781, %780 : vector<8x16xf32>
    %cst_338 = arith.constant 5.000000e-01 : f32
    %783 = vector.broadcast %cst_338 : f32 to vector<8x16xf32>
    %784 = arith.addf %782, %783 : vector<8x16xf32>
    %785 = math.tanh %777 : vector<8x16xf32>
    %786 = arith.mulf %784, %785 : vector<8x16xf32>
    %787 = tpu.concatenate %184, %270, %356, %442, %528, %614, %700, %786 in 0 : vector<8x16xf32>, vector<8x16xf32>, vector<8x16xf32>, vector<8x16xf32>, vector<8x16xf32>, vector<8x16xf32>, vector<8x16xf32>, vector<8x16xf32> -> vector<64x16xf32>
    %c0_339 = arith.constant 0 : index
    %c0_340 = arith.constant 0 : index
    %788 = vector.load %arg9[%c0_339, %c0_340] : memref<16x128xf32, #tpu.memory_space<vmem>>, vector<16x128xf32>
    %cst_341 = arith.constant dense<0.000000e+00> : vector<64x128xf32>
    %789 = tpu.matmul %787, %788, %cst_341 {dimension_numbers = #tpu.dot_dimension_numbers<[1], [0], [0], [1], [0, 0, 1, 1], [], []>} : vector<64x16xf32>, vector<16x128xf32>, vector<64x128xf32> -> vector<64x128xf32>
    %c0_342 = arith.constant 0 : index
    %c0_343 = arith.constant 0 : index
    %790 = vector.load %arg10[%c0_342, %c0_343] : memref<1x128xf32, #tpu.memory_space<vmem>>, vector<1x128xf32>
    %791 = vector.broadcast %790 : vector<1x128xf32> to vector<64x128xf32>
    %792 = arith.addf %789, %791 : vector<64x128xf32>
    %c0_344 = arith.constant 0 : index
    %c0_345 = arith.constant 0 : index
    %793 = vector.load %arg13[%c0_344, %c0_345] : memref<64x128xf32, #tpu.memory_space<vmem>>, vector<64x128xf32>
    tpu.vector_store %arg13[%c0_344, %c0_345], %792 {strides = array<i32>} : memref<64x128xf32, #tpu.memory_space<vmem>>, vector<64x128xf32>,
    %c0_346 = arith.constant 0 : index
    %c0_347 = arith.constant 0 : index
    %c0_348 = arith.constant 0 : index
    %794 = vector.load %arg14[%c0_346, %c0_347, %c0_348] : memref<2x8x16xf32, #tpu.memory_space<vmem>>, vector<1x8x16xf32>
    %795 = vector.shape_cast %794 : vector<1x8x16xf32> to vector<8x16xf32>
    %796 = vector.shape_cast %739 : vector<8x16xf32> to vector<1x8x16xf32>
    tpu.vector_store %arg14[%c0_346, %c0_347, %c0_348], %796 {strides = array<i32>} : memref<2x8x16xf32, #tpu.memory_space<vmem>>, vector<1x8x16xf32>,
    %c1_349 = arith.constant 1 : index
    %c0_350 = arith.constant 0 : index
    %c0_351 = arith.constant 0 : index
    %797 = vector.load %arg14[%c1_349, %c0_350, %c0_351] : memref<2x8x16xf32, #tpu.memory_space<vmem>>, vector<1x8x16xf32>
    %798 = vector.shape_cast %797 : vector<1x8x16xf32> to vector<8x16xf32>
    %799 = vector.shape_cast %786 : vector<8x16xf32> to vector<1x8x16xf32>
    tpu.vector_store %arg14[%c1_349, %c0_350, %c0_351], %799 {strides = array<i32>} : memref<2x8x16xf32, #tpu.memory_space<vmem>>, vector<1x8x16xf32>,
    %c0_352 = arith.constant 0 : index
    %c0_353 = arith.constant 0 : index
    %c0_354 = arith.constant 0 : index
    %800 = vector.load %arg15[%c0_352, %c0_353, %c0_354] : memref<2x8x16xf32, #tpu.memory_space<vmem>>, vector<1x8x16xf32>
    %801 = vector.shape_cast %800 : vector<1x8x16xf32> to vector<8x16xf32>
    %802 = vector.shape_cast %730 : vector<8x16xf32> to vector<1x8x16xf32>
    tpu.vector_store %arg15[%c0_352, %c0_353, %c0_354], %802 {strides = array<i32>} : memref<2x8x16xf32, #tpu.memory_space<vmem>>, vector<1x8x16xf32>,
    %c1_355 = arith.constant 1 : index
    %c0_356 = arith.constant 0 : index
    %c0_357 = arith.constant 0 : index
    %803 = vector.load %arg15[%c1_355, %c0_356, %c0_357] : memref<2x8x16xf32, #tpu.memory_space<vmem>>, vector<1x8x16xf32>
    %804 = vector.shape_cast %803 : vector<1x8x16xf32> to vector<8x16xf32>
    %805 = vector.shape_cast %777 : vector<8x16xf32> to vector<1x8x16xf32>
    tpu.vector_store %arg15[%c1_355, %c0_356, %c0_357], %805 {strides = array<i32>} : memref<2x8x16xf32, #tpu.memory_space<vmem>>, vector<1x8x16xf32>,
    return
  }
}

</mosaic_0001>

<llo_original>
// kernel: model_forward.1
$region0: #{model_forward.1}
  #allocation0 [shape = 'u32[]', space=smem, size = 0x4, offset = 0x4, fixed_abs, tag = 'smem constant byte address 0x4 - core index']
  #allocation1 [shape = 'u32[144,128]{1,0:T(1,128)}', space=vmem, size = 0x12000, scoped, tag = 'internal scratch']
  %s0 = inlined_call_operand.vmem [shape: s32[64,1], index: 0, kind: input, shape index: {}]
  %s1 = inlined_call_operand.vmem [shape: f32[64,1], index: 1, kind: input, shape index: {}]
  %s2 = inlined_call_operand.vmem [shape: f32[4,20,16], index: 2, kind: input, shape index: {}]
  %s3 = inlined_call_operand.vmem [shape: f32[4,1,16], index: 3, kind: input, shape index: {}]
  %s4 = inlined_call_operand.vmem [shape: f32[4,1,16], index: 4, kind: input, shape index: {}]
  %s5 = inlined_call_operand.vmem [shape: f32[4,16,16], index: 5, kind: input, shape index: {}]
  %s6 = inlined_call_operand.vmem [shape: f32[4,16,16], index: 6, kind: input, shape index: {}]
  %s7 = inlined_call_operand.vmem [shape: f32[4,16,16], index: 7, kind: input, shape index: {}]
  %s8 = inlined_call_operand.vmem [shape: f32[4,1,16], index: 8, kind: input, shape index: {}]
  %s9 = inlined_call_operand.vmem [shape: f32[16,128], index: 9, kind: input, shape index: {}]
  %s10 = inlined_call_operand.vmem [shape: f32[1,128], index: 10, kind: input, shape index: {}]
  %s11 = inlined_call_operand.vmem [shape: f32[2,8,16], index: 11, kind: input, shape index: {}]
  %s12 = inlined_call_operand.vmem [shape: f32[2,8,16], index: 12, kind: input, shape index: {}]
  %s13 = inlined_call_operand.vmem [shape: f32[64,128], index: 13, kind: output, shape index: {0}]
  %s14 = inlined_call_operand.hbm [shape: f32[2,8,16], index: 14, kind: output, shape index: {1}]
  %s15 = inlined_call_operand.hbm [shape: f32[2,8,16], index: 15, kind: output, shape index: {2}]
  %16 = xla_tuple %s13, %s14, %s15
  %s17 = sld [smem:[#allocation0]]
  $region78: #{model_forward.1} parent=0
    _
  %s19 = ssub.s32 1, %s17
  %s20 = scalar_select 0, %s19, %s17
  $region1: #{model_forward.1} parent=0
    #allocation2 [shape = 'u8[8192]{0}', space=vmem, size = 0x2000, scoped, tag = 'output window, operand 1, single buffered']
    #allocation3 [shape = 's32[1]{0}', space=sflag, size = 0x4, scoped, tag = 'scoped memory for model_forward.1']
    #allocation4 [shape = 'u8[8192]{0}', space=vmem, size = 0x2000, scoped, tag = 'output window, operand 2, single buffered']
    #allocation5 [shape = 's32[1]{0}', space=sflag, size = 0x4, scoped, tag = 'scoped memory for model_forward.1']
    %21 = vsyncpa [#allocation3], 0
    %22 = vsyncpa [#allocation5], 0
    // Predicated region
    $region2: #{model_forward.1} parent=1 // pred_check
      _
    $region3: #{model_forward.1} parent=1 // pred_check_branch
      %24 = sbr.rel (0) target = $region5
    $region4: #{model_forward.1} parent=1 // pred_region
      _
    $region5: #{model_forward.1} parent=1 // pred_fallthru
      _
    // Predicated region
    $region6: #{model_forward.1} parent=1 // pred_check
      _
    $region7: #{model_forward.1} parent=1 // pred_check_branch
      %26 = sbr.rel (0) target = $region9
    $region8: #{model_forward.1} parent=1 // pred_region
      _
    $region9: #{model_forward.1} parent=1 // pred_fallthru
      _
    // Predicated region
    $region10: #{model_forward.1} parent=1 // pred_check
      _
    $region11: #{model_forward.1} parent=1 // pred_check_branch
      %28 = sbr.rel (0) target = $region13
    $region12: #{model_forward.1} parent=1 // pred_region
      _
    $region13: #{model_forward.1} parent=1 // pred_fallthru
      _
    // Predicated region
    $region14: #{model_forward.1} parent=1 // pred_check
      _
    $region15: #{model_forward.1} parent=1 // pred_check_branch
      %30 = sbr.rel (0) target = $region17
    $region16: #{model_forward.1} parent=1 // pred_region
      _
    $region17: #{model_forward.1} parent=1 // pred_fallthru
      _
    // Predicated region
    $region18: #{model_forward.1} parent=1 // pred_check
      _
    $region19: #{model_forward.1} parent=1 // pred_check_branch
      %32 = sbr.rel (0) target = $region21
    $region20: #{model_forward.1} parent=1 // pred_region
      _
    $region21: #{model_forward.1} parent=1 // pred_fallthru
      _
    // Predicated region
    $region22: #{model_forward.1} parent=1 // pred_check
      _
    $region23: #{model_forward.1} parent=1 // pred_check_branch
      %34 = sbr.rel (0) target = $region25
    $region24: #{model_forward.1} parent=1 // pred_region
      _
    $region25: #{model_forward.1} parent=1 // pred_fallthru
      _
    // Predicated region
    $region26: #{model_forward.1} parent=1 // pred_check
      _
    $region27: #{model_forward.1} parent=1 // pred_check_branch
      %36 = sbr.rel (0) target = $region29
    $region28: #{model_forward.1} parent=1 // pred_region
      _
    $region29: #{model_forward.1} parent=1 // pred_fallthru
      _
    // Predicated region
    $region30: #{model_forward.1} parent=1 // pred_check
      _
    $region31: #{model_forward.1} parent=1 // pred_check_branch
      %38 = sbr.rel (0) target = $region33
    $region32: #{model_forward.1} parent=1 // pred_region
      _
    $region33: #{model_forward.1} parent=1 // pred_fallthru
      _
    // Predicated region
    $region34: #{model_forward.1} parent=1 // pred_check
      _
    $region35: #{model_forward.1} parent=1 // pred_check_branch
      %40 = sbr.rel (0) target = $region37
    $region36: #{model_forward.1} parent=1 // pred_region
      _
    $region37: #{model_forward.1} parent=1 // pred_fallthru
      _
    // Predicated region
    $region38: #{model_forward.1} parent=1 // pred_check
      _
    $region39: #{model_forward.1} parent=1 // pred_check_branch
      %42 = sbr.rel (0) target = $region41
    $region40: #{model_forward.1} parent=1 // pred_region
      _
    $region41: #{model_forward.1} parent=1 // pred_fallthru
      _
    // Predicated region
    $region42: #{model_forward.1} parent=1 // pred_check
      _
    $region43: #{model_forward.1} parent=1 // pred_check_branch
      %44 = sbr.rel (0) target = $region45
    $region44: #{model_forward.1} parent=1 // pred_region
      _
    $region45: #{model_forward.1} parent=1 // pred_fallthru
      _
    // Predicated region
    $region46: #{model_forward.1} parent=1 // pred_check
      _
    $region47: #{model_forward.1} parent=1 // pred_check_branch
      %46 = sbr.rel (0) target = $region49
    $region48: #{model_forward.1} parent=1 // pred_region
      _
    $region49: #{model_forward.1} parent=1 // pred_fallthru
      _
    // Predicated region
    $region50: #{model_forward.1} parent=1 // pred_check
      _
    $region51: #{model_forward.1} parent=1 // pred_check_branch
      %48 = sbr.rel (0) target = $region53
    $region52: #{model_forward.1} parent=1 // pred_region
      _
    $region53: #{model_forward.1} parent=1 // pred_fallthru
      _
    %v49 = vld [vmem:[%s0] sm:$0xff]
    %v50 = vld [vmem:[%s0 + $0x8] sm:$0xff]
    %v51 = vld [vmem:[%s0 + $0x10] sm:$0xff]
    %v52 = vld [vmem:[%s0 + $0x18] sm:$0xff]
    %v53 = vld [vmem:[%s0 + $0x20] sm:$0xff]
    %v54 = vld [vmem:[%s0 + $0x28] sm:$0xff]
    %v55 = vld [vmem:[%s0 + $0x30] sm:$0xff]
    %v56 = vld [vmem:[%s0 + $0x38] sm:$0xff]
    %v57 = vld [vmem:[%s1] sm:$0xff]
    %v58 = vld [vmem:[%s1 + $0x8] sm:$0xff]
    %v59 = vld [vmem:[%s1 + $0x10] sm:$0xff]
    %v60 = vld [vmem:[%s1 + $0x18] sm:$0xff]
    %v61 = vld [vmem:[%s1 + $0x20] sm:$0xff]
    %v62 = vld [vmem:[%s1 + $0x28] sm:$0xff]
    %v63 = vld [vmem:[%s1 + $0x30] sm:$0xff]
    %v64 = vld [vmem:[%s1 + $0x38] sm:$0xff]
    %v65 = vlaneseq
    %v66 = vand.u32 %v65, 127
    %67 = vset.pattern.permute.xlu0 0
    %68 = vperm.xlu0 %67, %v49
    %v69 = vpop.permute.xlu0 %68
    %70 = vset.pattern.permute.xlu0 0
    %71 = vperm.xlu0 %70, %v50
    %v72 = vpop.permute.xlu0 %71
    %73 = vset.pattern.permute.xlu0 0
    %74 = vperm.xlu0 %73, %v51
    %v75 = vpop.permute.xlu0 %74
    %76 = vset.pattern.permute.xlu0 0
    %77 = vperm.xlu0 %76, %v52
    %v78 = vpop.permute.xlu0 %77
    %79 = vset.pattern.permute.xlu0 0
    %80 = vperm.xlu0 %79, %v53
    %v81 = vpop.permute.xlu0 %80
    %82 = vset.pattern.permute.xlu0 0
    %83 = vperm.xlu0 %82, %v54
    %v84 = vpop.permute.xlu0 %83
    %85 = vset.pattern.permute.xlu0 0
    %86 = vperm.xlu0 %85, %v55
    %v87 = vpop.permute.xlu0 %86
    %88 = vset.pattern.permute.xlu0 0
    %89 = vperm.xlu0 %88, %v56
    %v90 = vpop.permute.xlu0 %89
    %vm91 = vcmp.eq.s32.totalorder %v66, %v69
    %vm92 = vcmp.eq.s32.totalorder %v66, %v72
    %vm93 = vcmp.eq.s32.totalorder %v66, %v75
    %vm94 = vcmp.eq.s32.totalorder %v66, %v78
    %vm95 = vcmp.eq.s32.totalorder %v66, %v81
    %vm96 = vcmp.eq.s32.totalorder %v66, %v84
    %vm97 = vcmp.eq.s32.totalorder %v66, %v87
    %vm98 = vcmp.eq.s32.totalorder %v66, %v90
    %v99 = vsel %vm91, 1, 0
    %v100 = vsel %vm92, 1, 0
    %v101 = vsel %vm93, 1, 0
    %v102 = vsel %vm94, 1, 0
    %v103 = vsel %vm95, 1, 0
    %v104 = vsel %vm96, 1, 0
    %v105 = vsel %vm97, 1, 0
    %v106 = vsel %vm98, 1, 0
    %v107 = vcvt.s32.f32 %v99
    %v108 = vcvt.s32.f32 %v100
    %v109 = vcvt.s32.f32 %v101
    %v110 = vcvt.s32.f32 %v102
    %v111 = vcvt.s32.f32 %v103
    %v112 = vcvt.s32.f32 %v104
    %v113 = vcvt.s32.f32 %v105
    %v114 = vcvt.s32.f32 %v106
    %v115 = vld [vmem:[%s2] sm:$0xff]
    %v116 = vld [vmem:[%s2 + $0x8] sm:$0xff]
    %v117 = vld [vmem:[%s2 + $0x10] sm:$0xf]
    %v118 = vld [vmem:[%s3] sm:$0x1]
    %120 = vset.pattern.permute.xlu0 0
    %121 = vperm.xlu0 %120, %v57
    %v122 = vpop.permute.xlu0 %121
    %125 = vset.pattern.permute.xlu0 0
    %126 = vperm.xlu0 %125, %v58
    %v127 = vpop.permute.xlu0 %126
    %130 = vset.pattern.permute.xlu0 0
    %131 = vperm.xlu0 %130, %v59
    %v132 = vpop.permute.xlu0 %131
    %135 = vset.pattern.permute.xlu0 0
    %136 = vperm.xlu0 %135, %v60
    %v137 = vpop.permute.xlu0 %136
    %140 = vset.pattern.permute.xlu0 0
    %141 = vperm.xlu0 %140, %v61
    %v142 = vpop.permute.xlu0 %141
    %145 = vset.pattern.permute.xlu0 0
    %146 = vperm.xlu0 %145, %v62
    %v147 = vpop.permute.xlu0 %146
    %150 = vset.pattern.permute.xlu0 0
    %151 = vperm.xlu0 %150, %v63
    %v152 = vpop.permute.xlu0 %151
    %155 = vset.pattern.permute.xlu0 0
    %156 = vperm.xlu0 %155, %v64
    %v157 = vpop.permute.xlu0 %156
    %v160 = vlaneseq
    %v161 = vshrl.u32 %v160, 7
    %v162 = vsub.s32 0, %v161
    %v163 = vrot.slane %v118, %v162
    %v165 = vmul.f32 %v122, %v163
    %v166 = vmul.f32 %v127, %v163
    %v167 = vmul.f32 %v132, %v163
    %v168 = vmul.f32 %v137, %v163
    %v169 = vmul.f32 %v142, %v163
    %v170 = vmul.f32 %v147, %v163
    %v171 = vmul.f32 %v152, %v163
    %v172 = vmul.f32 %v157, %v163
    %vm173 = vcmask 162816
    %v175 = vsel %vm173, %v107, 0
    %v178 = vsel %vm173, %v108, 0
    %v181 = vsel %vm173, %v109, 0
    %v184 = vsel %vm173, %v110, 0
    %v187 = vsel %vm173, %v111, 0
    %v190 = vsel %vm173, %v112, 0
    %v193 = vsel %vm173, %v113, 0
    %v196 = vsel %vm173, %v114, 0
    %vm198 = vcmask 1043456
    %v200 = vsel %vm198, %v117, 0
    %202 = vmatprep.subr.mxu0 0.0
    %203 = vmatpush1.msra.mxu0 0.0
    %204 = vmatprep.subr.mxu0 0.0
    %205 = vmatpush1.msra.mxu0 0.0
    %206 = vmatprep.subr.mxu0 0.0
    %207 = vmatpush1.msra.mxu0 0.0
    %208 = vmatprep.subr.mxu0 0.0
    %209 = vmatpush1.msra.mxu0 0.0
    %210 = vmatprep.subr.mxu0 0.0
    %211 = vmatpush1.msra.mxu0 0.0
    %212 = vmatprep.subr.mxu0 0.0
    %213 = vmatpush1.msra.mxu0 0.0
    %214 = vmatprep.subr.mxu0 0.0
    %215 = vmatpush1.msra.mxu0 0.0
    %216 = vmatprep.subr.mxu0 0.0
    %217 = vmatpush1.msra.mxu0 0.0
    %218 = vmatprep.subr.mxu0 0.0
    %219 = vmatpush1.msra.mxu0 0.0
    %220 = vmatprep.subr.mxu0 0.0
    %221 = vmatpush1.msra.mxu0 0.0
    %222 = vmatprep.subr.mxu0 0.0
    %223 = vmatpush1.msra.mxu0 0.0
    %224 = vmatprep.subr.mxu0 0.0
    %225 = vmatpush1.msra.mxu0 0.0
    %226 = vmatprep.subr.mxu0 0.0
    %227 = vmatpush1.msra.mxu0 0.0
    %228 = vmatprep.subr.mxu0 0.0
    %229 = vmatpush1.msra.mxu0 %v200
    %230 = vmatprep.subr.mxu0 0.0
    %231 = vmatpush1.msra.mxu0 %v116
    %232 = vmatprep.subr.mxu0 0.0
    %233 = vmatpush1.msra.mxu0 %v115
    %234 = vmatprep.subr.mxu0 0.0
    %235 = vmatpush2.msra.mxu0 0.0
    %236 = vmatprep.subr.mxu0 0.0
    %237 = vmatpush2.msra.mxu0 0.0
    %238 = vmatprep.subr.mxu0 0.0
    %239 = vmatpush2.msra.mxu0 0.0
    %240 = vmatprep.subr.mxu0 0.0
    %241 = vmatpush2.msra.mxu0 0.0
    %242 = vmatprep.subr.mxu0 0.0
    %243 = vmatpush2.msra.mxu0 0.0
    %244 = vmatprep.subr.mxu0 0.0
    %245 = vmatpush2.msra.mxu0 0.0
    %246 = vmatprep.subr.mxu0 0.0
    %247 = vmatpush2.msra.mxu0 0.0
    %248 = vmatprep.subr.mxu0 0.0
    %249 = vmatpush2.msra.mxu0 0.0
    %250 = vmatprep.subr.mxu0 0.0
    %251 = vmatpush2.msra.mxu0 0.0
    %252 = vmatprep.subr.mxu0 0.0
    %253 = vmatpush2.msra.mxu0 0.0
    %254 = vmatprep.subr.mxu0 0.0
    %255 = vmatpush2.msra.mxu0 0.0
    %256 = vmatprep.subr.mxu0 0.0
    %257 = vmatpush2.msra.mxu0 0.0
    %258 = vmatprep.subr.mxu0 0.0
    %259 = vmatpush2.msra.mxu0 0.0
    %260 = vmatprep.subr.mxu0 0.0
    %261 = vmatpush2.msra.mxu0 0.0
    %262 = vmatprep.subr.mxu0 0.0
    %263 = vmatpush2.msra.mxu0 0.0
    %264 = vmatprep.subr.mxu0 0.0
    %265 = vmatpush2.msra.mxu0 0.0
    %266 = vmatprep.mubr.f32.mxu0 0.0
    %267 = vmatmul.mubr.f32.gmra.mxu0 %v175
    %v268 = vpop.f32.mrf.mxu0
    %v269 = vadd.f32 %v165, %v268
    %v270 = vpop.f32.mrf.mxu0
    %271 = vmatprep.mubr.f32.mxu0 0.0
    %272 = vmatmul.mubr.f32.gmra.mxu0 %v178
    %v273 = vpop.f32.mrf.mxu0
    %v274 = vadd.f32 %v166, %v273
    %v275 = vpop.f32.mrf.mxu0
    %276 = vmatprep.mubr.f32.mxu0 0.0
    %277 = vmatmul.mubr.f32.gmra.mxu0 %v181
    %v278 = vpop.f32.mrf.mxu0
    %v279 = vadd.f32 %v167, %v278
    %v280 = vpop.f32.mrf.mxu0
    %281 = vmatprep.mubr.f32.mxu0 0.0
    %282 = vmatmul.mubr.f32.gmra.mxu0 %v184
    %v283 = vpop.f32.mrf.mxu0
    %v284 = vadd.f32 %v168, %v283
    %v285 = vpop.f32.mrf.mxu0
    %286 = vmatprep.mubr.f32.mxu0 0.0
    %287 = vmatmul.mubr.f32.gmra.mxu0 %v187
    %v288 = vpop.f32.mrf.mxu0
    %v289 = vadd.f32 %v169, %v288
    %v290 = vpop.f32.mrf.mxu0
    %291 = vmatprep.mubr.f32.mxu0 0.0
    %292 = vmatmul.mubr.f32.gmra.mxu0 %v190
    %v293 = vpop.f32.mrf.mxu0
    %v294 = vadd.f32 %v170, %v293
    %v295 = vpop.f32.mrf.mxu0
    %296 = vmatprep.mubr.f32.mxu0 0.0
    %297 = vmatmul.mubr.f32.gmra.mxu0 %v193
    %v298 = vpop.f32.mrf.mxu0
    %v299 = vadd.f32 %v171, %v298
    %v300 = vpop.f32.mrf.mxu0
    %301 = vmatprep.mubr.f32.mxu0 0.0
    %302 = vmatmul.mubr.f32.gmra.mxu0 %v196
    %v303 = vpop.f32.mrf.mxu0
    %v304 = vadd.f32 %v172, %v303
    %v305 = vpop.f32.mrf.mxu0
    %306 = vdwg.mxu0
    %v307 = vld [vmem:[%s4] sm:$0x1]
    %v309 = vlaneseq
    %v310 = vshrl.u32 %v309, 7
    %v311 = vsub.s32 0, %v310
    %v312 = vrot.slane %v307, %v311
    %v314 = vadd.f32 %v269, %v312
    %v315 = vadd.f32 %v274, %v312
    %v316 = vadd.f32 %v279, %v312
    %v317 = vadd.f32 %v284, %v312
    %v318 = vadd.f32 %v289, %v312
    %v319 = vadd.f32 %v294, %v312
    %v320 = vadd.f32 %v299, %v312
    %v321 = vadd.f32 %v304, %v312
    %s322 = scalar_lea.vmem %s2, 24
    %v323 = vld [vmem:[%s322] sm:$0xff]
    %v324 = vld [vmem:[%s322 + $0x8] sm:$0xff]
    %v325 = vld [vmem:[%s322 + $0x10] sm:$0xf]
    %s326 = scalar_lea.vmem %s3, 1
    %v327 = vld [vmem:[%s326] sm:$0x1]
    %v329 = vlaneseq
    %v330 = vshrl.u32 %v329, 7
    %v331 = vsub.s32 0, %v330
    %v332 = vrot.slane %v327, %v331
    %v334 = vmul.f32 %v122, %v332
    %v335 = vmul.f32 %v127, %v332
    %v336 = vmul.f32 %v132, %v332
    %v337 = vmul.f32 %v137, %v332
    %v338 = vmul.f32 %v142, %v332
    %v339 = vmul.f32 %v147, %v332
    %v340 = vmul.f32 %v152, %v332
    %v341 = vmul.f32 %v157, %v332
    %v343 = vsel %vm198, %v325, 0
    %345 = vmatprep.subr.mxu0 0.0
    %346 = vmatpush1.msra.mxu0 0.0
    %347 = vmatprep.subr.mxu0 0.0
    %348 = vmatpush1.msra.mxu0 0.0
    %349 = vmatprep.subr.mxu0 0.0
    %350 = vmatpush1.msra.mxu0 0.0
    %351 = vmatprep.subr.mxu0 0.0
    %352 = vmatpush1.msra.mxu0 0.0
    %353 = vmatprep.subr.mxu0 0.0
    %354 = vmatpush1.msra.mxu0 0.0
    %355 = vmatprep.subr.mxu0 0.0
    %356 = vmatpush1.msra.mxu0 0.0
    %357 = vmatprep.subr.mxu0 0.0
    %358 = vmatpush1.msra.mxu0 0.0
    %359 = vmatprep.subr.mxu0 0.0
    %360 = vmatpush1.msra.mxu0 0.0
    %361 = vmatprep.subr.mxu0 0.0
    %362 = vmatpush1.msra.mxu0 0.0
    %363 = vmatprep.subr.mxu0 0.0
    %364 = vmatpush1.msra.mxu0 0.0
    %365 = vmatprep.subr.mxu0 0.0
    %366 = vmatpush1.msra.mxu0 0.0
    %367 = vmatprep.subr.mxu0 0.0
    %368 = vmatpush1.msra.mxu0 0.0
    %369 = vmatprep.subr.mxu0 0.0
    %370 = vmatpush1.msra.mxu0 0.0
    %371 = vmatprep.subr.mxu0 0.0
    %372 = vmatpush1.msra.mxu0 %v343
    %373 = vmatprep.subr.mxu0 0.0
    %374 = vmatpush1.msra.mxu0 %v324
    %375 = vmatprep.subr.mxu0 0.0
    %376 = vmatpush1.msra.mxu0 %v323
    %377 = vmatprep.subr.mxu0 0.0
    %378 = vmatpush2.msra.mxu0 0.0
    %379 = vmatprep.subr.mxu0 0.0
    %380 = vmatpush2.msra.mxu0 0.0
    %381 = vmatprep.subr.mxu0 0.0
    %382 = vmatpush2.msra.mxu0 0.0
    %383 = vmatprep.subr.mxu0 0.0
    %384 = vmatpush2.msra.mxu0 0.0
    %385 = vmatprep.subr.mxu0 0.0
    %386 = vmatpush2.msra.mxu0 0.0
    %387 = vmatprep.subr.mxu0 0.0
    %388 = vmatpush2.msra.mxu0 0.0
    %389 = vmatprep.subr.mxu0 0.0
    %390 = vmatpush2.msra.mxu0 0.0
    %391 = vmatprep.subr.mxu0 0.0
    %392 = vmatpush2.msra.mxu0 0.0
    %393 = vmatprep.subr.mxu0 0.0
    %394 = vmatpush2.msra.mxu0 0.0
    %395 = vmatprep.subr.mxu0 0.0
    %396 = vmatpush2.msra.mxu0 0.0
    %397 = vmatprep.subr.mxu0 0.0
    %398 = vmatpush2.msra.mxu0 0.0
    %399 = vmatprep.subr.mxu0 0.0
    %400 = vmatpush2.msra.mxu0 0.0
    %401 = vmatprep.subr.mxu0 0.0
    %402 = vmatpush2.msra.mxu0 0.0
    %403 = vmatprep.subr.mxu0 0.0
    %404 = vmatpush2.msra.mxu0 0.0
    %405 = vmatprep.subr.mxu0 0.0
    %406 = vmatpush2.msra.mxu0 0.0
    %407 = vmatprep.subr.mxu0 0.0
    %408 = vmatpush2.msra.mxu0 0.0
    %409 = vmatprep.mubr.f32.mxu0 0.0
    %410 = vmatmul.mubr.f32.gmra.mxu0 %v175
    %v411 = vpop.f32.mrf.mxu0
    %v412 = vadd.f32 %v334, %v411
    %v413 = vpop.f32.mrf.mxu0
    %414 = vmatprep.mubr.f32.mxu0 0.0
    %415 = vmatmul.mubr.f32.gmra.mxu0 %v178
    %v416 = vpop.f32.mrf.mxu0
    %v417 = vadd.f32 %v335, %v416
    %v418 = vpop.f32.mrf.mxu0
    %419 = vmatprep.mubr.f32.mxu0 0.0
    %420 = vmatmul.mubr.f32.gmra.mxu0 %v181
    %v421 = vpop.f32.mrf.mxu0
    %v422 = vadd.f32 %v336, %v421
    %v423 = vpop.f32.mrf.mxu0
    %424 = vmatprep.mubr.f32.mxu0 0.0
    %425 = vmatmul.mubr.f32.gmra.mxu0 %v184
    %v426 = vpop.f32.mrf.mxu0
    %v427 = vadd.f32 %v337, %v426
    %v428 = vpop.f32.mrf.mxu0
    %429 = vmatprep.mubr.f32.mxu0 0.0
    %430 = vmatmul.mubr.f32.gmra.mxu0 %v187
    %v431 = vpop.f32.mrf.mxu0
    %v432 = vadd.f32 %v338, %v431
    %v433 = vpop.f32.mrf.mxu0
    %434 = vmatprep.mubr.f32.mxu0 0.0
    %435 = vmatmul.mubr.f32.gmra.mxu0 %v190
    %v436 = vpop.f32.mrf.mxu0
    %v437 = vadd.f32 %v339, %v436
    %v438 = vpop.f32.mrf.mxu0
    %439 = vmatprep.mubr.f32.mxu0 0.0
    %440 = vmatmul.mubr.f32.gmra.mxu0 %v193
    %v441 = vpop.f32.mrf.mxu0
    %v442 = vadd.f32 %v340, %v441
    %v443 = vpop.f32.mrf.mxu0
    %444 = vmatprep.mubr.f32.mxu0 0.0
    %445 = vmatmul.mubr.f32.gmra.mxu0 %v196
    %v446 = vpop.f32.mrf.mxu0
    %v447 = vadd.f32 %v341, %v446
    %v448 = vpop.f32.mrf.mxu0
    %449 = vdwg.mxu0
    %s450 = scalar_lea.vmem %s4, 1
    %v451 = vld [vmem:[%s450] sm:$0x1]
    %v453 = vlaneseq
    %v454 = vshrl.u32 %v453, 7
    %v455 = vsub.s32 0, %v454
    %v456 = vrot.slane %v451, %v455
    %v458 = vadd.f32 %v412, %v456
    %v459 = vadd.f32 %v417, %v456
    %v460 = vadd.f32 %v422, %v456
    %v461 = vadd.f32 %v427, %v456
    %v462 = vadd.f32 %v432, %v456
    %v463 = vadd.f32 %v437, %v456
    %v464 = vadd.f32 %v442, %v456
    %v465 = vadd.f32 %v447, %v456
    %s466 = scalar_lea.vmem %s2, 48
    %v467 = vld [vmem:[%s466] sm:$0xff]
    %v468 = vld [vmem:[%s466 + $0x8] sm:$0xff]
    %v469 = vld [vmem:[%s466 + $0x10] sm:$0xf]
    %s470 = scalar_lea.vmem %s3, 2
    %v471 = vld [vmem:[%s470] sm:$0x1]
    %v473 = vlaneseq
    %v474 = vshrl.u32 %v473, 7
    %v475 = vsub.s32 0, %v474
    %v476 = vrot.slane %v471, %v475
    %v478 = vmul.f32 %v122, %v476
    %v479 = vmul.f32 %v127, %v476
    %v480 = vmul.f32 %v132, %v476
    %v481 = vmul.f32 %v137, %v476
    %v482 = vmul.f32 %v142, %v476
    %v483 = vmul.f32 %v147, %v476
    %v484 = vmul.f32 %v152, %v476
    %v485 = vmul.f32 %v157, %v476
    %v487 = vsel %vm198, %v469, 0
    %489 = vmatprep.subr.mxu0 0.0
    %490 = vmatpush1.msra.mxu0 0.0
    %491 = vmatprep.subr.mxu0 0.0
    %492 = vmatpush1.msra.mxu0 0.0
    %493 = vmatprep.subr.mxu0 0.0
    %494 = vmatpush1.msra.mxu0 0.0
    %495 = vmatprep.subr.mxu0 0.0
    %496 = vmatpush1.msra.mxu0 0.0
    %497 = vmatprep.subr.mxu0 0.0
    %498 = vmatpush1.msra.mxu0 0.0
    %499 = vmatprep.subr.mxu0 0.0
    %500 = vmatpush1.msra.mxu0 0.0
    %501 = vmatprep.subr.mxu0 0.0
    %502 = vmatpush1.msra.mxu0 0.0
    %503 = vmatprep.subr.mxu0 0.0
    %504 = vmatpush1.msra.mxu0 0.0
    %505 = vmatprep.subr.mxu0 0.0
    %506 = vmatpush1.msra.mxu0 0.0
    %507 = vmatprep.subr.mxu0 0.0
    %508 = vmatpush1.msra.mxu0 0.0
    %509 = vmatprep.subr.mxu0 0.0
    %510 = vmatpush1.msra.mxu0 0.0
    %511 = vmatprep.subr.mxu0 0.0
    %512 = vmatpush1.msra.mxu0 0.0
    %513 = vmatprep.subr.mxu0 0.0
    %514 = vmatpush1.msra.mxu0 0.0
    %515 = vmatprep.subr.mxu0 0.0
    %516 = vmatpush1.msra.mxu0 %v487
    %517 = vmatprep.subr.mxu0 0.0
    %518 = vmatpush1.msra.mxu0 %v468
    %519 = vmatprep.subr.mxu0 0.0
    %520 = vmatpush1.msra.mxu0 %v467
    %521 = vmatprep.subr.mxu0 0.0
    %522 = vmatpush2.msra.mxu0 0.0
    %523 = vmatprep.subr.mxu0 0.0
    %524 = vmatpush2.msra.mxu0 0.0
    %525 = vmatprep.subr.mxu0 0.0
    %526 = vmatpush2.msra.mxu0 0.0
    %527 = vmatprep.subr.mxu0 0.0
    %528 = vmatpush2.msra.mxu0 0.0
    %529 = vmatprep.subr.mxu0 0.0
    %530 = vmatpush2.msra.mxu0 0.0
    %531 = vmatprep.subr.mxu0 0.0
    %532 = vmatpush2.msra.mxu0 0.0
    %533 = vmatprep.subr.mxu0 0.0
    %534 = vmatpush2.msra.mxu0 0.0
    %535 = vmatprep.subr.mxu0 0.0
    %536 = vmatpush2.msra.mxu0 0.0
    %537 = vmatprep.subr.mxu0 0.0
    %538 = vmatpush2.msra.mxu0 0.0
    %539 = vmatprep.subr.mxu0 0.0
    %540 = vmatpush2.msra.mxu0 0.0
    %541 = vmatprep.subr.mxu0 0.0
    %542 = vmatpush2.msra.mxu0 0.0
    %543 = vmatprep.subr.mxu0 0.0
    %544 = vmatpush2.msra.mxu0 0.0
    %545 = vmatprep.subr.mxu0 0.0
    %546 = vmatpush2.msra.mxu0 0.0
    %547 = vmatprep.subr.mxu0 0.0
    %548 = vmatpush2.msra.mxu0 0.0
    %549 = vmatprep.subr.mxu0 0.0
    %550 = vmatpush2.msra.mxu0 0.0
    %551 = vmatprep.subr.mxu0 0.0
    %552 = vmatpush2.msra.mxu0 0.0
    %553 = vmatprep.mubr.f32.mxu0 0.0
    %554 = vmatmul.mubr.f32.gmra.mxu0 %v175
    %v555 = vpop.f32.mrf.mxu0
    %v556 = vadd.f32 %v478, %v555
    %v557 = vpop.f32.mrf.mxu0
    %558 = vmatprep.mubr.f32.mxu0 0.0
    %559 = vmatmul.mubr.f32.gmra.mxu0 %v178
    %v560 = vpop.f32.mrf.mxu0
    %v561 = vadd.f32 %v479, %v560
    %v562 = vpop.f32.mrf.mxu0
    %563 = vmatprep.mubr.f32.mxu0 0.0
    %564 = vmatmul.mubr.f32.gmra.mxu0 %v181
    %v565 = vpop.f32.mrf.mxu0
    %v566 = vadd.f32 %v480, %v565
    %v567 = vpop.f32.mrf.mxu0
    %568 = vmatprep.mubr.f32.mxu0 0.0
    %569 = vmatmul.mubr.f32.gmra.mxu0 %v184
    %v570 = vpop.f32.mrf.mxu0
    %v571 = vadd.f32 %v481, %v570
    %v572 = vpop.f32.mrf.mxu0
    %573 = vmatprep.mubr.f32.mxu0 0.0
    %574 = vmatmul.mubr.f32.gmra.mxu0 %v187
    %v575 = vpop.f32.mrf.mxu0
    %v576 = vadd.f32 %v482, %v575
    %v577 = vpop.f32.mrf.mxu0
    %578 = vmatprep.mubr.f32.mxu0 0.0
    %579 = vmatmul.mubr.f32.gmra.mxu0 %v190
    %v580 = vpop.f32.mrf.mxu0
    %v581 = vadd.f32 %v483, %v580
    %v582 = vpop.f32.mrf.mxu0
    %583 = vmatprep.mubr.f32.mxu0 0.0
    %584 = vmatmul.mubr.f32.gmra.mxu0 %v193
    %v585 = vpop.f32.mrf.mxu0
    %v586 = vadd.f32 %v484, %v585
    %v587 = vpop.f32.mrf.mxu0
    %588 = vmatprep.mubr.f32.mxu0 0.0
    %589 = vmatmul.mubr.f32.gmra.mxu0 %v196
    %v590 = vpop.f32.mrf.mxu0
    %v591 = vadd.f32 %v485, %v590
    %v592 = vpop.f32.mrf.mxu0
    %593 = vdwg.mxu0
    %s594 = scalar_lea.vmem %s4, 2
    %v595 = vld [vmem:[%s594] sm:$0x1]
    %v597 = vlaneseq
    %v598 = vshrl.u32 %v597, 7
    %v599 = vsub.s32 0, %v598
    %v600 = vrot.slane %v595, %v599
    %v602 = vadd.f32 %v556, %v600
    %v603 = vadd.f32 %v561, %v600
    %v604 = vadd.f32 %v566, %v600
    %v605 = vadd.f32 %v571, %v600
    %v606 = vadd.f32 %v576, %v600
    %v607 = vadd.f32 %v581, %v600
    %v608 = vadd.f32 %v586, %v600
    %v609 = vadd.f32 %v591, %v600
    %s610 = scalar_lea.vmem %s2, 72
    %v611 = vld [vmem:[%s610] sm:$0xff]
    %v612 = vld [vmem:[%s610 + $0x8] sm:$0xff]
    %v613 = vld [vmem:[%s610 + $0x10] sm:$0xf]
    %s614 = scalar_lea.vmem %s3, 3
    %v615 = vld [vmem:[%s614] sm:$0x1]
    %v617 = vlaneseq
    %v618 = vshrl.u32 %v617, 7
    %v619 = vsub.s32 0, %v618
    %v620 = vrot.slane %v615, %v619
    %v622 = vmul.f32 %v122, %v620
    %v623 = vmul.f32 %v127, %v620
    %v624 = vmul.f32 %v132, %v620
    %v625 = vmul.f32 %v137, %v620
    %v626 = vmul.f32 %v142, %v620
    %v627 = vmul.f32 %v147, %v620
    %v628 = vmul.f32 %v152, %v620
    %v629 = vmul.f32 %v157, %v620
    %v631 = vsel %vm198, %v613, 0
    %633 = vmatprep.subr.mxu0 0.0
    %634 = vmatpush1.msra.mxu0 0.0
    %635 = vmatprep.subr.mxu0 0.0
    %636 = vmatpush1.msra.mxu0 0.0
    %637 = vmatprep.subr.mxu0 0.0
    %638 = vmatpush1.msra.mxu0 0.0
    %639 = vmatprep.subr.mxu0 0.0
    %640 = vmatpush1.msra.mxu0 0.0
    %641 = vmatprep.subr.mxu0 0.0
    %642 = vmatpush1.msra.mxu0 0.0
    %643 = vmatprep.subr.mxu0 0.0
    %644 = vmatpush1.msra.mxu0 0.0
    %645 = vmatprep.subr.mxu0 0.0
    %646 = vmatpush1.msra.mxu0 0.0
    %647 = vmatprep.subr.mxu0 0.0
    %648 = vmatpush1.msra.mxu0 0.0
    %649 = vmatprep.subr.mxu0 0.0
    %650 = vmatpush1.msra.mxu0 0.0
    %651 = vmatprep.subr.mxu0 0.0
    %652 = vmatpush1.msra.mxu0 0.0
    %653 = vmatprep.subr.mxu0 0.0
    %654 = vmatpush1.msra.mxu0 0.0
    %655 = vmatprep.subr.mxu0 0.0
    %656 = vmatpush1.msra.mxu0 0.0
    %657 = vmatprep.subr.mxu0 0.0
    %658 = vmatpush1.msra.mxu0 0.0
    %659 = vmatprep.subr.mxu0 0.0
    %660 = vmatpush1.msra.mxu0 %v631
    %661 = vmatprep.subr.mxu0 0.0
    %662 = vmatpush1.msra.mxu0 %v612
    %663 = vmatprep.subr.mxu0 0.0
    %664 = vmatpush1.msra.mxu0 %v611
    %665 = vmatprep.subr.mxu0 0.0
    %666 = vmatpush2.msra.mxu0 0.0
    %667 = vmatprep.subr.mxu0 0.0
    %668 = vmatpush2.msra.mxu0 0.0
    %669 = vmatprep.subr.mxu0 0.0
    %670 = vmatpush2.msra.mxu0 0.0
    %671 = vmatprep.subr.mxu0 0.0
    %672 = vmatpush2.msra.mxu0 0.0
    %673 = vmatprep.subr.mxu0 0.0
    %674 = vmatpush2.msra.mxu0 0.0
    %675 = vmatprep.subr.mxu0 0.0
    %676 = vmatpush2.msra.mxu0 0.0
    %677 = vmatprep.subr.mxu0 0.0
    %678 = vmatpush2.msra.mxu0 0.0
    %679 = vmatprep.subr.mxu0 0.0
    %680 = vmatpush2.msra.mxu0 0.0
    %681 = vmatprep.subr.mxu0 0.0
    %682 = vmatpush2.msra.mxu0 0.0
    %683 = vmatprep.subr.mxu0 0.0
    %684 = vmatpush2.msra.mxu0 0.0
    %685 = vmatprep.subr.mxu0 0.0
    %686 = vmatpush2.msra.mxu0 0.0
    %687 = vmatprep.subr.mxu0 0.0
    %688 = vmatpush2.msra.mxu0 0.0
    %689 = vmatprep.subr.mxu0 0.0
    %690 = vmatpush2.msra.mxu0 0.0
    %691 = vmatprep.subr.mxu0 0.0
    %692 = vmatpush2.msra.mxu0 0.0
    %693 = vmatprep.subr.mxu0 0.0
    %694 = vmatpush2.msra.mxu0 0.0
    %695 = vmatprep.subr.mxu0 0.0
    %696 = vmatpush2.msra.mxu0 0.0
    %697 = vmatprep.mubr.f32.mxu0 0.0
    %698 = vmatmul.mubr.f32.gmra.mxu0 %v175
    %v699 = vpop.f32.mrf.mxu0
    %v700 = vadd.f32 %v622, %v699
    %v701 = vpop.f32.mrf.mxu0
    %702 = vmatprep.mubr.f32.mxu0 0.0
    %703 = vmatmul.mubr.f32.gmra.mxu0 %v178
    %v704 = vpop.f32.mrf.mxu0
    %v705 = vadd.f32 %v623, %v704
    %v706 = vpop.f32.mrf.mxu0
    %707 = vmatprep.mubr.f32.mxu0 0.0
    %708 = vmatmul.mubr.f32.gmra.mxu0 %v181
    %v709 = vpop.f32.mrf.mxu0
    %v710 = vadd.f32 %v624, %v709
    %v711 = vpop.f32.mrf.mxu0
    %712 = vmatprep.mubr.f32.mxu0 0.0
    %713 = vmatmul.mubr.f32.gmra.mxu0 %v184
    %v714 = vpop.f32.mrf.mxu0
    %v715 = vadd.f32 %v625, %v714
    %v716 = vpop.f32.mrf.mxu0
    %717 = vmatprep.mubr.f32.mxu0 0.0
    %718 = vmatmul.mubr.f32.gmra.mxu0 %v187
    %v719 = vpop.f32.mrf.mxu0
    %v720 = vadd.f32 %v626, %v719
    %v721 = vpop.f32.mrf.mxu0
    %722 = vmatprep.mubr.f32.mxu0 0.0
    %723 = vmatmul.mubr.f32.gmra.mxu0 %v190
    %v724 = vpop.f32.mrf.mxu0
    %v725 = vadd.f32 %v627, %v724
    %v726 = vpop.f32.mrf.mxu0
    %727 = vmatprep.mubr.f32.mxu0 0.0
    %728 = vmatmul.mubr.f32.gmra.mxu0 %v193
    %v729 = vpop.f32.mrf.mxu0
    %v730 = vadd.f32 %v628, %v729
    %v731 = vpop.f32.mrf.mxu0
    %732 = vmatprep.mubr.f32.mxu0 0.0
    %733 = vmatmul.mubr.f32.gmra.mxu0 %v196
    %v734 = vpop.f32.mrf.mxu0
    %v735 = vadd.f32 %v629, %v734
    %v736 = vpop.f32.mrf.mxu0
    %737 = vdwg.mxu0
    %s738 = scalar_lea.vmem %s4, 3
    %v739 = vld [vmem:[%s738] sm:$0x1]
    %v741 = vlaneseq
    %v742 = vshrl.u32 %v741, 7
    %v743 = vsub.s32 0, %v742
    %v744 = vrot.slane %v739, %v743
    %v746 = vadd.f32 %v700, %v744
    %v747 = vadd.f32 %v705, %v744
    %v748 = vadd.f32 %v710, %v744
    %v749 = vadd.f32 %v715, %v744
    %v750 = vadd.f32 %v720, %v744
    %v751 = vadd.f32 %v725, %v744
    %v752 = vadd.f32 %v730, %v744
    %v753 = vadd.f32 %v735, %v744
    %v754 = vld [vmem:[%s5] sm:$0xff]
    %v755 = vld [vmem:[%s5 + $0x8] sm:$0xff]
    %s756 = scalar_lea.vmem %s5, 16
    %v757 = vld [vmem:[%s756] sm:$0xff]
    %v758 = vld [vmem:[%s756 + $0x8] sm:$0xff]
    %s759 = scalar_lea.vmem %s5, 32
    %v760 = vld [vmem:[%s759] sm:$0xff]
    %v761 = vld [vmem:[%s759 + $0x8] sm:$0xff]
    %s762 = scalar_lea.vmem %s5, 48
    %v763 = vld [vmem:[%s762] sm:$0xff]
    %v764 = vld [vmem:[%s762 + $0x8] sm:$0xff]
    %v765 = vld [vmem:[%s6] sm:$0xff]
    %v766 = vld [vmem:[%s6 + $0x8] sm:$0xff]
    %s767 = scalar_lea.vmem %s6, 16
    %v768 = vld [vmem:[%s767] sm:$0xff]
    %v769 = vld [vmem:[%s767 + $0x8] sm:$0xff]
    %s770 = scalar_lea.vmem %s6, 32
    %v771 = vld [vmem:[%s770] sm:$0xff]
    %v772 = vld [vmem:[%s770 + $0x8] sm:$0xff]
    %s773 = scalar_lea.vmem %s6, 48
    %v774 = vld [vmem:[%s773] sm:$0xff]
    %v775 = vld [vmem:[%s773 + $0x8] sm:$0xff]
    %v776 = vld [vmem:[%s7] sm:$0xff]
    %v777 = vld [vmem:[%s7 + $0x8] sm:$0xff]
    %s778 = scalar_lea.vmem %s7, 16
    %v779 = vld [vmem:[%s778] sm:$0xff]
    %v780 = vld [vmem:[%s778 + $0x8] sm:$0xff]
    %s781 = scalar_lea.vmem %s7, 32
    %v782 = vld [vmem:[%s781] sm:$0xff]
    %v783 = vld [vmem:[%s781 + $0x8] sm:$0xff]
    %s784 = scalar_lea.vmem %s7, 48
    %v785 = vld [vmem:[%s784] sm:$0xff]
    %v786 = vld [vmem:[%s784 + $0x8] sm:$0xff]
    %v787 = vld [vmem:[%s8] sm:$0x1]
    %s788 = scalar_lea.vmem %s8, 1
    %v789 = vld [vmem:[%s788] sm:$0x1]
    %s790 = scalar_lea.vmem %s8, 2
    %v791 = vld [vmem:[%s790] sm:$0x1]
    %s792 = scalar_lea.vmem %s8, 3
    %v793 = vld [vmem:[%s792] sm:$0x1]
    %v794 = vld [vmem:[%s11] sm:$0xff]
    %v795 = vld [vmem:[%s12] sm:$0xff]
    %s796 = scalar_lea.vmem %s11, 8
    %v797 = vld [vmem:[%s796] sm:$0xff]
    %s798 = scalar_lea.vmem %s12, 8
    %v799 = vld [vmem:[%s798] sm:$0xff]
    %vm800 = vcmask 130048
    %v802 = vsel %vm800, %v794, 0
    %804 = vmatprep.subr.mxu0 0.0
    %805 = vmatpush1.msra.mxu0 0.0
    %806 = vmatprep.subr.mxu0 0.0
    %807 = vmatpush1.msra.mxu0 0.0
    %808 = vmatprep.subr.mxu0 0.0
    %809 = vmatpush1.msra.mxu0 0.0
    %810 = vmatprep.subr.mxu0 0.0
    %811 = vmatpush1.msra.mxu0 0.0
    %812 = vmatprep.subr.mxu0 0.0
    %813 = vmatpush1.msra.mxu0 0.0
    %814 = vmatprep.subr.mxu0 0.0
    %815 = vmatpush1.msra.mxu0 0.0
    %816 = vmatprep.subr.mxu0 0.0
    %817 = vmatpush1.msra.mxu0 0.0
    %818 = vmatprep.subr.mxu0 0.0
    %819 = vmatpush1.msra.mxu0 0.0
    %820 = vmatprep.subr.mxu0 0.0
    %821 = vmatpush1.msra.mxu0 0.0
    %822 = vmatprep.subr.mxu0 0.0
    %823 = vmatpush1.msra.mxu0 0.0
    %824 = vmatprep.subr.mxu0 0.0
    %825 = vmatpush1.msra.mxu0 0.0
    %826 = vmatprep.subr.mxu0 0.0
    %827 = vmatpush1.msra.mxu0 0.0
    %828 = vmatprep.subr.mxu0 0.0
    %829 = vmatpush1.msra.mxu0 0.0
    %830 = vmatprep.subr.mxu0 0.0
    %831 = vmatpush1.msra.mxu0 0.0
    %832 = vmatprep.subr.mxu0 0.0
    %833 = vmatpush1.msra.mxu0 %v755
    %834 = vmatprep.subr.mxu0 0.0
    %835 = vmatpush1.msra.mxu0 %v754
    %836 = vmatprep.subr.mxu0 0.0
    %837 = vmatpush2.msra.mxu0 0.0
    %838 = vmatprep.subr.mxu0 0.0
    %839 = vmatpush2.msra.mxu0 0.0
    %840 = vmatprep.subr.mxu0 0.0
    %841 = vmatpush2.msra.mxu0 0.0
    %842 = vmatprep.subr.mxu0 0.0
    %843 = vmatpush2.msra.mxu0 0.0
    %844 = vmatprep.subr.mxu0 0.0
    %845 = vmatpush2.msra.mxu0 0.0
    %846 = vmatprep.subr.mxu0 0.0
    %847 = vmatpush2.msra.mxu0 0.0
    %848 = vmatprep.subr.mxu0 0.0
    %849 = vmatpush2.msra.mxu0 0.0
    %850 = vmatprep.subr.mxu0 0.0
    %851 = vmatpush2.msra.mxu0 0.0
    %852 = vmatprep.subr.mxu0 0.0
    %853 = vmatpush2.msra.mxu0 0.0
    %854 = vmatprep.subr.mxu0 0.0
    %855 = vmatpush2.msra.mxu0 0.0
    %856 = vmatprep.subr.mxu0 0.0
    %857 = vmatpush2.msra.mxu0 0.0
    %858 = vmatprep.subr.mxu0 0.0
    %859 = vmatpush2.msra.mxu0 0.0
    %860 = vmatprep.subr.mxu0 0.0
    %861 = vmatpush2.msra.mxu0 0.0
    %862 = vmatprep.subr.mxu0 0.0
    %863 = vmatpush2.msra.mxu0 0.0
    %864 = vmatprep.subr.mxu0 0.0
    %865 = vmatpush2.msra.mxu0 0.0
    %866 = vmatprep.subr.mxu0 0.0
    %867 = vmatpush2.msra.mxu0 0.0
    %868 = vmatprep.mubr.f32.mxu0 0.0
    %869 = vmatmul.mubr.f32.gmra.mxu0 %v802
    %v870 = vpop.f32.mrf.mxu0
    %v871 = vadd.f32 0.0, %v870
    %v872 = vpop.f32.mrf.mxu0
    %873 = vdwg.mxu0
    %v874 = vadd.f32 %v314, %v871
    %875 = vmatprep.subr.mxu0 0.0
    %876 = vmatpush1.msra.mxu0 0.0
    %877 = vmatprep.subr.mxu0 0.0
    %878 = vmatpush1.msra.mxu0 0.0
    %879 = vmatprep.subr.mxu0 0.0
    %880 = vmatpush1.msra.mxu0 0.0
    %881 = vmatprep.subr.mxu0 0.0
    %882 = vmatpush1.msra.mxu0 0.0
    %883 = vmatprep.subr.mxu0 0.0
    %884 = vmatpush1.msra.mxu0 0.0
    %885 = vmatprep.subr.mxu0 0.0
    %886 = vmatpush1.msra.mxu0 0.0
    %887 = vmatprep.subr.mxu0 0.0
    %888 = vmatpush1.msra.mxu0 0.0
    %889 = vmatprep.subr.mxu0 0.0
    %890 = vmatpush1.msra.mxu0 0.0
    %891 = vmatprep.subr.mxu0 0.0
    %892 = vmatpush1.msra.mxu0 0.0
    %893 = vmatprep.subr.mxu0 0.0
    %894 = vmatpush1.msra.mxu0 0.0
    %895 = vmatprep.subr.mxu0 0.0
    %896 = vmatpush1.msra.mxu0 0.0
    %897 = vmatprep.subr.mxu0 0.0
    %898 = vmatpush1.msra.mxu0 0.0
    %899 = vmatprep.subr.mxu0 0.0
    %900 = vmatpush1.msra.mxu0 0.0
    %901 = vmatprep.subr.mxu0 0.0
    %902 = vmatpush1.msra.mxu0 0.0
    %903 = vmatprep.subr.mxu0 0.0
    %904 = vmatpush1.msra.mxu0 %v758
    %905 = vmatprep.subr.mxu0 0.0
    %906 = vmatpush1.msra.mxu0 %v757
    %907 = vmatprep.subr.mxu0 0.0
    %908 = vmatpush2.msra.mxu0 0.0
    %909 = vmatprep.subr.mxu0 0.0
    %910 = vmatpush2.msra.mxu0 0.0
    %911 = vmatprep.subr.mxu0 0.0
    %912 = vmatpush2.msra.mxu0 0.0
    %913 = vmatprep.subr.mxu0 0.0
    %914 = vmatpush2.msra.mxu0 0.0
    %915 = vmatprep.subr.mxu0 0.0
    %916 = vmatpush2.msra.mxu0 0.0
    %917 = vmatprep.subr.mxu0 0.0
    %918 = vmatpush2.msra.mxu0 0.0
    %919 = vmatprep.subr.mxu0 0.0
    %920 = vmatpush2.msra.mxu0 0.0
    %921 = vmatprep.subr.mxu0 0.0
    %922 = vmatpush2.msra.mxu0 0.0
    %923 = vmatprep.subr.mxu0 0.0
    %924 = vmatpush2.msra.mxu0 0.0
    %925 = vmatprep.subr.mxu0 0.0
    %926 = vmatpush2.msra.mxu0 0.0
    %927 = vmatprep.subr.mxu0 0.0
    %928 = vmatpush2.msra.mxu0 0.0
    %929 = vmatprep.subr.mxu0 0.0
    %930 = vmatpush2.msra.mxu0 0.0
    %931 = vmatprep.subr.mxu0 0.0
    %932 = vmatpush2.msra.mxu0 0.0
    %933 = vmatprep.subr.mxu0 0.0
    %934 = vmatpush2.msra.mxu0 0.0
    %935 = vmatprep.subr.mxu0 0.0
    %936 = vmatpush2.msra.mxu0 0.0
    %937 = vmatprep.subr.mxu0 0.0
    %938 = vmatpush2.msra.mxu0 0.0
    %939 = vmatprep.mubr.f32.mxu0 0.0
    %940 = vmatmul.mubr.f32.gmra.mxu0 %v802
    %v941 = vpop.f32.mrf.mxu0
    %v942 = vadd.f32 0.0, %v941
    %v943 = vpop.f32.mrf.mxu0
    %944 = vdwg.mxu0
    %v945 = vadd.f32 %v458, %v942
    %946 = vmatprep.subr.mxu0 0.0
    %947 = vmatpush1.msra.mxu0 0.0
    %948 = vmatprep.subr.mxu0 0.0
    %949 = vmatpush1.msra.mxu0 0.0
    %950 = vmatprep.subr.mxu0 0.0
    %951 = vmatpush1.msra.mxu0 0.0
    %952 = vmatprep.subr.mxu0 0.0
    %953 = vmatpush1.msra.mxu0 0.0
    %954 = vmatprep.subr.mxu0 0.0
    %955 = vmatpush1.msra.mxu0 0.0
    %956 = vmatprep.subr.mxu0 0.0
    %957 = vmatpush1.msra.mxu0 0.0
    %958 = vmatprep.subr.mxu0 0.0
    %959 = vmatpush1.msra.mxu0 0.0
    %960 = vmatprep.subr.mxu0 0.0
    %961 = vmatpush1.msra.mxu0 0.0
    %962 = vmatprep.subr.mxu0 0.0
    %963 = vmatpush1.msra.mxu0 0.0
    %964 = vmatprep.subr.mxu0 0.0
    %965 = vmatpush1.msra.mxu0 0.0
    %966 = vmatprep.subr.mxu0 0.0
    %967 = vmatpush1.msra.mxu0 0.0
    %968 = vmatprep.subr.mxu0 0.0
    %969 = vmatpush1.msra.mxu0 0.0
    %970 = vmatprep.subr.mxu0 0.0
    %971 = vmatpush1.msra.mxu0 0.0
    %972 = vmatprep.subr.mxu0 0.0
    %973 = vmatpush1.msra.mxu0 0.0
    %974 = vmatprep.subr.mxu0 0.0
    %975 = vmatpush1.msra.mxu0 %v761
    %976 = vmatprep.subr.mxu0 0.0
    %977 = vmatpush1.msra.mxu0 %v760
    %978 = vmatprep.subr.mxu0 0.0
    %979 = vmatpush2.msra.mxu0 0.0
    %980 = vmatprep.subr.mxu0 0.0
    %981 = vmatpush2.msra.mxu0 0.0
    %982 = vmatprep.subr.mxu0 0.0
    %983 = vmatpush2.msra.mxu0 0.0
    %984 = vmatprep.subr.mxu0 0.0
    %985 = vmatpush2.msra.mxu0 0.0
    %986 = vmatprep.subr.mxu0 0.0
    %987 = vmatpush2.msra.mxu0 0.0
    %988 = vmatprep.subr.mxu0 0.0
    %989 = vmatpush2.msra.mxu0 0.0
    %990 = vmatprep.subr.mxu0 0.0
    %991 = vmatpush2.msra.mxu0 0.0
    %992 = vmatprep.subr.mxu0 0.0
    %993 = vmatpush2.msra.mxu0 0.0
    %994 = vmatprep.subr.mxu0 0.0
    %995 = vmatpush2.msra.mxu0 0.0
    %996 = vmatprep.subr.mxu0 0.0
    %997 = vmatpush2.msra.mxu0 0.0
    %998 = vmatprep.subr.mxu0 0.0
    %999 = vmatpush2.msra.mxu0 0.0
    %1000 = vmatprep.subr.mxu0 0.0
    %1001 = vmatpush2.msra.mxu0 0.0
    %1002 = vmatprep.subr.mxu0 0.0
    %1003 = vmatpush2.msra.mxu0 0.0
    %1004 = vmatprep.subr.mxu0 0.0
    %1005 = vmatpush2.msra.mxu0 0.0
    %1006 = vmatprep.subr.mxu0 0.0
    %1007 = vmatpush2.msra.mxu0 0.0
    %1008 = vmatprep.subr.mxu0 0.0
    %1009 = vmatpush2.msra.mxu0 0.0
    %1010 = vmatprep.mubr.f32.mxu0 0.0
    %1011 = vmatmul.mubr.f32.gmra.mxu0 %v802
    %v1012 = vpop.f32.mrf.mxu0
    %v1013 = vadd.f32 0.0, %v1012
    %v1014 = vpop.f32.mrf.mxu0
    %1015 = vdwg.mxu0
    %v1016 = vadd.f32 %v602, %v1013
    %1017 = vmatprep.subr.mxu0 0.0
    %1018 = vmatpush1.msra.mxu0 0.0
    %1019 = vmatprep.subr.mxu0 0.0
    %1020 = vmatpush1.msra.mxu0 0.0
    %1021 = vmatprep.subr.mxu0 0.0
    %1022 = vmatpush1.msra.mxu0 0.0
    %1023 = vmatprep.subr.mxu0 0.0
    %1024 = vmatpush1.msra.mxu0 0.0
    %1025 = vmatprep.subr.mxu0 0.0
    %1026 = vmatpush1.msra.mxu0 0.0
    %1027 = vmatprep.subr.mxu0 0.0
    %1028 = vmatpush1.msra.mxu0 0.0
    %1029 = vmatprep.subr.mxu0 0.0
    %1030 = vmatpush1.msra.mxu0 0.0
    %1031 = vmatprep.subr.mxu0 0.0
    %1032 = vmatpush1.msra.mxu0 0.0
    %1033 = vmatprep.subr.mxu0 0.0
    %1034 = vmatpush1.msra.mxu0 0.0
    %1035 = vmatprep.subr.mxu0 0.0
    %1036 = vmatpush1.msra.mxu0 0.0
    %1037 = vmatprep.subr.mxu0 0.0
    %1038 = vmatpush1.msra.mxu0 0.0
    %1039 = vmatprep.subr.mxu0 0.0
    %1040 = vmatpush1.msra.mxu0 0.0
    %1041 = vmatprep.subr.mxu0 0.0
    %1042 = vmatpush1.msra.mxu0 0.0
    %1043 = vmatprep.subr.mxu0 0.0
    %1044 = vmatpush1.msra.mxu0 0.0
    %1045 = vmatprep.subr.mxu0 0.0
    %1046 = vmatpush1.msra.mxu0 %v764
    %1047 = vmatprep.subr.mxu0 0.0
    %1048 = vmatpush1.msra.mxu0 %v763
    %1049 = vmatprep.subr.mxu0 0.0
    %1050 = vmatpush2.msra.mxu0 0.0
    %1051 = vmatprep.subr.mxu0 0.0
    %1052 = vmatpush2.msra.mxu0 0.0
    %1053 = vmatprep.subr.mxu0 0.0
    %1054 = vmatpush2.msra.mxu0 0.0
    %1055 = vmatprep.subr.mxu0 0.0
    %1056 = vmatpush2.msra.mxu0 0.0
    %1057 = vmatprep.subr.mxu0 0.0
    %1058 = vmatpush2.msra.mxu0 0.0
    %1059 = vmatprep.subr.mxu0 0.0
    %1060 = vmatpush2.msra.mxu0 0.0
    %1061 = vmatprep.subr.mxu0 0.0
    %1062 = vmatpush2.msra.mxu0 0.0
    %1063 = vmatprep.subr.mxu0 0.0
    %1064 = vmatpush2.msra.mxu0 0.0
    %1065 = vmatprep.subr.mxu0 0.0
    %1066 = vmatpush2.msra.mxu0 0.0
    %1067 = vmatprep.subr.mxu0 0.0
    %1068 = vmatpush2.msra.mxu0 0.0
    %1069 = vmatprep.subr.mxu0 0.0
    %1070 = vmatpush2.msra.mxu0 0.0
    %1071 = vmatprep.subr.mxu0 0.0
    %1072 = vmatpush2.msra.mxu0 0.0
    %1073 = vmatprep.subr.mxu0 0.0
    %1074 = vmatpush2.msra.mxu0 0.0
    %1075 = vmatprep.subr.mxu0 0.0
    %1076 = vmatpush2.msra.mxu0 0.0
    %1077 = vmatprep.subr.mxu0 0.0
    %1078 = vmatpush2.msra.mxu0 0.0
    %1079 = vmatprep.subr.mxu0 0.0
    %1080 = vmatpush2.msra.mxu0 0.0
    %1081 = vmatprep.mubr.f32.mxu0 0.0
    %1082 = vmatmul.mubr.f32.gmra.mxu0 %v802
    %v1083 = vpop.f32.mrf.mxu0
    %v1084 = vadd.f32 0.0, %v1083
    %v1085 = vpop.f32.mrf.mxu0
    %1086 = vdwg.mxu0
    %v1087 = vadd.f32 %v746, %v1084
    %v1088 = vmul.f32 %v945, 0.5
    %v1089 = vtanh.pop %v1088
    %v1090 = vmul.f32 %v1089, 0.5
    %v1091 = vadd.f32 %v1090, 0.5
    %v1092 = vmul.f32 %v1091, %v795
    %v1093 = vmul.f32 %v874, 0.5
    %v1094 = vtanh.pop %v1093
    %v1095 = vmul.f32 %v1094, 0.5
    %v1096 = vadd.f32 %v1095, 0.5
    %v1097 = vtanh.pop %v1016
    %v1098 = vmul.f32 %v1096, %v1097
    %v1099 = vadd.f32 %v1092, %v1098
    %v1100 = vmul.f32 %v1087, 0.5
    %v1101 = vtanh.pop %v1100
    %v1102 = vmul.f32 %v1101, 0.5
    %v1103 = vadd.f32 %v1102, 0.5
    %v1104 = vtanh.pop %v1099
    %v1105 = vmul.f32 %v1103, %v1104
    %v1107 = vsel %vm800, %v1105, 0
    %1109 = vmatprep.subr.mxu0 0.0
    %1110 = vmatpush1.msra.mxu0 0.0
    %1111 = vmatprep.subr.mxu0 0.0
    %1112 = vmatpush1.msra.mxu0 0.0
    %1113 = vmatprep.subr.mxu0 0.0
    %1114 = vmatpush1.msra.mxu0 0.0
    %1115 = vmatprep.subr.mxu0 0.0
    %1116 = vmatpush1.msra.mxu0 0.0
    %1117 = vmatprep.subr.mxu0 0.0
    %1118 = vmatpush1.msra.mxu0 0.0
    %1119 = vmatprep.subr.mxu0 0.0
    %1120 = vmatpush1.msra.mxu0 0.0
    %1121 = vmatprep.subr.mxu0 0.0
    %1122 = vmatpush1.msra.mxu0 0.0
    %1123 = vmatprep.subr.mxu0 0.0
    %1124 = vmatpush1.msra.mxu0 0.0
    %1125 = vmatprep.subr.mxu0 0.0
    %1126 = vmatpush1.msra.mxu0 0.0
    %1127 = vmatprep.subr.mxu0 0.0
    %1128 = vmatpush1.msra.mxu0 0.0
    %1129 = vmatprep.subr.mxu0 0.0
    %1130 = vmatpush1.msra.mxu0 0.0
    %1131 = vmatprep.subr.mxu0 0.0
    %1132 = vmatpush1.msra.mxu0 0.0
    %1133 = vmatprep.subr.mxu0 0.0
    %1134 = vmatpush1.msra.mxu0 0.0
    %1135 = vmatprep.subr.mxu0 0.0
    %1136 = vmatpush1.msra.mxu0 0.0
    %1137 = vmatprep.subr.mxu0 0.0
    %1138 = vmatpush1.msra.mxu0 %v766
    %1139 = vmatprep.subr.mxu0 0.0
    %1140 = vmatpush1.msra.mxu0 %v765
    %1141 = vmatprep.subr.mxu0 0.0
    %1142 = vmatpush2.msra.mxu0 0.0
    %1143 = vmatprep.subr.mxu0 0.0
    %1144 = vmatpush2.msra.mxu0 0.0
    %1145 = vmatprep.subr.mxu0 0.0
    %1146 = vmatpush2.msra.mxu0 0.0
    %1147 = vmatprep.subr.mxu0 0.0
    %1148 = vmatpush2.msra.mxu0 0.0
    %1149 = vmatprep.subr.mxu0 0.0
    %1150 = vmatpush2.msra.mxu0 0.0
    %1151 = vmatprep.subr.mxu0 0.0
    %1152 = vmatpush2.msra.mxu0 0.0
    %1153 = vmatprep.subr.mxu0 0.0
    %1154 = vmatpush2.msra.mxu0 0.0
    %1155 = vmatprep.subr.mxu0 0.0
    %1156 = vmatpush2.msra.mxu0 0.0
    %1157 = vmatprep.subr.mxu0 0.0
    %1158 = vmatpush2.msra.mxu0 0.0
    %1159 = vmatprep.subr.mxu0 0.0
    %1160 = vmatpush2.msra.mxu0 0.0
    %1161 = vmatprep.subr.mxu0 0.0
    %1162 = vmatpush2.msra.mxu0 0.0
    %1163 = vmatprep.subr.mxu0 0.0
    %1164 = vmatpush2.msra.mxu0 0.0
    %1165 = vmatprep.subr.mxu0 0.0
    %1166 = vmatpush2.msra.mxu0 0.0
    %1167 = vmatprep.subr.mxu0 0.0
    %1168 = vmatpush2.msra.mxu0 0.0
    %1169 = vmatprep.subr.mxu0 0.0
    %1170 = vmatpush2.msra.mxu0 0.0
    %1171 = vmatprep.subr.mxu0 0.0
    %1172 = vmatpush2.msra.mxu0 0.0
    %1173 = vmatprep.mubr.f32.mxu0 0.0
    %1174 = vmatmul.mubr.f32.gmra.mxu0 %v1107
    %v1175 = vpop.f32.mrf.mxu0
    %v1176 = vadd.f32 0.0, %v1175
    %v1177 = vpop.f32.mrf.mxu0
    %1178 = vdwg.mxu0
    %v1180 = vlaneseq
    %v1181 = vshrl.u32 %v1180, 7
    %v1182 = vsub.s32 0, %v1181
    %v1183 = vrot.slane %v787, %v1182
    %v1185 = vadd.f32 %v1183, %v1176
    %v1187 = vsel %vm800, %v797, 0
    %1189 = vmatprep.subr.mxu0 0.0
    %1190 = vmatpush1.msra.mxu0 0.0
    %1191 = vmatprep.subr.mxu0 0.0
    %1192 = vmatpush1.msra.mxu0 0.0
    %1193 = vmatprep.subr.mxu0 0.0
    %1194 = vmatpush1.msra.mxu0 0.0
    %1195 = vmatprep.subr.mxu0 0.0
    %1196 = vmatpush1.msra.mxu0 0.0
    %1197 = vmatprep.subr.mxu0 0.0
    %1198 = vmatpush1.msra.mxu0 0.0
    %1199 = vmatprep.subr.mxu0 0.0
    %1200 = vmatpush1.msra.mxu0 0.0
    %1201 = vmatprep.subr.mxu0 0.0
    %1202 = vmatpush1.msra.mxu0 0.0
    %1203 = vmatprep.subr.mxu0 0.0
    %1204 = vmatpush1.msra.mxu0 0.0
    %1205 = vmatprep.subr.mxu0 0.0
    %1206 = vmatpush1.msra.mxu0 0.0
    %1207 = vmatprep.subr.mxu0 0.0
    %1208 = vmatpush1.msra.mxu0 0.0
    %1209 = vmatprep.subr.mxu0 0.0
    %1210 = vmatpush1.msra.mxu0 0.0
    %1211 = vmatprep.subr.mxu0 0.0
    %1212 = vmatpush1.msra.mxu0 0.0
    %1213 = vmatprep.subr.mxu0 0.0
    %1214 = vmatpush1.msra.mxu0 0.0
    %1215 = vmatprep.subr.mxu0 0.0
    %1216 = vmatpush1.msra.mxu0 0.0
    %1217 = vmatprep.subr.mxu0 0.0
    %1218 = vmatpush1.msra.mxu0 %v777
    %1219 = vmatprep.subr.mxu0 0.0
    %1220 = vmatpush1.msra.mxu0 %v776
    %1221 = vmatprep.subr.mxu0 0.0
    %1222 = vmatpush2.msra.mxu0 0.0
    %1223 = vmatprep.subr.mxu0 0.0
    %1224 = vmatpush2.msra.mxu0 0.0
    %1225 = vmatprep.subr.mxu0 0.0
    %1226 = vmatpush2.msra.mxu0 0.0
    %1227 = vmatprep.subr.mxu0 0.0
    %1228 = vmatpush2.msra.mxu0 0.0
    %1229 = vmatprep.subr.mxu0 0.0
    %1230 = vmatpush2.msra.mxu0 0.0
    %1231 = vmatprep.subr.mxu0 0.0
    %1232 = vmatpush2.msra.mxu0 0.0
    %1233 = vmatprep.subr.mxu0 0.0
    %1234 = vmatpush2.msra.mxu0 0.0
    %1235 = vmatprep.subr.mxu0 0.0
    %1236 = vmatpush2.msra.mxu0 0.0
    %1237 = vmatprep.subr.mxu0 0.0
    %1238 = vmatpush2.msra.mxu0 0.0
    %1239 = vmatprep.subr.mxu0 0.0
    %1240 = vmatpush2.msra.mxu0 0.0
    %1241 = vmatprep.subr.mxu0 0.0
    %1242 = vmatpush2.msra.mxu0 0.0
    %1243 = vmatprep.subr.mxu0 0.0
    %1244 = vmatpush2.msra.mxu0 0.0
    %1245 = vmatprep.subr.mxu0 0.0
    %1246 = vmatpush2.msra.mxu0 0.0
    %1247 = vmatprep.subr.mxu0 0.0
    %1248 = vmatpush2.msra.mxu0 0.0
    %1249 = vmatprep.subr.mxu0 0.0
    %1250 = vmatpush2.msra.mxu0 0.0
    %1251 = vmatprep.subr.mxu0 0.0
    %1252 = vmatpush2.msra.mxu0 0.0
    %1253 = vmatprep.mubr.f32.mxu0 0.0
    %1254 = vmatmul.mubr.f32.gmra.mxu0 %v1187
    %v1255 = vpop.f32.mrf.mxu0
    %v1256 = vadd.f32 0.0, %v1255
    %v1257 = vpop.f32.mrf.mxu0
    %1258 = vdwg.mxu0
    %v1259 = vadd.f32 %v1185, %v1256
    %1260 = vmatprep.subr.mxu0 0.0
    %1261 = vmatpush1.msra.mxu0 0.0
    %1262 = vmatprep.subr.mxu0 0.0
    %1263 = vmatpush1.msra.mxu0 0.0
    %1264 = vmatprep.subr.mxu0 0.0
    %1265 = vmatpush1.msra.mxu0 0.0
    %1266 = vmatprep.subr.mxu0 0.0
    %1267 = vmatpush1.msra.mxu0 0.0
    %1268 = vmatprep.subr.mxu0 0.0
    %1269 = vmatpush1.msra.mxu0 0.0
    %1270 = vmatprep.subr.mxu0 0.0
    %1271 = vmatpush1.msra.mxu0 0.0
    %1272 = vmatprep.subr.mxu0 0.0
    %1273 = vmatpush1.msra.mxu0 0.0
    %1274 = vmatprep.subr.mxu0 0.0
    %1275 = vmatpush1.msra.mxu0 0.0
    %1276 = vmatprep.subr.mxu0 0.0
    %1277 = vmatpush1.msra.mxu0 0.0
    %1278 = vmatprep.subr.mxu0 0.0
    %1279 = vmatpush1.msra.mxu0 0.0
    %1280 = vmatprep.subr.mxu0 0.0
    %1281 = vmatpush1.msra.mxu0 0.0
    %1282 = vmatprep.subr.mxu0 0.0
    %1283 = vmatpush1.msra.mxu0 0.0
    %1284 = vmatprep.subr.mxu0 0.0
    %1285 = vmatpush1.msra.mxu0 0.0
    %1286 = vmatprep.subr.mxu0 0.0
    %1287 = vmatpush1.msra.mxu0 0.0
    %1288 = vmatprep.subr.mxu0 0.0
    %1289 = vmatpush1.msra.mxu0 %v769
    %1290 = vmatprep.subr.mxu0 0.0
    %1291 = vmatpush1.msra.mxu0 %v768
    %1292 = vmatprep.subr.mxu0 0.0
    %1293 = vmatpush2.msra.mxu0 0.0
    %1294 = vmatprep.subr.mxu0 0.0
    %1295 = vmatpush2.msra.mxu0 0.0
    %1296 = vmatprep.subr.mxu0 0.0
    %1297 = vmatpush2.msra.mxu0 0.0
    %1298 = vmatprep.subr.mxu0 0.0
    %1299 = vmatpush2.msra.mxu0 0.0
    %1300 = vmatprep.subr.mxu0 0.0
    %1301 = vmatpush2.msra.mxu0 0.0
    %1302 = vmatprep.subr.mxu0 0.0
    %1303 = vmatpush2.msra.mxu0 0.0
    %1304 = vmatprep.subr.mxu0 0.0
    %1305 = vmatpush2.msra.mxu0 0.0
    %1306 = vmatprep.subr.mxu0 0.0
    %1307 = vmatpush2.msra.mxu0 0.0
    %1308 = vmatprep.subr.mxu0 0.0
    %1309 = vmatpush2.msra.mxu0 0.0
    %1310 = vmatprep.subr.mxu0 0.0
    %1311 = vmatpush2.msra.mxu0 0.0
    %1312 = vmatprep.subr.mxu0 0.0
    %1313 = vmatpush2.msra.mxu0 0.0
    %1314 = vmatprep.subr.mxu0 0.0
    %1315 = vmatpush2.msra.mxu0 0.0
    %1316 = vmatprep.subr.mxu0 0.0
    %1317 = vmatpush2.msra.mxu0 0.0
    %1318 = vmatprep.subr.mxu0 0.0
    %1319 = vmatpush2.msra.mxu0 0.0
    %1320 = vmatprep.subr.mxu0 0.0
    %1321 = vmatpush2.msra.mxu0 0.0
    %1322 = vmatprep.subr.mxu0 0.0
    %1323 = vmatpush2.msra.mxu0 0.0
    %1324 = vmatprep.mubr.f32.mxu0 0.0
    %1325 = vmatmul.mubr.f32.gmra.mxu0 %v1107
    %v1326 = vpop.f32.mrf.mxu0
    %v1327 = vadd.f32 0.0, %v1326
    %v1328 = vpop.f32.mrf.mxu0
    %1329 = vdwg.mxu0
    %v1331 = vlaneseq
    %v1332 = vshrl.u32 %v1331, 7
    %v1333 = vsub.s32 0, %v1332
    %v1334 = vrot.slane %v789, %v1333
    %v1336 = vadd.f32 %v1334, %v1327
    %1337 = vmatprep.subr.mxu0 0.0
    %1338 = vmatpush1.msra.mxu0 0.0
    %1339 = vmatprep.subr.mxu0 0.0
    %1340 = vmatpush1.msra.mxu0 0.0
    %1341 = vmatprep.subr.mxu0 0.0
    %1342 = vmatpush1.msra.mxu0 0.0
    %1343 = vmatprep.subr.mxu0 0.0
    %1344 = vmatpush1.msra.mxu0 0.0
    %1345 = vmatprep.subr.mxu0 0.0
    %1346 = vmatpush1.msra.mxu0 0.0
    %1347 = vmatprep.subr.mxu0 0.0
    %1348 = vmatpush1.msra.mxu0 0.0
    %1349 = vmatprep.subr.mxu0 0.0
    %1350 = vmatpush1.msra.mxu0 0.0
    %1351 = vmatprep.subr.mxu0 0.0
    %1352 = vmatpush1.msra.mxu0 0.0
    %1353 = vmatprep.subr.mxu0 0.0
    %1354 = vmatpush1.msra.mxu0 0.0
    %1355 = vmatprep.subr.mxu0 0.0
    %1356 = vmatpush1.msra.mxu0 0.0
    %1357 = vmatprep.subr.mxu0 0.0
    %1358 = vmatpush1.msra.mxu0 0.0
    %1359 = vmatprep.subr.mxu0 0.0
    %1360 = vmatpush1.msra.mxu0 0.0
    %1361 = vmatprep.subr.mxu0 0.0
    %1362 = vmatpush1.msra.mxu0 0.0
    %1363 = vmatprep.subr.mxu0 0.0
    %1364 = vmatpush1.msra.mxu0 0.0
    %1365 = vmatprep.subr.mxu0 0.0
    %1366 = vmatpush1.msra.mxu0 %v780
    %1367 = vmatprep.subr.mxu0 0.0
    %1368 = vmatpush1.msra.mxu0 %v779
    %1369 = vmatprep.subr.mxu0 0.0
    %1370 = vmatpush2.msra.mxu0 0.0
    %1371 = vmatprep.subr.mxu0 0.0
    %1372 = vmatpush2.msra.mxu0 0.0
    %1373 = vmatprep.subr.mxu0 0.0
    %1374 = vmatpush2.msra.mxu0 0.0
    %1375 = vmatprep.subr.mxu0 0.0
    %1376 = vmatpush2.msra.mxu0 0.0
    %1377 = vmatprep.subr.mxu0 0.0
    %1378 = vmatpush2.msra.mxu0 0.0
    %1379 = vmatprep.subr.mxu0 0.0
    %1380 = vmatpush2.msra.mxu0 0.0
    %1381 = vmatprep.subr.mxu0 0.0
    %1382 = vmatpush2.msra.mxu0 0.0
    %1383 = vmatprep.subr.mxu0 0.0
    %1384 = vmatpush2.msra.mxu0 0.0
    %1385 = vmatprep.subr.mxu0 0.0
    %1386 = vmatpush2.msra.mxu0 0.0
    %1387 = vmatprep.subr.mxu0 0.0
    %1388 = vmatpush2.msra.mxu0 0.0
    %1389 = vmatprep.subr.mxu0 0.0
    %1390 = vmatpush2.msra.mxu0 0.0
    %1391 = vmatprep.subr.mxu0 0.0
    %1392 = vmatpush2.msra.mxu0 0.0
    %1393 = vmatprep.subr.mxu0 0.0
    %1394 = vmatpush2.msra.mxu0 0.0
    %1395 = vmatprep.subr.mxu0 0.0
    %1396 = vmatpush2.msra.mxu0 0.0
    %1397 = vmatprep.subr.mxu0 0.0
    %1398 = vmatpush2.msra.mxu0 0.0
    %1399 = vmatprep.subr.mxu0 0.0
    %1400 = vmatpush2.msra.mxu0 0.0
    %1401 = vmatprep.mubr.f32.mxu0 0.0
    %1402 = vmatmul.mubr.f32.gmra.mxu0 %v1187
    %v1403 = vpop.f32.mrf.mxu0
    %v1404 = vadd.f32 0.0, %v1403
    %v1405 = vpop.f32.mrf.mxu0
    %1406 = vdwg.mxu0
    %v1407 = vadd.f32 %v1336, %v1404
    %1408 = vmatprep.subr.mxu0 0.0
    %1409 = vmatpush1.msra.mxu0 0.0
    %1410 = vmatprep.subr.mxu0 0.0
    %1411 = vmatpush1.msra.mxu0 0.0
    %1412 = vmatprep.subr.mxu0 0.0
    %1413 = vmatpush1.msra.mxu0 0.0
    %1414 = vmatprep.subr.mxu0 0.0
    %1415 = vmatpush1.msra.mxu0 0.0
    %1416 = vmatprep.subr.mxu0 0.0
    %1417 = vmatpush1.msra.mxu0 0.0
    %1418 = vmatprep.subr.mxu0 0.0
    %1419 = vmatpush1.msra.mxu0 0.0
    %1420 = vmatprep.subr.mxu0 0.0
    %1421 = vmatpush1.msra.mxu0 0.0
    %1422 = vmatprep.subr.mxu0 0.0
    %1423 = vmatpush1.msra.mxu0 0.0
    %1424 = vmatprep.subr.mxu0 0.0
    %1425 = vmatpush1.msra.mxu0 0.0
    %1426 = vmatprep.subr.mxu0 0.0
    %1427 = vmatpush1.msra.mxu0 0.0
    %1428 = vmatprep.subr.mxu0 0.0
    %1429 = vmatpush1.msra.mxu0 0.0
    %1430 = vmatprep.subr.mxu0 0.0
    %1431 = vmatpush1.msra.mxu0 0.0
    %1432 = vmatprep.subr.mxu0 0.0
    %1433 = vmatpush1.msra.mxu0 0.0
    %1434 = vmatprep.subr.mxu0 0.0
    %1435 = vmatpush1.msra.mxu0 0.0
    %1436 = vmatprep.subr.mxu0 0.0
    %1437 = vmatpush1.msra.mxu0 %v772
    %1438 = vmatprep.subr.mxu0 0.0
    %1439 = vmatpush1.msra.mxu0 %v771
    %1440 = vmatprep.subr.mxu0 0.0
    %1441 = vmatpush2.msra.mxu0 0.0
    %1442 = vmatprep.subr.mxu0 0.0
    %1443 = vmatpush2.msra.mxu0 0.0
    %1444 = vmatprep.subr.mxu0 0.0
    %1445 = vmatpush2.msra.mxu0 0.0
    %1446 = vmatprep.subr.mxu0 0.0
    %1447 = vmatpush2.msra.mxu0 0.0
    %1448 = vmatprep.subr.mxu0 0.0
    %1449 = vmatpush2.msra.mxu0 0.0
    %1450 = vmatprep.subr.mxu0 0.0
    %1451 = vmatpush2.msra.mxu0 0.0
    %1452 = vmatprep.subr.mxu0 0.0
    %1453 = vmatpush2.msra.mxu0 0.0
    %1454 = vmatprep.subr.mxu0 0.0
    %1455 = vmatpush2.msra.mxu0 0.0
    %1456 = vmatprep.subr.mxu0 0.0
    %1457 = vmatpush2.msra.mxu0 0.0
    %1458 = vmatprep.subr.mxu0 0.0
    %1459 = vmatpush2.msra.mxu0 0.0
    %1460 = vmatprep.subr.mxu0 0.0
    %1461 = vmatpush2.msra.mxu0 0.0
    %1462 = vmatprep.subr.mxu0 0.0
    %1463 = vmatpush2.msra.mxu0 0.0
    %1464 = vmatprep.subr.mxu0 0.0
    %1465 = vmatpush2.msra.mxu0 0.0
    %1466 = vmatprep.subr.mxu0 0.0
    %1467 = vmatpush2.msra.mxu0 0.0
    %1468 = vmatprep.subr.mxu0 0.0
    %1469 = vmatpush2.msra.mxu0 0.0
    %1470 = vmatprep.subr.mxu0 0.0
    %1471 = vmatpush2.msra.mxu0 0.0
    %1472 = vmatprep.mubr.f32.mxu0 0.0
    %1473 = vmatmul.mubr.f32.gmra.mxu0 %v1107
    %v1474 = vpop.f32.mrf.mxu0
    %v1475 = vadd.f32 0.0, %v1474
    %v1476 = vpop.f32.mrf.mxu0
    %1477 = vdwg.mxu0
    %v1479 = vlaneseq
    %v1480 = vshrl.u32 %v1479, 7
    %v1481 = vsub.s32 0, %v1480
    %v1482 = vrot.slane %v791, %v1481
    %v1484 = vadd.f32 %v1482, %v1475
    %1485 = vmatprep.subr.mxu0 0.0
    %1486 = vmatpush1.msra.mxu0 0.0
    %1487 = vmatprep.subr.mxu0 0.0
    %1488 = vmatpush1.msra.mxu0 0.0
    %1489 = vmatprep.subr.mxu0 0.0
    %1490 = vmatpush1.msra.mxu0 0.0
    %1491 = vmatprep.subr.mxu0 0.0
    %1492 = vmatpush1.msra.mxu0 0.0
    %1493 = vmatprep.subr.mxu0 0.0
    %1494 = vmatpush1.msra.mxu0 0.0
    %1495 = vmatprep.subr.mxu0 0.0
    %1496 = vmatpush1.msra.mxu0 0.0
    %1497 = vmatprep.subr.mxu0 0.0
    %1498 = vmatpush1.msra.mxu0 0.0
    %1499 = vmatprep.subr.mxu0 0.0
    %1500 = vmatpush1.msra.mxu0 0.0
    %1501 = vmatprep.subr.mxu0 0.0
    %1502 = vmatpush1.msra.mxu0 0.0
    %1503 = vmatprep.subr.mxu0 0.0
    %1504 = vmatpush1.msra.mxu0 0.0
    %1505 = vmatprep.subr.mxu0 0.0
    %1506 = vmatpush1.msra.mxu0 0.0
    %1507 = vmatprep.subr.mxu0 0.0
    %1508 = vmatpush1.msra.mxu0 0.0
    %1509 = vmatprep.subr.mxu0 0.0
    %1510 = vmatpush1.msra.mxu0 0.0
    %1511 = vmatprep.subr.mxu0 0.0
    %1512 = vmatpush1.msra.mxu0 0.0
    %1513 = vmatprep.subr.mxu0 0.0
    %1514 = vmatpush1.msra.mxu0 %v783
    %1515 = vmatprep.subr.mxu0 0.0
    %1516 = vmatpush1.msra.mxu0 %v782
    %1517 = vmatprep.subr.mxu0 0.0
    %1518 = vmatpush2.msra.mxu0 0.0
    %1519 = vmatprep.subr.mxu0 0.0
    %1520 = vmatpush2.msra.mxu0 0.0
    %1521 = vmatprep.subr.mxu0 0.0
    %1522 = vmatpush2.msra.mxu0 0.0
    %1523 = vmatprep.subr.mxu0 0.0
    %1524 = vmatpush2.msra.mxu0 0.0
    %1525 = vmatprep.subr.mxu0 0.0
    %1526 = vmatpush2.msra.mxu0 0.0
    %1527 = vmatprep.subr.mxu0 0.0
    %1528 = vmatpush2.msra.mxu0 0.0
    %1529 = vmatprep.subr.mxu0 0.0
    %1530 = vmatpush2.msra.mxu0 0.0
    %1531 = vmatprep.subr.mxu0 0.0
    %1532 = vmatpush2.msra.mxu0 0.0
    %1533 = vmatprep.subr.mxu0 0.0
    %1534 = vmatpush2.msra.mxu0 0.0
    %1535 = vmatprep.subr.mxu0 0.0
    %1536 = vmatpush2.msra.mxu0 0.0
    %1537 = vmatprep.subr.mxu0 0.0
    %1538 = vmatpush2.msra.mxu0 0.0
    %1539 = vmatprep.subr.mxu0 0.0
    %1540 = vmatpush2.msra.mxu0 0.0
    %1541 = vmatprep.subr.mxu0 0.0
    %1542 = vmatpush2.msra.mxu0 0.0
    %1543 = vmatprep.subr.mxu0 0.0
    %1544 = vmatpush2.msra.mxu0 0.0
    %1545 = vmatprep.subr.mxu0 0.0
    %1546 = vmatpush2.msra.mxu0 0.0
    %1547 = vmatprep.subr.mxu0 0.0
    %1548 = vmatpush2.msra.mxu0 0.0
    %1549 = vmatprep.mubr.f32.mxu0 0.0
    %1550 = vmatmul.mubr.f32.gmra.mxu0 %v1187
    %v1551 = vpop.f32.mrf.mxu0
    %v1552 = vadd.f32 0.0, %v1551
    %v1553 = vpop.f32.mrf.mxu0
    %1554 = vdwg.mxu0
    %v1555 = vadd.f32 %v1484, %v1552
    %1556 = vmatprep.subr.mxu0 0.0
    %1557 = vmatpush1.msra.mxu0 0.0
    %1558 = vmatprep.subr.mxu0 0.0
    %1559 = vmatpush1.msra.mxu0 0.0
    %1560 = vmatprep.subr.mxu0 0.0
    %1561 = vmatpush1.msra.mxu0 0.0
    %1562 = vmatprep.subr.mxu0 0.0
    %1563 = vmatpush1.msra.mxu0 0.0
    %1564 = vmatprep.subr.mxu0 0.0
    %1565 = vmatpush1.msra.mxu0 0.0
    %1566 = vmatprep.subr.mxu0 0.0
    %1567 = vmatpush1.msra.mxu0 0.0
    %1568 = vmatprep.subr.mxu0 0.0
    %1569 = vmatpush1.msra.mxu0 0.0
    %1570 = vmatprep.subr.mxu0 0.0
    %1571 = vmatpush1.msra.mxu0 0.0
    %1572 = vmatprep.subr.mxu0 0.0
    %1573 = vmatpush1.msra.mxu0 0.0
    %1574 = vmatprep.subr.mxu0 0.0
    %1575 = vmatpush1.msra.mxu0 0.0
    %1576 = vmatprep.subr.mxu0 0.0
    %1577 = vmatpush1.msra.mxu0 0.0
    %1578 = vmatprep.subr.mxu0 0.0
    %1579 = vmatpush1.msra.mxu0 0.0
    %1580 = vmatprep.subr.mxu0 0.0
    %1581 = vmatpush1.msra.mxu0 0.0
    %1582 = vmatprep.subr.mxu0 0.0
    %1583 = vmatpush1.msra.mxu0 0.0
    %1584 = vmatprep.subr.mxu0 0.0
    %1585 = vmatpush1.msra.mxu0 %v775
    %1586 = vmatprep.subr.mxu0 0.0
    %1587 = vmatpush1.msra.mxu0 %v774
    %1588 = vmatprep.subr.mxu0 0.0
    %1589 = vmatpush2.msra.mxu0 0.0
    %1590 = vmatprep.subr.mxu0 0.0
    %1591 = vmatpush2.msra.mxu0 0.0
    %1592 = vmatprep.subr.mxu0 0.0
    %1593 = vmatpush2.msra.mxu0 0.0
    %1594 = vmatprep.subr.mxu0 0.0
    %1595 = vmatpush2.msra.mxu0 0.0
    %1596 = vmatprep.subr.mxu0 0.0
    %1597 = vmatpush2.msra.mxu0 0.0
    %1598 = vmatprep.subr.mxu0 0.0
    %1599 = vmatpush2.msra.mxu0 0.0
    %1600 = vmatprep.subr.mxu0 0.0
    %1601 = vmatpush2.msra.mxu0 0.0
    %1602 = vmatprep.subr.mxu0 0.0
    %1603 = vmatpush2.msra.mxu0 0.0
    %1604 = vmatprep.subr.mxu0 0.0
    %1605 = vmatpush2.msra.mxu0 0.0
    %1606 = vmatprep.subr.mxu0 0.0
    %1607 = vmatpush2.msra.mxu0 0.0
    %1608 = vmatprep.subr.mxu0 0.0
    %1609 = vmatpush2.msra.mxu0 0.0
    %1610 = vmatprep.subr.mxu0 0.0
    %1611 = vmatpush2.msra.mxu0 0.0
    %1612 = vmatprep.subr.mxu0 0.0
    %1613 = vmatpush2.msra.mxu0 0.0
    %1614 = vmatprep.subr.mxu0 0.0
    %1615 = vmatpush2.msra.mxu0 0.0
    %1616 = vmatprep.subr.mxu0 0.0
    %1617 = vmatpush2.msra.mxu0 0.0
    %1618 = vmatprep.subr.mxu0 0.0
    %1619 = vmatpush2.msra.mxu0 0.0
    %1620 = vmatprep.mubr.f32.mxu0 0.0
    %1621 = vmatmul.mubr.f32.gmra.mxu0 %v1107
    %v1622 = vpop.f32.mrf.mxu0
    %v1623 = vadd.f32 0.0, %v1622
    %v1624 = vpop.f32.mrf.mxu0
    %1625 = vdwg.mxu0
    %v1627 = vlaneseq
    %v1628 = vshrl.u32 %v1627, 7
    %v1629 = vsub.s32 0, %v1628
    %v1630 = vrot.slane %v793, %v1629
    %v1632 = vadd.f32 %v1630, %v1623
    %1633 = vmatprep.subr.mxu0 0.0
    %1634 = vmatpush1.msra.mxu0 0.0
    %1635 = vmatprep.subr.mxu0 0.0
    %1636 = vmatpush1.msra.mxu0 0.0
    %1637 = vmatprep.subr.mxu0 0.0
    %1638 = vmatpush1.msra.mxu0 0.0
    %1639 = vmatprep.subr.mxu0 0.0
    %1640 = vmatpush1.msra.mxu0 0.0
    %1641 = vmatprep.subr.mxu0 0.0
    %1642 = vmatpush1.msra.mxu0 0.0
    %1643 = vmatprep.subr.mxu0 0.0
    %1644 = vmatpush1.msra.mxu0 0.0
    %1645 = vmatprep.subr.mxu0 0.0
    %1646 = vmatpush1.msra.mxu0 0.0
    %1647 = vmatprep.subr.mxu0 0.0
    %1648 = vmatpush1.msra.mxu0 0.0
    %1649 = vmatprep.subr.mxu0 0.0
    %1650 = vmatpush1.msra.mxu0 0.0
    %1651 = vmatprep.subr.mxu0 0.0
    %1652 = vmatpush1.msra.mxu0 0.0
    %1653 = vmatprep.subr.mxu0 0.0
    %1654 = vmatpush1.msra.mxu0 0.0
    %1655 = vmatprep.subr.mxu0 0.0
    %1656 = vmatpush1.msra.mxu0 0.0
    %1657 = vmatprep.subr.mxu0 0.0
    %1658 = vmatpush1.msra.mxu0 0.0
    %1659 = vmatprep.subr.mxu0 0.0
    %1660 = vmatpush1.msra.mxu0 0.0
    %1661 = vmatprep.subr.mxu0 0.0
    %1662 = vmatpush1.msra.mxu0 %v786
    %1663 = vmatprep.subr.mxu0 0.0
    %1664 = vmatpush1.msra.mxu0 %v785
    %1665 = vmatprep.subr.mxu0 0.0
    %1666 = vmatpush2.msra.mxu0 0.0
    %1667 = vmatprep.subr.mxu0 0.0
    %1668 = vmatpush2.msra.mxu0 0.0
    %1669 = vmatprep.subr.mxu0 0.0
    %1670 = vmatpush2.msra.mxu0 0.0
    %1671 = vmatprep.subr.mxu0 0.0
    %1672 = vmatpush2.msra.mxu0 0.0
    %1673 = vmatprep.subr.mxu0 0.0
    %1674 = vmatpush2.msra.mxu0 0.0
    %1675 = vmatprep.subr.mxu0 0.0
    %1676 = vmatpush2.msra.mxu0 0.0
    %1677 = vmatprep.subr.mxu0 0.0
    %1678 = vmatpush2.msra.mxu0 0.0
    %1679 = vmatprep.subr.mxu0 0.0
    %1680 = vmatpush2.msra.mxu0 0.0
    %1681 = vmatprep.subr.mxu0 0.0
    %1682 = vmatpush2.msra.mxu0 0.0
    %1683 = vmatprep.subr.mxu0 0.0
    %1684 = vmatpush2.msra.mxu0 0.0
    %1685 = vmatprep.subr.mxu0 0.0
    %1686 = vmatpush2.msra.mxu0 0.0
    %1687 = vmatprep.subr.mxu0 0.0
    %1688 = vmatpush2.msra.mxu0 0.0
    %1689 = vmatprep.subr.mxu0 0.0
    %1690 = vmatpush2.msra.mxu0 0.0
    %1691 = vmatprep.subr.mxu0 0.0
    %1692 = vmatpush2.msra.mxu0 0.0
    %1693 = vmatprep.subr.mxu0 0.0
    %1694 = vmatpush2.msra.mxu0 0.0
    %1695 = vmatprep.subr.mxu0 0.0
    %1696 = vmatpush2.msra.mxu0 0.0
    %1697 = vmatprep.mubr.f32.mxu0 0.0
    %1698 = vmatmul.mubr.f32.gmra.mxu0 %v1187
    %v1699 = vpop.f32.mrf.mxu0
    %v1700 = vadd.f32 0.0, %v1699
    %v1701 = vpop.f32.mrf.mxu0
    %1702 = vdwg.mxu0
    %v1703 = vadd.f32 %v1632, %v1700
    %v1704 = vmul.f32 %v1407, 0.5
    %v1705 = vtanh.pop %v1704
    %v1706 = vmul.f32 %v1705, 0.5
    %v1707 = vadd.f32 %v1706, 0.5
    %v1708 = vmul.f32 %v1707, %v799
    %v1709 = vmul.f32 %v1259, 0.5
    %v1710 = vtanh.pop %v1709
    %v1711 = vmul.f32 %v1710, 0.5
    %v1712 = vadd.f32 %v1711, 0.5
    %v1713 = vtanh.pop %v1555
    %v1714 = vmul.f32 %v1712, %v1713
    %v1715 = vadd.f32 %v1708, %v1714
    %v1716 = vmul.f32 %v1703, 0.5
    %v1717 = vtanh.pop %v1716
    %v1718 = vmul.f32 %v1717, 0.5
    %v1719 = vadd.f32 %v1718, 0.5
    %v1720 = vtanh.pop %v1715
    %v1721 = vmul.f32 %v1719, %v1720
    %1722 = vmatprep.subr.mxu0 0.0
    %1723 = vmatpush1.msra.mxu0 0.0
    %1724 = vmatprep.subr.mxu0 0.0
    %1725 = vmatpush1.msra.mxu0 0.0
    %1726 = vmatprep.subr.mxu0 0.0
    %1727 = vmatpush1.msra.mxu0 0.0
    %1728 = vmatprep.subr.mxu0 0.0
    %1729 = vmatpush1.msra.mxu0 0.0
    %1730 = vmatprep.subr.mxu0 0.0
    %1731 = vmatpush1.msra.mxu0 0.0
    %1732 = vmatprep.subr.mxu0 0.0
    %1733 = vmatpush1.msra.mxu0 0.0
    %1734 = vmatprep.subr.mxu0 0.0
    %1735 = vmatpush1.msra.mxu0 0.0
    %1736 = vmatprep.subr.mxu0 0.0
    %1737 = vmatpush1.msra.mxu0 0.0
    %1738 = vmatprep.subr.mxu0 0.0
    %1739 = vmatpush1.msra.mxu0 0.0
    %1740 = vmatprep.subr.mxu0 0.0
    %1741 = vmatpush1.msra.mxu0 0.0
    %1742 = vmatprep.subr.mxu0 0.0
    %1743 = vmatpush1.msra.mxu0 0.0
    %1744 = vmatprep.subr.mxu0 0.0
    %1745 = vmatpush1.msra.mxu0 0.0
    %1746 = vmatprep.subr.mxu0 0.0
    %1747 = vmatpush1.msra.mxu0 0.0
    %1748 = vmatprep.subr.mxu0 0.0
    %1749 = vmatpush1.msra.mxu0 0.0
    %1750 = vmatprep.subr.mxu0 0.0
    %1751 = vmatpush1.msra.mxu0 %v755
    %1752 = vmatprep.subr.mxu0 0.0
    %1753 = vmatpush1.msra.mxu0 %v754
    %1754 = vmatprep.subr.mxu0 0.0
    %1755 = vmatpush2.msra.mxu0 0.0
    %1756 = vmatprep.subr.mxu0 0.0
    %1757 = vmatpush2.msra.mxu0 0.0
    %1758 = vmatprep.subr.mxu0 0.0
    %1759 = vmatpush2.msra.mxu0 0.0
    %1760 = vmatprep.subr.mxu0 0.0
    %1761 = vmatpush2.msra.mxu0 0.0
    %1762 = vmatprep.subr.mxu0 0.0
    %1763 = vmatpush2.msra.mxu0 0.0
    %1764 = vmatprep.subr.mxu0 0.0
    %1765 = vmatpush2.msra.mxu0 0.0
    %1766 = vmatprep.subr.mxu0 0.0
    %1767 = vmatpush2.msra.mxu0 0.0
    %1768 = vmatprep.subr.mxu0 0.0
    %1769 = vmatpush2.msra.mxu0 0.0
    %1770 = vmatprep.subr.mxu0 0.0
    %1771 = vmatpush2.msra.mxu0 0.0
    %1772 = vmatprep.subr.mxu0 0.0
    %1773 = vmatpush2.msra.mxu0 0.0
    %1774 = vmatprep.subr.mxu0 0.0
    %1775 = vmatpush2.msra.mxu0 0.0
    %1776 = vmatprep.subr.mxu0 0.0
    %1777 = vmatpush2.msra.mxu0 0.0
    %1778 = vmatprep.subr.mxu0 0.0
    %1779 = vmatpush2.msra.mxu0 0.0
    %1780 = vmatprep.subr.mxu0 0.0
    %1781 = vmatpush2.msra.mxu0 0.0
    %1782 = vmatprep.subr.mxu0 0.0
    %1783 = vmatpush2.msra.mxu0 0.0
    %1784 = vmatprep.subr.mxu0 0.0
    %1785 = vmatpush2.msra.mxu0 0.0
    %1786 = vmatprep.mubr.f32.mxu0 0.0
    %1787 = vmatmul.mubr.f32.gmra.mxu0 %v1107
    %v1788 = vpop.f32.mrf.mxu0
    %v1789 = vadd.f32 0.0, %v1788
    %v1790 = vpop.f32.mrf.mxu0
    %1791 = vdwg.mxu0
    %v1792 = vadd.f32 %v315, %v1789
    %1793 = vmatprep.subr.mxu0 0.0
    %1794 = vmatpush1.msra.mxu0 0.0
    %1795 = vmatprep.subr.mxu0 0.0
    %1796 = vmatpush1.msra.mxu0 0.0
    %1797 = vmatprep.subr.mxu0 0.0
    %1798 = vmatpush1.msra.mxu0 0.0
    %1799 = vmatprep.subr.mxu0 0.0
    %1800 = vmatpush1.msra.mxu0 0.0
    %1801 = vmatprep.subr.mxu0 0.0
    %1802 = vmatpush1.msra.mxu0 0.0
    %1803 = vmatprep.subr.mxu0 0.0
    %1804 = vmatpush1.msra.mxu0 0.0
    %1805 = vmatprep.subr.mxu0 0.0
    %1806 = vmatpush1.msra.mxu0 0.0
    %1807 = vmatprep.subr.mxu0 0.0
    %1808 = vmatpush1.msra.mxu0 0.0
    %1809 = vmatprep.subr.mxu0 0.0
    %1810 = vmatpush1.msra.mxu0 0.0
    %1811 = vmatprep.subr.mxu0 0.0
    %1812 = vmatpush1.msra.mxu0 0.0
    %1813 = vmatprep.subr.mxu0 0.0
    %1814 = vmatpush1.msra.mxu0 0.0
    %1815 = vmatprep.subr.mxu0 0.0
    %1816 = vmatpush1.msra.mxu0 0.0
    %1817 = vmatprep.subr.mxu0 0.0
    %1818 = vmatpush1.msra.mxu0 0.0
    %1819 = vmatprep.subr.mxu0 0.0
    %1820 = vmatpush1.msra.mxu0 0.0
    %1821 = vmatprep.subr.mxu0 0.0
    %1822 = vmatpush1.msra.mxu0 %v758
    %1823 = vmatprep.subr.mxu0 0.0
    %1824 = vmatpush1.msra.mxu0 %v757
    %1825 = vmatprep.subr.mxu0 0.0
    %1826 = vmatpush2.msra.mxu0 0.0
    %1827 = vmatprep.subr.mxu0 0.0
    %1828 = vmatpush2.msra.mxu0 0.0
    %1829 = vmatprep.subr.mxu0 0.0
    %1830 = vmatpush2.msra.mxu0 0.0
    %1831 = vmatprep.subr.mxu0 0.0
    %1832 = vmatpush2.msra.mxu0 0.0
    %1833 = vmatprep.subr.mxu0 0.0
    %1834 = vmatpush2.msra.mxu0 0.0
    %1835 = vmatprep.subr.mxu0 0.0
    %1836 = vmatpush2.msra.mxu0 0.0
    %1837 = vmatprep.subr.mxu0 0.0
    %1838 = vmatpush2.msra.mxu0 0.0
    %1839 = vmatprep.subr.mxu0 0.0
    %1840 = vmatpush2.msra.mxu0 0.0
    %1841 = vmatprep.subr.mxu0 0.0
    %1842 = vmatpush2.msra.mxu0 0.0
    %1843 = vmatprep.subr.mxu0 0.0
    %1844 = vmatpush2.msra.mxu0 0.0
    %1845 = vmatprep.subr.mxu0 0.0
    %1846 = vmatpush2.msra.mxu0 0.0
    %1847 = vmatprep.subr.mxu0 0.0
    %1848 = vmatpush2.msra.mxu0 0.0
    %1849 = vmatprep.subr.mxu0 0.0
    %1850 = vmatpush2.msra.mxu0 0.0
    %1851 = vmatprep.subr.mxu0 0.0
    %1852 = vmatpush2.msra.mxu0 0.0
    %1853 = vmatprep.subr.mxu0 0.0
    %1854 = vmatpush2.msra.mxu0 0.0
    %1855 = vmatprep.subr.mxu0 0.0
    %1856 = vmatpush2.msra.mxu0 0.0
    %1857 = vmatprep.mubr.f32.mxu0 0.0
    %1858 = vmatmul.mubr.f32.gmra.mxu0 %v1107
    %v1859 = vpop.f32.mrf.mxu0
    %v1860 = vadd.f32 0.0, %v1859
    %v1861 = vpop.f32.mrf.mxu0
    %1862 = vdwg.mxu0
    %v1863 = vadd.f32 %v459, %v1860
    %1864 = vmatprep.subr.mxu0 0.0
    %1865 = vmatpush1.msra.mxu0 0.0
    %1866 = vmatprep.subr.mxu0 0.0
    %1867 = vmatpush1.msra.mxu0 0.0
    %1868 = vmatprep.subr.mxu0 0.0
    %1869 = vmatpush1.msra.mxu0 0.0
    %1870 = vmatprep.subr.mxu0 0.0
    %1871 = vmatpush1.msra.mxu0 0.0
    %1872 = vmatprep.subr.mxu0 0.0
    %1873 = vmatpush1.msra.mxu0 0.0
    %1874 = vmatprep.subr.mxu0 0.0
    %1875 = vmatpush1.msra.mxu0 0.0
    %1876 = vmatprep.subr.mxu0 0.0
    %1877 = vmatpush1.msra.mxu0 0.0
    %1878 = vmatprep.subr.mxu0 0.0
    %1879 = vmatpush1.msra.mxu0 0.0
    %1880 = vmatprep.subr.mxu0 0.0
    %1881 = vmatpush1.msra.mxu0 0.0
    %1882 = vmatprep.subr.mxu0 0.0
    %1883 = vmatpush1.msra.mxu0 0.0
    %1884 = vmatprep.subr.mxu0 0.0
    %1885 = vmatpush1.msra.mxu0 0.0
    %1886 = vmatprep.subr.mxu0 0.0
    %1887 = vmatpush1.msra.mxu0 0.0
    %1888 = vmatprep.subr.mxu0 0.0
    %1889 = vmatpush1.msra.mxu0 0.0
    %1890 = vmatprep.subr.mxu0 0.0
    %1891 = vmatpush1.msra.mxu0 0.0
    %1892 = vmatprep.subr.mxu0 0.0
    %1893 = vmatpush1.msra.mxu0 %v761
    %1894 = vmatprep.subr.mxu0 0.0
    %1895 = vmatpush1.msra.mxu0 %v760
    %1896 = vmatprep.subr.mxu0 0.0
    %1897 = vmatpush2.msra.mxu0 0.0
    %1898 = vmatprep.subr.mxu0 0.0
    %1899 = vmatpush2.msra.mxu0 0.0
    %1900 = vmatprep.subr.mxu0 0.0
    %1901 = vmatpush2.msra.mxu0 0.0
    %1902 = vmatprep.subr.mxu0 0.0
    %1903 = vmatpush2.msra.mxu0 0.0
    %1904 = vmatprep.subr.mxu0 0.0
    %1905 = vmatpush2.msra.mxu0 0.0
    %1906 = vmatprep.subr.mxu0 0.0
    %1907 = vmatpush2.msra.mxu0 0.0
    %1908 = vmatprep.subr.mxu0 0.0
    %1909 = vmatpush2.msra.mxu0 0.0
    %1910 = vmatprep.subr.mxu0 0.0
    %1911 = vmatpush2.msra.mxu0 0.0
    %1912 = vmatprep.subr.mxu0 0.0
    %1913 = vmatpush2.msra.mxu0 0.0
    %1914 = vmatprep.subr.mxu0 0.0
    %1915 = vmatpush2.msra.mxu0 0.0
    %1916 = vmatprep.subr.mxu0 0.0
    %1917 = vmatpush2.msra.mxu0 0.0
    %1918 = vmatprep.subr.mxu0 0.0
    %1919 = vmatpush2.msra.mxu0 0.0
    %1920 = vmatprep.subr.mxu0 0.0
    %1921 = vmatpush2.msra.mxu0 0.0
    %1922 = vmatprep.subr.mxu0 0.0
    %1923 = vmatpush2.msra.mxu0 0.0
    %1924 = vmatprep.subr.mxu0 0.0
    %1925 = vmatpush2.msra.mxu0 0.0
    %1926 = vmatprep.subr.mxu0 0.0
    %1927 = vmatpush2.msra.mxu0 0.0
    %1928 = vmatprep.mubr.f32.mxu0 0.0
    %1929 = vmatmul.mubr.f32.gmra.mxu0 %v1107
    %v1930 = vpop.f32.mrf.mxu0
    %v1931 = vadd.f32 0.0, %v1930
    %v1932 = vpop.f32.mrf.mxu0
    %1933 = vdwg.mxu0
    %v1934 = vadd.f32 %v603, %v1931
    %1935 = vmatprep.subr.mxu0 0.0
    %1936 = vmatpush1.msra.mxu0 0.0
    %1937 = vmatprep.subr.mxu0 0.0
    %1938 = vmatpush1.msra.mxu0 0.0
    %1939 = vmatprep.subr.mxu0 0.0
    %1940 = vmatpush1.msra.mxu0 0.0
    %1941 = vmatprep.subr.mxu0 0.0
    %1942 = vmatpush1.msra.mxu0 0.0
    %1943 = vmatprep.subr.mxu0 0.0
    %1944 = vmatpush1.msra.mxu0 0.0
    %1945 = vmatprep.subr.mxu0 0.0
    %1946 = vmatpush1.msra.mxu0 0.0
    %1947 = vmatprep.subr.mxu0 0.0
    %1948 = vmatpush1.msra.mxu0 0.0
    %1949 = vmatprep.subr.mxu0 0.0
    %1950 = vmatpush1.msra.mxu0 0.0
    %1951 = vmatprep.subr.mxu0 0.0
    %1952 = vmatpush1.msra.mxu0 0.0
    %1953 = vmatprep.subr.mxu0 0.0
    %1954 = vmatpush1.msra.mxu0 0.0
    %1955 = vmatprep.subr.mxu0 0.0
    %1956 = vmatpush1.msra.mxu0 0.0
    %1957 = vmatprep.subr.mxu0 0.0
    %1958 = vmatpush1.msra.mxu0 0.0
    %1959 = vmatprep.subr.mxu0 0.0
    %1960 = vmatpush1.msra.mxu0 0.0
    %1961 = vmatprep.subr.mxu0 0.0
    %1962 = vmatpush1.msra.mxu0 0.0
    %1963 = vmatprep.subr.mxu0 0.0
    %1964 = vmatpush1.msra.mxu0 %v764
    %1965 = vmatprep.subr.mxu0 0.0
    %1966 = vmatpush1.msra.mxu0 %v763
    %1967 = vmatprep.subr.mxu0 0.0
    %1968 = vmatpush2.msra.mxu0 0.0
    %1969 = vmatprep.subr.mxu0 0.0
    %1970 = vmatpush2.msra.mxu0 0.0
    %1971 = vmatprep.subr.mxu0 0.0
    %1972 = vmatpush2.msra.mxu0 0.0
    %1973 = vmatprep.subr.mxu0 0.0
    %1974 = vmatpush2.msra.mxu0 0.0
    %1975 = vmatprep.subr.mxu0 0.0
    %1976 = vmatpush2.msra.mxu0 0.0
    %1977 = vmatprep.subr.mxu0 0.0
    %1978 = vmatpush2.msra.mxu0 0.0
    %1979 = vmatprep.subr.mxu0 0.0
    %1980 = vmatpush2.msra.mxu0 0.0
    %1981 = vmatprep.subr.mxu0 0.0
    %1982 = vmatpush2.msra.mxu0 0.0
    %1983 = vmatprep.subr.mxu0 0.0
    %1984 = vmatpush2.msra.mxu0 0.0
    %1985 = vmatprep.subr.mxu0 0.0
    %1986 = vmatpush2.msra.mxu0 0.0
    %1987 = vmatprep.subr.mxu0 0.0
    %1988 = vmatpush2.msra.mxu0 0.0
    %1989 = vmatprep.subr.mxu0 0.0
    %1990 = vmatpush2.msra.mxu0 0.0
    %1991 = vmatprep.subr.mxu0 0.0
    %1992 = vmatpush2.msra.mxu0 0.0
    %1993 = vmatprep.subr.mxu0 0.0
    %1994 = vmatpush2.msra.mxu0 0.0
    %1995 = vmatprep.subr.mxu0 0.0
    %1996 = vmatpush2.msra.mxu0 0.0
    %1997 = vmatprep.subr.mxu0 0.0
    %1998 = vmatpush2.msra.mxu0 0.0
    %1999 = vmatprep.mubr.f32.mxu0 0.0
    %2000 = vmatmul.mubr.f32.gmra.mxu0 %v1107
    %v2001 = vpop.f32.mrf.mxu0
    %v2002 = vadd.f32 0.0, %v2001
    %v2003 = vpop.f32.mrf.mxu0
    %2004 = vdwg.mxu0
    %v2005 = vadd.f32 %v747, %v2002
    %v2006 = vmul.f32 %v1863, 0.5
    %v2007 = vtanh.pop %v2006
    %v2008 = vmul.f32 %v2007, 0.5
    %v2009 = vadd.f32 %v2008, 0.5
    %v2010 = vmul.f32 %v2009, %v1099
    %v2011 = vmul.f32 %v1792, 0.5
    %v2012 = vtanh.pop %v2011
    %v2013 = vmul.f32 %v2012, 0.5
    %v2014 = vadd.f32 %v2013, 0.5
    %v2015 = vtanh.pop %v1934
    %v2016 = vmul.f32 %v2014, %v2015
    %v2017 = vadd.f32 %v2010, %v2016
    %v2018 = vmul.f32 %v2005, 0.5
    %v2019 = vtanh.pop %v2018
    %v2020 = vmul.f32 %v2019, 0.5
    %v2021 = vadd.f32 %v2020, 0.5
    %v2022 = vtanh.pop %v2017
    %v2023 = vmul.f32 %v2021, %v2022
    %v2025 = vsel %vm800, %v2023, 0
    %2027 = vmatprep.subr.mxu0 0.0
    %2028 = vmatpush1.msra.mxu0 0.0
    %2029 = vmatprep.subr.mxu0 0.0
    %2030 = vmatpush1.msra.mxu0 0.0
    %2031 = vmatprep.subr.mxu0 0.0
    %2032 = vmatpush1.msra.mxu0 0.0
    %2033 = vmatprep.subr.mxu0 0.0
    %2034 = vmatpush1.msra.mxu0 0.0
    %2035 = vmatprep.subr.mxu0 0.0
    %2036 = vmatpush1.msra.mxu0 0.0
    %2037 = vmatprep.subr.mxu0 0.0
    %2038 = vmatpush1.msra.mxu0 0.0
    %2039 = vmatprep.subr.mxu0 0.0
    %2040 = vmatpush1.msra.mxu0 0.0
    %2041 = vmatprep.subr.mxu0 0.0
    %2042 = vmatpush1.msra.mxu0 0.0
    %2043 = vmatprep.subr.mxu0 0.0
    %2044 = vmatpush1.msra.mxu0 0.0
    %2045 = vmatprep.subr.mxu0 0.0
    %2046 = vmatpush1.msra.mxu0 0.0
    %2047 = vmatprep.subr.mxu0 0.0
    %2048 = vmatpush1.msra.mxu0 0.0
    %2049 = vmatprep.subr.mxu0 0.0
    %2050 = vmatpush1.msra.mxu0 0.0
    %2051 = vmatprep.subr.mxu0 0.0
    %2052 = vmatpush1.msra.mxu0 0.0
    %2053 = vmatprep.subr.mxu0 0.0
    %2054 = vmatpush1.msra.mxu0 0.0
    %2055 = vmatprep.subr.mxu0 0.0
    %2056 = vmatpush1.msra.mxu0 %v766
    %2057 = vmatprep.subr.mxu0 0.0
    %2058 = vmatpush1.msra.mxu0 %v765
    %2059 = vmatprep.subr.mxu0 0.0
    %2060 = vmatpush2.msra.mxu0 0.0
    %2061 = vmatprep.subr.mxu0 0.0
    %2062 = vmatpush2.msra.mxu0 0.0
    %2063 = vmatprep.subr.mxu0 0.0
    %2064 = vmatpush2.msra.mxu0 0.0
    %2065 = vmatprep.subr.mxu0 0.0
    %2066 = vmatpush2.msra.mxu0 0.0
    %2067 = vmatprep.subr.mxu0 0.0
    %2068 = vmatpush2.msra.mxu0 0.0
    %2069 = vmatprep.subr.mxu0 0.0
    %2070 = vmatpush2.msra.mxu0 0.0
    %2071 = vmatprep.subr.mxu0 0.0
    %2072 = vmatpush2.msra.mxu0 0.0
    %2073 = vmatprep.subr.mxu0 0.0
    %2074 = vmatpush2.msra.mxu0 0.0
    %2075 = vmatprep.subr.mxu0 0.0
    %2076 = vmatpush2.msra.mxu0 0.0
    %2077 = vmatprep.subr.mxu0 0.0
    %2078 = vmatpush2.msra.mxu0 0.0
    %2079 = vmatprep.subr.mxu0 0.0
    %2080 = vmatpush2.msra.mxu0 0.0
    %2081 = vmatprep.subr.mxu0 0.0
    %2082 = vmatpush2.msra.mxu0 0.0
    %2083 = vmatprep.subr.mxu0 0.0
    %2084 = vmatpush2.msra.mxu0 0.0
    %2085 = vmatprep.subr.mxu0 0.0
    %2086 = vmatpush2.msra.mxu0 0.0
    %2087 = vmatprep.subr.mxu0 0.0
    %2088 = vmatpush2.msra.mxu0 0.0
    %2089 = vmatprep.subr.mxu0 0.0
    %2090 = vmatpush2.msra.mxu0 0.0
    %2091 = vmatprep.mubr.f32.mxu0 0.0
    %2092 = vmatmul.mubr.f32.gmra.mxu0 %v2025
    %v2093 = vpop.f32.mrf.mxu0
    %v2094 = vadd.f32 0.0, %v2093
    %v2095 = vpop.f32.mrf.mxu0
    %2096 = vdwg.mxu0
    %v2097 = vadd.f32 %v1183, %v2094
    %v2099 = vsel %vm800, %v1721, 0
    %2101 = vmatprep.subr.mxu0 0.0
    %2102 = vmatpush1.msra.mxu0 0.0
    %2103 = vmatprep.subr.mxu0 0.0
    %2104 = vmatpush1.msra.mxu0 0.0
    %2105 = vmatprep.subr.mxu0 0.0
    %2106 = vmatpush1.msra.mxu0 0.0
    %2107 = vmatprep.subr.mxu0 0.0
    %2108 = vmatpush1.msra.mxu0 0.0
    %2109 = vmatprep.subr.mxu0 0.0
    %2110 = vmatpush1.msra.mxu0 0.0
    %2111 = vmatprep.subr.mxu0 0.0
    %2112 = vmatpush1.msra.mxu0 0.0
    %2113 = vmatprep.subr.mxu0 0.0
    %2114 = vmatpush1.msra.mxu0 0.0
    %2115 = vmatprep.subr.mxu0 0.0
    %2116 = vmatpush1.msra.mxu0 0.0
    %2117 = vmatprep.subr.mxu0 0.0
    %2118 = vmatpush1.msra.mxu0 0.0
    %2119 = vmatprep.subr.mxu0 0.0
    %2120 = vmatpush1.msra.mxu0 0.0
    %2121 = vmatprep.subr.mxu0 0.0
    %2122 = vmatpush1.msra.mxu0 0.0
    %2123 = vmatprep.subr.mxu0 0.0
    %2124 = vmatpush1.msra.mxu0 0.0
    %2125 = vmatprep.subr.mxu0 0.0
    %2126 = vmatpush1.msra.mxu0 0.0
    %2127 = vmatprep.subr.mxu0 0.0
    %2128 = vmatpush1.msra.mxu0 0.0
    %2129 = vmatprep.subr.mxu0 0.0
    %2130 = vmatpush1.msra.mxu0 %v777
    %2131 = vmatprep.subr.mxu0 0.0
    %2132 = vmatpush1.msra.mxu0 %v776
    %2133 = vmatprep.subr.mxu0 0.0
    %2134 = vmatpush2.msra.mxu0 0.0
    %2135 = vmatprep.subr.mxu0 0.0
    %2136 = vmatpush2.msra.mxu0 0.0
    %2137 = vmatprep.subr.mxu0 0.0
    %2138 = vmatpush2.msra.mxu0 0.0
    %2139 = vmatprep.subr.mxu0 0.0
    %2140 = vmatpush2.msra.mxu0 0.0
    %2141 = vmatprep.subr.mxu0 0.0
    %2142 = vmatpush2.msra.mxu0 0.0
    %2143 = vmatprep.subr.mxu0 0.0
    %2144 = vmatpush2.msra.mxu0 0.0
    %2145 = vmatprep.subr.mxu0 0.0
    %2146 = vmatpush2.msra.mxu0 0.0
    %2147 = vmatprep.subr.mxu0 0.0
    %2148 = vmatpush2.msra.mxu0 0.0
    %2149 = vmatprep.subr.mxu0 0.0
    %2150 = vmatpush2.msra.mxu0 0.0
    %2151 = vmatprep.subr.mxu0 0.0
    %2152 = vmatpush2.msra.mxu0 0.0
    %2153 = vmatprep.subr.mxu0 0.0
    %2154 = vmatpush2.msra.mxu0 0.0
    %2155 = vmatprep.subr.mxu0 0.0
    %2156 = vmatpush2.msra.mxu0 0.0
    %2157 = vmatprep.subr.mxu0 0.0
    %2158 = vmatpush2.msra.mxu0 0.0
    %2159 = vmatprep.subr.mxu0 0.0
    %2160 = vmatpush2.msra.mxu0 0.0
    %2161 = vmatprep.subr.mxu0 0.0
    %2162 = vmatpush2.msra.mxu0 0.0
    %2163 = vmatprep.subr.mxu0 0.0
    %2164 = vmatpush2.msra.mxu0 0.0
    %2165 = vmatprep.mubr.f32.mxu0 0.0
    %2166 = vmatmul.mubr.f32.gmra.mxu0 %v2099
    %v2167 = vpop.f32.mrf.mxu0
    %v2168 = vadd.f32 0.0, %v2167
    %v2169 = vpop.f32.mrf.mxu0
    %2170 = vdwg.mxu0
    %v2171 = vadd.f32 %v2097, %v2168
    %2172 = vmatprep.subr.mxu0 0.0
    %2173 = vmatpush1.msra.mxu0 0.0
    %2174 = vmatprep.subr.mxu0 0.0
    %2175 = vmatpush1.msra.mxu0 0.0
    %2176 = vmatprep.subr.mxu0 0.0
    %2177 = vmatpush1.msra.mxu0 0.0
    %2178 = vmatprep.subr.mxu0 0.0
    %2179 = vmatpush1.msra.mxu0 0.0
    %2180 = vmatprep.subr.mxu0 0.0
    %2181 = vmatpush1.msra.mxu0 0.0
    %2182 = vmatprep.subr.mxu0 0.0
    %2183 = vmatpush1.msra.mxu0 0.0
    %2184 = vmatprep.subr.mxu0 0.0
    %2185 = vmatpush1.msra.mxu0 0.0
    %2186 = vmatprep.subr.mxu0 0.0
    %2187 = vmatpush1.msra.mxu0 0.0
    %2188 = vmatprep.subr.mxu0 0.0
    %2189 = vmatpush1.msra.mxu0 0.0
    %2190 = vmatprep.subr.mxu0 0.0
    %2191 = vmatpush1.msra.mxu0 0.0
    %2192 = vmatprep.subr.mxu0 0.0
    %2193 = vmatpush1.msra.mxu0 0.0
    %2194 = vmatprep.subr.mxu0 0.0
    %2195 = vmatpush1.msra.mxu0 0.0
    %2196 = vmatprep.subr.mxu0 0.0
    %2197 = vmatpush1.msra.mxu0 0.0
    %2198 = vmatprep.subr.mxu0 0.0
    %2199 = vmatpush1.msra.mxu0 0.0
    %2200 = vmatprep.subr.mxu0 0.0
    %2201 = vmatpush1.msra.mxu0 %v769
    %2202 = vmatprep.subr.mxu0 0.0
    %2203 = vmatpush1.msra.mxu0 %v768
    %2204 = vmatprep.subr.mxu0 0.0
    %2205 = vmatpush2.msra.mxu0 0.0
    %2206 = vmatprep.subr.mxu0 0.0
    %2207 = vmatpush2.msra.mxu0 0.0
    %2208 = vmatprep.subr.mxu0 0.0
    %2209 = vmatpush2.msra.mxu0 0.0
    %2210 = vmatprep.subr.mxu0 0.0
    %2211 = vmatpush2.msra.mxu0 0.0
    %2212 = vmatprep.subr.mxu0 0.0
    %2213 = vmatpush2.msra.mxu0 0.0
    %2214 = vmatprep.subr.mxu0 0.0
    %2215 = vmatpush2.msra.mxu0 0.0
    %2216 = vmatprep.subr.mxu0 0.0
    %2217 = vmatpush2.msra.mxu0 0.0
    %2218 = vmatprep.subr.mxu0 0.0
    %2219 = vmatpush2.msra.mxu0 0.0
    %2220 = vmatprep.subr.mxu0 0.0
    %2221 = vmatpush2.msra.mxu0 0.0
    %2222 = vmatprep.subr.mxu0 0.0
    %2223 = vmatpush2.msra.mxu0 0.0
    %2224 = vmatprep.subr.mxu0 0.0
    %2225 = vmatpush2.msra.mxu0 0.0
    %2226 = vmatprep.subr.mxu0 0.0
    %2227 = vmatpush2.msra.mxu0 0.0
    %2228 = vmatprep.subr.mxu0 0.0
    %2229 = vmatpush2.msra.mxu0 0.0
    %2230 = vmatprep.subr.mxu0 0.0
    %2231 = vmatpush2.msra.mxu0 0.0
    %2232 = vmatprep.subr.mxu0 0.0
    %2233 = vmatpush2.msra.mxu0 0.0
    %2234 = vmatprep.subr.mxu0 0.0
    %2235 = vmatpush2.msra.mxu0 0.0
    %2236 = vmatprep.mubr.f32.mxu0 0.0
    %2237 = vmatmul.mubr.f32.gmra.mxu0 %v2025
    %v2238 = vpop.f32.mrf.mxu0
    %v2239 = vadd.f32 0.0, %v2238
    %v2240 = vpop.f32.mrf.mxu0
    %2241 = vdwg.mxu0
    %v2242 = vadd.f32 %v1334, %v2239
    %2243 = vmatprep.subr.mxu0 0.0
    %2244 = vmatpush1.msra.mxu0 0.0
    %2245 = vmatprep.subr.mxu0 0.0
    %2246 = vmatpush1.msra.mxu0 0.0
    %2247 = vmatprep.subr.mxu0 0.0
    %2248 = vmatpush1.msra.mxu0 0.0
    %2249 = vmatprep.subr.mxu0 0.0
    %2250 = vmatpush1.msra.mxu0 0.0
    %2251 = vmatprep.subr.mxu0 0.0
    %2252 = vmatpush1.msra.mxu0 0.0
    %2253 = vmatprep.subr.mxu0 0.0
    %2254 = vmatpush1.msra.mxu0 0.0
    %2255 = vmatprep.subr.mxu0 0.0
    %2256 = vmatpush1.msra.mxu0 0.0
    %2257 = vmatprep.subr.mxu0 0.0
    %2258 = vmatpush1.msra.mxu0 0.0
    %2259 = vmatprep.subr.mxu0 0.0
    %2260 = vmatpush1.msra.mxu0 0.0
    %2261 = vmatprep.subr.mxu0 0.0
    %2262 = vmatpush1.msra.mxu0 0.0
    %2263 = vmatprep.subr.mxu0 0.0
    %2264 = vmatpush1.msra.mxu0 0.0
    %2265 = vmatprep.subr.mxu0 0.0
    %2266 = vmatpush1.msra.mxu0 0.0
    %2267 = vmatprep.subr.mxu0 0.0
    %2268 = vmatpush1.msra.mxu0 0.0
    %2269 = vmatprep.subr.mxu0 0.0
    %2270 = vmatpush1.msra.mxu0 0.0
    %2271 = vmatprep.subr.mxu0 0.0
    %2272 = vmatpush1.msra.mxu0 %v780
    %2273 = vmatprep.subr.mxu0 0.0
    %2274 = vmatpush1.msra.mxu0 %v779
    %2275 = vmatprep.subr.mxu0 0.0
    %2276 = vmatpush2.msra.mxu0 0.0
    %2277 = vmatprep.subr.mxu0 0.0
    %2278 = vmatpush2.msra.mxu0 0.0
    %2279 = vmatprep.subr.mxu0 0.0
    %2280 = vmatpush2.msra.mxu0 0.0
    %2281 = vmatprep.subr.mxu0 0.0
    %2282 = vmatpush2.msra.mxu0 0.0
    %2283 = vmatprep.subr.mxu0 0.0
    %2284 = vmatpush2.msra.mxu0 0.0
    %2285 = vmatprep.subr.mxu0 0.0
    %2286 = vmatpush2.msra.mxu0 0.0
    %2287 = vmatprep.subr.mxu0 0.0
    %2288 = vmatpush2.msra.mxu0 0.0
    %2289 = vmatprep.subr.mxu0 0.0
    %2290 = vmatpush2.msra.mxu0 0.0
    %2291 = vmatprep.subr.mxu0 0.0
    %2292 = vmatpush2.msra.mxu0 0.0
    %2293 = vmatprep.subr.mxu0 0.0
    %2294 = vmatpush2.msra.mxu0 0.0
    %2295 = vmatprep.subr.mxu0 0.0
    %2296 = vmatpush2.msra.mxu0 0.0
    %2297 = vmatprep.subr.mxu0 0.0
    %2298 = vmatpush2.msra.mxu0 0.0
    %2299 = vmatprep.subr.mxu0 0.0
    %2300 = vmatpush2.msra.mxu0 0.0
    %2301 = vmatprep.subr.mxu0 0.0
    %2302 = vmatpush2.msra.mxu0 0.0
    %2303 = vmatprep.subr.mxu0 0.0
    %2304 = vmatpush2.msra.mxu0 0.0
    %2305 = vmatprep.subr.mxu0 0.0
    %2306 = vmatpush2.msra.mxu0 0.0
    %2307 = vmatprep.mubr.f32.mxu0 0.0
    %2308 = vmatmul.mubr.f32.gmra.mxu0 %v2099
    %v2309 = vpop.f32.mrf.mxu0
    %v2310 = vadd.f32 0.0, %v2309
    %v2311 = vpop.f32.mrf.mxu0
    %2312 = vdwg.mxu0
    %v2313 = vadd.f32 %v2242, %v2310
    %2314 = vmatprep.subr.mxu0 0.0
    %2315 = vmatpush1.msra.mxu0 0.0
    %2316 = vmatprep.subr.mxu0 0.0
    %2317 = vmatpush1.msra.mxu0 0.0
    %2318 = vmatprep.subr.mxu0 0.0
    %2319 = vmatpush1.msra.mxu0 0.0
    %2320 = vmatprep.subr.mxu0 0.0
    %2321 = vmatpush1.msra.mxu0 0.0
    %2322 = vmatprep.subr.mxu0 0.0
    %2323 = vmatpush1.msra.mxu0 0.0
    %2324 = vmatprep.subr.mxu0 0.0
    %2325 = vmatpush1.msra.mxu0 0.0
    %2326 = vmatprep.subr.mxu0 0.0
    %2327 = vmatpush1.msra.mxu0 0.0
    %2328 = vmatprep.subr.mxu0 0.0
    %2329 = vmatpush1.msra.mxu0 0.0
    %2330 = vmatprep.subr.mxu0 0.0
    %2331 = vmatpush1.msra.mxu0 0.0
    %2332 = vmatprep.subr.mxu0 0.0
    %2333 = vmatpush1.msra.mxu0 0.0
    %2334 = vmatprep.subr.mxu0 0.0
    %2335 = vmatpush1.msra.mxu0 0.0
    %2336 = vmatprep.subr.mxu0 0.0
    %2337 = vmatpush1.msra.mxu0 0.0
    %2338 = vmatprep.subr.mxu0 0.0
    %2339 = vmatpush1.msra.mxu0 0.0
    %2340 = vmatprep.subr.mxu0 0.0
    %2341 = vmatpush1.msra.mxu0 0.0
    %2342 = vmatprep.subr.mxu0 0.0
    %2343 = vmatpush1.msra.mxu0 %v772
    %2344 = vmatprep.subr.mxu0 0.0
    %2345 = vmatpush1.msra.mxu0 %v771
    %2346 = vmatprep.subr.mxu0 0.0
    %2347 = vmatpush2.msra.mxu0 0.0
    %2348 = vmatprep.subr.mxu0 0.0
    %2349 = vmatpush2.msra.mxu0 0.0
    %2350 = vmatprep.subr.mxu0 0.0
    %2351 = vmatpush2.msra.mxu0 0.0
    %2352 = vmatprep.subr.mxu0 0.0
    %2353 = vmatpush2.msra.mxu0 0.0
    %2354 = vmatprep.subr.mxu0 0.0
    %2355 = vmatpush2.msra.mxu0 0.0
    %2356 = vmatprep.subr.mxu0 0.0
    %2357 = vmatpush2.msra.mxu0 0.0
    %2358 = vmatprep.subr.mxu0 0.0
    %2359 = vmatpush2.msra.mxu0 0.0
    %2360 = vmatprep.subr.mxu0 0.0
    %2361 = vmatpush2.msra.mxu0 0.0
    %2362 = vmatprep.subr.mxu0 0.0
    %2363 = vmatpush2.msra.mxu0 0.0
    %2364 = vmatprep.subr.mxu0 0.0
    %2365 = vmatpush2.msra.mxu0 0.0
    %2366 = vmatprep.subr.mxu0 0.0
    %2367 = vmatpush2.msra.mxu0 0.0
    %2368 = vmatprep.subr.mxu0 0.0
    %2369 = vmatpush2.msra.mxu0 0.0
    %2370 = vmatprep.subr.mxu0 0.0
    %2371 = vmatpush2.msra.mxu0 0.0
    %2372 = vmatprep.subr.mxu0 0.0
    %2373 = vmatpush2.msra.mxu0 0.0
    %2374 = vmatprep.subr.mxu0 0.0
    %2375 = vmatpush2.msra.mxu0 0.0
    %2376 = vmatprep.subr.mxu0 0.0
    %2377 = vmatpush2.msra.mxu0 0.0
    %2378 = vmatprep.mubr.f32.mxu0 0.0
    %2379 = vmatmul.mubr.f32.gmra.mxu0 %v2025
    %v2380 = vpop.f32.mrf.mxu0
    %v2381 = vadd.f32 0.0, %v2380
    %v2382 = vpop.f32.mrf.mxu0
    %2383 = vdwg.mxu0
    %v2384 = vadd.f32 %v1482, %v2381
    %2385 = vmatprep.subr.mxu0 0.0
    %2386 = vmatpush1.msra.mxu0 0.0
    %2387 = vmatprep.subr.mxu0 0.0
    %2388 = vmatpush1.msra.mxu0 0.0
    %2389 = vmatprep.subr.mxu0 0.0
    %2390 = vmatpush1.msra.mxu0 0.0
    %2391 = vmatprep.subr.mxu0 0.0
    %2392 = vmatpush1.msra.mxu0 0.0
    %2393 = vmatprep.subr.mxu0 0.0
    %2394 = vmatpush1.msra.mxu0 0.0
    %2395 = vmatprep.subr.mxu0 0.0
    %2396 = vmatpush1.msra.mxu0 0.0
    %2397 = vmatprep.subr.mxu0 0.0
    %2398 = vmatpush1.msra.mxu0 0.0
    %2399 = vmatprep.subr.mxu0 0.0
    %2400 = vmatpush1.msra.mxu0 0.0
    %2401 = vmatprep.subr.mxu0 0.0
    %2402 = vmatpush1.msra.mxu0 0.0
    %2403 = vmatprep.subr.mxu0 0.0
    %2404 = vmatpush1.msra.mxu0 0.0
    %2405 = vmatprep.subr.mxu0 0.0
    %2406 = vmatpush1.msra.mxu0 0.0
    %2407 = vmatprep.subr.mxu0 0.0
    %2408 = vmatpush1.msra.mxu0 0.0
    %2409 = vmatprep.subr.mxu0 0.0
    %2410 = vmatpush1.msra.mxu0 0.0
    %2411 = vmatprep.subr.mxu0 0.0
    %2412 = vmatpush1.msra.mxu0 0.0
    %2413 = vmatprep.subr.mxu0 0.0
    %2414 = vmatpush1.msra.mxu0 %v783
    %2415 = vmatprep.subr.mxu0 0.0
    %2416 = vmatpush1.msra.mxu0 %v782
    %2417 = vmatprep.subr.mxu0 0.0
    %2418 = vmatpush2.msra.mxu0 0.0
    %2419 = vmatprep.subr.mxu0 0.0
    %2420 = vmatpush2.msra.mxu0 0.0
    %2421 = vmatprep.subr.mxu0 0.0
    %2422 = vmatpush2.msra.mxu0 0.0
    %2423 = vmatprep.subr.mxu0 0.0
    %2424 = vmatpush2.msra.mxu0 0.0
    %2425 = vmatprep.subr.mxu0 0.0
    %2426 = vmatpush2.msra.mxu0 0.0
    %2427 = vmatprep.subr.mxu0 0.0
    %2428 = vmatpush2.msra.mxu0 0.0
    %2429 = vmatprep.subr.mxu0 0.0
    %2430 = vmatpush2.msra.mxu0 0.0
    %2431 = vmatprep.subr.mxu0 0.0
    %2432 = vmatpush2.msra.mxu0 0.0
    %2433 = vmatprep.subr.mxu0 0.0
    %2434 = vmatpush2.msra.mxu0 0.0
    %2435 = vmatprep.subr.mxu0 0.0
    %2436 = vmatpush2.msra.mxu0 0.0
    %2437 = vmatprep.subr.mxu0 0.0
    %2438 = vmatpush2.msra.mxu0 0.0
    %2439 = vmatprep.subr.mxu0 0.0
    %2440 = vmatpush2.msra.mxu0 0.0
    %2441 = vmatprep.subr.mxu0 0.0
    %2442 = vmatpush2.msra.mxu0 0.0
    %2443 = vmatprep.subr.mxu0 0.0
    %2444 = vmatpush2.msra.mxu0 0.0
    %2445 = vmatprep.subr.mxu0 0.0
    %2446 = vmatpush2.msra.mxu0 0.0
    %2447 = vmatprep.subr.mxu0 0.0
    %2448 = vmatpush2.msra.mxu0 0.0
    %2449 = vmatprep.mubr.f32.mxu0 0.0
    %2450 = vmatmul.mubr.f32.gmra.mxu0 %v2099
    %v2451 = vpop.f32.mrf.mxu0
    %v2452 = vadd.f32 0.0, %v2451
    %v2453 = vpop.f32.mrf.mxu0
    %2454 = vdwg.mxu0
    %v2455 = vadd.f32 %v2384, %v2452
    %2456 = vmatprep.subr.mxu0 0.0
    %2457 = vmatpush1.msra.mxu0 0.0
    %2458 = vmatprep.subr.mxu0 0.0
    %2459 = vmatpush1.msra.mxu0 0.0
    %2460 = vmatprep.subr.mxu0 0.0
    %2461 = vmatpush1.msra.mxu0 0.0
    %2462 = vmatprep.subr.mxu0 0.0
    %2463 = vmatpush1.msra.mxu0 0.0
    %2464 = vmatprep.subr.mxu0 0.0
    %2465 = vmatpush1.msra.mxu0 0.0
    %2466 = vmatprep.subr.mxu0 0.0
    %2467 = vmatpush1.msra.mxu0 0.0
    %2468 = vmatprep.subr.mxu0 0.0
    %2469 = vmatpush1.msra.mxu0 0.0
    %2470 = vmatprep.subr.mxu0 0.0
    %2471 = vmatpush1.msra.mxu0 0.0
    %2472 = vmatprep.subr.mxu0 0.0
    %2473 = vmatpush1.msra.mxu0 0.0
    %2474 = vmatprep.subr.mxu0 0.0
    %2475 = vmatpush1.msra.mxu0 0.0
    %2476 = vmatprep.subr.mxu0 0.0
    %2477 = vmatpush1.msra.mxu0 0.0
    %2478 = vmatprep.subr.mxu0 0.0
    %2479 = vmatpush1.msra.mxu0 0.0
    %2480 = vmatprep.subr.mxu0 0.0
    %2481 = vmatpush1.msra.mxu0 0.0
    %2482 = vmatprep.subr.mxu0 0.0
    %2483 = vmatpush1.msra.mxu0 0.0
    %2484 = vmatprep.subr.mxu0 0.0
    %2485 = vmatpush1.msra.mxu0 %v775
    %2486 = vmatprep.subr.mxu0 0.0
    %2487 = vmatpush1.msra.mxu0 %v774
    %2488 = vmatprep.subr.mxu0 0.0
    %2489 = vmatpush2.msra.mxu0 0.0
    %2490 = vmatprep.subr.mxu0 0.0
    %2491 = vmatpush2.msra.mxu0 0.0
    %2492 = vmatprep.subr.mxu0 0.0
    %2493 = vmatpush2.msra.mxu0 0.0
    %2494 = vmatprep.subr.mxu0 0.0
    %2495 = vmatpush2.msra.mxu0 0.0
    %2496 = vmatprep.subr.mxu0 0.0
    %2497 = vmatpush2.msra.mxu0 0.0
    %2498 = vmatprep.subr.mxu0 0.0
    %2499 = vmatpush2.msra.mxu0 0.0
    %2500 = vmatprep.subr.mxu0 0.0
    %2501 = vmatpush2.msra.mxu0 0.0
    %2502 = vmatprep.subr.mxu0 0.0
    %2503 = vmatpush2.msra.mxu0 0.0
    %2504 = vmatprep.subr.mxu0 0.0
    %2505 = vmatpush2.msra.mxu0 0.0
    %2506 = vmatprep.subr.mxu0 0.0
    %2507 = vmatpush2.msra.mxu0 0.0
    %2508 = vmatprep.subr.mxu0 0.0
    %2509 = vmatpush2.msra.mxu0 0.0
    %2510 = vmatprep.subr.mxu0 0.0
    %2511 = vmatpush2.msra.mxu0 0.0
    %2512 = vmatprep.subr.mxu0 0.0
    %2513 = vmatpush2.msra.mxu0 0.0
    %2514 = vmatprep.subr.mxu0 0.0
    %2515 = vmatpush2.msra.mxu0 0.0
    %2516 = vmatprep.subr.mxu0 0.0
    %2517 = vmatpush2.msra.mxu0 0.0
    %2518 = vmatprep.subr.mxu0 0.0
    %2519 = vmatpush2.msra.mxu0 0.0
    %2520 = vmatprep.mubr.f32.mxu0 0.0
    %2521 = vmatmul.mubr.f32.gmra.mxu0 %v2025
    %v2522 = vpop.f32.mrf.mxu0
    %v2523 = vadd.f32 0.0, %v2522
    %v2524 = vpop.f32.mrf.mxu0
    %2525 = vdwg.mxu0
    %v2526 = vadd.f32 %v1630, %v2523
    %2527 = vmatprep.subr.mxu0 0.0
    %2528 = vmatpush1.msra.mxu0 0.0
    %2529 = vmatprep.subr.mxu0 0.0
    %2530 = vmatpush1.msra.mxu0 0.0
    %2531 = vmatprep.subr.mxu0 0.0
    %2532 = vmatpush1.msra.mxu0 0.0
    %2533 = vmatprep.subr.mxu0 0.0
    %2534 = vmatpush1.msra.mxu0 0.0
    %2535 = vmatprep.subr.mxu0 0.0
    %2536 = vmatpush1.msra.mxu0 0.0
    %2537 = vmatprep.subr.mxu0 0.0
    %2538 = vmatpush1.msra.mxu0 0.0
    %2539 = vmatprep.subr.mxu0 0.0
    %2540 = vmatpush1.msra.mxu0 0.0
    %2541 = vmatprep.subr.mxu0 0.0
    %2542 = vmatpush1.msra.mxu0 0.0
    %2543 = vmatprep.subr.mxu0 0.0
    %2544 = vmatpush1.msra.mxu0 0.0
    %2545 = vmatprep.subr.mxu0 0.0
    %2546 = vmatpush1.msra.mxu0 0.0
    %2547 = vmatprep.subr.mxu0 0.0
    %2548 = vmatpush1.msra.mxu0 0.0
    %2549 = vmatprep.subr.mxu0 0.0
    %2550 = vmatpush1.msra.mxu0 0.0
    %2551 = vmatprep.subr.mxu0 0.0
    %2552 = vmatpush1.msra.mxu0 0.0
    %2553 = vmatprep.subr.mxu0 0.0
    %2554 = vmatpush1.msra.mxu0 0.0
    %2555 = vmatprep.subr.mxu0 0.0
    %2556 = vmatpush1.msra.mxu0 %v786
    %2557 = vmatprep.subr.mxu0 0.0
    %2558 = vmatpush1.msra.mxu0 %v785
    %2559 = vmatprep.subr.mxu0 0.0
    %2560 = vmatpush2.msra.mxu0 0.0
    %2561 = vmatprep.subr.mxu0 0.0
    %2562 = vmatpush2.msra.mxu0 0.0
    %2563 = vmatprep.subr.mxu0 0.0
    %2564 = vmatpush2.msra.mxu0 0.0
    %2565 = vmatprep.subr.mxu0 0.0
    %2566 = vmatpush2.msra.mxu0 0.0
    %2567 = vmatprep.subr.mxu0 0.0
    %2568 = vmatpush2.msra.mxu0 0.0
    %2569 = vmatprep.subr.mxu0 0.0
    %2570 = vmatpush2.msra.mxu0 0.0
    %2571 = vmatprep.subr.mxu0 0.0
    %2572 = vmatpush2.msra.mxu0 0.0
    %2573 = vmatprep.subr.mxu0 0.0
    %2574 = vmatpush2.msra.mxu0 0.0
    %2575 = vmatprep.subr.mxu0 0.0
    %2576 = vmatpush2.msra.mxu0 0.0
    %2577 = vmatprep.subr.mxu0 0.0
    %2578 = vmatpush2.msra.mxu0 0.0
    %2579 = vmatprep.subr.mxu0 0.0
    %2580 = vmatpush2.msra.mxu0 0.0
    %2581 = vmatprep.subr.mxu0 0.0
    %2582 = vmatpush2.msra.mxu0 0.0
    %2583 = vmatprep.subr.mxu0 0.0
    %2584 = vmatpush2.msra.mxu0 0.0
    %2585 = vmatprep.subr.mxu0 0.0
    %2586 = vmatpush2.msra.mxu0 0.0
    %2587 = vmatprep.subr.mxu0 0.0
    %2588 = vmatpush2.msra.mxu0 0.0
    %2589 = vmatprep.subr.mxu0 0.0
    %2590 = vmatpush2.msra.mxu0 0.0
    %2591 = vmatprep.mubr.f32.mxu0 0.0
    %2592 = vmatmul.mubr.f32.gmra.mxu0 %v2099
    %v2593 = vpop.f32.mrf.mxu0
    %v2594 = vadd.f32 0.0, %v2593
    %v2595 = vpop.f32.mrf.mxu0
    %2596 = vdwg.mxu0
    %v2597 = vadd.f32 %v2526, %v2594
    %v2598 = vmul.f32 %v2313, 0.5
    %v2599 = vtanh.pop %v2598
    %v2600 = vmul.f32 %v2599, 0.5
    %v2601 = vadd.f32 %v2600, 0.5
    %v2602 = vmul.f32 %v2601, %v1715
    %v2603 = vmul.f32 %v2171, 0.5
    %v2604 = vtanh.pop %v2603
    %v2605 = vmul.f32 %v2604, 0.5
    %v2606 = vadd.f32 %v2605, 0.5
    %v2607 = vtanh.pop %v2455
    %v2608 = vmul.f32 %v2606, %v2607
    %v2609 = vadd.f32 %v2602, %v2608
    %v2610 = vmul.f32 %v2597, 0.5
    %v2611 = vtanh.pop %v2610
    %v2612 = vmul.f32 %v2611, 0.5
    %v2613 = vadd.f32 %v2612, 0.5
    %v2614 = vtanh.pop %v2609
    %v2615 = vmul.f32 %v2613, %v2614
    %2616 = vmatprep.subr.mxu0 0.0
    %2617 = vmatpush1.msra.mxu0 0.0
    %2618 = vmatprep.subr.mxu0 0.0
    %2619 = vmatpush1.msra.mxu0 0.0
    %2620 = vmatprep.subr.mxu0 0.0
    %2621 = vmatpush1.msra.mxu0 0.0
    %2622 = vmatprep.subr.mxu0 0.0
    %2623 = vmatpush1.msra.mxu0 0.0
    %2624 = vmatprep.subr.mxu0 0.0
    %2625 = vmatpush1.msra.mxu0 0.0
    %2626 = vmatprep.subr.mxu0 0.0
    %2627 = vmatpush1.msra.mxu0 0.0
    %2628 = vmatprep.subr.mxu0 0.0
    %2629 = vmatpush1.msra.mxu0 0.0
    %2630 = vmatprep.subr.mxu0 0.0
    %2631 = vmatpush1.msra.mxu0 0.0
    %2632 = vmatprep.subr.mxu0 0.0
    %2633 = vmatpush1.msra.mxu0 0.0
    %2634 = vmatprep.subr.mxu0 0.0
    %2635 = vmatpush1.msra.mxu0 0.0
    %2636 = vmatprep.subr.mxu0 0.0
    %2637 = vmatpush1.msra.mxu0 0.0
    %2638 = vmatprep.subr.mxu0 0.0
    %2639 = vmatpush1.msra.mxu0 0.0
    %2640 = vmatprep.subr.mxu0 0.0
    %2641 = vmatpush1.msra.mxu0 0.0
    %2642 = vmatprep.subr.mxu0 0.0
    %2643 = vmatpush1.msra.mxu0 0.0
    %2644 = vmatprep.subr.mxu0 0.0
    %2645 = vmatpush1.msra.mxu0 %v755
    %2646 = vmatprep.subr.mxu0 0.0
    %2647 = vmatpush1.msra.mxu0 %v754
    %2648 = vmatprep.subr.mxu0 0.0
    %2649 = vmatpush2.msra.mxu0 0.0
    %2650 = vmatprep.subr.mxu0 0.0
    %2651 = vmatpush2.msra.mxu0 0.0
    %2652 = vmatprep.subr.mxu0 0.0
    %2653 = vmatpush2.msra.mxu0 0.0
    %2654 = vmatprep.subr.mxu0 0.0
    %2655 = vmatpush2.msra.mxu0 0.0
    %2656 = vmatprep.subr.mxu0 0.0
    %2657 = vmatpush2.msra.mxu0 0.0
    %2658 = vmatprep.subr.mxu0 0.0
    %2659 = vmatpush2.msra.mxu0 0.0
    %2660 = vmatprep.subr.mxu0 0.0
    %2661 = vmatpush2.msra.mxu0 0.0
    %2662 = vmatprep.subr.mxu0 0.0
    %2663 = vmatpush2.msra.mxu0 0.0
    %2664 = vmatprep.subr.mxu0 0.0
    %2665 = vmatpush2.msra.mxu0 0.0
    %2666 = vmatprep.subr.mxu0 0.0
    %2667 = vmatpush2.msra.mxu0 0.0
    %2668 = vmatprep.subr.mxu0 0.0
    %2669 = vmatpush2.msra.mxu0 0.0
    %2670 = vmatprep.subr.mxu0 0.0
    %2671 = vmatpush2.msra.mxu0 0.0
    %2672 = vmatprep.subr.mxu0 0.0
    %2673 = vmatpush2.msra.mxu0 0.0
    %2674 = vmatprep.subr.mxu0 0.0
    %2675 = vmatpush2.msra.mxu0 0.0
    %2676 = vmatprep.subr.mxu0 0.0
    %2677 = vmatpush2.msra.mxu0 0.0
    %2678 = vmatprep.subr.mxu0 0.0
    %2679 = vmatpush2.msra.mxu0 0.0
    %2680 = vmatprep.mubr.f32.mxu0 0.0
    %2681 = vmatmul.mubr.f32.gmra.mxu0 %v2025
    %v2682 = vpop.f32.mrf.mxu0
    %v2683 = vadd.f32 0.0, %v2682
    %v2684 = vpop.f32.mrf.mxu0
    %2685 = vdwg.mxu0
    %v2686 = vadd.f32 %v316, %v2683
    %2687 = vmatprep.subr.mxu0 0.0
    %2688 = vmatpush1.msra.mxu0 0.0
    %2689 = vmatprep.subr.mxu0 0.0
    %2690 = vmatpush1.msra.mxu0 0.0
    %2691 = vmatprep.subr.mxu0 0.0
    %2692 = vmatpush1.msra.mxu0 0.0
    %2693 = vmatprep.subr.mxu0 0.0
    %2694 = vmatpush1.msra.mxu0 0.0
    %2695 = vmatprep.subr.mxu0 0.0
    %2696 = vmatpush1.msra.mxu0 0.0
    %2697 = vmatprep.subr.mxu0 0.0
    %2698 = vmatpush1.msra.mxu0 0.0
    %2699 = vmatprep.subr.mxu0 0.0
    %2700 = vmatpush1.msra.mxu0 0.0
    %2701 = vmatprep.subr.mxu0 0.0
    %2702 = vmatpush1.msra.mxu0 0.0
    %2703 = vmatprep.subr.mxu0 0.0
    %2704 = vmatpush1.msra.mxu0 0.0
    %2705 = vmatprep.subr.mxu0 0.0
    %2706 = vmatpush1.msra.mxu0 0.0
    %2707 = vmatprep.subr.mxu0 0.0
    %2708 = vmatpush1.msra.mxu0 0.0
    %2709 = vmatprep.subr.mxu0 0.0
    %2710 = vmatpush1.msra.mxu0 0.0
    %2711 = vmatprep.subr.mxu0 0.0
    %2712 = vmatpush1.msra.mxu0 0.0
    %2713 = vmatprep.subr.mxu0 0.0
    %2714 = vmatpush1.msra.mxu0 0.0
    %2715 = vmatprep.subr.mxu0 0.0
    %2716 = vmatpush1.msra.mxu0 %v758
    %2717 = vmatprep.subr.mxu0 0.0
    %2718 = vmatpush1.msra.mxu0 %v757
    %2719 = vmatprep.subr.mxu0 0.0
    %2720 = vmatpush2.msra.mxu0 0.0
    %2721 = vmatprep.subr.mxu0 0.0
    %2722 = vmatpush2.msra.mxu0 0.0
    %2723 = vmatprep.subr.mxu0 0.0
    %2724 = vmatpush2.msra.mxu0 0.0
    %2725 = vmatprep.subr.mxu0 0.0
    %2726 = vmatpush2.msra.mxu0 0.0
    %2727 = vmatprep.subr.mxu0 0.0
    %2728 = vmatpush2.msra.mxu0 0.0
    %2729 = vmatprep.subr.mxu0 0.0
    %2730 = vmatpush2.msra.mxu0 0.0
    %2731 = vmatprep.subr.mxu0 0.0
    %2732 = vmatpush2.msra.mxu0 0.0
    %2733 = vmatprep.subr.mxu0 0.0
    %2734 = vmatpush2.msra.mxu0 0.0
    %2735 = vmatprep.subr.mxu0 0.0
    %2736 = vmatpush2.msra.mxu0 0.0
    %2737 = vmatprep.subr.mxu0 0.0
    %2738 = vmatpush2.msra.mxu0 0.0
    %2739 = vmatprep.subr.mxu0 0.0
    %2740 = vmatpush2.msra.mxu0 0.0
    %2741 = vmatprep.subr.mxu0 0.0
    %2742 = vmatpush2.msra.mxu0 0.0
    %2743 = vmatprep.subr.mxu0 0.0
    %2744 = vmatpush2.msra.mxu0 0.0
    %2745 = vmatprep.subr.mxu0 0.0
    %2746 = vmatpush2.msra.mxu0 0.0
    %2747 = vmatprep.subr.mxu0 0.0
    %2748 = vmatpush2.msra.mxu0 0.0
    %2749 = vmatprep.subr.mxu0 0.0
    %2750 = vmatpush2.msra.mxu0 0.0
    %2751 = vmatprep.mubr.f32.mxu0 0.0
    %2752 = vmatmul.mubr.f32.gmra.mxu0 %v2025
    %v2753 = vpop.f32.mrf.mxu0
    %v2754 = vadd.f32 0.0, %v2753
    %v2755 = vpop.f32.mrf.mxu0
    %2756 = vdwg.mxu0
    %v2757 = vadd.f32 %v460, %v2754
    %2758 = vmatprep.subr.mxu0 0.0
    %2759 = vmatpush1.msra.mxu0 0.0
    %2760 = vmatprep.subr.mxu0 0.0
    %2761 = vmatpush1.msra.mxu0 0.0
    %2762 = vmatprep.subr.mxu0 0.0
    %2763 = vmatpush1.msra.mxu0 0.0
    %2764 = vmatprep.subr.mxu0 0.0
    %2765 = vmatpush1.msra.mxu0 0.0
    %2766 = vmatprep.subr.mxu0 0.0
    %2767 = vmatpush1.msra.mxu0 0.0
    %2768 = vmatprep.subr.mxu0 0.0
    %2769 = vmatpush1.msra.mxu0 0.0
    %2770 = vmatprep.subr.mxu0 0.0
    %2771 = vmatpush1.msra.mxu0 0.0
    %2772 = vmatprep.subr.mxu0 0.0
    %2773 = vmatpush1.msra.mxu0 0.0
    %2774 = vmatprep.subr.mxu0 0.0
    %2775 = vmatpush1.msra.mxu0 0.0
    %2776 = vmatprep.subr.mxu0 0.0
    %2777 = vmatpush1.msra.mxu0 0.0
    %2778 = vmatprep.subr.mxu0 0.0
    %2779 = vmatpush1.msra.mxu0 0.0
    %2780 = vmatprep.subr.mxu0 0.0
    %2781 = vmatpush1.msra.mxu0 0.0
    %2782 = vmatprep.subr.mxu0 0.0
    %2783 = vmatpush1.msra.mxu0 0.0
    %2784 = vmatprep.subr.mxu0 0.0
    %2785 = vmatpush1.msra.mxu0 0.0
    %2786 = vmatprep.subr.mxu0 0.0
    %2787 = vmatpush1.msra.mxu0 %v761
    %2788 = vmatprep.subr.mxu0 0.0
    %2789 = vmatpush1.msra.mxu0 %v760
    %2790 = vmatprep.subr.mxu0 0.0
    %2791 = vmatpush2.msra.mxu0 0.0
    %2792 = vmatprep.subr.mxu0 0.0
    %2793 = vmatpush2.msra.mxu0 0.0
    %2794 = vmatprep.subr.mxu0 0.0
    %2795 = vmatpush2.msra.mxu0 0.0
    %2796 = vmatprep.subr.mxu0 0.0
    %2797 = vmatpush2.msra.mxu0 0.0
    %2798 = vmatprep.subr.mxu0 0.0
    %2799 = vmatpush2.msra.mxu0 0.0
    %2800 = vmatprep.subr.mxu0 0.0
    %2801 = vmatpush2.msra.mxu0 0.0
    %2802 = vmatprep.subr.mxu0 0.0
    %2803 = vmatpush2.msra.mxu0 0.0
    %2804 = vmatprep.subr.mxu0 0.0
    %2805 = vmatpush2.msra.mxu0 0.0
    %2806 = vmatprep.subr.mxu0 0.0
    %2807 = vmatpush2.msra.mxu0 0.0
    %2808 = vmatprep.subr.mxu0 0.0
    %2809 = vmatpush2.msra.mxu0 0.0
    %2810 = vmatprep.subr.mxu0 0.0
    %2811 = vmatpush2.msra.mxu0 0.0
    %2812 = vmatprep.subr.mxu0 0.0
    %2813 = vmatpush2.msra.mxu0 0.0
    %2814 = vmatprep.subr.mxu0 0.0
    %2815 = vmatpush2.msra.mxu0 0.0
    %2816 = vmatprep.subr.mxu0 0.0
    %2817 = vmatpush2.msra.mxu0 0.0
    %2818 = vmatprep.subr.mxu0 0.0
    %2819 = vmatpush2.msra.mxu0 0.0
    %2820 = vmatprep.subr.mxu0 0.0
    %2821 = vmatpush2.msra.mxu0 0.0
    %2822 = vmatprep.mubr.f32.mxu0 0.0
    %2823 = vmatmul.mubr.f32.gmra.mxu0 %v2025
    %v2824 = vpop.f32.mrf.mxu0
    %v2825 = vadd.f32 0.0, %v2824
    %v2826 = vpop.f32.mrf.mxu0
    %2827 = vdwg.mxu0
    %v2828 = vadd.f32 %v604, %v2825
    %2829 = vmatprep.subr.mxu0 0.0
    %2830 = vmatpush1.msra.mxu0 0.0
    %2831 = vmatprep.subr.mxu0 0.0
    %2832 = vmatpush1.msra.mxu0 0.0
    %2833 = vmatprep.subr.mxu0 0.0
    %2834 = vmatpush1.msra.mxu0 0.0
    %2835 = vmatprep.subr.mxu0 0.0
    %2836 = vmatpush1.msra.mxu0 0.0
    %2837 = vmatprep.subr.mxu0 0.0
    %2838 = vmatpush1.msra.mxu0 0.0
    %2839 = vmatprep.subr.mxu0 0.0
    %2840 = vmatpush1.msra.mxu0 0.0
    %2841 = vmatprep.subr.mxu0 0.0
    %2842 = vmatpush1.msra.mxu0 0.0
    %2843 = vmatprep.subr.mxu0 0.0
    %2844 = vmatpush1.msra.mxu0 0.0
    %2845 = vmatprep.subr.mxu0 0.0
    %2846 = vmatpush1.msra.mxu0 0.0
    %2847 = vmatprep.subr.mxu0 0.0
    %2848 = vmatpush1.msra.mxu0 0.0
    %2849 = vmatprep.subr.mxu0 0.0
    %2850 = vmatpush1.msra.mxu0 0.0
    %2851 = vmatprep.subr.mxu0 0.0
    %2852 = vmatpush1.msra.mxu0 0.0
    %2853 = vmatprep.subr.mxu0 0.0
    %2854 = vmatpush1.msra.mxu0 0.0
    %2855 = vmatprep.subr.mxu0 0.0
    %2856 = vmatpush1.msra.mxu0 0.0
    %2857 = vmatprep.subr.mxu0 0.0
    %2858 = vmatpush1.msra.mxu0 %v764
    %2859 = vmatprep.subr.mxu0 0.0
    %2860 = vmatpush1.msra.mxu0 %v763
    %2861 = vmatprep.subr.mxu0 0.0
    %2862 = vmatpush2.msra.mxu0 0.0
    %2863 = vmatprep.subr.mxu0 0.0
    %2864 = vmatpush2.msra.mxu0 0.0
    %2865 = vmatprep.subr.mxu0 0.0
    %2866 = vmatpush2.msra.mxu0 0.0
    %2867 = vmatprep.subr.mxu0 0.0
    %2868 = vmatpush2.msra.mxu0 0.0
    %2869 = vmatprep.subr.mxu0 0.0
    %2870 = vmatpush2.msra.mxu0 0.0
    %2871 = vmatprep.subr.mxu0 0.0
    %2872 = vmatpush2.msra.mxu0 0.0
    %2873 = vmatprep.subr.mxu0 0.0
    %2874 = vmatpush2.msra.mxu0 0.0
    %2875 = vmatprep.subr.mxu0 0.0
    %2876 = vmatpush2.msra.mxu0 0.0
    %2877 = vmatprep.subr.mxu0 0.0
    %2878 = vmatpush2.msra.mxu0 0.0
    %2879 = vmatprep.subr.mxu0 0.0
    %2880 = vmatpush2.msra.mxu0 0.0
    %2881 = vmatprep.subr.mxu0 0.0
    %2882 = vmatpush2.msra.mxu0 0.0
    %2883 = vmatprep.subr.mxu0 0.0
    %2884 = vmatpush2.msra.mxu0 0.0
    %2885 = vmatprep.subr.mxu0 0.0
    %2886 = vmatpush2.msra.mxu0 0.0
    %2887 = vmatprep.subr.mxu0 0.0
    %2888 = vmatpush2.msra.mxu0 0.0
    %2889 = vmatprep.subr.mxu0 0.0
    %2890 = vmatpush2.msra.mxu0 0.0
    %2891 = vmatprep.subr.mxu0 0.0
    %2892 = vmatpush2.msra.mxu0 0.0
    %2893 = vmatprep.mubr.f32.mxu0 0.0
    %2894 = vmatmul.mubr.f32.gmra.mxu0 %v2025
    %v2895 = vpop.f32.mrf.mxu0
    %v2896 = vadd.f32 0.0, %v2895
    %v2897 = vpop.f32.mrf.mxu0
    %2898 = vdwg.mxu0
    %v2899 = vadd.f32 %v748, %v2896
    %v2900 = vmul.f32 %v2757, 0.5
    %v2901 = vtanh.pop %v2900
    %v2902 = vmul.f32 %v2901, 0.5
    %v2903 = vadd.f32 %v2902, 0.5
    %v2904 = vmul.f32 %v2903, %v2017
    %v2905 = vmul.f32 %v2686, 0.5
    %v2906 = vtanh.pop %v2905
    %v2907 = vmul.f32 %v2906, 0.5
    %v2908 = vadd.f32 %v2907, 0.5
    %v2909 = vtanh.pop %v2828
    %v2910 = vmul.f32 %v2908, %v2909
    %v2911 = vadd.f32 %v2904, %v2910
    %v2912 = vmul.f32 %v2899, 0.5
    %v2913 = vtanh.pop %v2912
    %v2914 = vmul.f32 %v2913, 0.5
    %v2915 = vadd.f32 %v2914, 0.5
    %v2916 = vtanh.pop %v2911
    %v2917 = vmul.f32 %v2915, %v2916
    %v2919 = vsel %vm800, %v2917, 0
    %2921 = vmatprep.subr.mxu0 0.0
    %2922 = vmatpush1.msra.mxu0 0.0
    %2923 = vmatprep.subr.mxu0 0.0
    %2924 = vmatpush1.msra.mxu0 0.0
    %2925 = vmatprep.subr.mxu0 0.0
    %2926 = vmatpush1.msra.mxu0 0.0
    %2927 = vmatprep.subr.mxu0 0.0
    %2928 = vmatpush1.msra.mxu0 0.0
    %2929 = vmatprep.subr.mxu0 0.0
    %2930 = vmatpush1.msra.mxu0 0.0
    %2931 = vmatprep.subr.mxu0 0.0
    %2932 = vmatpush1.msra.mxu0 0.0
    %2933 = vmatprep.subr.mxu0 0.0
    %2934 = vmatpush1.msra.mxu0 0.0
    %2935 = vmatprep.subr.mxu0 0.0
    %2936 = vmatpush1.msra.mxu0 0.0
    %2937 = vmatprep.subr.mxu0 0.0
    %2938 = vmatpush1.msra.mxu0 0.0
    %2939 = vmatprep.subr.mxu0 0.0
    %2940 = vmatpush1.msra.mxu0 0.0
    %2941 = vmatprep.subr.mxu0 0.0
    %2942 = vmatpush1.msra.mxu0 0.0
    %2943 = vmatprep.subr.mxu0 0.0
    %2944 = vmatpush1.msra.mxu0 0.0
    %2945 = vmatprep.subr.mxu0 0.0
    %2946 = vmatpush1.msra.mxu0 0.0
    %2947 = vmatprep.subr.mxu0 0.0
    %2948 = vmatpush1.msra.mxu0 0.0
    %2949 = vmatprep.subr.mxu0 0.0
    %2950 = vmatpush1.msra.mxu0 %v766
    %2951 = vmatprep.subr.mxu0 0.0
    %2952 = vmatpush1.msra.mxu0 %v765
    %2953 = vmatprep.subr.mxu0 0.0
    %2954 = vmatpush2.msra.mxu0 0.0
    %2955 = vmatprep.subr.mxu0 0.0
    %2956 = vmatpush2.msra.mxu0 0.0
    %2957 = vmatprep.subr.mxu0 0.0
    %2958 = vmatpush2.msra.mxu0 0.0
    %2959 = vmatprep.subr.mxu0 0.0
    %2960 = vmatpush2.msra.mxu0 0.0
    %2961 = vmatprep.subr.mxu0 0.0
    %2962 = vmatpush2.msra.mxu0 0.0
    %2963 = vmatprep.subr.mxu0 0.0
    %2964 = vmatpush2.msra.mxu0 0.0
    %2965 = vmatprep.subr.mxu0 0.0
    %2966 = vmatpush2.msra.mxu0 0.0
    %2967 = vmatprep.subr.mxu0 0.0
    %2968 = vmatpush2.msra.mxu0 0.0
    %2969 = vmatprep.subr.mxu0 0.0
    %2970 = vmatpush2.msra.mxu0 0.0
    %2971 = vmatprep.subr.mxu0 0.0
    %2972 = vmatpush2.msra.mxu0 0.0
    %2973 = vmatprep.subr.mxu0 0.0
    %2974 = vmatpush2.msra.mxu0 0.0
    %2975 = vmatprep.subr.mxu0 0.0
    %2976 = vmatpush2.msra.mxu0 0.0
    %2977 = vmatprep.subr.mxu0 0.0
    %2978 = vmatpush2.msra.mxu0 0.0
    %2979 = vmatprep.subr.mxu0 0.0
    %2980 = vmatpush2.msra.mxu0 0.0
    %2981 = vmatprep.subr.mxu0 0.0
    %2982 = vmatpush2.msra.mxu0 0.0
    %2983 = vmatprep.subr.mxu0 0.0
    %2984 = vmatpush2.msra.mxu0 0.0
    %2985 = vmatprep.mubr.f32.mxu0 0.0
    %2986 = vmatmul.mubr.f32.gmra.mxu0 %v2919
    %v2987 = vpop.f32.mrf.mxu0
    %v2988 = vadd.f32 0.0, %v2987
    %v2989 = vpop.f32.mrf.mxu0
    %2990 = vdwg.mxu0
    %v2991 = vadd.f32 %v1183, %v2988
    %v2993 = vsel %vm800, %v2615, 0
    %2995 = vmatprep.subr.mxu0 0.0
    %2996 = vmatpush1.msra.mxu0 0.0
    %2997 = vmatprep.subr.mxu0 0.0
    %2998 = vmatpush1.msra.mxu0 0.0
    %2999 = vmatprep.subr.mxu0 0.0
    %3000 = vmatpush1.msra.mxu0 0.0
    %3001 = vmatprep.subr.mxu0 0.0
    %3002 = vmatpush1.msra.mxu0 0.0
    %3003 = vmatprep.subr.mxu0 0.0
    %3004 = vmatpush1.msra.mxu0 0.0
    %3005 = vmatprep.subr.mxu0 0.0
    %3006 = vmatpush1.msra.mxu0 0.0
    %3007 = vmatprep.subr.mxu0 0.0
    %3008 = vmatpush1.msra.mxu0 0.0
    %3009 = vmatprep.subr.mxu0 0.0
    %3010 = vmatpush1.msra.mxu0 0.0
    %3011 = vmatprep.subr.mxu0 0.0
    %3012 = vmatpush1.msra.mxu0 0.0
    %3013 = vmatprep.subr.mxu0 0.0
    %3014 = vmatpush1.msra.mxu0 0.0
    %3015 = vmatprep.subr.mxu0 0.0
    %3016 = vmatpush1.msra.mxu0 0.0
    %3017 = vmatprep.subr.mxu0 0.0
    %3018 = vmatpush1.msra.mxu0 0.0
    %3019 = vmatprep.subr.mxu0 0.0
    %3020 = vmatpush1.msra.mxu0 0.0
    %3021 = vmatprep.subr.mxu0 0.0
    %3022 = vmatpush1.msra.mxu0 0.0
    %3023 = vmatprep.subr.mxu0 0.0
    %3024 = vmatpush1.msra.mxu0 %v777
    %3025 = vmatprep.subr.mxu0 0.0
    %3026 = vmatpush1.msra.mxu0 %v776
    %3027 = vmatprep.subr.mxu0 0.0
    %3028 = vmatpush2.msra.mxu0 0.0
    %3029 = vmatprep.subr.mxu0 0.0
    %3030 = vmatpush2.msra.mxu0 0.0
    %3031 = vmatprep.subr.mxu0 0.0
    %3032 = vmatpush2.msra.mxu0 0.0
    %3033 = vmatprep.subr.mxu0 0.0
    %3034 = vmatpush2.msra.mxu0 0.0
    %3035 = vmatprep.subr.mxu0 0.0
    %3036 = vmatpush2.msra.mxu0 0.0
    %3037 = vmatprep.subr.mxu0 0.0
    %3038 = vmatpush2.msra.mxu0 0.0
    %3039 = vmatprep.subr.mxu0 0.0
    %3040 = vmatpush2.msra.mxu0 0.0
    %3041 = vmatprep.subr.mxu0 0.0
    %3042 = vmatpush2.msra.mxu0 0.0
    %3043 = vmatprep.subr.mxu0 0.0
    %3044 = vmatpush2.msra.mxu0 0.0
    %3045 = vmatprep.subr.mxu0 0.0
    %3046 = vmatpush2.msra.mxu0 0.0
    %3047 = vmatprep.subr.mxu0 0.0
    %3048 = vmatpush2.msra.mxu0 0.0
    %3049 = vmatprep.subr.mxu0 0.0
    %3050 = vmatpush2.msra.mxu0 0.0
    %3051 = vmatprep.subr.mxu0 0.0
    %3052 = vmatpush2.msra.mxu0 0.0
    %3053 = vmatprep.subr.mxu0 0.0
    %3054 = vmatpush2.msra.mxu0 0.0
    %3055 = vmatprep.subr.mxu0 0.0
    %3056 = vmatpush2.msra.mxu0 0.0
    %3057 = vmatprep.subr.mxu0 0.0
    %3058 = vmatpush2.msra.mxu0 0.0
    %3059 = vmatprep.mubr.f32.mxu0 0.0
    %3060 = vmatmul.mubr.f32.gmra.mxu0 %v2993
    %v3061 = vpop.f32.mrf.mxu0
    %v3062 = vadd.f32 0.0, %v3061
    %v3063 = vpop.f32.mrf.mxu0
    %3064 = vdwg.mxu0
    %v3065 = vadd.f32 %v2991, %v3062
    %3066 = vmatprep.subr.mxu0 0.0
    %3067 = vmatpush1.msra.mxu0 0.0
    %3068 = vmatprep.subr.mxu0 0.0
    %3069 = vmatpush1.msra.mxu0 0.0
    %3070 = vmatprep.subr.mxu0 0.0
    %3071 = vmatpush1.msra.mxu0 0.0
    %3072 = vmatprep.subr.mxu0 0.0
    %3073 = vmatpush1.msra.mxu0 0.0
    %3074 = vmatprep.subr.mxu0 0.0
    %3075 = vmatpush1.msra.mxu0 0.0
    %3076 = vmatprep.subr.mxu0 0.0
    %3077 = vmatpush1.msra.mxu0 0.0
    %3078 = vmatprep.subr.mxu0 0.0
    %3079 = vmatpush1.msra.mxu0 0.0
    %3080 = vmatprep.subr.mxu0 0.0
    %3081 = vmatpush1.msra.mxu0 0.0
    %3082 = vmatprep.subr.mxu0 0.0
    %3083 = vmatpush1.msra.mxu0 0.0
    %3084 = vmatprep.subr.mxu0 0.0
    %3085 = vmatpush1.msra.mxu0 0.0
    %3086 = vmatprep.subr.mxu0 0.0
    %3087 = vmatpush1.msra.mxu0 0.0
    %3088 = vmatprep.subr.mxu0 0.0
    %3089 = vmatpush1.msra.mxu0 0.0
    %3090 = vmatprep.subr.mxu0 0.0
    %3091 = vmatpush1.msra.mxu0 0.0
    %3092 = vmatprep.subr.mxu0 0.0
    %3093 = vmatpush1.msra.mxu0 0.0
    %3094 = vmatprep.subr.mxu0 0.0
    %3095 = vmatpush1.msra.mxu0 %v769
    %3096 = vmatprep.subr.mxu0 0.0
    %3097 = vmatpush1.msra.mxu0 %v768
    %3098 = vmatprep.subr.mxu0 0.0
    %3099 = vmatpush2.msra.mxu0 0.0
    %3100 = vmatprep.subr.mxu0 0.0
    %3101 = vmatpush2.msra.mxu0 0.0
    %3102 = vmatprep.subr.mxu0 0.0
    %3103 = vmatpush2.msra.mxu0 0.0
    %3104 = vmatprep.subr.mxu0 0.0
    %3105 = vmatpush2.msra.mxu0 0.0
    %3106 = vmatprep.subr.mxu0 0.0
    %3107 = vmatpush2.msra.mxu0 0.0
    %3108 = vmatprep.subr.mxu0 0.0
    %3109 = vmatpush2.msra.mxu0 0.0
    %3110 = vmatprep.subr.mxu0 0.0
    %3111 = vmatpush2.msra.mxu0 0.0
    %3112 = vmatprep.subr.mxu0 0.0
    %3113 = vmatpush2.msra.mxu0 0.0
    %3114 = vmatprep.subr.mxu0 0.0
    %3115 = vmatpush2.msra.mxu0 0.0
    %3116 = vmatprep.subr.mxu0 0.0
    %3117 = vmatpush2.msra.mxu0 0.0
    %3118 = vmatprep.subr.mxu0 0.0
    %3119 = vmatpush2.msra.mxu0 0.0
    %3120 = vmatprep.subr.mxu0 0.0
    %3121 = vmatpush2.msra.mxu0 0.0
    %3122 = vmatprep.subr.mxu0 0.0
    %3123 = vmatpush2.msra.mxu0 0.0
    %3124 = vmatprep.subr.mxu0 0.0
    %3125 = vmatpush2.msra.mxu0 0.0
    %3126 = vmatprep.subr.mxu0 0.0
    %3127 = vmatpush2.msra.mxu0 0.0
    %3128 = vmatprep.subr.mxu0 0.0
    %3129 = vmatpush2.msra.mxu0 0.0
    %3130 = vmatprep.mubr.f32.mxu0 0.0
    %3131 = vmatmul.mubr.f32.gmra.mxu0 %v2919
    %v3132 = vpop.f32.mrf.mxu0
    %v3133 = vadd.f32 0.0, %v3132
    %v3134 = vpop.f32.mrf.mxu0
    %3135 = vdwg.mxu0
    %v3136 = vadd.f32 %v1334, %v3133
    %3137 = vmatprep.subr.mxu0 0.0
    %3138 = vmatpush1.msra.mxu0 0.0
    %3139 = vmatprep.subr.mxu0 0.0
    %3140 = vmatpush1.msra.mxu0 0.0
    %3141 = vmatprep.subr.mxu0 0.0
    %3142 = vmatpush1.msra.mxu0 0.0
    %3143 = vmatprep.subr.mxu0 0.0
    %3144 = vmatpush1.msra.mxu0 0.0
    %3145 = vmatprep.subr.mxu0 0.0
    %3146 = vmatpush1.msra.mxu0 0.0
    %3147 = vmatprep.subr.mxu0 0.0
    %3148 = vmatpush1.msra.mxu0 0.0
    %3149 = vmatprep.subr.mxu0 0.0
    %3150 = vmatpush1.msra.mxu0 0.0
    %3151 = vmatprep.subr.mxu0 0.0
    %3152 = vmatpush1.msra.mxu0 0.0
    %3153 = vmatprep.subr.mxu0 0.0
    %3154 = vmatpush1.msra.mxu0 0.0
    %3155 = vmatprep.subr.mxu0 0.0
    %3156 = vmatpush1.msra.mxu0 0.0
    %3157 = vmatprep.subr.mxu0 0.0
    %3158 = vmatpush1.msra.mxu0 0.0
    %3159 = vmatprep.subr.mxu0 0.0
    %3160 = vmatpush1.msra.mxu0 0.0
    %3161 = vmatprep.subr.mxu0 0.0
    %3162 = vmatpush1.msra.mxu0 0.0
    %3163 = vmatprep.subr.mxu0 0.0
    %3164 = vmatpush1.msra.mxu0 0.0
    %3165 = vmatprep.subr.mxu0 0.0
    %3166 = vmatpush1.msra.mxu0 %v780
    %3167 = vmatprep.subr.mxu0 0.0
    %3168 = vmatpush1.msra.mxu0 %v779
    %3169 = vmatprep.subr.mxu0 0.0
    %3170 = vmatpush2.msra.mxu0 0.0
    %3171 = vmatprep.subr.mxu0 0.0
    %3172 = vmatpush2.msra.mxu0 0.0
    %3173 = vmatprep.subr.mxu0 0.0
    %3174 = vmatpush2.msra.mxu0 0.0
    %3175 = vmatprep.subr.mxu0 0.0
    %3176 = vmatpush2.msra.mxu0 0.0
    %3177 = vmatprep.subr.mxu0 0.0
    %3178 = vmatpush2.msra.mxu0 0.0
    %3179 = vmatprep.subr.mxu0 0.0
    %3180 = vmatpush2.msra.mxu0 0.0
    %3181 = vmatprep.subr.mxu0 0.0
    %3182 = vmatpush2.msra.mxu0 0.0
    %3183 = vmatprep.subr.mxu0 0.0
    %3184 = vmatpush2.msra.mxu0 0.0
    %3185 = vmatprep.subr.mxu0 0.0
    %3186 = vmatpush2.msra.mxu0 0.0
    %3187 = vmatprep.subr.mxu0 0.0
    %3188 = vmatpush2.msra.mxu0 0.0
    %3189 = vmatprep.subr.mxu0 0.0
    %3190 = vmatpush2.msra.mxu0 0.0
    %3191 = vmatprep.subr.mxu0 0.0
    %3192 = vmatpush2.msra.mxu0 0.0
    %3193 = vmatprep.subr.mxu0 0.0
    %3194 = vmatpush2.msra.mxu0 0.0
    %3195 = vmatprep.subr.mxu0 0.0
    %3196 = vmatpush2.msra.mxu0 0.0
    %3197 = vmatprep.subr.mxu0 0.0
    %3198 = vmatpush2.msra.mxu0 0.0
    %3199 = vmatprep.subr.mxu0 0.0
    %3200 = vmatpush2.msra.mxu0 0.0
    %3201 = vmatprep.mubr.f32.mxu0 0.0
    %3202 = vmatmul.mubr.f32.gmra.mxu0 %v2993
    %v3203 = vpop.f32.mrf.mxu0
    %v3204 = vadd.f32 0.0, %v3203
    %v3205 = vpop.f32.mrf.mxu0
    %3206 = vdwg.mxu0
    %v3207 = vadd.f32 %v3136, %v3204
    %3208 = vmatprep.subr.mxu0 0.0
    %3209 = vmatpush1.msra.mxu0 0.0
    %3210 = vmatprep.subr.mxu0 0.0
    %3211 = vmatpush1.msra.mxu0 0.0
    %3212 = vmatprep.subr.mxu0 0.0
    %3213 = vmatpush1.msra.mxu0 0.0
    %3214 = vmatprep.subr.mxu0 0.0
    %3215 = vmatpush1.msra.mxu0 0.0
    %3216 = vmatprep.subr.mxu0 0.0
    %3217 = vmatpush1.msra.mxu0 0.0
    %3218 = vmatprep.subr.mxu0 0.0
    %3219 = vmatpush1.msra.mxu0 0.0
    %3220 = vmatprep.subr.mxu0 0.0
    %3221 = vmatpush1.msra.mxu0 0.0
    %3222 = vmatprep.subr.mxu0 0.0
    %3223 = vmatpush1.msra.mxu0 0.0
    %3224 = vmatprep.subr.mxu0 0.0
    %3225 = vmatpush1.msra.mxu0 0.0
    %3226 = vmatprep.subr.mxu0 0.0
    %3227 = vmatpush1.msra.mxu0 0.0
    %3228 = vmatprep.subr.mxu0 0.0
    %3229 = vmatpush1.msra.mxu0 0.0
    %3230 = vmatprep.subr.mxu0 0.0
    %3231 = vmatpush1.msra.mxu0 0.0
    %3232 = vmatprep.subr.mxu0 0.0
    %3233 = vmatpush1.msra.mxu0 0.0
    %3234 = vmatprep.subr.mxu0 0.0
    %3235 = vmatpush1.msra.mxu0 0.0
    %3236 = vmatprep.subr.mxu0 0.0
    %3237 = vmatpush1.msra.mxu0 %v772
    %3238 = vmatprep.subr.mxu0 0.0
    %3239 = vmatpush1.msra.mxu0 %v771
    %3240 = vmatprep.subr.mxu0 0.0
    %3241 = vmatpush2.msra.mxu0 0.0
    %3242 = vmatprep.subr.mxu0 0.0
    %3243 = vmatpush2.msra.mxu0 0.0
    %3244 = vmatprep.subr.mxu0 0.0
    %3245 = vmatpush2.msra.mxu0 0.0
    %3246 = vmatprep.subr.mxu0 0.0
    %3247 = vmatpush2.msra.mxu0 0.0
    %3248 = vmatprep.subr.mxu0 0.0
    %3249 = vmatpush2.msra.mxu0 0.0
    %3250 = vmatprep.subr.mxu0 0.0
    %3251 = vmatpush2.msra.mxu0 0.0
    %3252 = vmatprep.subr.mxu0 0.0
    %3253 = vmatpush2.msra.mxu0 0.0
    %3254 = vmatprep.subr.mxu0 0.0
    %3255 = vmatpush2.msra.mxu0 0.0
    %3256 = vmatprep.subr.mxu0 0.0
    %3257 = vmatpush2.msra.mxu0 0.0
    %3258 = vmatprep.subr.mxu0 0.0
    %3259 = vmatpush2.msra.mxu0 0.0
    %3260 = vmatprep.subr.mxu0 0.0
    %3261 = vmatpush2.msra.mxu0 0.0
    %3262 = vmatprep.subr.mxu0 0.0
    %3263 = vmatpush2.msra.mxu0 0.0
    %3264 = vmatprep.subr.mxu0 0.0
    %3265 = vmatpush2.msra.mxu0 0.0
    %3266 = vmatprep.subr.mxu0 0.0
    %3267 = vmatpush2.msra.mxu0 0.0
    %3268 = vmatprep.subr.mxu0 0.0
    %3269 = vmatpush2.msra.mxu0 0.0
    %3270 = vmatprep.subr.mxu0 0.0
    %3271 = vmatpush2.msra.mxu0 0.0
    %3272 = vmatprep.mubr.f32.mxu0 0.0
    %3273 = vmatmul.mubr.f32.gmra.mxu0 %v2919
    %v3274 = vpop.f32.mrf.mxu0
    %v3275 = vadd.f32 0.0, %v3274
    %v3276 = vpop.f32.mrf.mxu0
    %3277 = vdwg.mxu0
    %v3278 = vadd.f32 %v1482, %v3275
    %3279 = vmatprep.subr.mxu0 0.0
    %3280 = vmatpush1.msra.mxu0 0.0
    %3281 = vmatprep.subr.mxu0 0.0
    %3282 = vmatpush1.msra.mxu0 0.0
    %3283 = vmatprep.subr.mxu0 0.0
    %3284 = vmatpush1.msra.mxu0 0.0
    %3285 = vmatprep.subr.mxu0 0.0
    %3286 = vmatpush1.msra.mxu0 0.0
    %3287 = vmatprep.subr.mxu0 0.0
    %3288 = vmatpush1.msra.mxu0 0.0
    %3289 = vmatprep.subr.mxu0 0.0
    %3290 = vmatpush1.msra.mxu0 0.0
    %3291 = vmatprep.subr.mxu0 0.0
    %3292 = vmatpush1.msra.mxu0 0.0
    %3293 = vmatprep.subr.mxu0 0.0
    %3294 = vmatpush1.msra.mxu0 0.0
    %3295 = vmatprep.subr.mxu0 0.0
    %3296 = vmatpush1.msra.mxu0 0.0
    %3297 = vmatprep.subr.mxu0 0.0
    %3298 = vmatpush1.msra.mxu0 0.0
    %3299 = vmatprep.subr.mxu0 0.0
    %3300 = vmatpush1.msra.mxu0 0.0
    %3301 = vmatprep.subr.mxu0 0.0
    %3302 = vmatpush1.msra.mxu0 0.0
    %3303 = vmatprep.subr.mxu0 0.0
    %3304 = vmatpush1.msra.mxu0 0.0
    %3305 = vmatprep.subr.mxu0 0.0
    %3306 = vmatpush1.msra.mxu0 0.0
    %3307 = vmatprep.subr.mxu0 0.0
    %3308 = vmatpush1.msra.mxu0 %v783
    %3309 = vmatprep.subr.mxu0 0.0
    %3310 = vmatpush1.msra.mxu0 %v782
    %3311 = vmatprep.subr.mxu0 0.0
    %3312 = vmatpush2.msra.mxu0 0.0
    %3313 = vmatprep.subr.mxu0 0.0
    %3314 = vmatpush2.msra.mxu0 0.0
    %3315 = vmatprep.subr.mxu0 0.0
    %3316 = vmatpush2.msra.mxu0 0.0
    %3317 = vmatprep.subr.mxu0 0.0
    %3318 = vmatpush2.msra.mxu0 0.0
    %3319 = vmatprep.subr.mxu0 0.0
    %3320 = vmatpush2.msra.mxu0 0.0
    %3321 = vmatprep.subr.mxu0 0.0
    %3322 = vmatpush2.msra.mxu0 0.0
    %3323 = vmatprep.subr.mxu0 0.0
    %3324 = vmatpush2.msra.mxu0 0.0
    %3325 = vmatprep.subr.mxu0 0.0
    %3326 = vmatpush2.msra.mxu0 0.0
    %3327 = vmatprep.subr.mxu0 0.0
    %3328 = vmatpush2.msra.mxu0 0.0
    %3329 = vmatprep.subr.mxu0 0.0
    %3330 = vmatpush2.msra.mxu0 0.0
    %3331 = vmatprep.subr.mxu0 0.0
    %3332 = vmatpush2.msra.mxu0 0.0
    %3333 = vmatprep.subr.mxu0 0.0
    %3334 = vmatpush2.msra.mxu0 0.0
    %3335 = vmatprep.subr.mxu0 0.0
    %3336 = vmatpush2.msra.mxu0 0.0
    %3337 = vmatprep.subr.mxu0 0.0
    %3338 = vmatpush2.msra.mxu0 0.0
    %3339 = vmatprep.subr.mxu0 0.0
    %3340 = vmatpush2.msra.mxu0 0.0
    %3341 = vmatprep.subr.mxu0 0.0
    %3342 = vmatpush2.msra.mxu0 0.0
    %3343 = vmatprep.mubr.f32.mxu0 0.0
    %3344 = vmatmul.mubr.f32.gmra.mxu0 %v2993
    %v3345 = vpop.f32.mrf.mxu0
    %v3346 = vadd.f32 0.0, %v3345
    %v3347 = vpop.f32.mrf.mxu0
    %3348 = vdwg.mxu0
    %v3349 = vadd.f32 %v3278, %v3346
    %3350 = vmatprep.subr.mxu0 0.0
    %3351 = vmatpush1.msra.mxu0 0.0
    %3352 = vmatprep.subr.mxu0 0.0
    %3353 = vmatpush1.msra.mxu0 0.0
    %3354 = vmatprep.subr.mxu0 0.0
    %3355 = vmatpush1.msra.mxu0 0.0
    %3356 = vmatprep.subr.mxu0 0.0
    %3357 = vmatpush1.msra.mxu0 0.0
    %3358 = vmatprep.subr.mxu0 0.0
    %3359 = vmatpush1.msra.mxu0 0.0
    %3360 = vmatprep.subr.mxu0 0.0
    %3361 = vmatpush1.msra.mxu0 0.0
    %3362 = vmatprep.subr.mxu0 0.0
    %3363 = vmatpush1.msra.mxu0 0.0
    %3364 = vmatprep.subr.mxu0 0.0
    %3365 = vmatpush1.msra.mxu0 0.0
    %3366 = vmatprep.subr.mxu0 0.0
    %3367 = vmatpush1.msra.mxu0 0.0
    %3368 = vmatprep.subr.mxu0 0.0
    %3369 = vmatpush1.msra.mxu0 0.0
    %3370 = vmatprep.subr.mxu0 0.0
    %3371 = vmatpush1.msra.mxu0 0.0
    %3372 = vmatprep.subr.mxu0 0.0
    %3373 = vmatpush1.msra.mxu0 0.0
    %3374 = vmatprep.subr.mxu0 0.0
    %3375 = vmatpush1.msra.mxu0 0.0
    %3376 = vmatprep.subr.mxu0 0.0
    %3377 = vmatpush1.msra.mxu0 0.0
    %3378 = vmatprep.subr.mxu0 0.0
    %3379 = vmatpush1.msra.mxu0 %v775
    %3380 = vmatprep.subr.mxu0 0.0
    %3381 = vmatpush1.msra.mxu0 %v774
    %3382 = vmatprep.subr.mxu0 0.0
    %3383 = vmatpush2.msra.mxu0 0.0
    %3384 = vmatprep.subr.mxu0 0.0
    %3385 = vmatpush2.msra.mxu0 0.0
    %3386 = vmatprep.subr.mxu0 0.0
    %3387 = vmatpush2.msra.mxu0 0.0
    %3388 = vmatprep.subr.mxu0 0.0
    %3389 = vmatpush2.msra.mxu0 0.0
    %3390 = vmatprep.subr.mxu0 0.0
    %3391 = vmatpush2.msra.mxu0 0.0
    %3392 = vmatprep.subr.mxu0 0.0
    %3393 = vmatpush2.msra.mxu0 0.0
    %3394 = vmatprep.subr.mxu0 0.0
    %3395 = vmatpush2.msra.mxu0 0.0
    %3396 = vmatprep.subr.mxu0 0.0
    %3397 = vmatpush2.msra.mxu0 0.0
    %3398 = vmatprep.subr.mxu0 0.0
    %3399 = vmatpush2.msra.mxu0 0.0
    %3400 = vmatprep.subr.mxu0 0.0
    %3401 = vmatpush2.msra.mxu0 0.0
    %3402 = vmatprep.subr.mxu0 0.0
    %3403 = vmatpush2.msra.mxu0 0.0
    %3404 = vmatprep.subr.mxu0 0.0
    %3405 = vmatpush2.msra.mxu0 0.0
    %3406 = vmatprep.subr.mxu0 0.0
    %3407 = vmatpush2.msra.mxu0 0.0
    %3408 = vmatprep.subr.mxu0 0.0
    %3409 = vmatpush2.msra.mxu0 0.0
    %3410 = vmatprep.subr.mxu0 0.0
    %3411 = vmatpush2.msra.mxu0 0.0
    %3412 = vmatprep.subr.mxu0 0.0
    %3413 = vmatpush2.msra.mxu0 0.0
    %3414 = vmatprep.mubr.f32.mxu0 0.0
    %3415 = vmatmul.mubr.f32.gmra.mxu0 %v2919
    %v3416 = vpop.f32.mrf.mxu0
    %v3417 = vadd.f32 0.0, %v3416
    %v3418 = vpop.f32.mrf.mxu0
    %3419 = vdwg.mxu0
    %v3420 = vadd.f32 %v1630, %v3417
    %3421 = vmatprep.subr.mxu0 0.0
    %3422 = vmatpush1.msra.mxu0 0.0
    %3423 = vmatprep.subr.mxu0 0.0
    %3424 = vmatpush1.msra.mxu0 0.0
    %3425 = vmatprep.subr.mxu0 0.0
    %3426 = vmatpush1.msra.mxu0 0.0
    %3427 = vmatprep.subr.mxu0 0.0
    %3428 = vmatpush1.msra.mxu0 0.0
    %3429 = vmatprep.subr.mxu0 0.0
    %3430 = vmatpush1.msra.mxu0 0.0
    %3431 = vmatprep.subr.mxu0 0.0
    %3432 = vmatpush1.msra.mxu0 0.0
    %3433 = vmatprep.subr.mxu0 0.0
    %3434 = vmatpush1.msra.mxu0 0.0
    %3435 = vmatprep.subr.mxu0 0.0
    %3436 = vmatpush1.msra.mxu0 0.0
    %3437 = vmatprep.subr.mxu0 0.0
    %3438 = vmatpush1.msra.mxu0 0.0
    %3439 = vmatprep.subr.mxu0 0.0
    %3440 = vmatpush1.msra.mxu0 0.0
    %3441 = vmatprep.subr.mxu0 0.0
    %3442 = vmatpush1.msra.mxu0 0.0
    %3443 = vmatprep.subr.mxu0 0.0
    %3444 = vmatpush1.msra.mxu0 0.0
    %3445 = vmatprep.subr.mxu0 0.0
    %3446 = vmatpush1.msra.mxu0 0.0
    %3447 = vmatprep.subr.mxu0 0.0
    %3448 = vmatpush1.msra.mxu0 0.0
    %3449 = vmatprep.subr.mxu0 0.0
    %3450 = vmatpush1.msra.mxu0 %v786
    %3451 = vmatprep.subr.mxu0 0.0
    %3452 = vmatpush1.msra.mxu0 %v785
    %3453 = vmatprep.subr.mxu0 0.0
    %3454 = vmatpush2.msra.mxu0 0.0
    %3455 = vmatprep.subr.mxu0 0.0
    %3456 = vmatpush2.msra.mxu0 0.0
    %3457 = vmatprep.subr.mxu0 0.0
    %3458 = vmatpush2.msra.mxu0 0.0
    %3459 = vmatprep.subr.mxu0 0.0
    %3460 = vmatpush2.msra.mxu0 0.0
    %3461 = vmatprep.subr.mxu0 0.0
    %3462 = vmatpush2.msra.mxu0 0.0
    %3463 = vmatprep.subr.mxu0 0.0
    %3464 = vmatpush2.msra.mxu0 0.0
    %3465 = vmatprep.subr.mxu0 0.0
    %3466 = vmatpush2.msra.mxu0 0.0
    %3467 = vmatprep.subr.mxu0 0.0
    %3468 = vmatpush2.msra.mxu0 0.0
    %3469 = vmatprep.subr.mxu0 0.0
    %3470 = vmatpush2.msra.mxu0 0.0
    %3471 = vmatprep.subr.mxu0 0.0
    %3472 = vmatpush2.msra.mxu0 0.0
    %3473 = vmatprep.subr.mxu0 0.0
    %3474 = vmatpush2.msra.mxu0 0.0
    %3475 = vmatprep.subr.mxu0 0.0
    %3476 = vmatpush2.msra.mxu0 0.0
    %3477 = vmatprep.subr.mxu0 0.0
    %3478 = vmatpush2.msra.mxu0 0.0
    %3479 = vmatprep.subr.mxu0 0.0
    %3480 = vmatpush2.msra.mxu0 0.0
    %3481 = vmatprep.subr.mxu0 0.0
    %3482 = vmatpush2.msra.mxu0 0.0
    %3483 = vmatprep.subr.mxu0 0.0
    %3484 = vmatpush2.msra.mxu0 0.0
    %3485 = vmatprep.mubr.f32.mxu0 0.0
    %3486 = vmatmul.mubr.f32.gmra.mxu0 %v2993
    %v3487 = vpop.f32.mrf.mxu0
    %v3488 = vadd.f32 0.0, %v3487
    %v3489 = vpop.f32.mrf.mxu0
    %3490 = vdwg.mxu0
    %v3491 = vadd.f32 %v3420, %v3488
    %v3492 = vmul.f32 %v3207, 0.5
    %v3493 = vtanh.pop %v3492
    %v3494 = vmul.f32 %v3493, 0.5
    %v3495 = vadd.f32 %v3494, 0.5
    %v3496 = vmul.f32 %v3495, %v2609
    %v3497 = vmul.f32 %v3065, 0.5
    %v3498 = vtanh.pop %v3497
    %v3499 = vmul.f32 %v3498, 0.5
    %v3500 = vadd.f32 %v3499, 0.5
    %v3501 = vtanh.pop %v3349
    %v3502 = vmul.f32 %v3500, %v3501
    %v3503 = vadd.f32 %v3496, %v3502
    %v3504 = vmul.f32 %v3491, 0.5
    %v3505 = vtanh.pop %v3504
    %v3506 = vmul.f32 %v3505, 0.5
    %v3507 = vadd.f32 %v3506, 0.5
    %v3508 = vtanh.pop %v3503
    %v3509 = vmul.f32 %v3507, %v3508
    %3510 = vmatprep.subr.mxu0 0.0
    %3511 = vmatpush1.msra.mxu0 0.0
    %3512 = vmatprep.subr.mxu0 0.0
    %3513 = vmatpush1.msra.mxu0 0.0
    %3514 = vmatprep.subr.mxu0 0.0
    %3515 = vmatpush1.msra.mxu0 0.0
    %3516 = vmatprep.subr.mxu0 0.0
    %3517 = vmatpush1.msra.mxu0 0.0
    %3518 = vmatprep.subr.mxu0 0.0
    %3519 = vmatpush1.msra.mxu0 0.0
    %3520 = vmatprep.subr.mxu0 0.0
    %3521 = vmatpush1.msra.mxu0 0.0
    %3522 = vmatprep.subr.mxu0 0.0
    %3523 = vmatpush1.msra.mxu0 0.0
    %3524 = vmatprep.subr.mxu0 0.0
    %3525 = vmatpush1.msra.mxu0 0.0
    %3526 = vmatprep.subr.mxu0 0.0
    %3527 = vmatpush1.msra.mxu0 0.0
    %3528 = vmatprep.subr.mxu0 0.0
    %3529 = vmatpush1.msra.mxu0 0.0
    %3530 = vmatprep.subr.mxu0 0.0
    %3531 = vmatpush1.msra.mxu0 0.0
    %3532 = vmatprep.subr.mxu0 0.0
    %3533 = vmatpush1.msra.mxu0 0.0
    %3534 = vmatprep.subr.mxu0 0.0
    %3535 = vmatpush1.msra.mxu0 0.0
    %3536 = vmatprep.subr.mxu0 0.0
    %3537 = vmatpush1.msra.mxu0 0.0
    %3538 = vmatprep.subr.mxu0 0.0
    %3539 = vmatpush1.msra.mxu0 %v755
    %3540 = vmatprep.subr.mxu0 0.0
    %3541 = vmatpush1.msra.mxu0 %v754
    %3542 = vmatprep.subr.mxu0 0.0
    %3543 = vmatpush2.msra.mxu0 0.0
    %3544 = vmatprep.subr.mxu0 0.0
    %3545 = vmatpush2.msra.mxu0 0.0
    %3546 = vmatprep.subr.mxu0 0.0
    %3547 = vmatpush2.msra.mxu0 0.0
    %3548 = vmatprep.subr.mxu0 0.0
    %3549 = vmatpush2.msra.mxu0 0.0
    %3550 = vmatprep.subr.mxu0 0.0
    %3551 = vmatpush2.msra.mxu0 0.0
    %3552 = vmatprep.subr.mxu0 0.0
    %3553 = vmatpush2.msra.mxu0 0.0
    %3554 = vmatprep.subr.mxu0 0.0
    %3555 = vmatpush2.msra.mxu0 0.0
    %3556 = vmatprep.subr.mxu0 0.0
    %3557 = vmatpush2.msra.mxu0 0.0
    %3558 = vmatprep.subr.mxu0 0.0
    %3559 = vmatpush2.msra.mxu0 0.0
    %3560 = vmatprep.subr.mxu0 0.0
    %3561 = vmatpush2.msra.mxu0 0.0
    %3562 = vmatprep.subr.mxu0 0.0
    %3563 = vmatpush2.msra.mxu0 0.0
    %3564 = vmatprep.subr.mxu0 0.0
    %3565 = vmatpush2.msra.mxu0 0.0
    %3566 = vmatprep.subr.mxu0 0.0
    %3567 = vmatpush2.msra.mxu0 0.0
    %3568 = vmatprep.subr.mxu0 0.0
    %3569 = vmatpush2.msra.mxu0 0.0
    %3570 = vmatprep.subr.mxu0 0.0
    %3571 = vmatpush2.msra.mxu0 0.0
    %3572 = vmatprep.subr.mxu0 0.0
    %3573 = vmatpush2.msra.mxu0 0.0
    %3574 = vmatprep.mubr.f32.mxu0 0.0
    %3575 = vmatmul.mubr.f32.gmra.mxu0 %v2919
    %v3576 = vpop.f32.mrf.mxu0
    %v3577 = vadd.f32 0.0, %v3576
    %v3578 = vpop.f32.mrf.mxu0
    %3579 = vdwg.mxu0
    %v3580 = vadd.f32 %v317, %v3577
    %3581 = vmatprep.subr.mxu0 0.0
    %3582 = vmatpush1.msra.mxu0 0.0
    %3583 = vmatprep.subr.mxu0 0.0
    %3584 = vmatpush1.msra.mxu0 0.0
    %3585 = vmatprep.subr.mxu0 0.0
    %3586 = vmatpush1.msra.mxu0 0.0
    %3587 = vmatprep.subr.mxu0 0.0
    %3588 = vmatpush1.msra.mxu0 0.0
    %3589 = vmatprep.subr.mxu0 0.0
    %3590 = vmatpush1.msra.mxu0 0.0
    %3591 = vmatprep.subr.mxu0 0.0
    %3592 = vmatpush1.msra.mxu0 0.0
    %3593 = vmatprep.subr.mxu0 0.0
    %3594 = vmatpush1.msra.mxu0 0.0
    %3595 = vmatprep.subr.mxu0 0.0
    %3596 = vmatpush1.msra.mxu0 0.0
    %3597 = vmatprep.subr.mxu0 0.0
    %3598 = vmatpush1.msra.mxu0 0.0
    %3599 = vmatprep.subr.mxu0 0.0
    %3600 = vmatpush1.msra.mxu0 0.0
    %3601 = vmatprep.subr.mxu0 0.0
    %3602 = vmatpush1.msra.mxu0 0.0
    %3603 = vmatprep.subr.mxu0 0.0
    %3604 = vmatpush1.msra.mxu0 0.0
    %3605 = vmatprep.subr.mxu0 0.0
    %3606 = vmatpush1.msra.mxu0 0.0
    %3607 = vmatprep.subr.mxu0 0.0
    %3608 = vmatpush1.msra.mxu0 0.0
    %3609 = vmatprep.subr.mxu0 0.0
    %3610 = vmatpush1.msra.mxu0 %v758
    %3611 = vmatprep.subr.mxu0 0.0
    %3612 = vmatpush1.msra.mxu0 %v757
    %3613 = vmatprep.subr.mxu0 0.0
    %3614 = vmatpush2.msra.mxu0 0.0
    %3615 = vmatprep.subr.mxu0 0.0
    %3616 = vmatpush2.msra.mxu0 0.0
    %3617 = vmatprep.subr.mxu0 0.0
    %3618 = vmatpush2.msra.mxu0 0.0
    %3619 = vmatprep.subr.mxu0 0.0
    %3620 = vmatpush2.msra.mxu0 0.0
    %3621 = vmatprep.subr.mxu0 0.0
    %3622 = vmatpush2.msra.mxu0 0.0
    %3623 = vmatprep.subr.mxu0 0.0
    %3624 = vmatpush2.msra.mxu0 0.0
    %3625 = vmatprep.subr.mxu0 0.0
    %3626 = vmatpush2.msra.mxu0 0.0
    %3627 = vmatprep.subr.mxu0 0.0
    %3628 = vmatpush2.msra.mxu0 0.0
    %3629 = vmatprep.subr.mxu0 0.0
    %3630 = vmatpush2.msra.mxu0 0.0
    %3631 = vmatprep.subr.mxu0 0.0
    %3632 = vmatpush2.msra.mxu0 0.0
    %3633 = vmatprep.subr.mxu0 0.0
    %3634 = vmatpush2.msra.mxu0 0.0
    %3635 = vmatprep.subr.mxu0 0.0
    %3636 = vmatpush2.msra.mxu0 0.0
    %3637 = vmatprep.subr.mxu0 0.0
    %3638 = vmatpush2.msra.mxu0 0.0
    %3639 = vmatprep.subr.mxu0 0.0
    %3640 = vmatpush2.msra.mxu0 0.0
    %3641 = vmatprep.subr.mxu0 0.0
    %3642 = vmatpush2.msra.mxu0 0.0
    %3643 = vmatprep.subr.mxu0 0.0
    %3644 = vmatpush2.msra.mxu0 0.0
    %3645 = vmatprep.mubr.f32.mxu0 0.0
    %3646 = vmatmul.mubr.f32.gmra.mxu0 %v2919
    %v3647 = vpop.f32.mrf.mxu0
    %v3648 = vadd.f32 0.0, %v3647
    %v3649 = vpop.f32.mrf.mxu0
    %3650 = vdwg.mxu0
    %v3651 = vadd.f32 %v461, %v3648
    %3652 = vmatprep.subr.mxu0 0.0
    %3653 = vmatpush1.msra.mxu0 0.0
    %3654 = vmatprep.subr.mxu0 0.0
    %3655 = vmatpush1.msra.mxu0 0.0
    %3656 = vmatprep.subr.mxu0 0.0
    %3657 = vmatpush1.msra.mxu0 0.0
    %3658 = vmatprep.subr.mxu0 0.0
    %3659 = vmatpush1.msra.mxu0 0.0
    %3660 = vmatprep.subr.mxu0 0.0
    %3661 = vmatpush1.msra.mxu0 0.0
    %3662 = vmatprep.subr.mxu0 0.0
    %3663 = vmatpush1.msra.mxu0 0.0
    %3664 = vmatprep.subr.mxu0 0.0
    %3665 = vmatpush1.msra.mxu0 0.0
    %3666 = vmatprep.subr.mxu0 0.0
    %3667 = vmatpush1.msra.mxu0 0.0
    %3668 = vmatprep.subr.mxu0 0.0
    %3669 = vmatpush1.msra.mxu0 0.0
    %3670 = vmatprep.subr.mxu0 0.0
    %3671 = vmatpush1.msra.mxu0 0.0
    %3672 = vmatprep.subr.mxu0 0.0
    %3673 = vmatpush1.msra.mxu0 0.0
    %3674 = vmatprep.subr.mxu0 0.0
    %3675 = vmatpush1.msra.mxu0 0.0
    %3676 = vmatprep.subr.mxu0 0.0
    %3677 = vmatpush1.msra.mxu0 0.0
    %3678 = vmatprep.subr.mxu0 0.0
    %3679 = vmatpush1.msra.mxu0 0.0
    %3680 = vmatprep.subr.mxu0 0.0
    %3681 = vmatpush1.msra.mxu0 %v761
    %3682 = vmatprep.subr.mxu0 0.0
    %3683 = vmatpush1.msra.mxu0 %v760
    %3684 = vmatprep.subr.mxu0 0.0
    %3685 = vmatpush2.msra.mxu0 0.0
    %3686 = vmatprep.subr.mxu0 0.0
    %3687 = vmatpush2.msra.mxu0 0.0
    %3688 = vmatprep.subr.mxu0 0.0
    %3689 = vmatpush2.msra.mxu0 0.0
    %3690 = vmatprep.subr.mxu0 0.0
    %3691 = vmatpush2.msra.mxu0 0.0
    %3692 = vmatprep.subr.mxu0 0.0
    %3693 = vmatpush2.msra.mxu0 0.0
    %3694 = vmatprep.subr.mxu0 0.0
    %3695 = vmatpush2.msra.mxu0 0.0
    %3696 = vmatprep.subr.mxu0 0.0
    %3697 = vmatpush2.msra.mxu0 0.0
    %3698 = vmatprep.subr.mxu0 0.0
    %3699 = vmatpush2.msra.mxu0 0.0
    %3700 = vmatprep.subr.mxu0 0.0
    %3701 = vmatpush2.msra.mxu0 0.0
    %3702 = vmatprep.subr.mxu0 0.0
    %3703 = vmatpush2.msra.mxu0 0.0
    %3704 = vmatprep.subr.mxu0 0.0
    %3705 = vmatpush2.msra.mxu0 0.0
    %3706 = vmatprep.subr.mxu0 0.0
    %3707 = vmatpush2.msra.mxu0 0.0
    %3708 = vmatprep.subr.mxu0 0.0
    %3709 = vmatpush2.msra.mxu0 0.0
    %3710 = vmatprep.subr.mxu0 0.0
    %3711 = vmatpush2.msra.mxu0 0.0
    %3712 = vmatprep.subr.mxu0 0.0
    %3713 = vmatpush2.msra.mxu0 0.0
    %3714 = vmatprep.subr.mxu0 0.0
    %3715 = vmatpush2.msra.mxu0 0.0
    %3716 = vmatprep.mubr.f32.mxu0 0.0
    %3717 = vmatmul.mubr.f32.gmra.mxu0 %v2919
    %v3718 = vpop.f32.mrf.mxu0
    %v3719 = vadd.f32 0.0, %v3718
    %v3720 = vpop.f32.mrf.mxu0
    %3721 = vdwg.mxu0
    %v3722 = vadd.f32 %v605, %v3719
    %3723 = vmatprep.subr.mxu0 0.0
    %3724 = vmatpush1.msra.mxu0 0.0
    %3725 = vmatprep.subr.mxu0 0.0
    %3726 = vmatpush1.msra.mxu0 0.0
    %3727 = vmatprep.subr.mxu0 0.0
    %3728 = vmatpush1.msra.mxu0 0.0
    %3729 = vmatprep.subr.mxu0 0.0
    %3730 = vmatpush1.msra.mxu0 0.0
    %3731 = vmatprep.subr.mxu0 0.0
    %3732 = vmatpush1.msra.mxu0 0.0
    %3733 = vmatprep.subr.mxu0 0.0
    %3734 = vmatpush1.msra.mxu0 0.0
    %3735 = vmatprep.subr.mxu0 0.0
    %3736 = vmatpush1.msra.mxu0 0.0
    %3737 = vmatprep.subr.mxu0 0.0
    %3738 = vmatpush1.msra.mxu0 0.0
    %3739 = vmatprep.subr.mxu0 0.0
    %3740 = vmatpush1.msra.mxu0 0.0
    %3741 = vmatprep.subr.mxu0 0.0
    %3742 = vmatpush1.msra.mxu0 0.0
    %3743 = vmatprep.subr.mxu0 0.0
    %3744 = vmatpush1.msra.mxu0 0.0
    %3745 = vmatprep.subr.mxu0 0.0
    %3746 = vmatpush1.msra.mxu0 0.0
    %3747 = vmatprep.subr.mxu0 0.0
    %3748 = vmatpush1.msra.mxu0 0.0
    %3749 = vmatprep.subr.mxu0 0.0
    %3750 = vmatpush1.msra.mxu0 0.0
    %3751 = vmatprep.subr.mxu0 0.0
    %3752 = vmatpush1.msra.mxu0 %v764
    %3753 = vmatprep.subr.mxu0 0.0
    %3754 = vmatpush1.msra.mxu0 %v763
    %3755 = vmatprep.subr.mxu0 0.0
    %3756 = vmatpush2.msra.mxu0 0.0
    %3757 = vmatprep.subr.mxu0 0.0
    %3758 = vmatpush2.msra.mxu0 0.0
    %3759 = vmatprep.subr.mxu0 0.0
    %3760 = vmatpush2.msra.mxu0 0.0
    %3761 = vmatprep.subr.mxu0 0.0
    %3762 = vmatpush2.msra.mxu0 0.0
    %3763 = vmatprep.subr.mxu0 0.0
    %3764 = vmatpush2.msra.mxu0 0.0
    %3765 = vmatprep.subr.mxu0 0.0
    %3766 = vmatpush2.msra.mxu0 0.0
    %3767 = vmatprep.subr.mxu0 0.0
    %3768 = vmatpush2.msra.mxu0 0.0
    %3769 = vmatprep.subr.mxu0 0.0
    %3770 = vmatpush2.msra.mxu0 0.0
    %3771 = vmatprep.subr.mxu0 0.0
    %3772 = vmatpush2.msra.mxu0 0.0
    %3773 = vmatprep.subr.mxu0 0.0
    %3774 = vmatpush2.msra.mxu0 0.0
    %3775 = vmatprep.subr.mxu0 0.0
    %3776 = vmatpush2.msra.mxu0 0.0
    %3777 = vmatprep.subr.mxu0 0.0
    %3778 = vmatpush2.msra.mxu0 0.0
    %3779 = vmatprep.subr.mxu0 0.0
    %3780 = vmatpush2.msra.mxu0 0.0
    %3781 = vmatprep.subr.mxu0 0.0
    %3782 = vmatpush2.msra.mxu0 0.0
    %3783 = vmatprep.subr.mxu0 0.0
    %3784 = vmatpush2.msra.mxu0 0.0
    %3785 = vmatprep.subr.mxu0 0.0
    %3786 = vmatpush2.msra.mxu0 0.0
    %3787 = vmatprep.mubr.f32.mxu0 0.0
    %3788 = vmatmul.mubr.f32.gmra.mxu0 %v2919
    %v3789 = vpop.f32.mrf.mxu0
    %v3790 = vadd.f32 0.0, %v3789
    %v3791 = vpop.f32.mrf.mxu0
    %3792 = vdwg.mxu0
    %v3793 = vadd.f32 %v749, %v3790
    %v3794 = vmul.f32 %v3651, 0.5
    %v3795 = vtanh.pop %v3794
    %v3796 = vmul.f32 %v3795, 0.5
    %v3797 = vadd.f32 %v3796, 0.5
    %v3798 = vmul.f32 %v3797, %v2911
    %v3799 = vmul.f32 %v3580, 0.5
    %v3800 = vtanh.pop %v3799
    %v3801 = vmul.f32 %v3800, 0.5
    %v3802 = vadd.f32 %v3801, 0.5
    %v3803 = vtanh.pop %v3722
    %v3804 = vmul.f32 %v3802, %v3803
    %v3805 = vadd.f32 %v3798, %v3804
    %v3806 = vmul.f32 %v3793, 0.5
    %v3807 = vtanh.pop %v3806
    %v3808 = vmul.f32 %v3807, 0.5
    %v3809 = vadd.f32 %v3808, 0.5
    %v3810 = vtanh.pop %v3805
    %v3811 = vmul.f32 %v3809, %v3810
    %v3813 = vsel %vm800, %v3811, 0
    %3815 = vmatprep.subr.mxu0 0.0
    %3816 = vmatpush1.msra.mxu0 0.0
    %3817 = vmatprep.subr.mxu0 0.0
    %3818 = vmatpush1.msra.mxu0 0.0
    %3819 = vmatprep.subr.mxu0 0.0
    %3820 = vmatpush1.msra.mxu0 0.0
    %3821 = vmatprep.subr.mxu0 0.0
    %3822 = vmatpush1.msra.mxu0 0.0
    %3823 = vmatprep.subr.mxu0 0.0
    %3824 = vmatpush1.msra.mxu0 0.0
    %3825 = vmatprep.subr.mxu0 0.0
    %3826 = vmatpush1.msra.mxu0 0.0
    %3827 = vmatprep.subr.mxu0 0.0
    %3828 = vmatpush1.msra.mxu0 0.0
    %3829 = vmatprep.subr.mxu0 0.0
    %3830 = vmatpush1.msra.mxu0 0.0
    %3831 = vmatprep.subr.mxu0 0.0
    %3832 = vmatpush1.msra.mxu0 0.0
    %3833 = vmatprep.subr.mxu0 0.0
    %3834 = vmatpush1.msra.mxu0 0.0
    %3835 = vmatprep.subr.mxu0 0.0
    %3836 = vmatpush1.msra.mxu0 0.0
    %3837 = vmatprep.subr.mxu0 0.0
    %3838 = vmatpush1.msra.mxu0 0.0
    %3839 = vmatprep.subr.mxu0 0.0
    %3840 = vmatpush1.msra.mxu0 0.0
    %3841 = vmatprep.subr.mxu0 0.0
    %3842 = vmatpush1.msra.mxu0 0.0
    %3843 = vmatprep.subr.mxu0 0.0
    %3844 = vmatpush1.msra.mxu0 %v766
    %3845 = vmatprep.subr.mxu0 0.0
    %3846 = vmatpush1.msra.mxu0 %v765
    %3847 = vmatprep.subr.mxu0 0.0
    %3848 = vmatpush2.msra.mxu0 0.0
    %3849 = vmatprep.subr.mxu0 0.0
    %3850 = vmatpush2.msra.mxu0 0.0
    %3851 = vmatprep.subr.mxu0 0.0
    %3852 = vmatpush2.msra.mxu0 0.0
    %3853 = vmatprep.subr.mxu0 0.0
    %3854 = vmatpush2.msra.mxu0 0.0
    %3855 = vmatprep.subr.mxu0 0.0
    %3856 = vmatpush2.msra.mxu0 0.0
    %3857 = vmatprep.subr.mxu0 0.0
    %3858 = vmatpush2.msra.mxu0 0.0
    %3859 = vmatprep.subr.mxu0 0.0
    %3860 = vmatpush2.msra.mxu0 0.0
    %3861 = vmatprep.subr.mxu0 0.0
    %3862 = vmatpush2.msra.mxu0 0.0
    %3863 = vmatprep.subr.mxu0 0.0
    %3864 = vmatpush2.msra.mxu0 0.0
    %3865 = vmatprep.subr.mxu0 0.0
    %3866 = vmatpush2.msra.mxu0 0.0
    %3867 = vmatprep.subr.mxu0 0.0
    %3868 = vmatpush2.msra.mxu0 0.0
    %3869 = vmatprep.subr.mxu0 0.0
    %3870 = vmatpush2.msra.mxu0 0.0
    %3871 = vmatprep.subr.mxu0 0.0
    %3872 = vmatpush2.msra.mxu0 0.0
    %3873 = vmatprep.subr.mxu0 0.0
    %3874 = vmatpush2.msra.mxu0 0.0
    %3875 = vmatprep.subr.mxu0 0.0
    %3876 = vmatpush2.msra.mxu0 0.0
    %3877 = vmatprep.subr.mxu0 0.0
    %3878 = vmatpush2.msra.mxu0 0.0
    %3879 = vmatprep.mubr.f32.mxu0 0.0
    %3880 = vmatmul.mubr.f32.gmra.mxu0 %v3813
    %v3881 = vpop.f32.mrf.mxu0
    %v3882 = vadd.f32 0.0, %v3881
    %v3883 = vpop.f32.mrf.mxu0
    %3884 = vdwg.mxu0
    %v3885 = vadd.f32 %v1183, %v3882
    %v3887 = vsel %vm800, %v3509, 0
    %3889 = vmatprep.subr.mxu0 0.0
    %3890 = vmatpush1.msra.mxu0 0.0
    %3891 = vmatprep.subr.mxu0 0.0
    %3892 = vmatpush1.msra.mxu0 0.0
    %3893 = vmatprep.subr.mxu0 0.0
    %3894 = vmatpush1.msra.mxu0 0.0
    %3895 = vmatprep.subr.mxu0 0.0
    %3896 = vmatpush1.msra.mxu0 0.0
    %3897 = vmatprep.subr.mxu0 0.0
    %3898 = vmatpush1.msra.mxu0 0.0
    %3899 = vmatprep.subr.mxu0 0.0
    %3900 = vmatpush1.msra.mxu0 0.0
    %3901 = vmatprep.subr.mxu0 0.0
    %3902 = vmatpush1.msra.mxu0 0.0
    %3903 = vmatprep.subr.mxu0 0.0
    %3904 = vmatpush1.msra.mxu0 0.0
    %3905 = vmatprep.subr.mxu0 0.0
    %3906 = vmatpush1.msra.mxu0 0.0
    %3907 = vmatprep.subr.mxu0 0.0
    %3908 = vmatpush1.msra.mxu0 0.0
    %3909 = vmatprep.subr.mxu0 0.0
    %3910 = vmatpush1.msra.mxu0 0.0
    %3911 = vmatprep.subr.mxu0 0.0
    %3912 = vmatpush1.msra.mxu0 0.0
    %3913 = vmatprep.subr.mxu0 0.0
    %3914 = vmatpush1.msra.mxu0 0.0
    %3915 = vmatprep.subr.mxu0 0.0
    %3916 = vmatpush1.msra.mxu0 0.0
    %3917 = vmatprep.subr.mxu0 0.0
    %3918 = vmatpush1.msra.mxu0 %v777
    %3919 = vmatprep.subr.mxu0 0.0
    %3920 = vmatpush1.msra.mxu0 %v776
    %3921 = vmatprep.subr.mxu0 0.0
    %3922 = vmatpush2.msra.mxu0 0.0
    %3923 = vmatprep.subr.mxu0 0.0
    %3924 = vmatpush2.msra.mxu0 0.0
    %3925 = vmatprep.subr.mxu0 0.0
    %3926 = vmatpush2.msra.mxu0 0.0
    %3927 = vmatprep.subr.mxu0 0.0
    %3928 = vmatpush2.msra.mxu0 0.0
    %3929 = vmatprep.subr.mxu0 0.0
    %3930 = vmatpush2.msra.mxu0 0.0
    %3931 = vmatprep.subr.mxu0 0.0
    %3932 = vmatpush2.msra.mxu0 0.0
    %3933 = vmatprep.subr.mxu0 0.0
    %3934 = vmatpush2.msra.mxu0 0.0
    %3935 = vmatprep.subr.mxu0 0.0
    %3936 = vmatpush2.msra.mxu0 0.0
    %3937 = vmatprep.subr.mxu0 0.0
    %3938 = vmatpush2.msra.mxu0 0.0
    %3939 = vmatprep.subr.mxu0 0.0
    %3940 = vmatpush2.msra.mxu0 0.0
    %3941 = vmatprep.subr.mxu0 0.0
    %3942 = vmatpush2.msra.mxu0 0.0
    %3943 = vmatprep.subr.mxu0 0.0
    %3944 = vmatpush2.msra.mxu0 0.0
    %3945 = vmatprep.subr.mxu0 0.0
    %3946 = vmatpush2.msra.mxu0 0.0
    %3947 = vmatprep.subr.mxu0 0.0
    %3948 = vmatpush2.msra.mxu0 0.0
    %3949 = vmatprep.subr.mxu0 0.0
    %3950 = vmatpush2.msra.mxu0 0.0
    %3951 = vmatprep.subr.mxu0 0.0
    %3952 = vmatpush2.msra.mxu0 0.0
    %3953 = vmatprep.mubr.f32.mxu0 0.0
    %3954 = vmatmul.mubr.f32.gmra.mxu0 %v3887
    %v3955 = vpop.f32.mrf.mxu0
    %v3956 = vadd.f32 0.0, %v3955
    %v3957 = vpop.f32.mrf.mxu0
    %3958 = vdwg.mxu0
    %v3959 = vadd.f32 %v3885, %v3956
    %3960 = vmatprep.subr.mxu0 0.0
    %3961 = vmatpush1.msra.mxu0 0.0
    %3962 = vmatprep.subr.mxu0 0.0
    %3963 = vmatpush1.msra.mxu0 0.0
    %3964 = vmatprep.subr.mxu0 0.0
    %3965 = vmatpush1.msra.mxu0 0.0
    %3966 = vmatprep.subr.mxu0 0.0
    %3967 = vmatpush1.msra.mxu0 0.0
    %3968 = vmatprep.subr.mxu0 0.0
    %3969 = vmatpush1.msra.mxu0 0.0
    %3970 = vmatprep.subr.mxu0 0.0
    %3971 = vmatpush1.msra.mxu0 0.0
    %3972 = vmatprep.subr.mxu0 0.0
    %3973 = vmatpush1.msra.mxu0 0.0
    %3974 = vmatprep.subr.mxu0 0.0
    %3975 = vmatpush1.msra.mxu0 0.0
    %3976 = vmatprep.subr.mxu0 0.0
    %3977 = vmatpush1.msra.mxu0 0.0
    %3978 = vmatprep.subr.mxu0 0.0
    %3979 = vmatpush1.msra.mxu0 0.0
    %3980 = vmatprep.subr.mxu0 0.0
    %3981 = vmatpush1.msra.mxu0 0.0
    %3982 = vmatprep.subr.mxu0 0.0
    %3983 = vmatpush1.msra.mxu0 0.0
    %3984 = vmatprep.subr.mxu0 0.0
    %3985 = vmatpush1.msra.mxu0 0.0
    %3986 = vmatprep.subr.mxu0 0.0
    %3987 = vmatpush1.msra.mxu0 0.0
    %3988 = vmatprep.subr.mxu0 0.0
    %3989 = vmatpush1.msra.mxu0 %v769
    %3990 = vmatprep.subr.mxu0 0.0
    %3991 = vmatpush1.msra.mxu0 %v768
    %3992 = vmatprep.subr.mxu0 0.0
    %3993 = vmatpush2.msra.mxu0 0.0
    %3994 = vmatprep.subr.mxu0 0.0
    %3995 = vmatpush2.msra.mxu0 0.0
    %3996 = vmatprep.subr.mxu0 0.0
    %3997 = vmatpush2.msra.mxu0 0.0
    %3998 = vmatprep.subr.mxu0 0.0
    %3999 = vmatpush2.msra.mxu0 0.0
    %4000 = vmatprep.subr.mxu0 0.0
    %4001 = vmatpush2.msra.mxu0 0.0
    %4002 = vmatprep.subr.mxu0 0.0
    %4003 = vmatpush2.msra.mxu0 0.0
    %4004 = vmatprep.subr.mxu0 0.0
    %4005 = vmatpush2.msra.mxu0 0.0
    %4006 = vmatprep.subr.mxu0 0.0
    %4007 = vmatpush2.msra.mxu0 0.0
    %4008 = vmatprep.subr.mxu0 0.0
    %4009 = vmatpush2.msra.mxu0 0.0
    %4010 = vmatprep.subr.mxu0 0.0
    %4011 = vmatpush2.msra.mxu0 0.0
    %4012 = vmatprep.subr.mxu0 0.0
    %4013 = vmatpush2.msra.mxu0 0.0
    %4014 = vmatprep.subr.mxu0 0.0
    %4015 = vmatpush2.msra.mxu0 0.0
    %4016 = vmatprep.subr.mxu0 0.0
    %4017 = vmatpush2.msra.mxu0 0.0
    %4018 = vmatprep.subr.mxu0 0.0
    %4019 = vmatpush2.msra.mxu0 0.0
    %4020 = vmatprep.subr.mxu0 0.0
    %4021 = vmatpush2.msra.mxu0 0.0
    %4022 = vmatprep.subr.mxu0 0.0
    %4023 = vmatpush2.msra.mxu0 0.0
    %4024 = vmatprep.mubr.f32.mxu0 0.0
    %4025 = vmatmul.mubr.f32.gmra.mxu0 %v3813
    %v4026 = vpop.f32.mrf.mxu0
    %v4027 = vadd.f32 0.0, %v4026
    %v4028 = vpop.f32.mrf.mxu0
    %4029 = vdwg.mxu0
    %v4030 = vadd.f32 %v1334, %v4027
    %4031 = vmatprep.subr.mxu0 0.0
    %4032 = vmatpush1.msra.mxu0 0.0
    %4033 = vmatprep.subr.mxu0 0.0
    %4034 = vmatpush1.msra.mxu0 0.0
    %4035 = vmatprep.subr.mxu0 0.0
    %4036 = vmatpush1.msra.mxu0 0.0
    %4037 = vmatprep.subr.mxu0 0.0
    %4038 = vmatpush1.msra.mxu0 0.0
    %4039 = vmatprep.subr.mxu0 0.0
    %4040 = vmatpush1.msra.mxu0 0.0
    %4041 = vmatprep.subr.mxu0 0.0
    %4042 = vmatpush1.msra.mxu0 0.0
    %4043 = vmatprep.subr.mxu0 0.0
    %4044 = vmatpush1.msra.mxu0 0.0
    %4045 = vmatprep.subr.mxu0 0.0
    %4046 = vmatpush1.msra.mxu0 0.0
    %4047 = vmatprep.subr.mxu0 0.0
    %4048 = vmatpush1.msra.mxu0 0.0
    %4049 = vmatprep.subr.mxu0 0.0
    %4050 = vmatpush1.msra.mxu0 0.0
    %4051 = vmatprep.subr.mxu0 0.0
    %4052 = vmatpush1.msra.mxu0 0.0
    %4053 = vmatprep.subr.mxu0 0.0
    %4054 = vmatpush1.msra.mxu0 0.0
    %4055 = vmatprep.subr.mxu0 0.0
    %4056 = vmatpush1.msra.mxu0 0.0
    %4057 = vmatprep.subr.mxu0 0.0
    %4058 = vmatpush1.msra.mxu0 0.0
    %4059 = vmatprep.subr.mxu0 0.0
    %4060 = vmatpush1.msra.mxu0 %v780
    %4061 = vmatprep.subr.mxu0 0.0
    %4062 = vmatpush1.msra.mxu0 %v779
    %4063 = vmatprep.subr.mxu0 0.0
    %4064 = vmatpush2.msra.mxu0 0.0
    %4065 = vmatprep.subr.mxu0 0.0
    %4066 = vmatpush2.msra.mxu0 0.0
    %4067 = vmatprep.subr.mxu0 0.0
    %4068 = vmatpush2.msra.mxu0 0.0
    %4069 = vmatprep.subr.mxu0 0.0
    %4070 = vmatpush2.msra.mxu0 0.0
    %4071 = vmatprep.subr.mxu0 0.0
    %4072 = vmatpush2.msra.mxu0 0.0
    %4073 = vmatprep.subr.mxu0 0.0
    %4074 = vmatpush2.msra.mxu0 0.0
    %4075 = vmatprep.subr.mxu0 0.0
    %4076 = vmatpush2.msra.mxu0 0.0
    %4077 = vmatprep.subr.mxu0 0.0
    %4078 = vmatpush2.msra.mxu0 0.0
    %4079 = vmatprep.subr.mxu0 0.0
    %4080 = vmatpush2.msra.mxu0 0.0
    %4081 = vmatprep.subr.mxu0 0.0
    %4082 = vmatpush2.msra.mxu0 0.0
    %4083 = vmatprep.subr.mxu0 0.0
    %4084 = vmatpush2.msra.mxu0 0.0
    %4085 = vmatprep.subr.mxu0 0.0
    %4086 = vmatpush2.msra.mxu0 0.0
    %4087 = vmatprep.subr.mxu0 0.0
    %4088 = vmatpush2.msra.mxu0 0.0
    %4089 = vmatprep.subr.mxu0 0.0
    %4090 = vmatpush2.msra.mxu0 0.0
    %4091 = vmatprep.subr.mxu0 0.0
    %4092 = vmatpush2.msra.mxu0 0.0
    %4093 = vmatprep.subr.mxu0 0.0
    %4094 = vmatpush2.msra.mxu0 0.0
    %4095 = vmatprep.mubr.f32.mxu0 0.0
    %4096 = vmatmul.mubr.f32.gmra.mxu0 %v3887
    %v4097 = vpop.f32.mrf.mxu0
    %v4098 = vadd.f32 0.0, %v4097
    %v4099 = vpop.f32.mrf.mxu0
    %4100 = vdwg.mxu0
    %v4101 = vadd.f32 %v4030, %v4098
    %4102 = vmatprep.subr.mxu0 0.0
    %4103 = vmatpush1.msra.mxu0 0.0
    %4104 = vmatprep.subr.mxu0 0.0
    %4105 = vmatpush1.msra.mxu0 0.0
    %4106 = vmatprep.subr.mxu0 0.0
    %4107 = vmatpush1.msra.mxu0 0.0
    %4108 = vmatprep.subr.mxu0 0.0
    %4109 = vmatpush1.msra.mxu0 0.0
    %4110 = vmatprep.subr.mxu0 0.0
    %4111 = vmatpush1.msra.mxu0 0.0
    %4112 = vmatprep.subr.mxu0 0.0
    %4113 = vmatpush1.msra.mxu0 0.0
    %4114 = vmatprep.subr.mxu0 0.0
    %4115 = vmatpush1.msra.mxu0 0.0
    %4116 = vmatprep.subr.mxu0 0.0
    %4117 = vmatpush1.msra.mxu0 0.0
    %4118 = vmatprep.subr.mxu0 0.0
    %4119 = vmatpush1.msra.mxu0 0.0
    %4120 = vmatprep.subr.mxu0 0.0
    %4121 = vmatpush1.msra.mxu0 0.0
    %4122 = vmatprep.subr.mxu0 0.0
    %4123 = vmatpush1.msra.mxu0 0.0
    %4124 = vmatprep.subr.mxu0 0.0
    %4125 = vmatpush1.msra.mxu0 0.0
    %4126 = vmatprep.subr.mxu0 0.0
    %4127 = vmatpush1.msra.mxu0 0.0
    %4128 = vmatprep.subr.mxu0 0.0
    %4129 = vmatpush1.msra.mxu0 0.0
    %4130 = vmatprep.subr.mxu0 0.0
    %4131 = vmatpush1.msra.mxu0 %v772
    %4132 = vmatprep.subr.mxu0 0.0
    %4133 = vmatpush1.msra.mxu0 %v771
    %4134 = vmatprep.subr.mxu0 0.0
    %4135 = vmatpush2.msra.mxu0 0.0
    %4136 = vmatprep.subr.mxu0 0.0
    %4137 = vmatpush2.msra.mxu0 0.0
    %4138 = vmatprep.subr.mxu0 0.0
    %4139 = vmatpush2.msra.mxu0 0.0
    %4140 = vmatprep.subr.mxu0 0.0
    %4141 = vmatpush2.msra.mxu0 0.0
    %4142 = vmatprep.subr.mxu0 0.0
    %4143 = vmatpush2.msra.mxu0 0.0
    %4144 = vmatprep.subr.mxu0 0.0
    %4145 = vmatpush2.msra.mxu0 0.0
    %4146 = vmatprep.subr.mxu0 0.0
    %4147 = vmatpush2.msra.mxu0 0.0
    %4148 = vmatprep.subr.mxu0 0.0
    %4149 = vmatpush2.msra.mxu0 0.0
    %4150 = vmatprep.subr.mxu0 0.0
    %4151 = vmatpush2.msra.mxu0 0.0
    %4152 = vmatprep.subr.mxu0 0.0
    %4153 = vmatpush2.msra.mxu0 0.0
    %4154 = vmatprep.subr.mxu0 0.0
    %4155 = vmatpush2.msra.mxu0 0.0
    %4156 = vmatprep.subr.mxu0 0.0
    %4157 = vmatpush2.msra.mxu0 0.0
    %4158 = vmatprep.subr.mxu0 0.0
    %4159 = vmatpush2.msra.mxu0 0.0
    %4160 = vmatprep.subr.mxu0 0.0
    %4161 = vmatpush2.msra.mxu0 0.0
    %4162 = vmatprep.subr.mxu0 0.0
    %4163 = vmatpush2.msra.mxu0 0.0
    %4164 = vmatprep.subr.mxu0 0.0
    %4165 = vmatpush2.msra.mxu0 0.0
    %4166 = vmatprep.mubr.f32.mxu0 0.0
    %4167 = vmatmul.mubr.f32.gmra.mxu0 %v3813
    %v4168 = vpop.f32.mrf.mxu0
    %v4169 = vadd.f32 0.0, %v4168
    %v4170 = vpop.f32.mrf.mxu0
    %4171 = vdwg.mxu0
    %v4172 = vadd.f32 %v1482, %v4169
    %4173 = vmatprep.subr.mxu0 0.0
    %4174 = vmatpush1.msra.mxu0 0.0
    %4175 = vmatprep.subr.mxu0 0.0
    %4176 = vmatpush1.msra.mxu0 0.0
    %4177 = vmatprep.subr.mxu0 0.0
    %4178 = vmatpush1.msra.mxu0 0.0
    %4179 = vmatprep.subr.mxu0 0.0
    %4180 = vmatpush1.msra.mxu0 0.0
    %4181 = vmatprep.subr.mxu0 0.0
    %4182 = vmatpush1.msra.mxu0 0.0
    %4183 = vmatprep.subr.mxu0 0.0
    %4184 = vmatpush1.msra.mxu0 0.0
    %4185 = vmatprep.subr.mxu0 0.0
    %4186 = vmatpush1.msra.mxu0 0.0
    %4187 = vmatprep.subr.mxu0 0.0
    %4188 = vmatpush1.msra.mxu0 0.0
    %4189 = vmatprep.subr.mxu0 0.0
    %4190 = vmatpush1.msra.mxu0 0.0
    %4191 = vmatprep.subr.mxu0 0.0
    %4192 = vmatpush1.msra.mxu0 0.0
    %4193 = vmatprep.subr.mxu0 0.0
    %4194 = vmatpush1.msra.mxu0 0.0
    %4195 = vmatprep.subr.mxu0 0.0
    %4196 = vmatpush1.msra.mxu0 0.0
    %4197 = vmatprep.subr.mxu0 0.0
    %4198 = vmatpush1.msra.mxu0 0.0
    %4199 = vmatprep.subr.mxu0 0.0
    %4200 = vmatpush1.msra.mxu0 0.0
    %4201 = vmatprep.subr.mxu0 0.0
    %4202 = vmatpush1.msra.mxu0 %v783
    %4203 = vmatprep.subr.mxu0 0.0
    %4204 = vmatpush1.msra.mxu0 %v782
    %4205 = vmatprep.subr.mxu0 0.0
    %4206 = vmatpush2.msra.mxu0 0.0
    %4207 = vmatprep.subr.mxu0 0.0
    %4208 = vmatpush2.msra.mxu0 0.0
    %4209 = vmatprep.subr.mxu0 0.0
    %4210 = vmatpush2.msra.mxu0 0.0
    %4211 = vmatprep.subr.mxu0 0.0
    %4212 = vmatpush2.msra.mxu0 0.0
    %4213 = vmatprep.subr.mxu0 0.0
    %4214 = vmatpush2.msra.mxu0 0.0
    %4215 = vmatprep.subr.mxu0 0.0
    %4216 = vmatpush2.msra.mxu0 0.0
    %4217 = vmatprep.subr.mxu0 0.0
    %4218 = vmatpush2.msra.mxu0 0.0
    %4219 = vmatprep.subr.mxu0 0.0
    %4220 = vmatpush2.msra.mxu0 0.0
    %4221 = vmatprep.subr.mxu0 0.0
    %4222 = vmatpush2.msra.mxu0 0.0
    %4223 = vmatprep.subr.mxu0 0.0
    %4224 = vmatpush2.msra.mxu0 0.0
    %4225 = vmatprep.subr.mxu0 0.0
    %4226 = vmatpush2.msra.mxu0 0.0
    %4227 = vmatprep.subr.mxu0 0.0
    %4228 = vmatpush2.msra.mxu0 0.0
    %4229 = vmatprep.subr.mxu0 0.0
    %4230 = vmatpush2.msra.mxu0 0.0
    %4231 = vmatprep.subr.mxu0 0.0
    %4232 = vmatpush2.msra.mxu0 0.0
    %4233 = vmatprep.subr.mxu0 0.0
    %4234 = vmatpush2.msra.mxu0 0.0
    %4235 = vmatprep.subr.mxu0 0.0
    %4236 = vmatpush2.msra.mxu0 0.0
    %4237 = vmatprep.mubr.f32.mxu0 0.0
    %4238 = vmatmul.mubr.f32.gmra.mxu0 %v3887
    %v4239 = vpop.f32.mrf.mxu0
    %v4240 = vadd.f32 0.0, %v4239
    %v4241 = vpop.f32.mrf.mxu0
    %4242 = vdwg.mxu0
    %v4243 = vadd.f32 %v4172, %v4240
    %4244 = vmatprep.subr.mxu0 0.0
    %4245 = vmatpush1.msra.mxu0 0.0
    %4246 = vmatprep.subr.mxu0 0.0
    %4247 = vmatpush1.msra.mxu0 0.0
    %4248 = vmatprep.subr.mxu0 0.0
    %4249 = vmatpush1.msra.mxu0 0.0
    %4250 = vmatprep.subr.mxu0 0.0
    %4251 = vmatpush1.msra.mxu0 0.0
    %4252 = vmatprep.subr.mxu0 0.0
    %4253 = vmatpush1.msra.mxu0 0.0
    %4254 = vmatprep.subr.mxu0 0.0
    %4255 = vmatpush1.msra.mxu0 0.0
    %4256 = vmatprep.subr.mxu0 0.0
    %4257 = vmatpush1.msra.mxu0 0.0
    %4258 = vmatprep.subr.mxu0 0.0
    %4259 = vmatpush1.msra.mxu0 0.0
    %4260 = vmatprep.subr.mxu0 0.0
    %4261 = vmatpush1.msra.mxu0 0.0
    %4262 = vmatprep.subr.mxu0 0.0
    %4263 = vmatpush1.msra.mxu0 0.0
    %4264 = vmatprep.subr.mxu0 0.0
    %4265 = vmatpush1.msra.mxu0 0.0
    %4266 = vmatprep.subr.mxu0 0.0
    %4267 = vmatpush1.msra.mxu0 0.0
    %4268 = vmatprep.subr.mxu0 0.0
    %4269 = vmatpush1.msra.mxu0 0.0
    %4270 = vmatprep.subr.mxu0 0.0
    %4271 = vmatpush1.msra.mxu0 0.0
    %4272 = vmatprep.subr.mxu0 0.0
    %4273 = vmatpush1.msra.mxu0 %v775
    %4274 = vmatprep.subr.mxu0 0.0
    %4275 = vmatpush1.msra.mxu0 %v774
    %4276 = vmatprep.subr.mxu0 0.0
    %4277 = vmatpush2.msra.mxu0 0.0
    %4278 = vmatprep.subr.mxu0 0.0
    %4279 = vmatpush2.msra.mxu0 0.0
    %4280 = vmatprep.subr.mxu0 0.0
    %4281 = vmatpush2.msra.mxu0 0.0
    %4282 = vmatprep.subr.mxu0 0.0
    %4283 = vmatpush2.msra.mxu0 0.0
    %4284 = vmatprep.subr.mxu0 0.0
    %4285 = vmatpush2.msra.mxu0 0.0
    %4286 = vmatprep.subr.mxu0 0.0
    %4287 = vmatpush2.msra.mxu0 0.0
    %4288 = vmatprep.subr.mxu0 0.0
    %4289 = vmatpush2.msra.mxu0 0.0
    %4290 = vmatprep.subr.mxu0 0.0
    %4291 = vmatpush2.msra.mxu0 0.0
    %4292 = vmatprep.subr.mxu0 0.0
    %4293 = vmatpush2.msra.mxu0 0.0
    %4294 = vmatprep.subr.mxu0 0.0
    %4295 = vmatpush2.msra.mxu0 0.0
    %4296 = vmatprep.subr.mxu0 0.0
    %4297 = vmatpush2.msra.mxu0 0.0
    %4298 = vmatprep.subr.mxu0 0.0
    %4299 = vmatpush2.msra.mxu0 0.0
    %4300 = vmatprep.subr.mxu0 0.0
    %4301 = vmatpush2.msra.mxu0 0.0
    %4302 = vmatprep.subr.mxu0 0.0
    %4303 = vmatpush2.msra.mxu0 0.0
    %4304 = vmatprep.subr.mxu0 0.0
    %4305 = vmatpush2.msra.mxu0 0.0
    %4306 = vmatprep.subr.mxu0 0.0
    %4307 = vmatpush2.msra.mxu0 0.0
    %4308 = vmatprep.mubr.f32.mxu0 0.0
    %4309 = vmatmul.mubr.f32.gmra.mxu0 %v3813
    %v4310 = vpop.f32.mrf.mxu0
    %v4311 = vadd.f32 0.0, %v4310
    %v4312 = vpop.f32.mrf.mxu0
    %4313 = vdwg.mxu0
    %v4314 = vadd.f32 %v1630, %v4311
    %4315 = vmatprep.subr.mxu0 0.0
    %4316 = vmatpush1.msra.mxu0 0.0
    %4317 = vmatprep.subr.mxu0 0.0
    %4318 = vmatpush1.msra.mxu0 0.0
    %4319 = vmatprep.subr.mxu0 0.0
    %4320 = vmatpush1.msra.mxu0 0.0
    %4321 = vmatprep.subr.mxu0 0.0
    %4322 = vmatpush1.msra.mxu0 0.0
    %4323 = vmatprep.subr.mxu0 0.0
    %4324 = vmatpush1.msra.mxu0 0.0
    %4325 = vmatprep.subr.mxu0 0.0
    %4326 = vmatpush1.msra.mxu0 0.0
    %4327 = vmatprep.subr.mxu0 0.0
    %4328 = vmatpush1.msra.mxu0 0.0
    %4329 = vmatprep.subr.mxu0 0.0
    %4330 = vmatpush1.msra.mxu0 0.0
    %4331 = vmatprep.subr.mxu0 0.0
    %4332 = vmatpush1.msra.mxu0 0.0
    %4333 = vmatprep.subr.mxu0 0.0
    %4334 = vmatpush1.msra.mxu0 0.0
    %4335 = vmatprep.subr.mxu0 0.0
    %4336 = vmatpush1.msra.mxu0 0.0
    %4337 = vmatprep.subr.mxu0 0.0
    %4338 = vmatpush1.msra.mxu0 0.0
    %4339 = vmatprep.subr.mxu0 0.0
    %4340 = vmatpush1.msra.mxu0 0.0
    %4341 = vmatprep.subr.mxu0 0.0
    %4342 = vmatpush1.msra.mxu0 0.0
    %4343 = vmatprep.subr.mxu0 0.0
    %4344 = vmatpush1.msra.mxu0 %v786
    %4345 = vmatprep.subr.mxu0 0.0
    %4346 = vmatpush1.msra.mxu0 %v785
    %4347 = vmatprep.subr.mxu0 0.0
    %4348 = vmatpush2.msra.mxu0 0.0
    %4349 = vmatprep.subr.mxu0 0.0
    %4350 = vmatpush2.msra.mxu0 0.0
    %4351 = vmatprep.subr.mxu0 0.0
    %4352 = vmatpush2.msra.mxu0 0.0
    %4353 = vmatprep.subr.mxu0 0.0
    %4354 = vmatpush2.msra.mxu0 0.0
    %4355 = vmatprep.subr.mxu0 0.0
    %4356 = vmatpush2.msra.mxu0 0.0
    %4357 = vmatprep.subr.mxu0 0.0
    %4358 = vmatpush2.msra.mxu0 0.0
    %4359 = vmatprep.subr.mxu0 0.0
    %4360 = vmatpush2.msra.mxu0 0.0
    %4361 = vmatprep.subr.mxu0 0.0
    %4362 = vmatpush2.msra.mxu0 0.0
    %4363 = vmatprep.subr.mxu0 0.0
    %4364 = vmatpush2.msra.mxu0 0.0
    %4365 = vmatprep.subr.mxu0 0.0
    %4366 = vmatpush2.msra.mxu0 0.0
    %4367 = vmatprep.subr.mxu0 0.0
    %4368 = vmatpush2.msra.mxu0 0.0
    %4369 = vmatprep.subr.mxu0 0.0
    %4370 = vmatpush2.msra.mxu0 0.0
    %4371 = vmatprep.subr.mxu0 0.0
    %4372 = vmatpush2.msra.mxu0 0.0
    %4373 = vmatprep.subr.mxu0 0.0
    %4374 = vmatpush2.msra.mxu0 0.0
    %4375 = vmatprep.subr.mxu0 0.0
    %4376 = vmatpush2.msra.mxu0 0.0
    %4377 = vmatprep.subr.mxu0 0.0
    %4378 = vmatpush2.msra.mxu0 0.0
    %4379 = vmatprep.mubr.f32.mxu0 0.0
    %4380 = vmatmul.mubr.f32.gmra.mxu0 %v3887
    %v4381 = vpop.f32.mrf.mxu0
    %v4382 = vadd.f32 0.0, %v4381
    %v4383 = vpop.f32.mrf.mxu0
    %4384 = vdwg.mxu0
    %v4385 = vadd.f32 %v4314, %v4382
    %v4386 = vmul.f32 %v4101, 0.5
    %v4387 = vtanh.pop %v4386
    %v4388 = vmul.f32 %v4387, 0.5
    %v4389 = vadd.f32 %v4388, 0.5
    %v4390 = vmul.f32 %v4389, %v3503
    %v4391 = vmul.f32 %v3959, 0.5
    %v4392 = vtanh.pop %v4391
    %v4393 = vmul.f32 %v4392, 0.5
    %v4394 = vadd.f32 %v4393, 0.5
    %v4395 = vtanh.pop %v4243
    %v4396 = vmul.f32 %v4394, %v4395
    %v4397 = vadd.f32 %v4390, %v4396
    %v4398 = vmul.f32 %v4385, 0.5
    %v4399 = vtanh.pop %v4398
    %v4400 = vmul.f32 %v4399, 0.5
    %v4401 = vadd.f32 %v4400, 0.5
    %v4402 = vtanh.pop %v4397
    %v4403 = vmul.f32 %v4401, %v4402
    %4404 = vmatprep.subr.mxu0 0.0
    %4405 = vmatpush1.msra.mxu0 0.0
    %4406 = vmatprep.subr.mxu0 0.0
    %4407 = vmatpush1.msra.mxu0 0.0
    %4408 = vmatprep.subr.mxu0 0.0
    %4409 = vmatpush1.msra.mxu0 0.0
    %4410 = vmatprep.subr.mxu0 0.0
    %4411 = vmatpush1.msra.mxu0 0.0
    %4412 = vmatprep.subr.mxu0 0.0
    %4413 = vmatpush1.msra.mxu0 0.0
    %4414 = vmatprep.subr.mxu0 0.0
    %4415 = vmatpush1.msra.mxu0 0.0
    %4416 = vmatprep.subr.mxu0 0.0
    %4417 = vmatpush1.msra.mxu0 0.0
    %4418 = vmatprep.subr.mxu0 0.0
    %4419 = vmatpush1.msra.mxu0 0.0
    %4420 = vmatprep.subr.mxu0 0.0
    %4421 = vmatpush1.msra.mxu0 0.0
    %4422 = vmatprep.subr.mxu0 0.0
    %4423 = vmatpush1.msra.mxu0 0.0
    %4424 = vmatprep.subr.mxu0 0.0
    %4425 = vmatpush1.msra.mxu0 0.0
    %4426 = vmatprep.subr.mxu0 0.0
    %4427 = vmatpush1.msra.mxu0 0.0
    %4428 = vmatprep.subr.mxu0 0.0
    %4429 = vmatpush1.msra.mxu0 0.0
    %4430 = vmatprep.subr.mxu0 0.0
    %4431 = vmatpush1.msra.mxu0 0.0
    %4432 = vmatprep.subr.mxu0 0.0
    %4433 = vmatpush1.msra.mxu0 %v755
    %4434 = vmatprep.subr.mxu0 0.0
    %4435 = vmatpush1.msra.mxu0 %v754
    %4436 = vmatprep.subr.mxu0 0.0
    %4437 = vmatpush2.msra.mxu0 0.0
    %4438 = vmatprep.subr.mxu0 0.0
    %4439 = vmatpush2.msra.mxu0 0.0
    %4440 = vmatprep.subr.mxu0 0.0
    %4441 = vmatpush2.msra.mxu0 0.0
    %4442 = vmatprep.subr.mxu0 0.0
    %4443 = vmatpush2.msra.mxu0 0.0
    %4444 = vmatprep.subr.mxu0 0.0
    %4445 = vmatpush2.msra.mxu0 0.0
    %4446 = vmatprep.subr.mxu0 0.0
    %4447 = vmatpush2.msra.mxu0 0.0
    %4448 = vmatprep.subr.mxu0 0.0
    %4449 = vmatpush2.msra.mxu0 0.0
    %4450 = vmatprep.subr.mxu0 0.0
    %4451 = vmatpush2.msra.mxu0 0.0
    %4452 = vmatprep.subr.mxu0 0.0
    %4453 = vmatpush2.msra.mxu0 0.0
    %4454 = vmatprep.subr.mxu0 0.0
    %4455 = vmatpush2.msra.mxu0 0.0
    %4456 = vmatprep.subr.mxu0 0.0
    %4457 = vmatpush2.msra.mxu0 0.0
    %4458 = vmatprep.subr.mxu0 0.0
    %4459 = vmatpush2.msra.mxu0 0.0
    %4460 = vmatprep.subr.mxu0 0.0
    %4461 = vmatpush2.msra.mxu0 0.0
    %4462 = vmatprep.subr.mxu0 0.0
    %4463 = vmatpush2.msra.mxu0 0.0
    %4464 = vmatprep.subr.mxu0 0.0
    %4465 = vmatpush2.msra.mxu0 0.0
    %4466 = vmatprep.subr.mxu0 0.0
    %4467 = vmatpush2.msra.mxu0 0.0
    %4468 = vmatprep.mubr.f32.mxu0 0.0
    %4469 = vmatmul.mubr.f32.gmra.mxu0 %v3813
    %v4470 = vpop.f32.mrf.mxu0
    %v4471 = vadd.f32 0.0, %v4470
    %v4472 = vpop.f32.mrf.mxu0
    %4473 = vdwg.mxu0
    %v4474 = vadd.f32 %v318, %v4471
    %4475 = vmatprep.subr.mxu0 0.0
    %4476 = vmatpush1.msra.mxu0 0.0
    %4477 = vmatprep.subr.mxu0 0.0
    %4478 = vmatpush1.msra.mxu0 0.0
    %4479 = vmatprep.subr.mxu0 0.0
    %4480 = vmatpush1.msra.mxu0 0.0
    %4481 = vmatprep.subr.mxu0 0.0
    %4482 = vmatpush1.msra.mxu0 0.0
    %4483 = vmatprep.subr.mxu0 0.0
    %4484 = vmatpush1.msra.mxu0 0.0
    %4485 = vmatprep.subr.mxu0 0.0
    %4486 = vmatpush1.msra.mxu0 0.0
    %4487 = vmatprep.subr.mxu0 0.0
    %4488 = vmatpush1.msra.mxu0 0.0
    %4489 = vmatprep.subr.mxu0 0.0
    %4490 = vmatpush1.msra.mxu0 0.0
    %4491 = vmatprep.subr.mxu0 0.0
    %4492 = vmatpush1.msra.mxu0 0.0
    %4493 = vmatprep.subr.mxu0 0.0
    %4494 = vmatpush1.msra.mxu0 0.0
    %4495 = vmatprep.subr.mxu0 0.0
    %4496 = vmatpush1.msra.mxu0 0.0
    %4497 = vmatprep.subr.mxu0 0.0
    %4498 = vmatpush1.msra.mxu0 0.0
    %4499 = vmatprep.subr.mxu0 0.0
    %4500 = vmatpush1.msra.mxu0 0.0
    %4501 = vmatprep.subr.mxu0 0.0
    %4502 = vmatpush1.msra.mxu0 0.0
    %4503 = vmatprep.subr.mxu0 0.0
    %4504 = vmatpush1.msra.mxu0 %v758
    %4505 = vmatprep.subr.mxu0 0.0
    %4506 = vmatpush1.msra.mxu0 %v757
    %4507 = vmatprep.subr.mxu0 0.0
    %4508 = vmatpush2.msra.mxu0 0.0
    %4509 = vmatprep.subr.mxu0 0.0
    %4510 = vmatpush2.msra.mxu0 0.0
    %4511 = vmatprep.subr.mxu0 0.0
    %4512 = vmatpush2.msra.mxu0 0.0
    %4513 = vmatprep.subr.mxu0 0.0
    %4514 = vmatpush2.msra.mxu0 0.0
    %4515 = vmatprep.subr.mxu0 0.0
    %4516 = vmatpush2.msra.mxu0 0.0
    %4517 = vmatprep.subr.mxu0 0.0
    %4518 = vmatpush2.msra.mxu0 0.0
    %4519 = vmatprep.subr.mxu0 0.0
    %4520 = vmatpush2.msra.mxu0 0.0
    %4521 = vmatprep.subr.mxu0 0.0
    %4522 = vmatpush2.msra.mxu0 0.0
    %4523 = vmatprep.subr.mxu0 0.0
    %4524 = vmatpush2.msra.mxu0 0.0
    %4525 = vmatprep.subr.mxu0 0.0
    %4526 = vmatpush2.msra.mxu0 0.0
    %4527 = vmatprep.subr.mxu0 0.0
    %4528 = vmatpush2.msra.mxu0 0.0
    %4529 = vmatprep.subr.mxu0 0.0
    %4530 = vmatpush2.msra.mxu0 0.0
    %4531 = vmatprep.subr.mxu0 0.0
    %4532 = vmatpush2.msra.mxu0 0.0
    %4533 = vmatprep.subr.mxu0 0.0
    %4534 = vmatpush2.msra.mxu0 0.0
    %4535 = vmatprep.subr.mxu0 0.0
    %4536 = vmatpush2.msra.mxu0 0.0
    %4537 = vmatprep.subr.mxu0 0.0
    %4538 = vmatpush2.msra.mxu0 0.0
    %4539 = vmatprep.mubr.f32.mxu0 0.0
    %4540 = vmatmul.mubr.f32.gmra.mxu0 %v3813
    %v4541 = vpop.f32.mrf.mxu0
    %v4542 = vadd.f32 0.0, %v4541
    %v4543 = vpop.f32.mrf.mxu0
    %4544 = vdwg.mxu0
    %v4545 = vadd.f32 %v462, %v4542
    %4546 = vmatprep.subr.mxu0 0.0
    %4547 = vmatpush1.msra.mxu0 0.0
    %4548 = vmatprep.subr.mxu0 0.0
    %4549 = vmatpush1.msra.mxu0 0.0
    %4550 = vmatprep.subr.mxu0 0.0
    %4551 = vmatpush1.msra.mxu0 0.0
    %4552 = vmatprep.subr.mxu0 0.0
    %4553 = vmatpush1.msra.mxu0 0.0
    %4554 = vmatprep.subr.mxu0 0.0
    %4555 = vmatpush1.msra.mxu0 0.0
    %4556 = vmatprep.subr.mxu0 0.0
    %4557 = vmatpush1.msra.mxu0 0.0
    %4558 = vmatprep.subr.mxu0 0.0
    %4559 = vmatpush1.msra.mxu0 0.0
    %4560 = vmatprep.subr.mxu0 0.0
    %4561 = vmatpush1.msra.mxu0 0.0
    %4562 = vmatprep.subr.mxu0 0.0
    %4563 = vmatpush1.msra.mxu0 0.0
    %4564 = vmatprep.subr.mxu0 0.0
    %4565 = vmatpush1.msra.mxu0 0.0
    %4566 = vmatprep.subr.mxu0 0.0
    %4567 = vmatpush1.msra.mxu0 0.0
    %4568 = vmatprep.subr.mxu0 0.0
    %4569 = vmatpush1.msra.mxu0 0.0
    %4570 = vmatprep.subr.mxu0 0.0
    %4571 = vmatpush1.msra.mxu0 0.0
    %4572 = vmatprep.subr.mxu0 0.0
    %4573 = vmatpush1.msra.mxu0 0.0
    %4574 = vmatprep.subr.mxu0 0.0
    %4575 = vmatpush1.msra.mxu0 %v761
    %4576 = vmatprep.subr.mxu0 0.0
    %4577 = vmatpush1.msra.mxu0 %v760
    %4578 = vmatprep.subr.mxu0 0.0
    %4579 = vmatpush2.msra.mxu0 0.0
    %4580 = vmatprep.subr.mxu0 0.0
    %4581 = vmatpush2.msra.mxu0 0.0
    %4582 = vmatprep.subr.mxu0 0.0
    %4583 = vmatpush2.msra.mxu0 0.0
    %4584 = vmatprep.subr.mxu0 0.0
    %4585 = vmatpush2.msra.mxu0 0.0
    %4586 = vmatprep.subr.mxu0 0.0
    %4587 = vmatpush2.msra.mxu0 0.0
    %4588 = vmatprep.subr.mxu0 0.0
    %4589 = vmatpush2.msra.mxu0 0.0
    %4590 = vmatprep.subr.mxu0 0.0
    %4591 = vmatpush2.msra.mxu0 0.0
    %4592 = vmatprep.subr.mxu0 0.0
    %4593 = vmatpush2.msra.mxu0 0.0
    %4594 = vmatprep.subr.mxu0 0.0
    %4595 = vmatpush2.msra.mxu0 0.0
    %4596 = vmatprep.subr.mxu0 0.0
    %4597 = vmatpush2.msra.mxu0 0.0
    %4598 = vmatprep.subr.mxu0 0.0
    %4599 = vmatpush2.msra.mxu0 0.0
    %4600 = vmatprep.subr.mxu0 0.0
    %4601 = vmatpush2.msra.mxu0 0.0
    %4602 = vmatprep.subr.mxu0 0.0
    %4603 = vmatpush2.msra.mxu0 0.0
    %4604 = vmatprep.subr.mxu0 0.0
    %4605 = vmatpush2.msra.mxu0 0.0
    %4606 = vmatprep.subr.mxu0 0.0
    %4607 = vmatpush2.msra.mxu0 0.0
    %4608 = vmatprep.subr.mxu0 0.0
    %4609 = vmatpush2.msra.mxu0 0.0
    %4610 = vmatprep.mubr.f32.mxu0 0.0
    %4611 = vmatmul.mubr.f32.gmra.mxu0 %v3813
    %v4612 = vpop.f32.mrf.mxu0
    %v4613 = vadd.f32 0.0, %v4612
    %v4614 = vpop.f32.mrf.mxu0
    %4615 = vdwg.mxu0
    %v4616 = vadd.f32 %v606, %v4613
    %4617 = vmatprep.subr.mxu0 0.0
    %4618 = vmatpush1.msra.mxu0 0.0
    %4619 = vmatprep.subr.mxu0 0.0
    %4620 = vmatpush1.msra.mxu0 0.0
    %4621 = vmatprep.subr.mxu0 0.0
    %4622 = vmatpush1.msra.mxu0 0.0
    %4623 = vmatprep.subr.mxu0 0.0
    %4624 = vmatpush1.msra.mxu0 0.0
    %4625 = vmatprep.subr.mxu0 0.0
    %4626 = vmatpush1.msra.mxu0 0.0
    %4627 = vmatprep.subr.mxu0 0.0
    %4628 = vmatpush1.msra.mxu0 0.0
    %4629 = vmatprep.subr.mxu0 0.0
    %4630 = vmatpush1.msra.mxu0 0.0
    %4631 = vmatprep.subr.mxu0 0.0
    %4632 = vmatpush1.msra.mxu0 0.0
    %4633 = vmatprep.subr.mxu0 0.0
    %4634 = vmatpush1.msra.mxu0 0.0
    %4635 = vmatprep.subr.mxu0 0.0
    %4636 = vmatpush1.msra.mxu0 0.0
    %4637 = vmatprep.subr.mxu0 0.0
    %4638 = vmatpush1.msra.mxu0 0.0
    %4639 = vmatprep.subr.mxu0 0.0
    %4640 = vmatpush1.msra.mxu0 0.0
    %4641 = vmatprep.subr.mxu0 0.0
    %4642 = vmatpush1.msra.mxu0 0.0
    %4643 = vmatprep.subr.mxu0 0.0
    %4644 = vmatpush1.msra.mxu0 0.0
    %4645 = vmatprep.subr.mxu0 0.0
    %4646 = vmatpush1.msra.mxu0 %v764
    %4647 = vmatprep.subr.mxu0 0.0
    %4648 = vmatpush1.msra.mxu0 %v763
    %4649 = vmatprep.subr.mxu0 0.0
    %4650 = vmatpush2.msra.mxu0 0.0
    %4651 = vmatprep.subr.mxu0 0.0
    %4652 = vmatpush2.msra.mxu0 0.0
    %4653 = vmatprep.subr.mxu0 0.0
    %4654 = vmatpush2.msra.mxu0 0.0
    %4655 = vmatprep.subr.mxu0 0.0
    %4656 = vmatpush2.msra.mxu0 0.0
    %4657 = vmatprep.subr.mxu0 0.0
    %4658 = vmatpush2.msra.mxu0 0.0
    %4659 = vmatprep.subr.mxu0 0.0
    %4660 = vmatpush2.msra.mxu0 0.0
    %4661 = vmatprep.subr.mxu0 0.0
    %4662 = vmatpush2.msra.mxu0 0.0
    %4663 = vmatprep.subr.mxu0 0.0
    %4664 = vmatpush2.msra.mxu0 0.0
    %4665 = vmatprep.subr.mxu0 0.0
    %4666 = vmatpush2.msra.mxu0 0.0
    %4667 = vmatprep.subr.mxu0 0.0
    %4668 = vmatpush2.msra.mxu0 0.0
    %4669 = vmatprep.subr.mxu0 0.0
    %4670 = vmatpush2.msra.mxu0 0.0
    %4671 = vmatprep.subr.mxu0 0.0
    %4672 = vmatpush2.msra.mxu0 0.0
    %4673 = vmatprep.subr.mxu0 0.0
    %4674 = vmatpush2.msra.mxu0 0.0
    %4675 = vmatprep.subr.mxu0 0.0
    %4676 = vmatpush2.msra.mxu0 0.0
    %4677 = vmatprep.subr.mxu0 0.0
    %4678 = vmatpush2.msra.mxu0 0.0
    %4679 = vmatprep.subr.mxu0 0.0
    %4680 = vmatpush2.msra.mxu0 0.0
    %4681 = vmatprep.mubr.f32.mxu0 0.0
    %4682 = vmatmul.mubr.f32.gmra.mxu0 %v3813
    %v4683 = vpop.f32.mrf.mxu0
    %v4684 = vadd.f32 0.0, %v4683
    %v4685 = vpop.f32.mrf.mxu0
    %4686 = vdwg.mxu0
    %v4687 = vadd.f32 %v750, %v4684
    %v4688 = vmul.f32 %v4545, 0.5
    %v4689 = vtanh.pop %v4688
    %v4690 = vmul.f32 %v4689, 0.5
    %v4691 = vadd.f32 %v4690, 0.5
    %v4692 = vmul.f32 %v4691, %v3805
    %v4693 = vmul.f32 %v4474, 0.5
    %v4694 = vtanh.pop %v4693
    %v4695 = vmul.f32 %v4694, 0.5
    %v4696 = vadd.f32 %v4695, 0.5
    %v4697 = vtanh.pop %v4616
    %v4698 = vmul.f32 %v4696, %v4697
    %v4699 = vadd.f32 %v4692, %v4698
    %v4700 = vmul.f32 %v4687, 0.5
    %v4701 = vtanh.pop %v4700
    %v4702 = vmul.f32 %v4701, 0.5
    %v4703 = vadd.f32 %v4702, 0.5
    %v4704 = vtanh.pop %v4699
    %v4705 = vmul.f32 %v4703, %v4704
    %v4707 = vsel %vm800, %v4705, 0
    %4709 = vmatprep.subr.mxu0 0.0
    %4710 = vmatpush1.msra.mxu0 0.0
    %4711 = vmatprep.subr.mxu0 0.0
    %4712 = vmatpush1.msra.mxu0 0.0
    %4713 = vmatprep.subr.mxu0 0.0
    %4714 = vmatpush1.msra.mxu0 0.0
    %4715 = vmatprep.subr.mxu0 0.0
    %4716 = vmatpush1.msra.mxu0 0.0
    %4717 = vmatprep.subr.mxu0 0.0
    %4718 = vmatpush1.msra.mxu0 0.0
    %4719 = vmatprep.subr.mxu0 0.0
    %4720 = vmatpush1.msra.mxu0 0.0
    %4721 = vmatprep.subr.mxu0 0.0
    %4722 = vmatpush1.msra.mxu0 0.0
    %4723 = vmatprep.subr.mxu0 0.0
    %4724 = vmatpush1.msra.mxu0 0.0
    %4725 = vmatprep.subr.mxu0 0.0
    %4726 = vmatpush1.msra.mxu0 0.0
    %4727 = vmatprep.subr.mxu0 0.0
    %4728 = vmatpush1.msra.mxu0 0.0
    %4729 = vmatprep.subr.mxu0 0.0
    %4730 = vmatpush1.msra.mxu0 0.0
    %4731 = vmatprep.subr.mxu0 0.0
    %4732 = vmatpush1.msra.mxu0 0.0
    %4733 = vmatprep.subr.mxu0 0.0
    %4734 = vmatpush1.msra.mxu0 0.0
    %4735 = vmatprep.subr.mxu0 0.0
    %4736 = vmatpush1.msra.mxu0 0.0
    %4737 = vmatprep.subr.mxu0 0.0
    %4738 = vmatpush1.msra.mxu0 %v766
    %4739 = vmatprep.subr.mxu0 0.0
    %4740 = vmatpush1.msra.mxu0 %v765
    %4741 = vmatprep.subr.mxu0 0.0
    %4742 = vmatpush2.msra.mxu0 0.0
    %4743 = vmatprep.subr.mxu0 0.0
    %4744 = vmatpush2.msra.mxu0 0.0
    %4745 = vmatprep.subr.mxu0 0.0
    %4746 = vmatpush2.msra.mxu0 0.0
    %4747 = vmatprep.subr.mxu0 0.0
    %4748 = vmatpush2.msra.mxu0 0.0
    %4749 = vmatprep.subr.mxu0 0.0
    %4750 = vmatpush2.msra.mxu0 0.0
    %4751 = vmatprep.subr.mxu0 0.0
    %4752 = vmatpush2.msra.mxu0 0.0
    %4753 = vmatprep.subr.mxu0 0.0
    %4754 = vmatpush2.msra.mxu0 0.0
    %4755 = vmatprep.subr.mxu0 0.0
    %4756 = vmatpush2.msra.mxu0 0.0
    %4757 = vmatprep.subr.mxu0 0.0
    %4758 = vmatpush2.msra.mxu0 0.0
    %4759 = vmatprep.subr.mxu0 0.0
    %4760 = vmatpush2.msra.mxu0 0.0
    %4761 = vmatprep.subr.mxu0 0.0
    %4762 = vmatpush2.msra.mxu0 0.0
    %4763 = vmatprep.subr.mxu0 0.0
    %4764 = vmatpush2.msra.mxu0 0.0
    %4765 = vmatprep.subr.mxu0 0.0
    %4766 = vmatpush2.msra.mxu0 0.0
    %4767 = vmatprep.subr.mxu0 0.0
    %4768 = vmatpush2.msra.mxu0 0.0
    %4769 = vmatprep.subr.mxu0 0.0
    %4770 = vmatpush2.msra.mxu0 0.0
    %4771 = vmatprep.subr.mxu0 0.0
    %4772 = vmatpush2.msra.mxu0 0.0
    %4773 = vmatprep.mubr.f32.mxu0 0.0
    %4774 = vmatmul.mubr.f32.gmra.mxu0 %v4707
    %v4775 = vpop.f32.mrf.mxu0
    %v4776 = vadd.f32 0.0, %v4775
    %v4777 = vpop.f32.mrf.mxu0
    %4778 = vdwg.mxu0
    %v4779 = vadd.f32 %v1183, %v4776
    %v4781 = vsel %vm800, %v4403, 0
    %4783 = vmatprep.subr.mxu0 0.0
    %4784 = vmatpush1.msra.mxu0 0.0
    %4785 = vmatprep.subr.mxu0 0.0
    %4786 = vmatpush1.msra.mxu0 0.0
    %4787 = vmatprep.subr.mxu0 0.0
    %4788 = vmatpush1.msra.mxu0 0.0
    %4789 = vmatprep.subr.mxu0 0.0
    %4790 = vmatpush1.msra.mxu0 0.0
    %4791 = vmatprep.subr.mxu0 0.0
    %4792 = vmatpush1.msra.mxu0 0.0
    %4793 = vmatprep.subr.mxu0 0.0
    %4794 = vmatpush1.msra.mxu0 0.0
    %4795 = vmatprep.subr.mxu0 0.0
    %4796 = vmatpush1.msra.mxu0 0.0
    %4797 = vmatprep.subr.mxu0 0.0
    %4798 = vmatpush1.msra.mxu0 0.0
    %4799 = vmatprep.subr.mxu0 0.0
    %4800 = vmatpush1.msra.mxu0 0.0
    %4801 = vmatprep.subr.mxu0 0.0
    %4802 = vmatpush1.msra.mxu0 0.0
    %4803 = vmatprep.subr.mxu0 0.0
    %4804 = vmatpush1.msra.mxu0 0.0
    %4805 = vmatprep.subr.mxu0 0.0
    %4806 = vmatpush1.msra.mxu0 0.0
    %4807 = vmatprep.subr.mxu0 0.0
    %4808 = vmatpush1.msra.mxu0 0.0
    %4809 = vmatprep.subr.mxu0 0.0
    %4810 = vmatpush1.msra.mxu0 0.0
    %4811 = vmatprep.subr.mxu0 0.0
    %4812 = vmatpush1.msra.mxu0 %v777
    %4813 = vmatprep.subr.mxu0 0.0
    %4814 = vmatpush1.msra.mxu0 %v776
    %4815 = vmatprep.subr.mxu0 0.0
    %4816 = vmatpush2.msra.mxu0 0.0
    %4817 = vmatprep.subr.mxu0 0.0
    %4818 = vmatpush2.msra.mxu0 0.0
    %4819 = vmatprep.subr.mxu0 0.0
    %4820 = vmatpush2.msra.mxu0 0.0
    %4821 = vmatprep.subr.mxu0 0.0
    %4822 = vmatpush2.msra.mxu0 0.0
    %4823 = vmatprep.subr.mxu0 0.0
    %4824 = vmatpush2.msra.mxu0 0.0
    %4825 = vmatprep.subr.mxu0 0.0
    %4826 = vmatpush2.msra.mxu0 0.0
    %4827 = vmatprep.subr.mxu0 0.0
    %4828 = vmatpush2.msra.mxu0 0.0
    %4829 = vmatprep.subr.mxu0 0.0
    %4830 = vmatpush2.msra.mxu0 0.0
    %4831 = vmatprep.subr.mxu0 0.0
    %4832 = vmatpush2.msra.mxu0 0.0
    %4833 = vmatprep.subr.mxu0 0.0
    %4834 = vmatpush2.msra.mxu0 0.0
    %4835 = vmatprep.subr.mxu0 0.0
    %4836 = vmatpush2.msra.mxu0 0.0
    %4837 = vmatprep.subr.mxu0 0.0
    %4838 = vmatpush2.msra.mxu0 0.0
    %4839 = vmatprep.subr.mxu0 0.0
    %4840 = vmatpush2.msra.mxu0 0.0
    %4841 = vmatprep.subr.mxu0 0.0
    %4842 = vmatpush2.msra.mxu0 0.0
    %4843 = vmatprep.subr.mxu0 0.0
    %4844 = vmatpush2.msra.mxu0 0.0
    %4845 = vmatprep.subr.mxu0 0.0
    %4846 = vmatpush2.msra.mxu0 0.0
    %4847 = vmatprep.mubr.f32.mxu0 0.0
    %4848 = vmatmul.mubr.f32.gmra.mxu0 %v4781
    %v4849 = vpop.f32.mrf.mxu0
    %v4850 = vadd.f32 0.0, %v4849
    %v4851 = vpop.f32.mrf.mxu0
    %4852 = vdwg.mxu0
    %v4853 = vadd.f32 %v4779, %v4850
    %4854 = vmatprep.subr.mxu0 0.0
    %4855 = vmatpush1.msra.mxu0 0.0
    %4856 = vmatprep.subr.mxu0 0.0
    %4857 = vmatpush1.msra.mxu0 0.0
    %4858 = vmatprep.subr.mxu0 0.0
    %4859 = vmatpush1.msra.mxu0 0.0
    %4860 = vmatprep.subr.mxu0 0.0
    %4861 = vmatpush1.msra.mxu0 0.0
    %4862 = vmatprep.subr.mxu0 0.0
    %4863 = vmatpush1.msra.mxu0 0.0
    %4864 = vmatprep.subr.mxu0 0.0
    %4865 = vmatpush1.msra.mxu0 0.0
    %4866 = vmatprep.subr.mxu0 0.0
    %4867 = vmatpush1.msra.mxu0 0.0
    %4868 = vmatprep.subr.mxu0 0.0
    %4869 = vmatpush1.msra.mxu0 0.0
    %4870 = vmatprep.subr.mxu0 0.0
    %4871 = vmatpush1.msra.mxu0 0.0
    %4872 = vmatprep.subr.mxu0 0.0
    %4873 = vmatpush1.msra.mxu0 0.0
    %4874 = vmatprep.subr.mxu0 0.0
    %4875 = vmatpush1.msra.mxu0 0.0
    %4876 = vmatprep.subr.mxu0 0.0
    %4877 = vmatpush1.msra.mxu0 0.0
    %4878 = vmatprep.subr.mxu0 0.0
    %4879 = vmatpush1.msra.mxu0 0.0
    %4880 = vmatprep.subr.mxu0 0.0
    %4881 = vmatpush1.msra.mxu0 0.0
    %4882 = vmatprep.subr.mxu0 0.0
    %4883 = vmatpush1.msra.mxu0 %v769
    %4884 = vmatprep.subr.mxu0 0.0
    %4885 = vmatpush1.msra.mxu0 %v768
    %4886 = vmatprep.subr.mxu0 0.0
    %4887 = vmatpush2.msra.mxu0 0.0
    %4888 = vmatprep.subr.mxu0 0.0
    %4889 = vmatpush2.msra.mxu0 0.0
    %4890 = vmatprep.subr.mxu0 0.0
    %4891 = vmatpush2.msra.mxu0 0.0
    %4892 = vmatprep.subr.mxu0 0.0
    %4893 = vmatpush2.msra.mxu0 0.0
    %4894 = vmatprep.subr.mxu0 0.0
    %4895 = vmatpush2.msra.mxu0 0.0
    %4896 = vmatprep.subr.mxu0 0.0
    %4897 = vmatpush2.msra.mxu0 0.0
    %4898 = vmatprep.subr.mxu0 0.0
    %4899 = vmatpush2.msra.mxu0 0.0
    %4900 = vmatprep.subr.mxu0 0.0
    %4901 = vmatpush2.msra.mxu0 0.0
    %4902 = vmatprep.subr.mxu0 0.0
    %4903 = vmatpush2.msra.mxu0 0.0
    %4904 = vmatprep.subr.mxu0 0.0
    %4905 = vmatpush2.msra.mxu0 0.0
    %4906 = vmatprep.subr.mxu0 0.0
    %4907 = vmatpush2.msra.mxu0 0.0
    %4908 = vmatprep.subr.mxu0 0.0
    %4909 = vmatpush2.msra.mxu0 0.0
    %4910 = vmatprep.subr.mxu0 0.0
    %4911 = vmatpush2.msra.mxu0 0.0
    %4912 = vmatprep.subr.mxu0 0.0
    %4913 = vmatpush2.msra.mxu0 0.0
    %4914 = vmatprep.subr.mxu0 0.0
    %4915 = vmatpush2.msra.mxu0 0.0
    %4916 = vmatprep.subr.mxu0 0.0
    %4917 = vmatpush2.msra.mxu0 0.0
    %4918 = vmatprep.mubr.f32.mxu0 0.0
    %4919 = vmatmul.mubr.f32.gmra.mxu0 %v4707
    %v4920 = vpop.f32.mrf.mxu0
    %v4921 = vadd.f32 0.0, %v4920
    %v4922 = vpop.f32.mrf.mxu0
    %4923 = vdwg.mxu0
    %v4924 = vadd.f32 %v1334, %v4921
    %4925 = vmatprep.subr.mxu0 0.0
    %4926 = vmatpush1.msra.mxu0 0.0
    %4927 = vmatprep.subr.mxu0 0.0
    %4928 = vmatpush1.msra.mxu0 0.0
    %4929 = vmatprep.subr.mxu0 0.0
    %4930 = vmatpush1.msra.mxu0 0.0
    %4931 = vmatprep.subr.mxu0 0.0
    %4932 = vmatpush1.msra.mxu0 0.0
    %4933 = vmatprep.subr.mxu0 0.0
    %4934 = vmatpush1.msra.mxu0 0.0
    %4935 = vmatprep.subr.mxu0 0.0
    %4936 = vmatpush1.msra.mxu0 0.0
    %4937 = vmatprep.subr.mxu0 0.0
    %4938 = vmatpush1.msra.mxu0 0.0
    %4939 = vmatprep.subr.mxu0 0.0
    %4940 = vmatpush1.msra.mxu0 0.0
    %4941 = vmatprep.subr.mxu0 0.0
    %4942 = vmatpush1.msra.mxu0 0.0
    %4943 = vmatprep.subr.mxu0 0.0
    %4944 = vmatpush1.msra.mxu0 0.0
    %4945 = vmatprep.subr.mxu0 0.0
    %4946 = vmatpush1.msra.mxu0 0.0
    %4947 = vmatprep.subr.mxu0 0.0
    %4948 = vmatpush1.msra.mxu0 0.0
    %4949 = vmatprep.subr.mxu0 0.0
    %4950 = vmatpush1.msra.mxu0 0.0
    %4951 = vmatprep.subr.mxu0 0.0
    %4952 = vmatpush1.msra.mxu0 0.0
    %4953 = vmatprep.subr.mxu0 0.0
    %4954 = vmatpush1.msra.mxu0 %v780
    %4955 = vmatprep.subr.mxu0 0.0
    %4956 = vmatpush1.msra.mxu0 %v779
    %4957 = vmatprep.subr.mxu0 0.0
    %4958 = vmatpush2.msra.mxu0 0.0
    %4959 = vmatprep.subr.mxu0 0.0
    %4960 = vmatpush2.msra.mxu0 0.0
    %4961 = vmatprep.subr.mxu0 0.0
    %4962 = vmatpush2.msra.mxu0 0.0
    %4963 = vmatprep.subr.mxu0 0.0
    %4964 = vmatpush2.msra.mxu0 0.0
    %4965 = vmatprep.subr.mxu0 0.0
    %4966 = vmatpush2.msra.mxu0 0.0
    %4967 = vmatprep.subr.mxu0 0.0
    %4968 = vmatpush2.msra.mxu0 0.0
    %4969 = vmatprep.subr.mxu0 0.0
    %4970 = vmatpush2.msra.mxu0 0.0
    %4971 = vmatprep.subr.mxu0 0.0
    %4972 = vmatpush2.msra.mxu0 0.0
    %4973 = vmatprep.subr.mxu0 0.0
    %4974 = vmatpush2.msra.mxu0 0.0
    %4975 = vmatprep.subr.mxu0 0.0
    %4976 = vmatpush2.msra.mxu0 0.0
    %4977 = vmatprep.subr.mxu0 0.0
    %4978 = vmatpush2.msra.mxu0 0.0
    %4979 = vmatprep.subr.mxu0 0.0
    %4980 = vmatpush2.msra.mxu0 0.0
    %4981 = vmatprep.subr.mxu0 0.0
    %4982 = vmatpush2.msra.mxu0 0.0
    %4983 = vmatprep.subr.mxu0 0.0
    %4984 = vmatpush2.msra.mxu0 0.0
    %4985 = vmatprep.subr.mxu0 0.0
    %4986 = vmatpush2.msra.mxu0 0.0
    %4987 = vmatprep.subr.mxu0 0.0
    %4988 = vmatpush2.msra.mxu0 0.0
    %4989 = vmatprep.mubr.f32.mxu0 0.0
    %4990 = vmatmul.mubr.f32.gmra.mxu0 %v4781
    %v4991 = vpop.f32.mrf.mxu0
    %v4992 = vadd.f32 0.0, %v4991
    %v4993 = vpop.f32.mrf.mxu0
    %4994 = vdwg.mxu0
    %v4995 = vadd.f32 %v4924, %v4992
    %4996 = vmatprep.subr.mxu0 0.0
    %4997 = vmatpush1.msra.mxu0 0.0
    %4998 = vmatprep.subr.mxu0 0.0
    %4999 = vmatpush1.msra.mxu0 0.0
    %5000 = vmatprep.subr.mxu0 0.0
    %5001 = vmatpush1.msra.mxu0 0.0
    %5002 = vmatprep.subr.mxu0 0.0
    %5003 = vmatpush1.msra.mxu0 0.0
    %5004 = vmatprep.subr.mxu0 0.0
    %5005 = vmatpush1.msra.mxu0 0.0
    %5006 = vmatprep.subr.mxu0 0.0
    %5007 = vmatpush1.msra.mxu0 0.0
    %5008 = vmatprep.subr.mxu0 0.0
    %5009 = vmatpush1.msra.mxu0 0.0
    %5010 = vmatprep.subr.mxu0 0.0
    %5011 = vmatpush1.msra.mxu0 0.0
    %5012 = vmatprep.subr.mxu0 0.0
    %5013 = vmatpush1.msra.mxu0 0.0
    %5014 = vmatprep.subr.mxu0 0.0
    %5015 = vmatpush1.msra.mxu0 0.0
    %5016 = vmatprep.subr.mxu0 0.0
    %5017 = vmatpush1.msra.mxu0 0.0
    %5018 = vmatprep.subr.mxu0 0.0
    %5019 = vmatpush1.msra.mxu0 0.0
    %5020 = vmatprep.subr.mxu0 0.0
    %5021 = vmatpush1.msra.mxu0 0.0
    %5022 = vmatprep.subr.mxu0 0.0
    %5023 = vmatpush1.msra.mxu0 0.0
    %5024 = vmatprep.subr.mxu0 0.0
    %5025 = vmatpush1.msra.mxu0 %v772
    %5026 = vmatprep.subr.mxu0 0.0
    %5027 = vmatpush1.msra.mxu0 %v771
    %5028 = vmatprep.subr.mxu0 0.0
    %5029 = vmatpush2.msra.mxu0 0.0
    %5030 = vmatprep.subr.mxu0 0.0
    %5031 = vmatpush2.msra.mxu0 0.0
    %5032 = vmatprep.subr.mxu0 0.0
    %5033 = vmatpush2.msra.mxu0 0.0
    %5034 = vmatprep.subr.mxu0 0.0
    %5035 = vmatpush2.msra.mxu0 0.0
    %5036 = vmatprep.subr.mxu0 0.0
    %5037 = vmatpush2.msra.mxu0 0.0
    %5038 = vmatprep.subr.mxu0 0.0
    %5039 = vmatpush2.msra.mxu0 0.0
    %5040 = vmatprep.subr.mxu0 0.0
    %5041 = vmatpush2.msra.mxu0 0.0
    %5042 = vmatprep.subr.mxu0 0.0
    %5043 = vmatpush2.msra.mxu0 0.0
    %5044 = vmatprep.subr.mxu0 0.0
    %5045 = vmatpush2.msra.mxu0 0.0
    %5046 = vmatprep.subr.mxu0 0.0
    %5047 = vmatpush2.msra.mxu0 0.0
    %5048 = vmatprep.subr.mxu0 0.0
    %5049 = vmatpush2.msra.mxu0 0.0
    %5050 = vmatprep.subr.mxu0 0.0
    %5051 = vmatpush2.msra.mxu0 0.0
    %5052 = vmatprep.subr.mxu0 0.0
    %5053 = vmatpush2.msra.mxu0 0.0
    %5054 = vmatprep.subr.mxu0 0.0
    %5055 = vmatpush2.msra.mxu0 0.0
    %5056 = vmatprep.subr.mxu0 0.0
    %5057 = vmatpush2.msra.mxu0 0.0
    %5058 = vmatprep.subr.mxu0 0.0
    %5059 = vmatpush2.msra.mxu0 0.0
    %5060 = vmatprep.mubr.f32.mxu0 0.0
    %5061 = vmatmul.mubr.f32.gmra.mxu0 %v4707
    %v5062 = vpop.f32.mrf.mxu0
    %v5063 = vadd.f32 0.0, %v5062
    %v5064 = vpop.f32.mrf.mxu0
    %5065 = vdwg.mxu0
    %v5066 = vadd.f32 %v1482, %v5063
    %5067 = vmatprep.subr.mxu0 0.0
    %5068 = vmatpush1.msra.mxu0 0.0
    %5069 = vmatprep.subr.mxu0 0.0
    %5070 = vmatpush1.msra.mxu0 0.0
    %5071 = vmatprep.subr.mxu0 0.0
    %5072 = vmatpush1.msra.mxu0 0.0
    %5073 = vmatprep.subr.mxu0 0.0
    %5074 = vmatpush1.msra.mxu0 0.0
    %5075 = vmatprep.subr.mxu0 0.0
    %5076 = vmatpush1.msra.mxu0 0.0
    %5077 = vmatprep.subr.mxu0 0.0
    %5078 = vmatpush1.msra.mxu0 0.0
    %5079 = vmatprep.subr.mxu0 0.0
    %5080 = vmatpush1.msra.mxu0 0.0
    %5081 = vmatprep.subr.mxu0 0.0
    %5082 = vmatpush1.msra.mxu0 0.0
    %5083 = vmatprep.subr.mxu0 0.0
    %5084 = vmatpush1.msra.mxu0 0.0
    %5085 = vmatprep.subr.mxu0 0.0
    %5086 = vmatpush1.msra.mxu0 0.0
    %5087 = vmatprep.subr.mxu0 0.0
    %5088 = vmatpush1.msra.mxu0 0.0
    %5089 = vmatprep.subr.mxu0 0.0
    %5090 = vmatpush1.msra.mxu0 0.0
    %5091 = vmatprep.subr.mxu0 0.0
    %5092 = vmatpush1.msra.mxu0 0.0
    %5093 = vmatprep.subr.mxu0 0.0
    %5094 = vmatpush1.msra.mxu0 0.0
    %5095 = vmatprep.subr.mxu0 0.0
    %5096 = vmatpush1.msra.mxu0 %v783
    %5097 = vmatprep.subr.mxu0 0.0
    %5098 = vmatpush1.msra.mxu0 %v782
    %5099 = vmatprep.subr.mxu0 0.0
    %5100 = vmatpush2.msra.mxu0 0.0
    %5101 = vmatprep.subr.mxu0 0.0
    %5102 = vmatpush2.msra.mxu0 0.0
    %5103 = vmatprep.subr.mxu0 0.0
    %5104 = vmatpush2.msra.mxu0 0.0
    %5105 = vmatprep.subr.mxu0 0.0
    %5106 = vmatpush2.msra.mxu0 0.0
    %5107 = vmatprep.subr.mxu0 0.0
    %5108 = vmatpush2.msra.mxu0 0.0
    %5109 = vmatprep.subr.mxu0 0.0
    %5110 = vmatpush2.msra.mxu0 0.0
    %5111 = vmatprep.subr.mxu0 0.0
    %5112 = vmatpush2.msra.mxu0 0.0
    %5113 = vmatprep.subr.mxu0 0.0
    %5114 = vmatpush2.msra.mxu0 0.0
    %5115 = vmatprep.subr.mxu0 0.0
    %5116 = vmatpush2.msra.mxu0 0.0
    %5117 = vmatprep.subr.mxu0 0.0
    %5118 = vmatpush2.msra.mxu0 0.0
    %5119 = vmatprep.subr.mxu0 0.0
    %5120 = vmatpush2.msra.mxu0 0.0
    %5121 = vmatprep.subr.mxu0 0.0
    %5122 = vmatpush2.msra.mxu0 0.0
    %5123 = vmatprep.subr.mxu0 0.0
    %5124 = vmatpush2.msra.mxu0 0.0
    %5125 = vmatprep.subr.mxu0 0.0
    %5126 = vmatpush2.msra.mxu0 0.0
    %5127 = vmatprep.subr.mxu0 0.0
    %5128 = vmatpush2.msra.mxu0 0.0
    %5129 = vmatprep.subr.mxu0 0.0
    %5130 = vmatpush2.msra.mxu0 0.0
    %5131 = vmatprep.mubr.f32.mxu0 0.0
    %5132 = vmatmul.mubr.f32.gmra.mxu0 %v4781
    %v5133 = vpop.f32.mrf.mxu0
    %v5134 = vadd.f32 0.0, %v5133
    %v5135 = vpop.f32.mrf.mxu0
    %5136 = vdwg.mxu0
    %v5137 = vadd.f32 %v5066, %v5134
    %5138 = vmatprep.subr.mxu0 0.0
    %5139 = vmatpush1.msra.mxu0 0.0
    %5140 = vmatprep.subr.mxu0 0.0
    %5141 = vmatpush1.msra.mxu0 0.0
    %5142 = vmatprep.subr.mxu0 0.0
    %5143 = vmatpush1.msra.mxu0 0.0
    %5144 = vmatprep.subr.mxu0 0.0
    %5145 = vmatpush1.msra.mxu0 0.0
    %5146 = vmatprep.subr.mxu0 0.0
    %5147 = vmatpush1.msra.mxu0 0.0
    %5148 = vmatprep.subr.mxu0 0.0
    %5149 = vmatpush1.msra.mxu0 0.0
    %5150 = vmatprep.subr.mxu0 0.0
    %5151 = vmatpush1.msra.mxu0 0.0
    %5152 = vmatprep.subr.mxu0 0.0
    %5153 = vmatpush1.msra.mxu0 0.0
    %5154 = vmatprep.subr.mxu0 0.0
    %5155 = vmatpush1.msra.mxu0 0.0
    %5156 = vmatprep.subr.mxu0 0.0
    %5157 = vmatpush1.msra.mxu0 0.0
    %5158 = vmatprep.subr.mxu0 0.0
    %5159 = vmatpush1.msra.mxu0 0.0
    %5160 = vmatprep.subr.mxu0 0.0
    %5161 = vmatpush1.msra.mxu0 0.0
    %5162 = vmatprep.subr.mxu0 0.0
    %5163 = vmatpush1.msra.mxu0 0.0
    %5164 = vmatprep.subr.mxu0 0.0
    %5165 = vmatpush1.msra.mxu0 0.0
    %5166 = vmatprep.subr.mxu0 0.0
    %5167 = vmatpush1.msra.mxu0 %v775
    %5168 = vmatprep.subr.mxu0 0.0
    %5169 = vmatpush1.msra.mxu0 %v774
    %5170 = vmatprep.subr.mxu0 0.0
    %5171 = vmatpush2.msra.mxu0 0.0
    %5172 = vmatprep.subr.mxu0 0.0
    %5173 = vmatpush2.msra.mxu0 0.0
    %5174 = vmatprep.subr.mxu0 0.0
    %5175 = vmatpush2.msra.mxu0 0.0
    %5176 = vmatprep.subr.mxu0 0.0
    %5177 = vmatpush2.msra.mxu0 0.0
    %5178 = vmatprep.subr.mxu0 0.0
    %5179 = vmatpush2.msra.mxu0 0.0
    %5180 = vmatprep.subr.mxu0 0.0
    %5181 = vmatpush2.msra.mxu0 0.0
    %5182 = vmatprep.subr.mxu0 0.0
    %5183 = vmatpush2.msra.mxu0 0.0
    %5184 = vmatprep.subr.mxu0 0.0
    %5185 = vmatpush2.msra.mxu0 0.0
    %5186 = vmatprep.subr.mxu0 0.0
    %5187 = vmatpush2.msra.mxu0 0.0
    %5188 = vmatprep.subr.mxu0 0.0
    %5189 = vmatpush2.msra.mxu0 0.0
    %5190 = vmatprep.subr.mxu0 0.0
    %5191 = vmatpush2.msra.mxu0 0.0
    %5192 = vmatprep.subr.mxu0 0.0
    %5193 = vmatpush2.msra.mxu0 0.0
    %5194 = vmatprep.subr.mxu0 0.0
    %5195 = vmatpush2.msra.mxu0 0.0
    %5196 = vmatprep.subr.mxu0 0.0
    %5197 = vmatpush2.msra.mxu0 0.0
    %5198 = vmatprep.subr.mxu0 0.0
    %5199 = vmatpush2.msra.mxu0 0.0
    %5200 = vmatprep.subr.mxu0 0.0
    %5201 = vmatpush2.msra.mxu0 0.0
    %5202 = vmatprep.mubr.f32.mxu0 0.0
    %5203 = vmatmul.mubr.f32.gmra.mxu0 %v4707
    %v5204 = vpop.f32.mrf.mxu0
    %v5205 = vadd.f32 0.0, %v5204
    %v5206 = vpop.f32.mrf.mxu0
    %5207 = vdwg.mxu0
    %v5208 = vadd.f32 %v1630, %v5205
    %5209 = vmatprep.subr.mxu0 0.0
    %5210 = vmatpush1.msra.mxu0 0.0
    %5211 = vmatprep.subr.mxu0 0.0
    %5212 = vmatpush1.msra.mxu0 0.0
    %5213 = vmatprep.subr.mxu0 0.0
    %5214 = vmatpush1.msra.mxu0 0.0
    %5215 = vmatprep.subr.mxu0 0.0
    %5216 = vmatpush1.msra.mxu0 0.0
    %5217 = vmatprep.subr.mxu0 0.0
    %5218 = vmatpush1.msra.mxu0 0.0
    %5219 = vmatprep.subr.mxu0 0.0
    %5220 = vmatpush1.msra.mxu0 0.0
    %5221 = vmatprep.subr.mxu0 0.0
    %5222 = vmatpush1.msra.mxu0 0.0
    %5223 = vmatprep.subr.mxu0 0.0
    %5224 = vmatpush1.msra.mxu0 0.0
    %5225 = vmatprep.subr.mxu0 0.0
    %5226 = vmatpush1.msra.mxu0 0.0
    %5227 = vmatprep.subr.mxu0 0.0
    %5228 = vmatpush1.msra.mxu0 0.0
    %5229 = vmatprep.subr.mxu0 0.0
    %5230 = vmatpush1.msra.mxu0 0.0
    %5231 = vmatprep.subr.mxu0 0.0
    %5232 = vmatpush1.msra.mxu0 0.0
    %5233 = vmatprep.subr.mxu0 0.0
    %5234 = vmatpush1.msra.mxu0 0.0
    %5235 = vmatprep.subr.mxu0 0.0
    %5236 = vmatpush1.msra.mxu0 0.0
    %5237 = vmatprep.subr.mxu0 0.0
    %5238 = vmatpush1.msra.mxu0 %v786
    %5239 = vmatprep.subr.mxu0 0.0
    %5240 = vmatpush1.msra.mxu0 %v785
    %5241 = vmatprep.subr.mxu0 0.0
    %5242 = vmatpush2.msra.mxu0 0.0
    %5243 = vmatprep.subr.mxu0 0.0
    %5244 = vmatpush2.msra.mxu0 0.0
    %5245 = vmatprep.subr.mxu0 0.0
    %5246 = vmatpush2.msra.mxu0 0.0
    %5247 = vmatprep.subr.mxu0 0.0
    %5248 = vmatpush2.msra.mxu0 0.0
    %5249 = vmatprep.subr.mxu0 0.0
    %5250 = vmatpush2.msra.mxu0 0.0
    %5251 = vmatprep.subr.mxu0 0.0
    %5252 = vmatpush2.msra.mxu0 0.0
    %5253 = vmatprep.subr.mxu0 0.0
    %5254 = vmatpush2.msra.mxu0 0.0
    %5255 = vmatprep.subr.mxu0 0.0
    %5256 = vmatpush2.msra.mxu0 0.0
    %5257 = vmatprep.subr.mxu0 0.0
    %5258 = vmatpush2.msra.mxu0 0.0
    %5259 = vmatprep.subr.mxu0 0.0
    %5260 = vmatpush2.msra.mxu0 0.0
    %5261 = vmatprep.subr.mxu0 0.0
    %5262 = vmatpush2.msra.mxu0 0.0
    %5263 = vmatprep.subr.mxu0 0.0
    %5264 = vmatpush2.msra.mxu0 0.0
    %5265 = vmatprep.subr.mxu0 0.0
    %5266 = vmatpush2.msra.mxu0 0.0
    %5267 = vmatprep.subr.mxu0 0.0
    %5268 = vmatpush2.msra.mxu0 0.0
    %5269 = vmatprep.subr.mxu0 0.0
    %5270 = vmatpush2.msra.mxu0 0.0
    %5271 = vmatprep.subr.mxu0 0.0
    %5272 = vmatpush2.msra.mxu0 0.0
    %5273 = vmatprep.mubr.f32.mxu0 0.0
    %5274 = vmatmul.mubr.f32.gmra.mxu0 %v4781
    %v5275 = vpop.f32.mrf.mxu0
    %v5276 = vadd.f32 0.0, %v5275
    %v5277 = vpop.f32.mrf.mxu0
    %5278 = vdwg.mxu0
    %v5279 = vadd.f32 %v5208, %v5276
    %v5280 = vmul.f32 %v4995, 0.5
    %v5281 = vtanh.pop %v5280
    %v5282 = vmul.f32 %v5281, 0.5
    %v5283 = vadd.f32 %v5282, 0.5
    %v5284 = vmul.f32 %v5283, %v4397
    %v5285 = vmul.f32 %v4853, 0.5
    %v5286 = vtanh.pop %v5285
    %v5287 = vmul.f32 %v5286, 0.5
    %v5288 = vadd.f32 %v5287, 0.5
    %v5289 = vtanh.pop %v5137
    %v5290 = vmul.f32 %v5288, %v5289
    %v5291 = vadd.f32 %v5284, %v5290
    %v5292 = vmul.f32 %v5279, 0.5
    %v5293 = vtanh.pop %v5292
    %v5294 = vmul.f32 %v5293, 0.5
    %v5295 = vadd.f32 %v5294, 0.5
    %v5296 = vtanh.pop %v5291
    %v5297 = vmul.f32 %v5295, %v5296
    %5298 = vmatprep.subr.mxu0 0.0
    %5299 = vmatpush1.msra.mxu0 0.0
    %5300 = vmatprep.subr.mxu0 0.0
    %5301 = vmatpush1.msra.mxu0 0.0
    %5302 = vmatprep.subr.mxu0 0.0
    %5303 = vmatpush1.msra.mxu0 0.0
    %5304 = vmatprep.subr.mxu0 0.0
    %5305 = vmatpush1.msra.mxu0 0.0
    %5306 = vmatprep.subr.mxu0 0.0
    %5307 = vmatpush1.msra.mxu0 0.0
    %5308 = vmatprep.subr.mxu0 0.0
    %5309 = vmatpush1.msra.mxu0 0.0
    %5310 = vmatprep.subr.mxu0 0.0
    %5311 = vmatpush1.msra.mxu0 0.0
    %5312 = vmatprep.subr.mxu0 0.0
    %5313 = vmatpush1.msra.mxu0 0.0
    %5314 = vmatprep.subr.mxu0 0.0
    %5315 = vmatpush1.msra.mxu0 0.0
    %5316 = vmatprep.subr.mxu0 0.0
    %5317 = vmatpush1.msra.mxu0 0.0
    %5318 = vmatprep.subr.mxu0 0.0
    %5319 = vmatpush1.msra.mxu0 0.0
    %5320 = vmatprep.subr.mxu0 0.0
    %5321 = vmatpush1.msra.mxu0 0.0
    %5322 = vmatprep.subr.mxu0 0.0
    %5323 = vmatpush1.msra.mxu0 0.0
    %5324 = vmatprep.subr.mxu0 0.0
    %5325 = vmatpush1.msra.mxu0 0.0
    %5326 = vmatprep.subr.mxu0 0.0
    %5327 = vmatpush1.msra.mxu0 %v755
    %5328 = vmatprep.subr.mxu0 0.0
    %5329 = vmatpush1.msra.mxu0 %v754
    %5330 = vmatprep.subr.mxu0 0.0
    %5331 = vmatpush2.msra.mxu0 0.0
    %5332 = vmatprep.subr.mxu0 0.0
    %5333 = vmatpush2.msra.mxu0 0.0
    %5334 = vmatprep.subr.mxu0 0.0
    %5335 = vmatpush2.msra.mxu0 0.0
    %5336 = vmatprep.subr.mxu0 0.0
    %5337 = vmatpush2.msra.mxu0 0.0
    %5338 = vmatprep.subr.mxu0 0.0
    %5339 = vmatpush2.msra.mxu0 0.0
    %5340 = vmatprep.subr.mxu0 0.0
    %5341 = vmatpush2.msra.mxu0 0.0
    %5342 = vmatprep.subr.mxu0 0.0
    %5343 = vmatpush2.msra.mxu0 0.0
    %5344 = vmatprep.subr.mxu0 0.0
    %5345 = vmatpush2.msra.mxu0 0.0
    %5346 = vmatprep.subr.mxu0 0.0
    %5347 = vmatpush2.msra.mxu0 0.0
    %5348 = vmatprep.subr.mxu0 0.0
    %5349 = vmatpush2.msra.mxu0 0.0
    %5350 = vmatprep.subr.mxu0 0.0
    %5351 = vmatpush2.msra.mxu0 0.0
    %5352 = vmatprep.subr.mxu0 0.0
    %5353 = vmatpush2.msra.mxu0 0.0
    %5354 = vmatprep.subr.mxu0 0.0
    %5355 = vmatpush2.msra.mxu0 0.0
    %5356 = vmatprep.subr.mxu0 0.0
    %5357 = vmatpush2.msra.mxu0 0.0
    %5358 = vmatprep.subr.mxu0 0.0
    %5359 = vmatpush2.msra.mxu0 0.0
    %5360 = vmatprep.subr.mxu0 0.0
    %5361 = vmatpush2.msra.mxu0 0.0
    %5362 = vmatprep.mubr.f32.mxu0 0.0
    %5363 = vmatmul.mubr.f32.gmra.mxu0 %v4707
    %v5364 = vpop.f32.mrf.mxu0
    %v5365 = vadd.f32 0.0, %v5364
    %v5366 = vpop.f32.mrf.mxu0
    %5367 = vdwg.mxu0
    %v5368 = vadd.f32 %v319, %v5365
    %5369 = vmatprep.subr.mxu0 0.0
    %5370 = vmatpush1.msra.mxu0 0.0
    %5371 = vmatprep.subr.mxu0 0.0
    %5372 = vmatpush1.msra.mxu0 0.0
    %5373 = vmatprep.subr.mxu0 0.0
    %5374 = vmatpush1.msra.mxu0 0.0
    %5375 = vmatprep.subr.mxu0 0.0
    %5376 = vmatpush1.msra.mxu0 0.0
    %5377 = vmatprep.subr.mxu0 0.0
    %5378 = vmatpush1.msra.mxu0 0.0
    %5379 = vmatprep.subr.mxu0 0.0
    %5380 = vmatpush1.msra.mxu0 0.0
    %5381 = vmatprep.subr.mxu0 0.0
    %5382 = vmatpush1.msra.mxu0 0.0
    %5383 = vmatprep.subr.mxu0 0.0
    %5384 = vmatpush1.msra.mxu0 0.0
    %5385 = vmatprep.subr.mxu0 0.0
    %5386 = vmatpush1.msra.mxu0 0.0
    %5387 = vmatprep.subr.mxu0 0.0
    %5388 = vmatpush1.msra.mxu0 0.0
    %5389 = vmatprep.subr.mxu0 0.0
    %5390 = vmatpush1.msra.mxu0 0.0
    %5391 = vmatprep.subr.mxu0 0.0
    %5392 = vmatpush1.msra.mxu0 0.0
    %5393 = vmatprep.subr.mxu0 0.0
    %5394 = vmatpush1.msra.mxu0 0.0
    %5395 = vmatprep.subr.mxu0 0.0
    %5396 = vmatpush1.msra.mxu0 0.0
    %5397 = vmatprep.subr.mxu0 0.0
    %5398 = vmatpush1.msra.mxu0 %v758
    %5399 = vmatprep.subr.mxu0 0.0
    %5400 = vmatpush1.msra.mxu0 %v757
    %5401 = vmatprep.subr.mxu0 0.0
    %5402 = vmatpush2.msra.mxu0 0.0
    %5403 = vmatprep.subr.mxu0 0.0
    %5404 = vmatpush2.msra.mxu0 0.0
    %5405 = vmatprep.subr.mxu0 0.0
    %5406 = vmatpush2.msra.mxu0 0.0
    %5407 = vmatprep.subr.mxu0 0.0
    %5408 = vmatpush2.msra.mxu0 0.0
    %5409 = vmatprep.subr.mxu0 0.0
    %5410 = vmatpush2.msra.mxu0 0.0
    %5411 = vmatprep.subr.mxu0 0.0
    %5412 = vmatpush2.msra.mxu0 0.0
    %5413 = vmatprep.subr.mxu0 0.0
    %5414 = vmatpush2.msra.mxu0 0.0
    %5415 = vmatprep.subr.mxu0 0.0
    %5416 = vmatpush2.msra.mxu0 0.0
    %5417 = vmatprep.subr.mxu0 0.0
    %5418 = vmatpush2.msra.mxu0 0.0
    %5419 = vmatprep.subr.mxu0 0.0
    %5420 = vmatpush2.msra.mxu0 0.0
    %5421 = vmatprep.subr.mxu0 0.0
    %5422 = vmatpush2.msra.mxu0 0.0
    %5423 = vmatprep.subr.mxu0 0.0
    %5424 = vmatpush2.msra.mxu0 0.0
    %5425 = vmatprep.subr.mxu0 0.0
    %5426 = vmatpush2.msra.mxu0 0.0
    %5427 = vmatprep.subr.mxu0 0.0
    %5428 = vmatpush2.msra.mxu0 0.0
    %5429 = vmatprep.subr.mxu0 0.0
    %5430 = vmatpush2.msra.mxu0 0.0
    %5431 = vmatprep.subr.mxu0 0.0
    %5432 = vmatpush2.msra.mxu0 0.0
    %5433 = vmatprep.mubr.f32.mxu0 0.0
    %5434 = vmatmul.mubr.f32.gmra.mxu0 %v4707
    %v5435 = vpop.f32.mrf.mxu0
    %v5436 = vadd.f32 0.0, %v5435
    %v5437 = vpop.f32.mrf.mxu0
    %5438 = vdwg.mxu0
    %v5439 = vadd.f32 %v463, %v5436
    %5440 = vmatprep.subr.mxu0 0.0
    %5441 = vmatpush1.msra.mxu0 0.0
    %5442 = vmatprep.subr.mxu0 0.0
    %5443 = vmatpush1.msra.mxu0 0.0
    %5444 = vmatprep.subr.mxu0 0.0
    %5445 = vmatpush1.msra.mxu0 0.0
    %5446 = vmatprep.subr.mxu0 0.0
    %5447 = vmatpush1.msra.mxu0 0.0
    %5448 = vmatprep.subr.mxu0 0.0
    %5449 = vmatpush1.msra.mxu0 0.0
    %5450 = vmatprep.subr.mxu0 0.0
    %5451 = vmatpush1.msra.mxu0 0.0
    %5452 = vmatprep.subr.mxu0 0.0
    %5453 = vmatpush1.msra.mxu0 0.0
    %5454 = vmatprep.subr.mxu0 0.0
    %5455 = vmatpush1.msra.mxu0 0.0
    %5456 = vmatprep.subr.mxu0 0.0
    %5457 = vmatpush1.msra.mxu0 0.0
    %5458 = vmatprep.subr.mxu0 0.0
    %5459 = vmatpush1.msra.mxu0 0.0
    %5460 = vmatprep.subr.mxu0 0.0
    %5461 = vmatpush1.msra.mxu0 0.0
    %5462 = vmatprep.subr.mxu0 0.0
    %5463 = vmatpush1.msra.mxu0 0.0
    %5464 = vmatprep.subr.mxu0 0.0
    %5465 = vmatpush1.msra.mxu0 0.0
    %5466 = vmatprep.subr.mxu0 0.0
    %5467 = vmatpush1.msra.mxu0 0.0
    %5468 = vmatprep.subr.mxu0 0.0
    %5469 = vmatpush1.msra.mxu0 %v761
    %5470 = vmatprep.subr.mxu0 0.0
    %5471 = vmatpush1.msra.mxu0 %v760
    %5472 = vmatprep.subr.mxu0 0.0
    %5473 = vmatpush2.msra.mxu0 0.0
    %5474 = vmatprep.subr.mxu0 0.0
    %5475 = vmatpush2.msra.mxu0 0.0
    %5476 = vmatprep.subr.mxu0 0.0
    %5477 = vmatpush2.msra.mxu0 0.0
    %5478 = vmatprep.subr.mxu0 0.0
    %5479 = vmatpush2.msra.mxu0 0.0
    %5480 = vmatprep.subr.mxu0 0.0
    %5481 = vmatpush2.msra.mxu0 0.0
    %5482 = vmatprep.subr.mxu0 0.0
    %5483 = vmatpush2.msra.mxu0 0.0
    %5484 = vmatprep.subr.mxu0 0.0
    %5485 = vmatpush2.msra.mxu0 0.0
    %5486 = vmatprep.subr.mxu0 0.0
    %5487 = vmatpush2.msra.mxu0 0.0
    %5488 = vmatprep.subr.mxu0 0.0
    %5489 = vmatpush2.msra.mxu0 0.0
    %5490 = vmatprep.subr.mxu0 0.0
    %5491 = vmatpush2.msra.mxu0 0.0
    %5492 = vmatprep.subr.mxu0 0.0
    %5493 = vmatpush2.msra.mxu0 0.0
    %5494 = vmatprep.subr.mxu0 0.0
    %5495 = vmatpush2.msra.mxu0 0.0
    %5496 = vmatprep.subr.mxu0 0.0
    %5497 = vmatpush2.msra.mxu0 0.0
    %5498 = vmatprep.subr.mxu0 0.0
    %5499 = vmatpush2.msra.mxu0 0.0
    %5500 = vmatprep.subr.mxu0 0.0
    %5501 = vmatpush2.msra.mxu0 0.0
    %5502 = vmatprep.subr.mxu0 0.0
    %5503 = vmatpush2.msra.mxu0 0.0
    %5504 = vmatprep.mubr.f32.mxu0 0.0
    %5505 = vmatmul.mubr.f32.gmra.mxu0 %v4707
    %v5506 = vpop.f32.mrf.mxu0
    %v5507 = vadd.f32 0.0, %v5506
    %v5508 = vpop.f32.mrf.mxu0
    %5509 = vdwg.mxu0
    %v5510 = vadd.f32 %v607, %v5507
    %5511 = vmatprep.subr.mxu0 0.0
    %5512 = vmatpush1.msra.mxu0 0.0
    %5513 = vmatprep.subr.mxu0 0.0
    %5514 = vmatpush1.msra.mxu0 0.0
    %5515 = vmatprep.subr.mxu0 0.0
    %5516 = vmatpush1.msra.mxu0 0.0
    %5517 = vmatprep.subr.mxu0 0.0
    %5518 = vmatpush1.msra.mxu0 0.0
    %5519 = vmatprep.subr.mxu0 0.0
    %5520 = vmatpush1.msra.mxu0 0.0
    %5521 = vmatprep.subr.mxu0 0.0
    %5522 = vmatpush1.msra.mxu0 0.0
    %5523 = vmatprep.subr.mxu0 0.0
    %5524 = vmatpush1.msra.mxu0 0.0
    %5525 = vmatprep.subr.mxu0 0.0
    %5526 = vmatpush1.msra.mxu0 0.0
    %5527 = vmatprep.subr.mxu0 0.0
    %5528 = vmatpush1.msra.mxu0 0.0
    %5529 = vmatprep.subr.mxu0 0.0
    %5530 = vmatpush1.msra.mxu0 0.0
    %5531 = vmatprep.subr.mxu0 0.0
    %5532 = vmatpush1.msra.mxu0 0.0
    %5533 = vmatprep.subr.mxu0 0.0
    %5534 = vmatpush1.msra.mxu0 0.0
    %5535 = vmatprep.subr.mxu0 0.0
    %5536 = vmatpush1.msra.mxu0 0.0
    %5537 = vmatprep.subr.mxu0 0.0
    %5538 = vmatpush1.msra.mxu0 0.0
    %5539 = vmatprep.subr.mxu0 0.0
    %5540 = vmatpush1.msra.mxu0 %v764
    %5541 = vmatprep.subr.mxu0 0.0
    %5542 = vmatpush1.msra.mxu0 %v763
    %5543 = vmatprep.subr.mxu0 0.0
    %5544 = vmatpush2.msra.mxu0 0.0
    %5545 = vmatprep.subr.mxu0 0.0
    %5546 = vmatpush2.msra.mxu0 0.0
    %5547 = vmatprep.subr.mxu0 0.0
    %5548 = vmatpush2.msra.mxu0 0.0
    %5549 = vmatprep.subr.mxu0 0.0
    %5550 = vmatpush2.msra.mxu0 0.0
    %5551 = vmatprep.subr.mxu0 0.0
    %5552 = vmatpush2.msra.mxu0 0.0
    %5553 = vmatprep.subr.mxu0 0.0
    %5554 = vmatpush2.msra.mxu0 0.0
    %5555 = vmatprep.subr.mxu0 0.0
    %5556 = vmatpush2.msra.mxu0 0.0
    %5557 = vmatprep.subr.mxu0 0.0
    %5558 = vmatpush2.msra.mxu0 0.0
    %5559 = vmatprep.subr.mxu0 0.0
    %5560 = vmatpush2.msra.mxu0 0.0
    %5561 = vmatprep.subr.mxu0 0.0
    %5562 = vmatpush2.msra.mxu0 0.0
    %5563 = vmatprep.subr.mxu0 0.0
    %5564 = vmatpush2.msra.mxu0 0.0
    %5565 = vmatprep.subr.mxu0 0.0
    %5566 = vmatpush2.msra.mxu0 0.0
    %5567 = vmatprep.subr.mxu0 0.0
    %5568 = vmatpush2.msra.mxu0 0.0
    %5569 = vmatprep.subr.mxu0 0.0
    %5570 = vmatpush2.msra.mxu0 0.0
    %5571 = vmatprep.subr.mxu0 0.0
    %5572 = vmatpush2.msra.mxu0 0.0
    %5573 = vmatprep.subr.mxu0 0.0
    %5574 = vmatpush2.msra.mxu0 0.0
    %5575 = vmatprep.mubr.f32.mxu0 0.0
    %5576 = vmatmul.mubr.f32.gmra.mxu0 %v4707
    %v5577 = vpop.f32.mrf.mxu0
    %v5578 = vadd.f32 0.0, %v5577
    %v5579 = vpop.f32.mrf.mxu0
    %5580 = vdwg.mxu0
    %v5581 = vadd.f32 %v751, %v5578
    %v5582 = vmul.f32 %v5439, 0.5
    %v5583 = vtanh.pop %v5582
    %v5584 = vmul.f32 %v5583, 0.5
    %v5585 = vadd.f32 %v5584, 0.5
    %v5586 = vmul.f32 %v5585, %v4699
    %v5587 = vmul.f32 %v5368, 0.5
    %v5588 = vtanh.pop %v5587
    %v5589 = vmul.f32 %v5588, 0.5
    %v5590 = vadd.f32 %v5589, 0.5
    %v5591 = vtanh.pop %v5510
    %v5592 = vmul.f32 %v5590, %v5591
    %v5593 = vadd.f32 %v5586, %v5592
    %v5594 = vmul.f32 %v5581, 0.5
    %v5595 = vtanh.pop %v5594
    %v5596 = vmul.f32 %v5595, 0.5
    %v5597 = vadd.f32 %v5596, 0.5
    %v5598 = vtanh.pop %v5593
    %v5599 = vmul.f32 %v5597, %v5598
    %v5601 = vsel %vm800, %v5599, 0
    %5603 = vmatprep.subr.mxu0 0.0
    %5604 = vmatpush1.msra.mxu0 0.0
    %5605 = vmatprep.subr.mxu0 0.0
    %5606 = vmatpush1.msra.mxu0 0.0
    %5607 = vmatprep.subr.mxu0 0.0
    %5608 = vmatpush1.msra.mxu0 0.0
    %5609 = vmatprep.subr.mxu0 0.0
    %5610 = vmatpush1.msra.mxu0 0.0
    %5611 = vmatprep.subr.mxu0 0.0
    %5612 = vmatpush1.msra.mxu0 0.0
    %5613 = vmatprep.subr.mxu0 0.0
    %5614 = vmatpush1.msra.mxu0 0.0
    %5615 = vmatprep.subr.mxu0 0.0
    %5616 = vmatpush1.msra.mxu0 0.0
    %5617 = vmatprep.subr.mxu0 0.0
    %5618 = vmatpush1.msra.mxu0 0.0
    %5619 = vmatprep.subr.mxu0 0.0
    %5620 = vmatpush1.msra.mxu0 0.0
    %5621 = vmatprep.subr.mxu0 0.0
    %5622 = vmatpush1.msra.mxu0 0.0
    %5623 = vmatprep.subr.mxu0 0.0
    %5624 = vmatpush1.msra.mxu0 0.0
    %5625 = vmatprep.subr.mxu0 0.0
    %5626 = vmatpush1.msra.mxu0 0.0
    %5627 = vmatprep.subr.mxu0 0.0
    %5628 = vmatpush1.msra.mxu0 0.0
    %5629 = vmatprep.subr.mxu0 0.0
    %5630 = vmatpush1.msra.mxu0 0.0
    %5631 = vmatprep.subr.mxu0 0.0
    %5632 = vmatpush1.msra.mxu0 %v766
    %5633 = vmatprep.subr.mxu0 0.0
    %5634 = vmatpush1.msra.mxu0 %v765
    %5635 = vmatprep.subr.mxu0 0.0
    %5636 = vmatpush2.msra.mxu0 0.0
    %5637 = vmatprep.subr.mxu0 0.0
    %5638 = vmatpush2.msra.mxu0 0.0
    %5639 = vmatprep.subr.mxu0 0.0
    %5640 = vmatpush2.msra.mxu0 0.0
    %5641 = vmatprep.subr.mxu0 0.0
    %5642 = vmatpush2.msra.mxu0 0.0
    %5643 = vmatprep.subr.mxu0 0.0
    %5644 = vmatpush2.msra.mxu0 0.0
    %5645 = vmatprep.subr.mxu0 0.0
    %5646 = vmatpush2.msra.mxu0 0.0
    %5647 = vmatprep.subr.mxu0 0.0
    %5648 = vmatpush2.msra.mxu0 0.0
    %5649 = vmatprep.subr.mxu0 0.0
    %5650 = vmatpush2.msra.mxu0 0.0
    %5651 = vmatprep.subr.mxu0 0.0
    %5652 = vmatpush2.msra.mxu0 0.0
    %5653 = vmatprep.subr.mxu0 0.0
    %5654 = vmatpush2.msra.mxu0 0.0
    %5655 = vmatprep.subr.mxu0 0.0
    %5656 = vmatpush2.msra.mxu0 0.0
    %5657 = vmatprep.subr.mxu0 0.0
    %5658 = vmatpush2.msra.mxu0 0.0
    %5659 = vmatprep.subr.mxu0 0.0
    %5660 = vmatpush2.msra.mxu0 0.0
    %5661 = vmatprep.subr.mxu0 0.0
    %5662 = vmatpush2.msra.mxu0 0.0
    %5663 = vmatprep.subr.mxu0 0.0
    %5664 = vmatpush2.msra.mxu0 0.0
    %5665 = vmatprep.subr.mxu0 0.0
    %5666 = vmatpush2.msra.mxu0 0.0
    %5667 = vmatprep.mubr.f32.mxu0 0.0
    %5668 = vmatmul.mubr.f32.gmra.mxu0 %v5601
    %v5669 = vpop.f32.mrf.mxu0
    %v5670 = vadd.f32 0.0, %v5669
    %v5671 = vpop.f32.mrf.mxu0
    %5672 = vdwg.mxu0
    %v5673 = vadd.f32 %v1183, %v5670
    %v5675 = vsel %vm800, %v5297, 0
    %5677 = vmatprep.subr.mxu0 0.0
    %5678 = vmatpush1.msra.mxu0 0.0
    %5679 = vmatprep.subr.mxu0 0.0
    %5680 = vmatpush1.msra.mxu0 0.0
    %5681 = vmatprep.subr.mxu0 0.0
    %5682 = vmatpush1.msra.mxu0 0.0
    %5683 = vmatprep.subr.mxu0 0.0
    %5684 = vmatpush1.msra.mxu0 0.0
    %5685 = vmatprep.subr.mxu0 0.0
    %5686 = vmatpush1.msra.mxu0 0.0
    %5687 = vmatprep.subr.mxu0 0.0
    %5688 = vmatpush1.msra.mxu0 0.0
    %5689 = vmatprep.subr.mxu0 0.0
    %5690 = vmatpush1.msra.mxu0 0.0
    %5691 = vmatprep.subr.mxu0 0.0
    %5692 = vmatpush1.msra.mxu0 0.0
    %5693 = vmatprep.subr.mxu0 0.0
    %5694 = vmatpush1.msra.mxu0 0.0
    %5695 = vmatprep.subr.mxu0 0.0
    %5696 = vmatpush1.msra.mxu0 0.0
    %5697 = vmatprep.subr.mxu0 0.0
    %5698 = vmatpush1.msra.mxu0 0.0
    %5699 = vmatprep.subr.mxu0 0.0
    %5700 = vmatpush1.msra.mxu0 0.0
    %5701 = vmatprep.subr.mxu0 0.0
    %5702 = vmatpush1.msra.mxu0 0.0
    %5703 = vmatprep.subr.mxu0 0.0
    %5704 = vmatpush1.msra.mxu0 0.0
    %5705 = vmatprep.subr.mxu0 0.0
    %5706 = vmatpush1.msra.mxu0 %v777
    %5707 = vmatprep.subr.mxu0 0.0
    %5708 = vmatpush1.msra.mxu0 %v776
    %5709 = vmatprep.subr.mxu0 0.0
    %5710 = vmatpush2.msra.mxu0 0.0
    %5711 = vmatprep.subr.mxu0 0.0
    %5712 = vmatpush2.msra.mxu0 0.0
    %5713 = vmatprep.subr.mxu0 0.0
    %5714 = vmatpush2.msra.mxu0 0.0
    %5715 = vmatprep.subr.mxu0 0.0
    %5716 = vmatpush2.msra.mxu0 0.0
    %5717 = vmatprep.subr.mxu0 0.0
    %5718 = vmatpush2.msra.mxu0 0.0
    %5719 = vmatprep.subr.mxu0 0.0
    %5720 = vmatpush2.msra.mxu0 0.0
    %5721 = vmatprep.subr.mxu0 0.0
    %5722 = vmatpush2.msra.mxu0 0.0
    %5723 = vmatprep.subr.mxu0 0.0
    %5724 = vmatpush2.msra.mxu0 0.0
    %5725 = vmatprep.subr.mxu0 0.0
    %5726 = vmatpush2.msra.mxu0 0.0
    %5727 = vmatprep.subr.mxu0 0.0
    %5728 = vmatpush2.msra.mxu0 0.0
    %5729 = vmatprep.subr.mxu0 0.0
    %5730 = vmatpush2.msra.mxu0 0.0
    %5731 = vmatprep.subr.mxu0 0.0
    %5732 = vmatpush2.msra.mxu0 0.0
    %5733 = vmatprep.subr.mxu0 0.0
    %5734 = vmatpush2.msra.mxu0 0.0
    %5735 = vmatprep.subr.mxu0 0.0
    %5736 = vmatpush2.msra.mxu0 0.0
    %5737 = vmatprep.subr.mxu0 0.0
    %5738 = vmatpush2.msra.mxu0 0.0
    %5739 = vmatprep.subr.mxu0 0.0
    %5740 = vmatpush2.msra.mxu0 0.0
    %5741 = vmatprep.mubr.f32.mxu0 0.0
    %5742 = vmatmul.mubr.f32.gmra.mxu0 %v5675
    %v5743 = vpop.f32.mrf.mxu0
    %v5744 = vadd.f32 0.0, %v5743
    %v5745 = vpop.f32.mrf.mxu0
    %5746 = vdwg.mxu0
    %v5747 = vadd.f32 %v5673, %v5744
    %5748 = vmatprep.subr.mxu0 0.0
    %5749 = vmatpush1.msra.mxu0 0.0
    %5750 = vmatprep.subr.mxu0 0.0
    %5751 = vmatpush1.msra.mxu0 0.0
    %5752 = vmatprep.subr.mxu0 0.0
    %5753 = vmatpush1.msra.mxu0 0.0
    %5754 = vmatprep.subr.mxu0 0.0
    %5755 = vmatpush1.msra.mxu0 0.0
    %5756 = vmatprep.subr.mxu0 0.0
    %5757 = vmatpush1.msra.mxu0 0.0
    %5758 = vmatprep.subr.mxu0 0.0
    %5759 = vmatpush1.msra.mxu0 0.0
    %5760 = vmatprep.subr.mxu0 0.0
    %5761 = vmatpush1.msra.mxu0 0.0
    %5762 = vmatprep.subr.mxu0 0.0
    %5763 = vmatpush1.msra.mxu0 0.0
    %5764 = vmatprep.subr.mxu0 0.0
    %5765 = vmatpush1.msra.mxu0 0.0
    %5766 = vmatprep.subr.mxu0 0.0
    %5767 = vmatpush1.msra.mxu0 0.0
    %5768 = vmatprep.subr.mxu0 0.0
    %5769 = vmatpush1.msra.mxu0 0.0
    %5770 = vmatprep.subr.mxu0 0.0
    %5771 = vmatpush1.msra.mxu0 0.0
    %5772 = vmatprep.subr.mxu0 0.0
    %5773 = vmatpush1.msra.mxu0 0.0
    %5774 = vmatprep.subr.mxu0 0.0
    %5775 = vmatpush1.msra.mxu0 0.0
    %5776 = vmatprep.subr.mxu0 0.0
    %5777 = vmatpush1.msra.mxu0 %v769
    %5778 = vmatprep.subr.mxu0 0.0
    %5779 = vmatpush1.msra.mxu0 %v768
    %5780 = vmatprep.subr.mxu0 0.0
    %5781 = vmatpush2.msra.mxu0 0.0
    %5782 = vmatprep.subr.mxu0 0.0
    %5783 = vmatpush2.msra.mxu0 0.0
    %5784 = vmatprep.subr.mxu0 0.0
    %5785 = vmatpush2.msra.mxu0 0.0
    %5786 = vmatprep.subr.mxu0 0.0
    %5787 = vmatpush2.msra.mxu0 0.0
    %5788 = vmatprep.subr.mxu0 0.0
    %5789 = vmatpush2.msra.mxu0 0.0
    %5790 = vmatprep.subr.mxu0 0.0
    %5791 = vmatpush2.msra.mxu0 0.0
    %5792 = vmatprep.subr.mxu0 0.0
    %5793 = vmatpush2.msra.mxu0 0.0
    %5794 = vmatprep.subr.mxu0 0.0
    %5795 = vmatpush2.msra.mxu0 0.0
    %5796 = vmatprep.subr.mxu0 0.0
    %5797 = vmatpush2.msra.mxu0 0.0
    %5798 = vmatprep.subr.mxu0 0.0
    %5799 = vmatpush2.msra.mxu0 0.0
    %5800 = vmatprep.subr.mxu0 0.0
    %5801 = vmatpush2.msra.mxu0 0.0
    %5802 = vmatprep.subr.mxu0 0.0
    %5803 = vmatpush2.msra.mxu0 0.0
    %5804 = vmatprep.subr.mxu0 0.0
    %5805 = vmatpush2.msra.mxu0 0.0
    %5806 = vmatprep.subr.mxu0 0.0
    %5807 = vmatpush2.msra.mxu0 0.0
    %5808 = vmatprep.subr.mxu0 0.0
    %5809 = vmatpush2.msra.mxu0 0.0
    %5810 = vmatprep.subr.mxu0 0.0
    %5811 = vmatpush2.msra.mxu0 0.0
    %5812 = vmatprep.mubr.f32.mxu0 0.0
    %5813 = vmatmul.mubr.f32.gmra.mxu0 %v5601
    %v5814 = vpop.f32.mrf.mxu0
    %v5815 = vadd.f32 0.0, %v5814
    %v5816 = vpop.f32.mrf.mxu0
    %5817 = vdwg.mxu0
    %v5818 = vadd.f32 %v1334, %v5815
    %5819 = vmatprep.subr.mxu0 0.0
    %5820 = vmatpush1.msra.mxu0 0.0
    %5821 = vmatprep.subr.mxu0 0.0
    %5822 = vmatpush1.msra.mxu0 0.0
    %5823 = vmatprep.subr.mxu0 0.0
    %5824 = vmatpush1.msra.mxu0 0.0
    %5825 = vmatprep.subr.mxu0 0.0
    %5826 = vmatpush1.msra.mxu0 0.0
    %5827 = vmatprep.subr.mxu0 0.0
    %5828 = vmatpush1.msra.mxu0 0.0
    %5829 = vmatprep.subr.mxu0 0.0
    %5830 = vmatpush1.msra.mxu0 0.0
    %5831 = vmatprep.subr.mxu0 0.0
    %5832 = vmatpush1.msra.mxu0 0.0
    %5833 = vmatprep.subr.mxu0 0.0
    %5834 = vmatpush1.msra.mxu0 0.0
    %5835 = vmatprep.subr.mxu0 0.0
    %5836 = vmatpush1.msra.mxu0 0.0
    %5837 = vmatprep.subr.mxu0 0.0
    %5838 = vmatpush1.msra.mxu0 0.0
    %5839 = vmatprep.subr.mxu0 0.0
    %5840 = vmatpush1.msra.mxu0 0.0
    %5841 = vmatprep.subr.mxu0 0.0
    %5842 = vmatpush1.msra.mxu0 0.0
    %5843 = vmatprep.subr.mxu0 0.0
    %5844 = vmatpush1.msra.mxu0 0.0
    %5845 = vmatprep.subr.mxu0 0.0
    %5846 = vmatpush1.msra.mxu0 0.0
    %5847 = vmatprep.subr.mxu0 0.0
    %5848 = vmatpush1.msra.mxu0 %v780
    %5849 = vmatprep.subr.mxu0 0.0
    %5850 = vmatpush1.msra.mxu0 %v779
    %5851 = vmatprep.subr.mxu0 0.0
    %5852 = vmatpush2.msra.mxu0 0.0
    %5853 = vmatprep.subr.mxu0 0.0
    %5854 = vmatpush2.msra.mxu0 0.0
    %5855 = vmatprep.subr.mxu0 0.0
    %5856 = vmatpush2.msra.mxu0 0.0
    %5857 = vmatprep.subr.mxu0 0.0
    %5858 = vmatpush2.msra.mxu0 0.0
    %5859 = vmatprep.subr.mxu0 0.0
    %5860 = vmatpush2.msra.mxu0 0.0
    %5861 = vmatprep.subr.mxu0 0.0
    %5862 = vmatpush2.msra.mxu0 0.0
    %5863 = vmatprep.subr.mxu0 0.0
    %5864 = vmatpush2.msra.mxu0 0.0
    %5865 = vmatprep.subr.mxu0 0.0
    %5866 = vmatpush2.msra.mxu0 0.0
    %5867 = vmatprep.subr.mxu0 0.0
    %5868 = vmatpush2.msra.mxu0 0.0
    %5869 = vmatprep.subr.mxu0 0.0
    %5870 = vmatpush2.msra.mxu0 0.0
    %5871 = vmatprep.subr.mxu0 0.0
    %5872 = vmatpush2.msra.mxu0 0.0
    %5873 = vmatprep.subr.mxu0 0.0
    %5874 = vmatpush2.msra.mxu0 0.0
    %5875 = vmatprep.subr.mxu0 0.0
    %5876 = vmatpush2.msra.mxu0 0.0
    %5877 = vmatprep.subr.mxu0 0.0
    %5878 = vmatpush2.msra.mxu0 0.0
    %5879 = vmatprep.subr.mxu0 0.0
    %5880 = vmatpush2.msra.mxu0 0.0
    %5881 = vmatprep.subr.mxu0 0.0
    %5882 = vmatpush2.msra.mxu0 0.0
    %5883 = vmatprep.mubr.f32.mxu0 0.0
    %5884 = vmatmul.mubr.f32.gmra.mxu0 %v5675
    %v5885 = vpop.f32.mrf.mxu0
    %v5886 = vadd.f32 0.0, %v5885
    %v5887 = vpop.f32.mrf.mxu0
    %5888 = vdwg.mxu0
    %v5889 = vadd.f32 %v5818, %v5886
    %5890 = vmatprep.subr.mxu0 0.0
    %5891 = vmatpush1.msra.mxu0 0.0
    %5892 = vmatprep.subr.mxu0 0.0
    %5893 = vmatpush1.msra.mxu0 0.0
    %5894 = vmatprep.subr.mxu0 0.0
    %5895 = vmatpush1.msra.mxu0 0.0
    %5896 = vmatprep.subr.mxu0 0.0
    %5897 = vmatpush1.msra.mxu0 0.0
    %5898 = vmatprep.subr.mxu0 0.0
    %5899 = vmatpush1.msra.mxu0 0.0
    %5900 = vmatprep.subr.mxu0 0.0
    %5901 = vmatpush1.msra.mxu0 0.0
    %5902 = vmatprep.subr.mxu0 0.0
    %5903 = vmatpush1.msra.mxu0 0.0
    %5904 = vmatprep.subr.mxu0 0.0
    %5905 = vmatpush1.msra.mxu0 0.0
    %5906 = vmatprep.subr.mxu0 0.0
    %5907 = vmatpush1.msra.mxu0 0.0
    %5908 = vmatprep.subr.mxu0 0.0
    %5909 = vmatpush1.msra.mxu0 0.0
    %5910 = vmatprep.subr.mxu0 0.0
    %5911 = vmatpush1.msra.mxu0 0.0
    %5912 = vmatprep.subr.mxu0 0.0
    %5913 = vmatpush1.msra.mxu0 0.0
    %5914 = vmatprep.subr.mxu0 0.0
    %5915 = vmatpush1.msra.mxu0 0.0
    %5916 = vmatprep.subr.mxu0 0.0
    %5917 = vmatpush1.msra.mxu0 0.0
    %5918 = vmatprep.subr.mxu0 0.0
    %5919 = vmatpush1.msra.mxu0 %v772
    %5920 = vmatprep.subr.mxu0 0.0
    %5921 = vmatpush1.msra.mxu0 %v771
    %5922 = vmatprep.subr.mxu0 0.0
    %5923 = vmatpush2.msra.mxu0 0.0
    %5924 = vmatprep.subr.mxu0 0.0
    %5925 = vmatpush2.msra.mxu0 0.0
    %5926 = vmatprep.subr.mxu0 0.0
    %5927 = vmatpush2.msra.mxu0 0.0
    %5928 = vmatprep.subr.mxu0 0.0
    %5929 = vmatpush2.msra.mxu0 0.0
    %5930 = vmatprep.subr.mxu0 0.0
    %5931 = vmatpush2.msra.mxu0 0.0
    %5932 = vmatprep.subr.mxu0 0.0
    %5933 = vmatpush2.msra.mxu0 0.0
    %5934 = vmatprep.subr.mxu0 0.0
    %5935 = vmatpush2.msra.mxu0 0.0
    %5936 = vmatprep.subr.mxu0 0.0
    %5937 = vmatpush2.msra.mxu0 0.0
    %5938 = vmatprep.subr.mxu0 0.0
    %5939 = vmatpush2.msra.mxu0 0.0
    %5940 = vmatprep.subr.mxu0 0.0
    %5941 = vmatpush2.msra.mxu0 0.0
    %5942 = vmatprep.subr.mxu0 0.0
    %5943 = vmatpush2.msra.mxu0 0.0
    %5944 = vmatprep.subr.mxu0 0.0
    %5945 = vmatpush2.msra.mxu0 0.0
    %5946 = vmatprep.subr.mxu0 0.0
    %5947 = vmatpush2.msra.mxu0 0.0
    %5948 = vmatprep.subr.mxu0 0.0
    %5949 = vmatpush2.msra.mxu0 0.0
    %5950 = vmatprep.subr.mxu0 0.0
    %5951 = vmatpush2.msra.mxu0 0.0
    %5952 = vmatprep.subr.mxu0 0.0
    %5953 = vmatpush2.msra.mxu0 0.0
    %5954 = vmatprep.mubr.f32.mxu0 0.0
    %5955 = vmatmul.mubr.f32.gmra.mxu0 %v5601
    %v5956 = vpop.f32.mrf.mxu0
    %v5957 = vadd.f32 0.0, %v5956
    %v5958 = vpop.f32.mrf.mxu0
    %5959 = vdwg.mxu0
    %v5960 = vadd.f32 %v1482, %v5957
    %5961 = vmatprep.subr.mxu0 0.0
    %5962 = vmatpush1.msra.mxu0 0.0
    %5963 = vmatprep.subr.mxu0 0.0
    %5964 = vmatpush1.msra.mxu0 0.0
    %5965 = vmatprep.subr.mxu0 0.0
    %5966 = vmatpush1.msra.mxu0 0.0
    %5967 = vmatprep.subr.mxu0 0.0
    %5968 = vmatpush1.msra.mxu0 0.0
    %5969 = vmatprep.subr.mxu0 0.0
    %5970 = vmatpush1.msra.mxu0 0.0
    %5971 = vmatprep.subr.mxu0 0.0
    %5972 = vmatpush1.msra.mxu0 0.0
    %5973 = vmatprep.subr.mxu0 0.0
    %5974 = vmatpush1.msra.mxu0 0.0
    %5975 = vmatprep.subr.mxu0 0.0
    %5976 = vmatpush1.msra.mxu0 0.0
    %5977 = vmatprep.subr.mxu0 0.0
    %5978 = vmatpush1.msra.mxu0 0.0
    %5979 = vmatprep.subr.mxu0 0.0
    %5980 = vmatpush1.msra.mxu0 0.0
    %5981 = vmatprep.subr.mxu0 0.0
    %5982 = vmatpush1.msra.mxu0 0.0
    %5983 = vmatprep.subr.mxu0 0.0
    %5984 = vmatpush1.msra.mxu0 0.0
    %5985 = vmatprep.subr.mxu0 0.0
    %5986 = vmatpush1.msra.mxu0 0.0
    %5987 = vmatprep.subr.mxu0 0.0
    %5988 = vmatpush1.msra.mxu0 0.0
    %5989 = vmatprep.subr.mxu0 0.0
    %5990 = vmatpush1.msra.mxu0 %v783
    %5991 = vmatprep.subr.mxu0 0.0
    %5992 = vmatpush1.msra.mxu0 %v782
    %5993 = vmatprep.subr.mxu0 0.0
    %5994 = vmatpush2.msra.mxu0 0.0
    %5995 = vmatprep.subr.mxu0 0.0
    %5996 = vmatpush2.msra.mxu0 0.0
    %5997 = vmatprep.subr.mxu0 0.0
    %5998 = vmatpush2.msra.mxu0 0.0
    %5999 = vmatprep.subr.mxu0 0.0
    %6000 = vmatpush2.msra.mxu0 0.0
    %6001 = vmatprep.subr.mxu0 0.0
    %6002 = vmatpush2.msra.mxu0 0.0
    %6003 = vmatprep.subr.mxu0 0.0
    %6004 = vmatpush2.msra.mxu0 0.0
    %6005 = vmatprep.subr.mxu0 0.0
    %6006 = vmatpush2.msra.mxu0 0.0
    %6007 = vmatprep.subr.mxu0 0.0
    %6008 = vmatpush2.msra.mxu0 0.0
    %6009 = vmatprep.subr.mxu0 0.0
    %6010 = vmatpush2.msra.mxu0 0.0
    %6011 = vmatprep.subr.mxu0 0.0
    %6012 = vmatpush2.msra.mxu0 0.0
    %6013 = vmatprep.subr.mxu0 0.0
    %6014 = vmatpush2.msra.mxu0 0.0
    %6015 = vmatprep.subr.mxu0 0.0
    %6016 = vmatpush2.msra.mxu0 0.0
    %6017 = vmatprep.subr.mxu0 0.0
    %6018 = vmatpush2.msra.mxu0 0.0
    %6019 = vmatprep.subr.mxu0 0.0
    %6020 = vmatpush2.msra.mxu0 0.0
    %6021 = vmatprep.subr.mxu0 0.0
    %6022 = vmatpush2.msra.mxu0 0.0
    %6023 = vmatprep.subr.mxu0 0.0
    %6024 = vmatpush2.msra.mxu0 0.0
    %6025 = vmatprep.mubr.f32.mxu0 0.0
    %6026 = vmatmul.mubr.f32.gmra.mxu0 %v5675
    %v6027 = vpop.f32.mrf.mxu0
    %v6028 = vadd.f32 0.0, %v6027
    %v6029 = vpop.f32.mrf.mxu0
    %6030 = vdwg.mxu0
    %v6031 = vadd.f32 %v5960, %v6028
    %6032 = vmatprep.subr.mxu0 0.0
    %6033 = vmatpush1.msra.mxu0 0.0
    %6034 = vmatprep.subr.mxu0 0.0
    %6035 = vmatpush1.msra.mxu0 0.0
    %6036 = vmatprep.subr.mxu0 0.0
    %6037 = vmatpush1.msra.mxu0 0.0
    %6038 = vmatprep.subr.mxu0 0.0
    %6039 = vmatpush1.msra.mxu0 0.0
    %6040 = vmatprep.subr.mxu0 0.0
    %6041 = vmatpush1.msra.mxu0 0.0
    %6042 = vmatprep.subr.mxu0 0.0
    %6043 = vmatpush1.msra.mxu0 0.0
    %6044 = vmatprep.subr.mxu0 0.0
    %6045 = vmatpush1.msra.mxu0 0.0
    %6046 = vmatprep.subr.mxu0 0.0
    %6047 = vmatpush1.msra.mxu0 0.0
    %6048 = vmatprep.subr.mxu0 0.0
    %6049 = vmatpush1.msra.mxu0 0.0
    %6050 = vmatprep.subr.mxu0 0.0
    %6051 = vmatpush1.msra.mxu0 0.0
    %6052 = vmatprep.subr.mxu0 0.0
    %6053 = vmatpush1.msra.mxu0 0.0
    %6054 = vmatprep.subr.mxu0 0.0
    %6055 = vmatpush1.msra.mxu0 0.0
    %6056 = vmatprep.subr.mxu0 0.0
    %6057 = vmatpush1.msra.mxu0 0.0
    %6058 = vmatprep.subr.mxu0 0.0
    %6059 = vmatpush1.msra.mxu0 0.0
    %6060 = vmatprep.subr.mxu0 0.0
    %6061 = vmatpush1.msra.mxu0 %v775
    %6062 = vmatprep.subr.mxu0 0.0
    %6063 = vmatpush1.msra.mxu0 %v774
    %6064 = vmatprep.subr.mxu0 0.0
    %6065 = vmatpush2.msra.mxu0 0.0
    %6066 = vmatprep.subr.mxu0 0.0
    %6067 = vmatpush2.msra.mxu0 0.0
    %6068 = vmatprep.subr.mxu0 0.0
    %6069 = vmatpush2.msra.mxu0 0.0
    %6070 = vmatprep.subr.mxu0 0.0
    %6071 = vmatpush2.msra.mxu0 0.0
    %6072 = vmatprep.subr.mxu0 0.0
    %6073 = vmatpush2.msra.mxu0 0.0
    %6074 = vmatprep.subr.mxu0 0.0
    %6075 = vmatpush2.msra.mxu0 0.0
    %6076 = vmatprep.subr.mxu0 0.0
    %6077 = vmatpush2.msra.mxu0 0.0
    %6078 = vmatprep.subr.mxu0 0.0
    %6079 = vmatpush2.msra.mxu0 0.0
    %6080 = vmatprep.subr.mxu0 0.0
    %6081 = vmatpush2.msra.mxu0 0.0
    %6082 = vmatprep.subr.mxu0 0.0
    %6083 = vmatpush2.msra.mxu0 0.0
    %6084 = vmatprep.subr.mxu0 0.0
    %6085 = vmatpush2.msra.mxu0 0.0
    %6086 = vmatprep.subr.mxu0 0.0
    %6087 = vmatpush2.msra.mxu0 0.0
    %6088 = vmatprep.subr.mxu0 0.0
    %6089 = vmatpush2.msra.mxu0 0.0
    %6090 = vmatprep.subr.mxu0 0.0
    %6091 = vmatpush2.msra.mxu0 0.0
    %6092 = vmatprep.subr.mxu0 0.0
    %6093 = vmatpush2.msra.mxu0 0.0
    %6094 = vmatprep.subr.mxu0 0.0
    %6095 = vmatpush2.msra.mxu0 0.0
    %6096 = vmatprep.mubr.f32.mxu0 0.0
    %6097 = vmatmul.mubr.f32.gmra.mxu0 %v5601
    %v6098 = vpop.f32.mrf.mxu0
    %v6099 = vadd.f32 0.0, %v6098
    %v6100 = vpop.f32.mrf.mxu0
    %6101 = vdwg.mxu0
    %v6102 = vadd.f32 %v1630, %v6099
    %6103 = vmatprep.subr.mxu0 0.0
    %6104 = vmatpush1.msra.mxu0 0.0
    %6105 = vmatprep.subr.mxu0 0.0
    %6106 = vmatpush1.msra.mxu0 0.0
    %6107 = vmatprep.subr.mxu0 0.0
    %6108 = vmatpush1.msra.mxu0 0.0
    %6109 = vmatprep.subr.mxu0 0.0
    %6110 = vmatpush1.msra.mxu0 0.0
    %6111 = vmatprep.subr.mxu0 0.0
    %6112 = vmatpush1.msra.mxu0 0.0
    %6113 = vmatprep.subr.mxu0 0.0
    %6114 = vmatpush1.msra.mxu0 0.0
    %6115 = vmatprep.subr.mxu0 0.0
    %6116 = vmatpush1.msra.mxu0 0.0
    %6117 = vmatprep.subr.mxu0 0.0
    %6118 = vmatpush1.msra.mxu0 0.0
    %6119 = vmatprep.subr.mxu0 0.0
    %6120 = vmatpush1.msra.mxu0 0.0
    %6121 = vmatprep.subr.mxu0 0.0
    %6122 = vmatpush1.msra.mxu0 0.0
    %6123 = vmatprep.subr.mxu0 0.0
    %6124 = vmatpush1.msra.mxu0 0.0
    %6125 = vmatprep.subr.mxu0 0.0
    %6126 = vmatpush1.msra.mxu0 0.0
    %6127 = vmatprep.subr.mxu0 0.0
    %6128 = vmatpush1.msra.mxu0 0.0
    %6129 = vmatprep.subr.mxu0 0.0
    %6130 = vmatpush1.msra.mxu0 0.0
    %6131 = vmatprep.subr.mxu0 0.0
    %6132 = vmatpush1.msra.mxu0 %v786
    %6133 = vmatprep.subr.mxu0 0.0
    %6134 = vmatpush1.msra.mxu0 %v785
    %6135 = vmatprep.subr.mxu0 0.0
    %6136 = vmatpush2.msra.mxu0 0.0
    %6137 = vmatprep.subr.mxu0 0.0
    %6138 = vmatpush2.msra.mxu0 0.0
    %6139 = vmatprep.subr.mxu0 0.0
    %6140 = vmatpush2.msra.mxu0 0.0
    %6141 = vmatprep.subr.mxu0 0.0
    %6142 = vmatpush2.msra.mxu0 0.0
    %6143 = vmatprep.subr.mxu0 0.0
    %6144 = vmatpush2.msra.mxu0 0.0
    %6145 = vmatprep.subr.mxu0 0.0
    %6146 = vmatpush2.msra.mxu0 0.0
    %6147 = vmatprep.subr.mxu0 0.0
    %6148 = vmatpush2.msra.mxu0 0.0
    %6149 = vmatprep.subr.mxu0 0.0
    %6150 = vmatpush2.msra.mxu0 0.0
    %6151 = vmatprep.subr.mxu0 0.0
    %6152 = vmatpush2.msra.mxu0 0.0
    %6153 = vmatprep.subr.mxu0 0.0
    %6154 = vmatpush2.msra.mxu0 0.0
    %6155 = vmatprep.subr.mxu0 0.0
    %6156 = vmatpush2.msra.mxu0 0.0
    %6157 = vmatprep.subr.mxu0 0.0
    %6158 = vmatpush2.msra.mxu0 0.0
    %6159 = vmatprep.subr.mxu0 0.0
    %6160 = vmatpush2.msra.mxu0 0.0
    %6161 = vmatprep.subr.mxu0 0.0
    %6162 = vmatpush2.msra.mxu0 0.0
    %6163 = vmatprep.subr.mxu0 0.0
    %6164 = vmatpush2.msra.mxu0 0.0
    %6165 = vmatprep.subr.mxu0 0.0
    %6166 = vmatpush2.msra.mxu0 0.0
    %6167 = vmatprep.mubr.f32.mxu0 0.0
    %6168 = vmatmul.mubr.f32.gmra.mxu0 %v5675
    %v6169 = vpop.f32.mrf.mxu0
    %v6170 = vadd.f32 0.0, %v6169
    %v6171 = vpop.f32.mrf.mxu0
    %6172 = vdwg.mxu0
    %v6173 = vadd.f32 %v6102, %v6170
    %v6174 = vmul.f32 %v5889, 0.5
    %v6175 = vtanh.pop %v6174
    %v6176 = vmul.f32 %v6175, 0.5
    %v6177 = vadd.f32 %v6176, 0.5
    %v6178 = vmul.f32 %v6177, %v5291
    %v6179 = vmul.f32 %v5747, 0.5
    %v6180 = vtanh.pop %v6179
    %v6181 = vmul.f32 %v6180, 0.5
    %v6182 = vadd.f32 %v6181, 0.5
    %v6183 = vtanh.pop %v6031
    %v6184 = vmul.f32 %v6182, %v6183
    %v6185 = vadd.f32 %v6178, %v6184
    %v6186 = vmul.f32 %v6173, 0.5
    %v6187 = vtanh.pop %v6186
    %v6188 = vmul.f32 %v6187, 0.5
    %v6189 = vadd.f32 %v6188, 0.5
    %v6190 = vtanh.pop %v6185
    %v6191 = vmul.f32 %v6189, %v6190
    %6192 = vmatprep.subr.mxu0 0.0
    %6193 = vmatpush1.msra.mxu0 0.0
    %6194 = vmatprep.subr.mxu0 0.0
    %6195 = vmatpush1.msra.mxu0 0.0
    %6196 = vmatprep.subr.mxu0 0.0
    %6197 = vmatpush1.msra.mxu0 0.0
    %6198 = vmatprep.subr.mxu0 0.0
    %6199 = vmatpush1.msra.mxu0 0.0
    %6200 = vmatprep.subr.mxu0 0.0
    %6201 = vmatpush1.msra.mxu0 0.0
    %6202 = vmatprep.subr.mxu0 0.0
    %6203 = vmatpush1.msra.mxu0 0.0
    %6204 = vmatprep.subr.mxu0 0.0
    %6205 = vmatpush1.msra.mxu0 0.0
    %6206 = vmatprep.subr.mxu0 0.0
    %6207 = vmatpush1.msra.mxu0 0.0
    %6208 = vmatprep.subr.mxu0 0.0
    %6209 = vmatpush1.msra.mxu0 0.0
    %6210 = vmatprep.subr.mxu0 0.0
    %6211 = vmatpush1.msra.mxu0 0.0
    %6212 = vmatprep.subr.mxu0 0.0
    %6213 = vmatpush1.msra.mxu0 0.0
    %6214 = vmatprep.subr.mxu0 0.0
    %6215 = vmatpush1.msra.mxu0 0.0
    %6216 = vmatprep.subr.mxu0 0.0
    %6217 = vmatpush1.msra.mxu0 0.0
    %6218 = vmatprep.subr.mxu0 0.0
    %6219 = vmatpush1.msra.mxu0 0.0
    %6220 = vmatprep.subr.mxu0 0.0
    %6221 = vmatpush1.msra.mxu0 %v755
    %6222 = vmatprep.subr.mxu0 0.0
    %6223 = vmatpush1.msra.mxu0 %v754
    %6224 = vmatprep.subr.mxu0 0.0
    %6225 = vmatpush2.msra.mxu0 0.0
    %6226 = vmatprep.subr.mxu0 0.0
    %6227 = vmatpush2.msra.mxu0 0.0
    %6228 = vmatprep.subr.mxu0 0.0
    %6229 = vmatpush2.msra.mxu0 0.0
    %6230 = vmatprep.subr.mxu0 0.0
    %6231 = vmatpush2.msra.mxu0 0.0
    %6232 = vmatprep.subr.mxu0 0.0
    %6233 = vmatpush2.msra.mxu0 0.0
    %6234 = vmatprep.subr.mxu0 0.0
    %6235 = vmatpush2.msra.mxu0 0.0
    %6236 = vmatprep.subr.mxu0 0.0
    %6237 = vmatpush2.msra.mxu0 0.0
    %6238 = vmatprep.subr.mxu0 0.0
    %6239 = vmatpush2.msra.mxu0 0.0
    %6240 = vmatprep.subr.mxu0 0.0
    %6241 = vmatpush2.msra.mxu0 0.0
    %6242 = vmatprep.subr.mxu0 0.0
    %6243 = vmatpush2.msra.mxu0 0.0
    %6244 = vmatprep.subr.mxu0 0.0
    %6245 = vmatpush2.msra.mxu0 0.0
    %6246 = vmatprep.subr.mxu0 0.0
    %6247 = vmatpush2.msra.mxu0 0.0
    %6248 = vmatprep.subr.mxu0 0.0
    %6249 = vmatpush2.msra.mxu0 0.0
    %6250 = vmatprep.subr.mxu0 0.0
    %6251 = vmatpush2.msra.mxu0 0.0
    %6252 = vmatprep.subr.mxu0 0.0
    %6253 = vmatpush2.msra.mxu0 0.0
    %6254 = vmatprep.subr.mxu0 0.0
    %6255 = vmatpush2.msra.mxu0 0.0
    %6256 = vmatprep.mubr.f32.mxu0 0.0
    %6257 = vmatmul.mubr.f32.gmra.mxu0 %v5601
    %v6258 = vpop.f32.mrf.mxu0
    %v6259 = vadd.f32 0.0, %v6258
    %v6260 = vpop.f32.mrf.mxu0
    %6261 = vdwg.mxu0
    %v6262 = vadd.f32 %v320, %v6259
    %6263 = vmatprep.subr.mxu0 0.0
    %6264 = vmatpush1.msra.mxu0 0.0
    %6265 = vmatprep.subr.mxu0 0.0
    %6266 = vmatpush1.msra.mxu0 0.0
    %6267 = vmatprep.subr.mxu0 0.0
    %6268 = vmatpush1.msra.mxu0 0.0
    %6269 = vmatprep.subr.mxu0 0.0
    %6270 = vmatpush1.msra.mxu0 0.0
    %6271 = vmatprep.subr.mxu0 0.0
    %6272 = vmatpush1.msra.mxu0 0.0
    %6273 = vmatprep.subr.mxu0 0.0
    %6274 = vmatpush1.msra.mxu0 0.0
    %6275 = vmatprep.subr.mxu0 0.0
    %6276 = vmatpush1.msra.mxu0 0.0
    %6277 = vmatprep.subr.mxu0 0.0
    %6278 = vmatpush1.msra.mxu0 0.0
    %6279 = vmatprep.subr.mxu0 0.0
    %6280 = vmatpush1.msra.mxu0 0.0
    %6281 = vmatprep.subr.mxu0 0.0
    %6282 = vmatpush1.msra.mxu0 0.0
    %6283 = vmatprep.subr.mxu0 0.0
    %6284 = vmatpush1.msra.mxu0 0.0
    %6285 = vmatprep.subr.mxu0 0.0
    %6286 = vmatpush1.msra.mxu0 0.0
    %6287 = vmatprep.subr.mxu0 0.0
    %6288 = vmatpush1.msra.mxu0 0.0
    %6289 = vmatprep.subr.mxu0 0.0
    %6290 = vmatpush1.msra.mxu0 0.0
    %6291 = vmatprep.subr.mxu0 0.0
    %6292 = vmatpush1.msra.mxu0 %v758
    %6293 = vmatprep.subr.mxu0 0.0
    %6294 = vmatpush1.msra.mxu0 %v757
    %6295 = vmatprep.subr.mxu0 0.0
    %6296 = vmatpush2.msra.mxu0 0.0
    %6297 = vmatprep.subr.mxu0 0.0
    %6298 = vmatpush2.msra.mxu0 0.0
    %6299 = vmatprep.subr.mxu0 0.0
    %6300 = vmatpush2.msra.mxu0 0.0
    %6301 = vmatprep.subr.mxu0 0.0
    %6302 = vmatpush2.msra.mxu0 0.0
    %6303 = vmatprep.subr.mxu0 0.0
    %6304 = vmatpush2.msra.mxu0 0.0
    %6305 = vmatprep.subr.mxu0 0.0
    %6306 = vmatpush2.msra.mxu0 0.0
    %6307 = vmatprep.subr.mxu0 0.0
    %6308 = vmatpush2.msra.mxu0 0.0
    %6309 = vmatprep.subr.mxu0 0.0
    %6310 = vmatpush2.msra.mxu0 0.0
    %6311 = vmatprep.subr.mxu0 0.0
    %6312 = vmatpush2.msra.mxu0 0.0
    %6313 = vmatprep.subr.mxu0 0.0
    %6314 = vmatpush2.msra.mxu0 0.0
    %6315 = vmatprep.subr.mxu0 0.0
    %6316 = vmatpush2.msra.mxu0 0.0
    %6317 = vmatprep.subr.mxu0 0.0
    %6318 = vmatpush2.msra.mxu0 0.0
    %6319 = vmatprep.subr.mxu0 0.0
    %6320 = vmatpush2.msra.mxu0 0.0
    %6321 = vmatprep.subr.mxu0 0.0
    %6322 = vmatpush2.msra.mxu0 0.0
    %6323 = vmatprep.subr.mxu0 0.0
    %6324 = vmatpush2.msra.mxu0 0.0
    %6325 = vmatprep.subr.mxu0 0.0
    %6326 = vmatpush2.msra.mxu0 0.0
    %6327 = vmatprep.mubr.f32.mxu0 0.0
    %6328 = vmatmul.mubr.f32.gmra.mxu0 %v5601
    %v6329 = vpop.f32.mrf.mxu0
    %v6330 = vadd.f32 0.0, %v6329
    %v6331 = vpop.f32.mrf.mxu0
    %6332 = vdwg.mxu0
    %v6333 = vadd.f32 %v464, %v6330
    %6334 = vmatprep.subr.mxu0 0.0
    %6335 = vmatpush1.msra.mxu0 0.0
    %6336 = vmatprep.subr.mxu0 0.0
    %6337 = vmatpush1.msra.mxu0 0.0
    %6338 = vmatprep.subr.mxu0 0.0
    %6339 = vmatpush1.msra.mxu0 0.0
    %6340 = vmatprep.subr.mxu0 0.0
    %6341 = vmatpush1.msra.mxu0 0.0
    %6342 = vmatprep.subr.mxu0 0.0
    %6343 = vmatpush1.msra.mxu0 0.0
    %6344 = vmatprep.subr.mxu0 0.0
    %6345 = vmatpush1.msra.mxu0 0.0
    %6346 = vmatprep.subr.mxu0 0.0
    %6347 = vmatpush1.msra.mxu0 0.0
    %6348 = vmatprep.subr.mxu0 0.0
    %6349 = vmatpush1.msra.mxu0 0.0
    %6350 = vmatprep.subr.mxu0 0.0
    %6351 = vmatpush1.msra.mxu0 0.0
    %6352 = vmatprep.subr.mxu0 0.0
    %6353 = vmatpush1.msra.mxu0 0.0
    %6354 = vmatprep.subr.mxu0 0.0
    %6355 = vmatpush1.msra.mxu0 0.0
    %6356 = vmatprep.subr.mxu0 0.0
    %6357 = vmatpush1.msra.mxu0 0.0
    %6358 = vmatprep.subr.mxu0 0.0
    %6359 = vmatpush1.msra.mxu0 0.0
    %6360 = vmatprep.subr.mxu0 0.0
    %6361 = vmatpush1.msra.mxu0 0.0
    %6362 = vmatprep.subr.mxu0 0.0
    %6363 = vmatpush1.msra.mxu0 %v761
    %6364 = vmatprep.subr.mxu0 0.0
    %6365 = vmatpush1.msra.mxu0 %v760
    %6366 = vmatprep.subr.mxu0 0.0
    %6367 = vmatpush2.msra.mxu0 0.0
    %6368 = vmatprep.subr.mxu0 0.0
    %6369 = vmatpush2.msra.mxu0 0.0
    %6370 = vmatprep.subr.mxu0 0.0
    %6371 = vmatpush2.msra.mxu0 0.0
    %6372 = vmatprep.subr.mxu0 0.0
    %6373 = vmatpush2.msra.mxu0 0.0
    %6374 = vmatprep.subr.mxu0 0.0
    %6375 = vmatpush2.msra.mxu0 0.0
    %6376 = vmatprep.subr.mxu0 0.0
    %6377 = vmatpush2.msra.mxu0 0.0
    %6378 = vmatprep.subr.mxu0 0.0
    %6379 = vmatpush2.msra.mxu0 0.0
    %6380 = vmatprep.subr.mxu0 0.0
    %6381 = vmatpush2.msra.mxu0 0.0
    %6382 = vmatprep.subr.mxu0 0.0
    %6383 = vmatpush2.msra.mxu0 0.0
    %6384 = vmatprep.subr.mxu0 0.0
    %6385 = vmatpush2.msra.mxu0 0.0
    %6386 = vmatprep.subr.mxu0 0.0
    %6387 = vmatpush2.msra.mxu0 0.0
    %6388 = vmatprep.subr.mxu0 0.0
    %6389 = vmatpush2.msra.mxu0 0.0
    %6390 = vmatprep.subr.mxu0 0.0
    %6391 = vmatpush2.msra.mxu0 0.0
    %6392 = vmatprep.subr.mxu0 0.0
    %6393 = vmatpush2.msra.mxu0 0.0
    %6394 = vmatprep.subr.mxu0 0.0
    %6395 = vmatpush2.msra.mxu0 0.0
    %6396 = vmatprep.subr.mxu0 0.0
    %6397 = vmatpush2.msra.mxu0 0.0
    %6398 = vmatprep.mubr.f32.mxu0 0.0
    %6399 = vmatmul.mubr.f32.gmra.mxu0 %v5601
    %v6400 = vpop.f32.mrf.mxu0
    %v6401 = vadd.f32 0.0, %v6400
    %v6402 = vpop.f32.mrf.mxu0
    %6403 = vdwg.mxu0
    %v6404 = vadd.f32 %v608, %v6401
    %6405 = vmatprep.subr.mxu0 0.0
    %6406 = vmatpush1.msra.mxu0 0.0
    %6407 = vmatprep.subr.mxu0 0.0
    %6408 = vmatpush1.msra.mxu0 0.0
    %6409 = vmatprep.subr.mxu0 0.0
    %6410 = vmatpush1.msra.mxu0 0.0
    %6411 = vmatprep.subr.mxu0 0.0
    %6412 = vmatpush1.msra.mxu0 0.0
    %6413 = vmatprep.subr.mxu0 0.0
    %6414 = vmatpush1.msra.mxu0 0.0
    %6415 = vmatprep.subr.mxu0 0.0
    %6416 = vmatpush1.msra.mxu0 0.0
    %6417 = vmatprep.subr.mxu0 0.0
    %6418 = vmatpush1.msra.mxu0 0.0
    %6419 = vmatprep.subr.mxu0 0.0
    %6420 = vmatpush1.msra.mxu0 0.0
    %6421 = vmatprep.subr.mxu0 0.0
    %6422 = vmatpush1.msra.mxu0 0.0
    %6423 = vmatprep.subr.mxu0 0.0
    %6424 = vmatpush1.msra.mxu0 0.0
    %6425 = vmatprep.subr.mxu0 0.0
    %6426 = vmatpush1.msra.mxu0 0.0
    %6427 = vmatprep.subr.mxu0 0.0
    %6428 = vmatpush1.msra.mxu0 0.0
    %6429 = vmatprep.subr.mxu0 0.0
    %6430 = vmatpush1.msra.mxu0 0.0
    %6431 = vmatprep.subr.mxu0 0.0
    %6432 = vmatpush1.msra.mxu0 0.0
    %6433 = vmatprep.subr.mxu0 0.0
    %6434 = vmatpush1.msra.mxu0 %v764
    %6435 = vmatprep.subr.mxu0 0.0
    %6436 = vmatpush1.msra.mxu0 %v763
    %6437 = vmatprep.subr.mxu0 0.0
    %6438 = vmatpush2.msra.mxu0 0.0
    %6439 = vmatprep.subr.mxu0 0.0
    %6440 = vmatpush2.msra.mxu0 0.0
    %6441 = vmatprep.subr.mxu0 0.0
    %6442 = vmatpush2.msra.mxu0 0.0
    %6443 = vmatprep.subr.mxu0 0.0
    %6444 = vmatpush2.msra.mxu0 0.0
    %6445 = vmatprep.subr.mxu0 0.0
    %6446 = vmatpush2.msra.mxu0 0.0
    %6447 = vmatprep.subr.mxu0 0.0
    %6448 = vmatpush2.msra.mxu0 0.0
    %6449 = vmatprep.subr.mxu0 0.0
    %6450 = vmatpush2.msra.mxu0 0.0
    %6451 = vmatprep.subr.mxu0 0.0
    %6452 = vmatpush2.msra.mxu0 0.0
    %6453 = vmatprep.subr.mxu0 0.0
    %6454 = vmatpush2.msra.mxu0 0.0
    %6455 = vmatprep.subr.mxu0 0.0
    %6456 = vmatpush2.msra.mxu0 0.0
    %6457 = vmatprep.subr.mxu0 0.0
    %6458 = vmatpush2.msra.mxu0 0.0
    %6459 = vmatprep.subr.mxu0 0.0
    %6460 = vmatpush2.msra.mxu0 0.0
    %6461 = vmatprep.subr.mxu0 0.0
    %6462 = vmatpush2.msra.mxu0 0.0
    %6463 = vmatprep.subr.mxu0 0.0
    %6464 = vmatpush2.msra.mxu0 0.0
    %6465 = vmatprep.subr.mxu0 0.0
    %6466 = vmatpush2.msra.mxu0 0.0
    %6467 = vmatprep.subr.mxu0 0.0
    %6468 = vmatpush2.msra.mxu0 0.0
    %6469 = vmatprep.mubr.f32.mxu0 0.0
    %6470 = vmatmul.mubr.f32.gmra.mxu0 %v5601
    %v6471 = vpop.f32.mrf.mxu0
    %v6472 = vadd.f32 0.0, %v6471
    %v6473 = vpop.f32.mrf.mxu0
    %6474 = vdwg.mxu0
    %v6475 = vadd.f32 %v752, %v6472
    %v6476 = vmul.f32 %v6333, 0.5
    %v6477 = vtanh.pop %v6476
    %v6478 = vmul.f32 %v6477, 0.5
    %v6479 = vadd.f32 %v6478, 0.5
    %v6480 = vmul.f32 %v6479, %v5593
    %v6481 = vmul.f32 %v6262, 0.5
    %v6482 = vtanh.pop %v6481
    %v6483 = vmul.f32 %v6482, 0.5
    %v6484 = vadd.f32 %v6483, 0.5
    %v6485 = vtanh.pop %v6404
    %v6486 = vmul.f32 %v6484, %v6485
    %v6487 = vadd.f32 %v6480, %v6486
    %v6488 = vmul.f32 %v6475, 0.5
    %v6489 = vtanh.pop %v6488
    %v6490 = vmul.f32 %v6489, 0.5
    %v6491 = vadd.f32 %v6490, 0.5
    %v6492 = vtanh.pop %v6487
    %v6493 = vmul.f32 %v6491, %v6492
    %v6495 = vsel %vm800, %v6493, 0
    %6497 = vmatprep.subr.mxu0 0.0
    %6498 = vmatpush1.msra.mxu0 0.0
    %6499 = vmatprep.subr.mxu0 0.0
    %6500 = vmatpush1.msra.mxu0 0.0
    %6501 = vmatprep.subr.mxu0 0.0
    %6502 = vmatpush1.msra.mxu0 0.0
    %6503 = vmatprep.subr.mxu0 0.0
    %6504 = vmatpush1.msra.mxu0 0.0
    %6505 = vmatprep.subr.mxu0 0.0
    %6506 = vmatpush1.msra.mxu0 0.0
    %6507 = vmatprep.subr.mxu0 0.0
    %6508 = vmatpush1.msra.mxu0 0.0
    %6509 = vmatprep.subr.mxu0 0.0
    %6510 = vmatpush1.msra.mxu0 0.0
    %6511 = vmatprep.subr.mxu0 0.0
    %6512 = vmatpush1.msra.mxu0 0.0
    %6513 = vmatprep.subr.mxu0 0.0
    %6514 = vmatpush1.msra.mxu0 0.0
    %6515 = vmatprep.subr.mxu0 0.0
    %6516 = vmatpush1.msra.mxu0 0.0
    %6517 = vmatprep.subr.mxu0 0.0
    %6518 = vmatpush1.msra.mxu0 0.0
    %6519 = vmatprep.subr.mxu0 0.0
    %6520 = vmatpush1.msra.mxu0 0.0
    %6521 = vmatprep.subr.mxu0 0.0
    %6522 = vmatpush1.msra.mxu0 0.0
    %6523 = vmatprep.subr.mxu0 0.0
    %6524 = vmatpush1.msra.mxu0 0.0
    %6525 = vmatprep.subr.mxu0 0.0
    %6526 = vmatpush1.msra.mxu0 %v766
    %6527 = vmatprep.subr.mxu0 0.0
    %6528 = vmatpush1.msra.mxu0 %v765
    %6529 = vmatprep.subr.mxu0 0.0
    %6530 = vmatpush2.msra.mxu0 0.0
    %6531 = vmatprep.subr.mxu0 0.0
    %6532 = vmatpush2.msra.mxu0 0.0
    %6533 = vmatprep.subr.mxu0 0.0
    %6534 = vmatpush2.msra.mxu0 0.0
    %6535 = vmatprep.subr.mxu0 0.0
    %6536 = vmatpush2.msra.mxu0 0.0
    %6537 = vmatprep.subr.mxu0 0.0
    %6538 = vmatpush2.msra.mxu0 0.0
    %6539 = vmatprep.subr.mxu0 0.0
    %6540 = vmatpush2.msra.mxu0 0.0
    %6541 = vmatprep.subr.mxu0 0.0
    %6542 = vmatpush2.msra.mxu0 0.0
    %6543 = vmatprep.subr.mxu0 0.0
    %6544 = vmatpush2.msra.mxu0 0.0
    %6545 = vmatprep.subr.mxu0 0.0
    %6546 = vmatpush2.msra.mxu0 0.0
    %6547 = vmatprep.subr.mxu0 0.0
    %6548 = vmatpush2.msra.mxu0 0.0
    %6549 = vmatprep.subr.mxu0 0.0
    %6550 = vmatpush2.msra.mxu0 0.0
    %6551 = vmatprep.subr.mxu0 0.0
    %6552 = vmatpush2.msra.mxu0 0.0
    %6553 = vmatprep.subr.mxu0 0.0
    %6554 = vmatpush2.msra.mxu0 0.0
    %6555 = vmatprep.subr.mxu0 0.0
    %6556 = vmatpush2.msra.mxu0 0.0
    %6557 = vmatprep.subr.mxu0 0.0
    %6558 = vmatpush2.msra.mxu0 0.0
    %6559 = vmatprep.subr.mxu0 0.0
    %6560 = vmatpush2.msra.mxu0 0.0
    %6561 = vmatprep.mubr.f32.mxu0 0.0
    %6562 = vmatmul.mubr.f32.gmra.mxu0 %v6495
    %v6563 = vpop.f32.mrf.mxu0
    %v6564 = vadd.f32 0.0, %v6563
    %v6565 = vpop.f32.mrf.mxu0
    %6566 = vdwg.mxu0
    %v6567 = vadd.f32 %v1183, %v6564
    %v6569 = vsel %vm800, %v6191, 0
    %6571 = vmatprep.subr.mxu0 0.0
    %6572 = vmatpush1.msra.mxu0 0.0
    %6573 = vmatprep.subr.mxu0 0.0
    %6574 = vmatpush1.msra.mxu0 0.0
    %6575 = vmatprep.subr.mxu0 0.0
    %6576 = vmatpush1.msra.mxu0 0.0
    %6577 = vmatprep.subr.mxu0 0.0
    %6578 = vmatpush1.msra.mxu0 0.0
    %6579 = vmatprep.subr.mxu0 0.0
    %6580 = vmatpush1.msra.mxu0 0.0
    %6581 = vmatprep.subr.mxu0 0.0
    %6582 = vmatpush1.msra.mxu0 0.0
    %6583 = vmatprep.subr.mxu0 0.0
    %6584 = vmatpush1.msra.mxu0 0.0
    %6585 = vmatprep.subr.mxu0 0.0
    %6586 = vmatpush1.msra.mxu0 0.0
    %6587 = vmatprep.subr.mxu0 0.0
    %6588 = vmatpush1.msra.mxu0 0.0
    %6589 = vmatprep.subr.mxu0 0.0
    %6590 = vmatpush1.msra.mxu0 0.0
    %6591 = vmatprep.subr.mxu0 0.0
    %6592 = vmatpush1.msra.mxu0 0.0
    %6593 = vmatprep.subr.mxu0 0.0
    %6594 = vmatpush1.msra.mxu0 0.0
    %6595 = vmatprep.subr.mxu0 0.0
    %6596 = vmatpush1.msra.mxu0 0.0
    %6597 = vmatprep.subr.mxu0 0.0
    %6598 = vmatpush1.msra.mxu0 0.0
    %6599 = vmatprep.subr.mxu0 0.0
    %6600 = vmatpush1.msra.mxu0 %v777
    %6601 = vmatprep.subr.mxu0 0.0
    %6602 = vmatpush1.msra.mxu0 %v776
    %6603 = vmatprep.subr.mxu0 0.0
    %6604 = vmatpush2.msra.mxu0 0.0
    %6605 = vmatprep.subr.mxu0 0.0
    %6606 = vmatpush2.msra.mxu0 0.0
    %6607 = vmatprep.subr.mxu0 0.0
    %6608 = vmatpush2.msra.mxu0 0.0
    %6609 = vmatprep.subr.mxu0 0.0
    %6610 = vmatpush2.msra.mxu0 0.0
    %6611 = vmatprep.subr.mxu0 0.0
    %6612 = vmatpush2.msra.mxu0 0.0
    %6613 = vmatprep.subr.mxu0 0.0
    %6614 = vmatpush2.msra.mxu0 0.0
    %6615 = vmatprep.subr.mxu0 0.0
    %6616 = vmatpush2.msra.mxu0 0.0
    %6617 = vmatprep.subr.mxu0 0.0
    %6618 = vmatpush2.msra.mxu0 0.0
    %6619 = vmatprep.subr.mxu0 0.0
    %6620 = vmatpush2.msra.mxu0 0.0
    %6621 = vmatprep.subr.mxu0 0.0
    %6622 = vmatpush2.msra.mxu0 0.0
    %6623 = vmatprep.subr.mxu0 0.0
    %6624 = vmatpush2.msra.mxu0 0.0
    %6625 = vmatprep.subr.mxu0 0.0
    %6626 = vmatpush2.msra.mxu0 0.0
    %6627 = vmatprep.subr.mxu0 0.0
    %6628 = vmatpush2.msra.mxu0 0.0
    %6629 = vmatprep.subr.mxu0 0.0
    %6630 = vmatpush2.msra.mxu0 0.0
    %6631 = vmatprep.subr.mxu0 0.0
    %6632 = vmatpush2.msra.mxu0 0.0
    %6633 = vmatprep.subr.mxu0 0.0
    %6634 = vmatpush2.msra.mxu0 0.0
    %6635 = vmatprep.mubr.f32.mxu0 0.0
    %6636 = vmatmul.mubr.f32.gmra.mxu0 %v6569
    %v6637 = vpop.f32.mrf.mxu0
    %v6638 = vadd.f32 0.0, %v6637
    %v6639 = vpop.f32.mrf.mxu0
    %6640 = vdwg.mxu0
    %v6641 = vadd.f32 %v6567, %v6638
    %6642 = vmatprep.subr.mxu0 0.0
    %6643 = vmatpush1.msra.mxu0 0.0
    %6644 = vmatprep.subr.mxu0 0.0
    %6645 = vmatpush1.msra.mxu0 0.0
    %6646 = vmatprep.subr.mxu0 0.0
    %6647 = vmatpush1.msra.mxu0 0.0
    %6648 = vmatprep.subr.mxu0 0.0
    %6649 = vmatpush1.msra.mxu0 0.0
    %6650 = vmatprep.subr.mxu0 0.0
    %6651 = vmatpush1.msra.mxu0 0.0
    %6652 = vmatprep.subr.mxu0 0.0
    %6653 = vmatpush1.msra.mxu0 0.0
    %6654 = vmatprep.subr.mxu0 0.0
    %6655 = vmatpush1.msra.mxu0 0.0
    %6656 = vmatprep.subr.mxu0 0.0
    %6657 = vmatpush1.msra.mxu0 0.0
    %6658 = vmatprep.subr.mxu0 0.0
    %6659 = vmatpush1.msra.mxu0 0.0
    %6660 = vmatprep.subr.mxu0 0.0
    %6661 = vmatpush1.msra.mxu0 0.0
    %6662 = vmatprep.subr.mxu0 0.0
    %6663 = vmatpush1.msra.mxu0 0.0
    %6664 = vmatprep.subr.mxu0 0.0
    %6665 = vmatpush1.msra.mxu0 0.0
    %6666 = vmatprep.subr.mxu0 0.0
    %6667 = vmatpush1.msra.mxu0 0.0
    %6668 = vmatprep.subr.mxu0 0.0
    %6669 = vmatpush1.msra.mxu0 0.0
    %6670 = vmatprep.subr.mxu0 0.0
    %6671 = vmatpush1.msra.mxu0 %v769
    %6672 = vmatprep.subr.mxu0 0.0
    %6673 = vmatpush1.msra.mxu0 %v768
    %6674 = vmatprep.subr.mxu0 0.0
    %6675 = vmatpush2.msra.mxu0 0.0
    %6676 = vmatprep.subr.mxu0 0.0
    %6677 = vmatpush2.msra.mxu0 0.0
    %6678 = vmatprep.subr.mxu0 0.0
    %6679 = vmatpush2.msra.mxu0 0.0
    %6680 = vmatprep.subr.mxu0 0.0
    %6681 = vmatpush2.msra.mxu0 0.0
    %6682 = vmatprep.subr.mxu0 0.0
    %6683 = vmatpush2.msra.mxu0 0.0
    %6684 = vmatprep.subr.mxu0 0.0
    %6685 = vmatpush2.msra.mxu0 0.0
    %6686 = vmatprep.subr.mxu0 0.0
    %6687 = vmatpush2.msra.mxu0 0.0
    %6688 = vmatprep.subr.mxu0 0.0
    %6689 = vmatpush2.msra.mxu0 0.0
    %6690 = vmatprep.subr.mxu0 0.0
    %6691 = vmatpush2.msra.mxu0 0.0
    %6692 = vmatprep.subr.mxu0 0.0
    %6693 = vmatpush2.msra.mxu0 0.0
    %6694 = vmatprep.subr.mxu0 0.0
    %6695 = vmatpush2.msra.mxu0 0.0
    %6696 = vmatprep.subr.mxu0 0.0
    %6697 = vmatpush2.msra.mxu0 0.0
    %6698 = vmatprep.subr.mxu0 0.0
    %6699 = vmatpush2.msra.mxu0 0.0
    %6700 = vmatprep.subr.mxu0 0.0
    %6701 = vmatpush2.msra.mxu0 0.0
    %6702 = vmatprep.subr.mxu0 0.0
    %6703 = vmatpush2.msra.mxu0 0.0
    %6704 = vmatprep.subr.mxu0 0.0
    %6705 = vmatpush2.msra.mxu0 0.0
    %6706 = vmatprep.mubr.f32.mxu0 0.0
    %6707 = vmatmul.mubr.f32.gmra.mxu0 %v6495
    %v6708 = vpop.f32.mrf.mxu0
    %v6709 = vadd.f32 0.0, %v6708
    %v6710 = vpop.f32.mrf.mxu0
    %6711 = vdwg.mxu0
    %v6712 = vadd.f32 %v1334, %v6709
    %6713 = vmatprep.subr.mxu0 0.0
    %6714 = vmatpush1.msra.mxu0 0.0
    %6715 = vmatprep.subr.mxu0 0.0
    %6716 = vmatpush1.msra.mxu0 0.0
    %6717 = vmatprep.subr.mxu0 0.0
    %6718 = vmatpush1.msra.mxu0 0.0
    %6719 = vmatprep.subr.mxu0 0.0
    %6720 = vmatpush1.msra.mxu0 0.0
    %6721 = vmatprep.subr.mxu0 0.0
    %6722 = vmatpush1.msra.mxu0 0.0
    %6723 = vmatprep.subr.mxu0 0.0
    %6724 = vmatpush1.msra.mxu0 0.0
    %6725 = vmatprep.subr.mxu0 0.0
    %6726 = vmatpush1.msra.mxu0 0.0
    %6727 = vmatprep.subr.mxu0 0.0
    %6728 = vmatpush1.msra.mxu0 0.0
    %6729 = vmatprep.subr.mxu0 0.0
    %6730 = vmatpush1.msra.mxu0 0.0
    %6731 = vmatprep.subr.mxu0 0.0
    %6732 = vmatpush1.msra.mxu0 0.0
    %6733 = vmatprep.subr.mxu0 0.0
    %6734 = vmatpush1.msra.mxu0 0.0
    %6735 = vmatprep.subr.mxu0 0.0
    %6736 = vmatpush1.msra.mxu0 0.0
    %6737 = vmatprep.subr.mxu0 0.0
    %6738 = vmatpush1.msra.mxu0 0.0
    %6739 = vmatprep.subr.mxu0 0.0
    %6740 = vmatpush1.msra.mxu0 0.0
    %6741 = vmatprep.subr.mxu0 0.0
    %6742 = vmatpush1.msra.mxu0 %v780
    %6743 = vmatprep.subr.mxu0 0.0
    %6744 = vmatpush1.msra.mxu0 %v779
    %6745 = vmatprep.subr.mxu0 0.0
    %6746 = vmatpush2.msra.mxu0 0.0
    %6747 = vmatprep.subr.mxu0 0.0
    %6748 = vmatpush2.msra.mxu0 0.0
    %6749 = vmatprep.subr.mxu0 0.0
    %6750 = vmatpush2.msra.mxu0 0.0
    %6751 = vmatprep.subr.mxu0 0.0
    %6752 = vmatpush2.msra.mxu0 0.0
    %6753 = vmatprep.subr.mxu0 0.0
    %6754 = vmatpush2.msra.mxu0 0.0
    %6755 = vmatprep.subr.mxu0 0.0
    %6756 = vmatpush2.msra.mxu0 0.0
    %6757 = vmatprep.subr.mxu0 0.0
    %6758 = vmatpush2.msra.mxu0 0.0
    %6759 = vmatprep.subr.mxu0 0.0
    %6760 = vmatpush2.msra.mxu0 0.0
    %6761 = vmatprep.subr.mxu0 0.0
    %6762 = vmatpush2.msra.mxu0 0.0
    %6763 = vmatprep.subr.mxu0 0.0
    %6764 = vmatpush2.msra.mxu0 0.0
    %6765 = vmatprep.subr.mxu0 0.0
    %6766 = vmatpush2.msra.mxu0 0.0
    %6767 = vmatprep.subr.mxu0 0.0
    %6768 = vmatpush2.msra.mxu0 0.0
    %6769 = vmatprep.subr.mxu0 0.0
    %6770 = vmatpush2.msra.mxu0 0.0
    %6771 = vmatprep.subr.mxu0 0.0
    %6772 = vmatpush2.msra.mxu0 0.0
    %6773 = vmatprep.subr.mxu0 0.0
    %6774 = vmatpush2.msra.mxu0 0.0
    %6775 = vmatprep.subr.mxu0 0.0
    %6776 = vmatpush2.msra.mxu0 0.0
    %6777 = vmatprep.mubr.f32.mxu0 0.0
    %6778 = vmatmul.mubr.f32.gmra.mxu0 %v6569
    %v6779 = vpop.f32.mrf.mxu0
    %v6780 = vadd.f32 0.0, %v6779
    %v6781 = vpop.f32.mrf.mxu0
    %6782 = vdwg.mxu0
    %v6783 = vadd.f32 %v6712, %v6780
    %6784 = vmatprep.subr.mxu0 0.0
    %6785 = vmatpush1.msra.mxu0 0.0
    %6786 = vmatprep.subr.mxu0 0.0
    %6787 = vmatpush1.msra.mxu0 0.0
    %6788 = vmatprep.subr.mxu0 0.0
    %6789 = vmatpush1.msra.mxu0 0.0
    %6790 = vmatprep.subr.mxu0 0.0
    %6791 = vmatpush1.msra.mxu0 0.0
    %6792 = vmatprep.subr.mxu0 0.0
    %6793 = vmatpush1.msra.mxu0 0.0
    %6794 = vmatprep.subr.mxu0 0.0
    %6795 = vmatpush1.msra.mxu0 0.0
    %6796 = vmatprep.subr.mxu0 0.0
    %6797 = vmatpush1.msra.mxu0 0.0
    %6798 = vmatprep.subr.mxu0 0.0
    %6799 = vmatpush1.msra.mxu0 0.0
    %6800 = vmatprep.subr.mxu0 0.0
    %6801 = vmatpush1.msra.mxu0 0.0
    %6802 = vmatprep.subr.mxu0 0.0
    %6803 = vmatpush1.msra.mxu0 0.0
    %6804 = vmatprep.subr.mxu0 0.0
    %6805 = vmatpush1.msra.mxu0 0.0
    %6806 = vmatprep.subr.mxu0 0.0
    %6807 = vmatpush1.msra.mxu0 0.0
    %6808 = vmatprep.subr.mxu0 0.0
    %6809 = vmatpush1.msra.mxu0 0.0
    %6810 = vmatprep.subr.mxu0 0.0
    %6811 = vmatpush1.msra.mxu0 0.0
    %6812 = vmatprep.subr.mxu0 0.0
    %6813 = vmatpush1.msra.mxu0 %v772
    %6814 = vmatprep.subr.mxu0 0.0
    %6815 = vmatpush1.msra.mxu0 %v771
    %6816 = vmatprep.subr.mxu0 0.0
    %6817 = vmatpush2.msra.mxu0 0.0
    %6818 = vmatprep.subr.mxu0 0.0
    %6819 = vmatpush2.msra.mxu0 0.0
    %6820 = vmatprep.subr.mxu0 0.0
    %6821 = vmatpush2.msra.mxu0 0.0
    %6822 = vmatprep.subr.mxu0 0.0
    %6823 = vmatpush2.msra.mxu0 0.0
    %6824 = vmatprep.subr.mxu0 0.0
    %6825 = vmatpush2.msra.mxu0 0.0
    %6826 = vmatprep.subr.mxu0 0.0
    %6827 = vmatpush2.msra.mxu0 0.0
    %6828 = vmatprep.subr.mxu0 0.0
    %6829 = vmatpush2.msra.mxu0 0.0
    %6830 = vmatprep.subr.mxu0 0.0
    %6831 = vmatpush2.msra.mxu0 0.0
    %6832 = vmatprep.subr.mxu0 0.0
    %6833 = vmatpush2.msra.mxu0 0.0
    %6834 = vmatprep.subr.mxu0 0.0
    %6835 = vmatpush2.msra.mxu0 0.0
    %6836 = vmatprep.subr.mxu0 0.0
    %6837 = vmatpush2.msra.mxu0 0.0
    %6838 = vmatprep.subr.mxu0 0.0
    %6839 = vmatpush2.msra.mxu0 0.0
    %6840 = vmatprep.subr.mxu0 0.0
    %6841 = vmatpush2.msra.mxu0 0.0
    %6842 = vmatprep.subr.mxu0 0.0
    %6843 = vmatpush2.msra.mxu0 0.0
    %6844 = vmatprep.subr.mxu0 0.0
    %6845 = vmatpush2.msra.mxu0 0.0
    %6846 = vmatprep.subr.mxu0 0.0
    %6847 = vmatpush2.msra.mxu0 0.0
    %6848 = vmatprep.mubr.f32.mxu0 0.0
    %6849 = vmatmul.mubr.f32.gmra.mxu0 %v6495
    %v6850 = vpop.f32.mrf.mxu0
    %v6851 = vadd.f32 0.0, %v6850
    %v6852 = vpop.f32.mrf.mxu0
    %6853 = vdwg.mxu0
    %v6854 = vadd.f32 %v1482, %v6851
    %6855 = vmatprep.subr.mxu0 0.0
    %6856 = vmatpush1.msra.mxu0 0.0
    %6857 = vmatprep.subr.mxu0 0.0
    %6858 = vmatpush1.msra.mxu0 0.0
    %6859 = vmatprep.subr.mxu0 0.0
    %6860 = vmatpush1.msra.mxu0 0.0
    %6861 = vmatprep.subr.mxu0 0.0
    %6862 = vmatpush1.msra.mxu0 0.0
    %6863 = vmatprep.subr.mxu0 0.0
    %6864 = vmatpush1.msra.mxu0 0.0
    %6865 = vmatprep.subr.mxu0 0.0
    %6866 = vmatpush1.msra.mxu0 0.0
    %6867 = vmatprep.subr.mxu0 0.0
    %6868 = vmatpush1.msra.mxu0 0.0
    %6869 = vmatprep.subr.mxu0 0.0
    %6870 = vmatpush1.msra.mxu0 0.0
    %6871 = vmatprep.subr.mxu0 0.0
    %6872 = vmatpush1.msra.mxu0 0.0
    %6873 = vmatprep.subr.mxu0 0.0
    %6874 = vmatpush1.msra.mxu0 0.0
    %6875 = vmatprep.subr.mxu0 0.0
    %6876 = vmatpush1.msra.mxu0 0.0
    %6877 = vmatprep.subr.mxu0 0.0
    %6878 = vmatpush1.msra.mxu0 0.0
    %6879 = vmatprep.subr.mxu0 0.0
    %6880 = vmatpush1.msra.mxu0 0.0
    %6881 = vmatprep.subr.mxu0 0.0
    %6882 = vmatpush1.msra.mxu0 0.0
    %6883 = vmatprep.subr.mxu0 0.0
    %6884 = vmatpush1.msra.mxu0 %v783
    %6885 = vmatprep.subr.mxu0 0.0
    %6886 = vmatpush1.msra.mxu0 %v782
    %6887 = vmatprep.subr.mxu0 0.0
    %6888 = vmatpush2.msra.mxu0 0.0
    %6889 = vmatprep.subr.mxu0 0.0
    %6890 = vmatpush2.msra.mxu0 0.0
    %6891 = vmatprep.subr.mxu0 0.0
    %6892 = vmatpush2.msra.mxu0 0.0
    %6893 = vmatprep.subr.mxu0 0.0
    %6894 = vmatpush2.msra.mxu0 0.0
    %6895 = vmatprep.subr.mxu0 0.0
    %6896 = vmatpush2.msra.mxu0 0.0
    %6897 = vmatprep.subr.mxu0 0.0
    %6898 = vmatpush2.msra.mxu0 0.0
    %6899 = vmatprep.subr.mxu0 0.0
    %6900 = vmatpush2.msra.mxu0 0.0
    %6901 = vmatprep.subr.mxu0 0.0
    %6902 = vmatpush2.msra.mxu0 0.0
    %6903 = vmatprep.subr.mxu0 0.0
    %6904 = vmatpush2.msra.mxu0 0.0
    %6905 = vmatprep.subr.mxu0 0.0
    %6906 = vmatpush2.msra.mxu0 0.0
    %6907 = vmatprep.subr.mxu0 0.0
    %6908 = vmatpush2.msra.mxu0 0.0
    %6909 = vmatprep.subr.mxu0 0.0
    %6910 = vmatpush2.msra.mxu0 0.0
    %6911 = vmatprep.subr.mxu0 0.0
    %6912 = vmatpush2.msra.mxu0 0.0
    %6913 = vmatprep.subr.mxu0 0.0
    %6914 = vmatpush2.msra.mxu0 0.0
    %6915 = vmatprep.subr.mxu0 0.0
    %6916 = vmatpush2.msra.mxu0 0.0
    %6917 = vmatprep.subr.mxu0 0.0
    %6918 = vmatpush2.msra.mxu0 0.0
    %6919 = vmatprep.mubr.f32.mxu0 0.0
    %6920 = vmatmul.mubr.f32.gmra.mxu0 %v6569
    %v6921 = vpop.f32.mrf.mxu0
    %v6922 = vadd.f32 0.0, %v6921
    %v6923 = vpop.f32.mrf.mxu0
    %6924 = vdwg.mxu0
    %v6925 = vadd.f32 %v6854, %v6922
    %6926 = vmatprep.subr.mxu0 0.0
    %6927 = vmatpush1.msra.mxu0 0.0
    %6928 = vmatprep.subr.mxu0 0.0
    %6929 = vmatpush1.msra.mxu0 0.0
    %6930 = vmatprep.subr.mxu0 0.0
    %6931 = vmatpush1.msra.mxu0 0.0
    %6932 = vmatprep.subr.mxu0 0.0
    %6933 = vmatpush1.msra.mxu0 0.0
    %6934 = vmatprep.subr.mxu0 0.0
    %6935 = vmatpush1.msra.mxu0 0.0
    %6936 = vmatprep.subr.mxu0 0.0
    %6937 = vmatpush1.msra.mxu0 0.0
    %6938 = vmatprep.subr.mxu0 0.0
    %6939 = vmatpush1.msra.mxu0 0.0
    %6940 = vmatprep.subr.mxu0 0.0
    %6941 = vmatpush1.msra.mxu0 0.0
    %6942 = vmatprep.subr.mxu0 0.0
    %6943 = vmatpush1.msra.mxu0 0.0
    %6944 = vmatprep.subr.mxu0 0.0
    %6945 = vmatpush1.msra.mxu0 0.0
    %6946 = vmatprep.subr.mxu0 0.0
    %6947 = vmatpush1.msra.mxu0 0.0
    %6948 = vmatprep.subr.mxu0 0.0
    %6949 = vmatpush1.msra.mxu0 0.0
    %6950 = vmatprep.subr.mxu0 0.0
    %6951 = vmatpush1.msra.mxu0 0.0
    %6952 = vmatprep.subr.mxu0 0.0
    %6953 = vmatpush1.msra.mxu0 0.0
    %6954 = vmatprep.subr.mxu0 0.0
    %6955 = vmatpush1.msra.mxu0 %v775
    %6956 = vmatprep.subr.mxu0 0.0
    %6957 = vmatpush1.msra.mxu0 %v774
    %6958 = vmatprep.subr.mxu0 0.0
    %6959 = vmatpush2.msra.mxu0 0.0
    %6960 = vmatprep.subr.mxu0 0.0
    %6961 = vmatpush2.msra.mxu0 0.0
    %6962 = vmatprep.subr.mxu0 0.0
    %6963 = vmatpush2.msra.mxu0 0.0
    %6964 = vmatprep.subr.mxu0 0.0
    %6965 = vmatpush2.msra.mxu0 0.0
    %6966 = vmatprep.subr.mxu0 0.0
    %6967 = vmatpush2.msra.mxu0 0.0
    %6968 = vmatprep.subr.mxu0 0.0
    %6969 = vmatpush2.msra.mxu0 0.0
    %6970 = vmatprep.subr.mxu0 0.0
    %6971 = vmatpush2.msra.mxu0 0.0
    %6972 = vmatprep.subr.mxu0 0.0
    %6973 = vmatpush2.msra.mxu0 0.0
    %6974 = vmatprep.subr.mxu0 0.0
    %6975 = vmatpush2.msra.mxu0 0.0
    %6976 = vmatprep.subr.mxu0 0.0
    %6977 = vmatpush2.msra.mxu0 0.0
    %6978 = vmatprep.subr.mxu0 0.0
    %6979 = vmatpush2.msra.mxu0 0.0
    %6980 = vmatprep.subr.mxu0 0.0
    %6981 = vmatpush2.msra.mxu0 0.0
    %6982 = vmatprep.subr.mxu0 0.0
    %6983 = vmatpush2.msra.mxu0 0.0
    %6984 = vmatprep.subr.mxu0 0.0
    %6985 = vmatpush2.msra.mxu0 0.0
    %6986 = vmatprep.subr.mxu0 0.0
    %6987 = vmatpush2.msra.mxu0 0.0
    %6988 = vmatprep.subr.mxu0 0.0
    %6989 = vmatpush2.msra.mxu0 0.0
    %6990 = vmatprep.mubr.f32.mxu0 0.0
    %6991 = vmatmul.mubr.f32.gmra.mxu0 %v6495
    %v6992 = vpop.f32.mrf.mxu0
    %v6993 = vadd.f32 0.0, %v6992
    %v6994 = vpop.f32.mrf.mxu0
    %6995 = vdwg.mxu0
    %v6996 = vadd.f32 %v1630, %v6993
    %6997 = vmatprep.subr.mxu0 0.0
    %6998 = vmatpush1.msra.mxu0 0.0
    %6999 = vmatprep.subr.mxu0 0.0
    %7000 = vmatpush1.msra.mxu0 0.0
    %7001 = vmatprep.subr.mxu0 0.0
    %7002 = vmatpush1.msra.mxu0 0.0
    %7003 = vmatprep.subr.mxu0 0.0
    %7004 = vmatpush1.msra.mxu0 0.0
    %7005 = vmatprep.subr.mxu0 0.0
    %7006 = vmatpush1.msra.mxu0 0.0
    %7007 = vmatprep.subr.mxu0 0.0
    %7008 = vmatpush1.msra.mxu0 0.0
    %7009 = vmatprep.subr.mxu0 0.0
    %7010 = vmatpush1.msra.mxu0 0.0
    %7011 = vmatprep.subr.mxu0 0.0
    %7012 = vmatpush1.msra.mxu0 0.0
    %7013 = vmatprep.subr.mxu0 0.0
    %7014 = vmatpush1.msra.mxu0 0.0
    %7015 = vmatprep.subr.mxu0 0.0
    %7016 = vmatpush1.msra.mxu0 0.0
    %7017 = vmatprep.subr.mxu0 0.0
    %7018 = vmatpush1.msra.mxu0 0.0
    %7019 = vmatprep.subr.mxu0 0.0
    %7020 = vmatpush1.msra.mxu0 0.0
    %7021 = vmatprep.subr.mxu0 0.0
    %7022 = vmatpush1.msra.mxu0 0.0
    %7023 = vmatprep.subr.mxu0 0.0
    %7024 = vmatpush1.msra.mxu0 0.0
    %7025 = vmatprep.subr.mxu0 0.0
    %7026 = vmatpush1.msra.mxu0 %v786
    %7027 = vmatprep.subr.mxu0 0.0
    %7028 = vmatpush1.msra.mxu0 %v785
    %7029 = vmatprep.subr.mxu0 0.0
    %7030 = vmatpush2.msra.mxu0 0.0
    %7031 = vmatprep.subr.mxu0 0.0
    %7032 = vmatpush2.msra.mxu0 0.0
    %7033 = vmatprep.subr.mxu0 0.0
    %7034 = vmatpush2.msra.mxu0 0.0
    %7035 = vmatprep.subr.mxu0 0.0
    %7036 = vmatpush2.msra.mxu0 0.0
    %7037 = vmatprep.subr.mxu0 0.0
    %7038 = vmatpush2.msra.mxu0 0.0
    %7039 = vmatprep.subr.mxu0 0.0
    %7040 = vmatpush2.msra.mxu0 0.0
    %7041 = vmatprep.subr.mxu0 0.0
    %7042 = vmatpush2.msra.mxu0 0.0
    %7043 = vmatprep.subr.mxu0 0.0
    %7044 = vmatpush2.msra.mxu0 0.0
    %7045 = vmatprep.subr.mxu0 0.0
    %7046 = vmatpush2.msra.mxu0 0.0
    %7047 = vmatprep.subr.mxu0 0.0
    %7048 = vmatpush2.msra.mxu0 0.0
    %7049 = vmatprep.subr.mxu0 0.0
    %7050 = vmatpush2.msra.mxu0 0.0
    %7051 = vmatprep.subr.mxu0 0.0
    %7052 = vmatpush2.msra.mxu0 0.0
    %7053 = vmatprep.subr.mxu0 0.0
    %7054 = vmatpush2.msra.mxu0 0.0
    %7055 = vmatprep.subr.mxu0 0.0
    %7056 = vmatpush2.msra.mxu0 0.0
    %7057 = vmatprep.subr.mxu0 0.0
    %7058 = vmatpush2.msra.mxu0 0.0
    %7059 = vmatprep.subr.mxu0 0.0
    %7060 = vmatpush2.msra.mxu0 0.0
    %7061 = vmatprep.mubr.f32.mxu0 0.0
    %7062 = vmatmul.mubr.f32.gmra.mxu0 %v6569
    %v7063 = vpop.f32.mrf.mxu0
    %v7064 = vadd.f32 0.0, %v7063
    %v7065 = vpop.f32.mrf.mxu0
    %7066 = vdwg.mxu0
    %v7067 = vadd.f32 %v6996, %v7064
    %v7068 = vmul.f32 %v6783, 0.5
    %v7069 = vtanh.pop %v7068
    %v7070 = vmul.f32 %v7069, 0.5
    %v7071 = vadd.f32 %v7070, 0.5
    %v7072 = vmul.f32 %v7071, %v6185
    %v7073 = vmul.f32 %v6641, 0.5
    %v7074 = vtanh.pop %v7073
    %v7075 = vmul.f32 %v7074, 0.5
    %v7076 = vadd.f32 %v7075, 0.5
    %v7077 = vtanh.pop %v6925
    %v7078 = vmul.f32 %v7076, %v7077
    %v7079 = vadd.f32 %v7072, %v7078
    %v7080 = vmul.f32 %v7067, 0.5
    %v7081 = vtanh.pop %v7080
    %v7082 = vmul.f32 %v7081, 0.5
    %v7083 = vadd.f32 %v7082, 0.5
    %v7084 = vtanh.pop %v7079
    %v7085 = vmul.f32 %v7083, %v7084
    %7086 = vmatprep.subr.mxu0 0.0
    %7087 = vmatpush1.msra.mxu0 0.0
    %7088 = vmatprep.subr.mxu0 0.0
    %7089 = vmatpush1.msra.mxu0 0.0
    %7090 = vmatprep.subr.mxu0 0.0
    %7091 = vmatpush1.msra.mxu0 0.0
    %7092 = vmatprep.subr.mxu0 0.0
    %7093 = vmatpush1.msra.mxu0 0.0
    %7094 = vmatprep.subr.mxu0 0.0
    %7095 = vmatpush1.msra.mxu0 0.0
    %7096 = vmatprep.subr.mxu0 0.0
    %7097 = vmatpush1.msra.mxu0 0.0
    %7098 = vmatprep.subr.mxu0 0.0
    %7099 = vmatpush1.msra.mxu0 0.0
    %7100 = vmatprep.subr.mxu0 0.0
    %7101 = vmatpush1.msra.mxu0 0.0
    %7102 = vmatprep.subr.mxu0 0.0
    %7103 = vmatpush1.msra.mxu0 0.0
    %7104 = vmatprep.subr.mxu0 0.0
    %7105 = vmatpush1.msra.mxu0 0.0
    %7106 = vmatprep.subr.mxu0 0.0
    %7107 = vmatpush1.msra.mxu0 0.0
    %7108 = vmatprep.subr.mxu0 0.0
    %7109 = vmatpush1.msra.mxu0 0.0
    %7110 = vmatprep.subr.mxu0 0.0
    %7111 = vmatpush1.msra.mxu0 0.0
    %7112 = vmatprep.subr.mxu0 0.0
    %7113 = vmatpush1.msra.mxu0 0.0
    %7114 = vmatprep.subr.mxu0 0.0
    %7115 = vmatpush1.msra.mxu0 %v755
    %7116 = vmatprep.subr.mxu0 0.0
    %7117 = vmatpush1.msra.mxu0 %v754
    %7118 = vmatprep.subr.mxu0 0.0
    %7119 = vmatpush2.msra.mxu0 0.0
    %7120 = vmatprep.subr.mxu0 0.0
    %7121 = vmatpush2.msra.mxu0 0.0
    %7122 = vmatprep.subr.mxu0 0.0
    %7123 = vmatpush2.msra.mxu0 0.0
    %7124 = vmatprep.subr.mxu0 0.0
    %7125 = vmatpush2.msra.mxu0 0.0
    %7126 = vmatprep.subr.mxu0 0.0
    %7127 = vmatpush2.msra.mxu0 0.0
    %7128 = vmatprep.subr.mxu0 0.0
    %7129 = vmatpush2.msra.mxu0 0.0
    %7130 = vmatprep.subr.mxu0 0.0
    %7131 = vmatpush2.msra.mxu0 0.0
    %7132 = vmatprep.subr.mxu0 0.0
    %7133 = vmatpush2.msra.mxu0 0.0
    %7134 = vmatprep.subr.mxu0 0.0
    %7135 = vmatpush2.msra.mxu0 0.0
    %7136 = vmatprep.subr.mxu0 0.0
    %7137 = vmatpush2.msra.mxu0 0.0
    %7138 = vmatprep.subr.mxu0 0.0
    %7139 = vmatpush2.msra.mxu0 0.0
    %7140 = vmatprep.subr.mxu0 0.0
    %7141 = vmatpush2.msra.mxu0 0.0
    %7142 = vmatprep.subr.mxu0 0.0
    %7143 = vmatpush2.msra.mxu0 0.0
    %7144 = vmatprep.subr.mxu0 0.0
    %7145 = vmatpush2.msra.mxu0 0.0
    %7146 = vmatprep.subr.mxu0 0.0
    %7147 = vmatpush2.msra.mxu0 0.0
    %7148 = vmatprep.subr.mxu0 0.0
    %7149 = vmatpush2.msra.mxu0 0.0
    %7150 = vmatprep.mubr.f32.mxu0 0.0
    %7151 = vmatmul.mubr.f32.gmra.mxu0 %v6495
    %v7152 = vpop.f32.mrf.mxu0
    %v7153 = vadd.f32 0.0, %v7152
    %v7154 = vpop.f32.mrf.mxu0
    %7155 = vdwg.mxu0
    %v7156 = vadd.f32 %v321, %v7153
    %7157 = vmatprep.subr.mxu0 0.0
    %7158 = vmatpush1.msra.mxu0 0.0
    %7159 = vmatprep.subr.mxu0 0.0
    %7160 = vmatpush1.msra.mxu0 0.0
    %7161 = vmatprep.subr.mxu0 0.0
    %7162 = vmatpush1.msra.mxu0 0.0
    %7163 = vmatprep.subr.mxu0 0.0
    %7164 = vmatpush1.msra.mxu0 0.0
    %7165 = vmatprep.subr.mxu0 0.0
    %7166 = vmatpush1.msra.mxu0 0.0
    %7167 = vmatprep.subr.mxu0 0.0
    %7168 = vmatpush1.msra.mxu0 0.0
    %7169 = vmatprep.subr.mxu0 0.0
    %7170 = vmatpush1.msra.mxu0 0.0
    %7171 = vmatprep.subr.mxu0 0.0
    %7172 = vmatpush1.msra.mxu0 0.0
    %7173 = vmatprep.subr.mxu0 0.0
    %7174 = vmatpush1.msra.mxu0 0.0
    %7175 = vmatprep.subr.mxu0 0.0
    %7176 = vmatpush1.msra.mxu0 0.0
    %7177 = vmatprep.subr.mxu0 0.0
    %7178 = vmatpush1.msra.mxu0 0.0
    %7179 = vmatprep.subr.mxu0 0.0
    %7180 = vmatpush1.msra.mxu0 0.0
    %7181 = vmatprep.subr.mxu0 0.0
    %7182 = vmatpush1.msra.mxu0 0.0
    %7183 = vmatprep.subr.mxu0 0.0
    %7184 = vmatpush1.msra.mxu0 0.0
    %7185 = vmatprep.subr.mxu0 0.0
    %7186 = vmatpush1.msra.mxu0 %v758
    %7187 = vmatprep.subr.mxu0 0.0
    %7188 = vmatpush1.msra.mxu0 %v757
    %7189 = vmatprep.subr.mxu0 0.0
    %7190 = vmatpush2.msra.mxu0 0.0
    %7191 = vmatprep.subr.mxu0 0.0
    %7192 = vmatpush2.msra.mxu0 0.0
    %7193 = vmatprep.subr.mxu0 0.0
    %7194 = vmatpush2.msra.mxu0 0.0
    %7195 = vmatprep.subr.mxu0 0.0
    %7196 = vmatpush2.msra.mxu0 0.0
    %7197 = vmatprep.subr.mxu0 0.0
    %7198 = vmatpush2.msra.mxu0 0.0
    %7199 = vmatprep.subr.mxu0 0.0
    %7200 = vmatpush2.msra.mxu0 0.0
    %7201 = vmatprep.subr.mxu0 0.0
    %7202 = vmatpush2.msra.mxu0 0.0
    %7203 = vmatprep.subr.mxu0 0.0
    %7204 = vmatpush2.msra.mxu0 0.0
    %7205 = vmatprep.subr.mxu0 0.0
    %7206 = vmatpush2.msra.mxu0 0.0
    %7207 = vmatprep.subr.mxu0 0.0
    %7208 = vmatpush2.msra.mxu0 0.0
    %7209 = vmatprep.subr.mxu0 0.0
    %7210 = vmatpush2.msra.mxu0 0.0
    %7211 = vmatprep.subr.mxu0 0.0
    %7212 = vmatpush2.msra.mxu0 0.0
    %7213 = vmatprep.subr.mxu0 0.0
    %7214 = vmatpush2.msra.mxu0 0.0
    %7215 = vmatprep.subr.mxu0 0.0
    %7216 = vmatpush2.msra.mxu0 0.0
    %7217 = vmatprep.subr.mxu0 0.0
    %7218 = vmatpush2.msra.mxu0 0.0
    %7219 = vmatprep.subr.mxu0 0.0
    %7220 = vmatpush2.msra.mxu0 0.0
    %7221 = vmatprep.mubr.f32.mxu0 0.0
    %7222 = vmatmul.mubr.f32.gmra.mxu0 %v6495
    %v7223 = vpop.f32.mrf.mxu0
    %v7224 = vadd.f32 0.0, %v7223
    %v7225 = vpop.f32.mrf.mxu0
    %7226 = vdwg.mxu0
    %v7227 = vadd.f32 %v465, %v7224
    %7228 = vmatprep.subr.mxu0 0.0
    %7229 = vmatpush1.msra.mxu0 0.0
    %7230 = vmatprep.subr.mxu0 0.0
    %7231 = vmatpush1.msra.mxu0 0.0
    %7232 = vmatprep.subr.mxu0 0.0
    %7233 = vmatpush1.msra.mxu0 0.0
    %7234 = vmatprep.subr.mxu0 0.0
    %7235 = vmatpush1.msra.mxu0 0.0
    %7236 = vmatprep.subr.mxu0 0.0
    %7237 = vmatpush1.msra.mxu0 0.0
    %7238 = vmatprep.subr.mxu0 0.0
    %7239 = vmatpush1.msra.mxu0 0.0
    %7240 = vmatprep.subr.mxu0 0.0
    %7241 = vmatpush1.msra.mxu0 0.0
    %7242 = vmatprep.subr.mxu0 0.0
    %7243 = vmatpush1.msra.mxu0 0.0
    %7244 = vmatprep.subr.mxu0 0.0
    %7245 = vmatpush1.msra.mxu0 0.0
    %7246 = vmatprep.subr.mxu0 0.0
    %7247 = vmatpush1.msra.mxu0 0.0
    %7248 = vmatprep.subr.mxu0 0.0
    %7249 = vmatpush1.msra.mxu0 0.0
    %7250 = vmatprep.subr.mxu0 0.0
    %7251 = vmatpush1.msra.mxu0 0.0
    %7252 = vmatprep.subr.mxu0 0.0
    %7253 = vmatpush1.msra.mxu0 0.0
    %7254 = vmatprep.subr.mxu0 0.0
    %7255 = vmatpush1.msra.mxu0 0.0
    %7256 = vmatprep.subr.mxu0 0.0
    %7257 = vmatpush1.msra.mxu0 %v761
    %7258 = vmatprep.subr.mxu0 0.0
    %7259 = vmatpush1.msra.mxu0 %v760
    %7260 = vmatprep.subr.mxu0 0.0
    %7261 = vmatpush2.msra.mxu0 0.0
    %7262 = vmatprep.subr.mxu0 0.0
    %7263 = vmatpush2.msra.mxu0 0.0
    %7264 = vmatprep.subr.mxu0 0.0
    %7265 = vmatpush2.msra.mxu0 0.0
    %7266 = vmatprep.subr.mxu0 0.0
    %7267 = vmatpush2.msra.mxu0 0.0
    %7268 = vmatprep.subr.mxu0 0.0
    %7269 = vmatpush2.msra.mxu0 0.0
    %7270 = vmatprep.subr.mxu0 0.0
    %7271 = vmatpush2.msra.mxu0 0.0
    %7272 = vmatprep.subr.mxu0 0.0
    %7273 = vmatpush2.msra.mxu0 0.0
    %7274 = vmatprep.subr.mxu0 0.0
    %7275 = vmatpush2.msra.mxu0 0.0
    %7276 = vmatprep.subr.mxu0 0.0
    %7277 = vmatpush2.msra.mxu0 0.0
    %7278 = vmatprep.subr.mxu0 0.0
    %7279 = vmatpush2.msra.mxu0 0.0
    %7280 = vmatprep.subr.mxu0 0.0
    %7281 = vmatpush2.msra.mxu0 0.0
    %7282 = vmatprep.subr.mxu0 0.0
    %7283 = vmatpush2.msra.mxu0 0.0
    %7284 = vmatprep.subr.mxu0 0.0
    %7285 = vmatpush2.msra.mxu0 0.0
    %7286 = vmatprep.subr.mxu0 0.0
    %7287 = vmatpush2.msra.mxu0 0.0
    %7288 = vmatprep.subr.mxu0 0.0
    %7289 = vmatpush2.msra.mxu0 0.0
    %7290 = vmatprep.subr.mxu0 0.0
    %7291 = vmatpush2.msra.mxu0 0.0
    %7292 = vmatprep.mubr.f32.mxu0 0.0
    %7293 = vmatmul.mubr.f32.gmra.mxu0 %v6495
    %v7294 = vpop.f32.mrf.mxu0
    %v7295 = vadd.f32 0.0, %v7294
    %v7296 = vpop.f32.mrf.mxu0
    %7297 = vdwg.mxu0
    %v7298 = vadd.f32 %v609, %v7295
    %7299 = vmatprep.subr.mxu0 0.0
    %7300 = vmatpush1.msra.mxu0 0.0
    %7301 = vmatprep.subr.mxu0 0.0
    %7302 = vmatpush1.msra.mxu0 0.0
    %7303 = vmatprep.subr.mxu0 0.0
    %7304 = vmatpush1.msra.mxu0 0.0
    %7305 = vmatprep.subr.mxu0 0.0
    %7306 = vmatpush1.msra.mxu0 0.0
    %7307 = vmatprep.subr.mxu0 0.0
    %7308 = vmatpush1.msra.mxu0 0.0
    %7309 = vmatprep.subr.mxu0 0.0
    %7310 = vmatpush1.msra.mxu0 0.0
    %7311 = vmatprep.subr.mxu0 0.0
    %7312 = vmatpush1.msra.mxu0 0.0
    %7313 = vmatprep.subr.mxu0 0.0
    %7314 = vmatpush1.msra.mxu0 0.0
    %7315 = vmatprep.subr.mxu0 0.0
    %7316 = vmatpush1.msra.mxu0 0.0
    %7317 = vmatprep.subr.mxu0 0.0
    %7318 = vmatpush1.msra.mxu0 0.0
    %7319 = vmatprep.subr.mxu0 0.0
    %7320 = vmatpush1.msra.mxu0 0.0
    %7321 = vmatprep.subr.mxu0 0.0
    %7322 = vmatpush1.msra.mxu0 0.0
    %7323 = vmatprep.subr.mxu0 0.0
    %7324 = vmatpush1.msra.mxu0 0.0
    %7325 = vmatprep.subr.mxu0 0.0
    %7326 = vmatpush1.msra.mxu0 0.0
    %7327 = vmatprep.subr.mxu0 0.0
    %7328 = vmatpush1.msra.mxu0 %v764
    %7329 = vmatprep.subr.mxu0 0.0
    %7330 = vmatpush1.msra.mxu0 %v763
    %7331 = vmatprep.subr.mxu0 0.0
    %7332 = vmatpush2.msra.mxu0 0.0
    %7333 = vmatprep.subr.mxu0 0.0
    %7334 = vmatpush2.msra.mxu0 0.0
    %7335 = vmatprep.subr.mxu0 0.0
    %7336 = vmatpush2.msra.mxu0 0.0
    %7337 = vmatprep.subr.mxu0 0.0
    %7338 = vmatpush2.msra.mxu0 0.0
    %7339 = vmatprep.subr.mxu0 0.0
    %7340 = vmatpush2.msra.mxu0 0.0
    %7341 = vmatprep.subr.mxu0 0.0
    %7342 = vmatpush2.msra.mxu0 0.0
    %7343 = vmatprep.subr.mxu0 0.0
    %7344 = vmatpush2.msra.mxu0 0.0
    %7345 = vmatprep.subr.mxu0 0.0
    %7346 = vmatpush2.msra.mxu0 0.0
    %7347 = vmatprep.subr.mxu0 0.0
    %7348 = vmatpush2.msra.mxu0 0.0
    %7349 = vmatprep.subr.mxu0 0.0
    %7350 = vmatpush2.msra.mxu0 0.0
    %7351 = vmatprep.subr.mxu0 0.0
    %7352 = vmatpush2.msra.mxu0 0.0
    %7353 = vmatprep.subr.mxu0 0.0
    %7354 = vmatpush2.msra.mxu0 0.0
    %7355 = vmatprep.subr.mxu0 0.0
    %7356 = vmatpush2.msra.mxu0 0.0
    %7357 = vmatprep.subr.mxu0 0.0
    %7358 = vmatpush2.msra.mxu0 0.0
    %7359 = vmatprep.subr.mxu0 0.0
    %7360 = vmatpush2.msra.mxu0 0.0
    %7361 = vmatprep.subr.mxu0 0.0
    %7362 = vmatpush2.msra.mxu0 0.0
    %7363 = vmatprep.mubr.f32.mxu0 0.0
    %7364 = vmatmul.mubr.f32.gmra.mxu0 %v6495
    %v7365 = vpop.f32.mrf.mxu0
    %v7366 = vadd.f32 0.0, %v7365
    %v7367 = vpop.f32.mrf.mxu0
    %7368 = vdwg.mxu0
    %v7369 = vadd.f32 %v753, %v7366
    %v7370 = vmul.f32 %v7227, 0.5
    %v7371 = vtanh.pop %v7370
    %v7372 = vmul.f32 %v7371, 0.5
    %v7373 = vadd.f32 %v7372, 0.5
    %v7374 = vmul.f32 %v7373, %v6487
    %v7375 = vmul.f32 %v7156, 0.5
    %v7376 = vtanh.pop %v7375
    %v7377 = vmul.f32 %v7376, 0.5
    %v7378 = vadd.f32 %v7377, 0.5
    %v7379 = vtanh.pop %v7298
    %v7380 = vmul.f32 %v7378, %v7379
    %v7381 = vadd.f32 %v7374, %v7380
    %v7382 = vmul.f32 %v7369, 0.5
    %v7383 = vtanh.pop %v7382
    %v7384 = vmul.f32 %v7383, 0.5
    %v7385 = vadd.f32 %v7384, 0.5
    %v7386 = vtanh.pop %v7381
    %v7387 = vmul.f32 %v7385, %v7386
    %v7389 = vsel %vm800, %v7387, 0
    %7391 = vmatprep.subr.mxu0 0.0
    %7392 = vmatpush1.msra.mxu0 0.0
    %7393 = vmatprep.subr.mxu0 0.0
    %7394 = vmatpush1.msra.mxu0 0.0
    %7395 = vmatprep.subr.mxu0 0.0
    %7396 = vmatpush1.msra.mxu0 0.0
    %7397 = vmatprep.subr.mxu0 0.0
    %7398 = vmatpush1.msra.mxu0 0.0
    %7399 = vmatprep.subr.mxu0 0.0
    %7400 = vmatpush1.msra.mxu0 0.0
    %7401 = vmatprep.subr.mxu0 0.0
    %7402 = vmatpush1.msra.mxu0 0.0
    %7403 = vmatprep.subr.mxu0 0.0
    %7404 = vmatpush1.msra.mxu0 0.0
    %7405 = vmatprep.subr.mxu0 0.0
    %7406 = vmatpush1.msra.mxu0 0.0
    %7407 = vmatprep.subr.mxu0 0.0
    %7408 = vmatpush1.msra.mxu0 0.0
    %7409 = vmatprep.subr.mxu0 0.0
    %7410 = vmatpush1.msra.mxu0 0.0
    %7411 = vmatprep.subr.mxu0 0.0
    %7412 = vmatpush1.msra.mxu0 0.0
    %7413 = vmatprep.subr.mxu0 0.0
    %7414 = vmatpush1.msra.mxu0 0.0
    %7415 = vmatprep.subr.mxu0 0.0
    %7416 = vmatpush1.msra.mxu0 0.0
    %7417 = vmatprep.subr.mxu0 0.0
    %7418 = vmatpush1.msra.mxu0 0.0
    %7419 = vmatprep.subr.mxu0 0.0
    %7420 = vmatpush1.msra.mxu0 %v766
    %7421 = vmatprep.subr.mxu0 0.0
    %7422 = vmatpush1.msra.mxu0 %v765
    %7423 = vmatprep.subr.mxu0 0.0
    %7424 = vmatpush2.msra.mxu0 0.0
    %7425 = vmatprep.subr.mxu0 0.0
    %7426 = vmatpush2.msra.mxu0 0.0
    %7427 = vmatprep.subr.mxu0 0.0
    %7428 = vmatpush2.msra.mxu0 0.0
    %7429 = vmatprep.subr.mxu0 0.0
    %7430 = vmatpush2.msra.mxu0 0.0
    %7431 = vmatprep.subr.mxu0 0.0
    %7432 = vmatpush2.msra.mxu0 0.0
    %7433 = vmatprep.subr.mxu0 0.0
    %7434 = vmatpush2.msra.mxu0 0.0
    %7435 = vmatprep.subr.mxu0 0.0
    %7436 = vmatpush2.msra.mxu0 0.0
    %7437 = vmatprep.subr.mxu0 0.0
    %7438 = vmatpush2.msra.mxu0 0.0
    %7439 = vmatprep.subr.mxu0 0.0
    %7440 = vmatpush2.msra.mxu0 0.0
    %7441 = vmatprep.subr.mxu0 0.0
    %7442 = vmatpush2.msra.mxu0 0.0
    %7443 = vmatprep.subr.mxu0 0.0
    %7444 = vmatpush2.msra.mxu0 0.0
    %7445 = vmatprep.subr.mxu0 0.0
    %7446 = vmatpush2.msra.mxu0 0.0
    %7447 = vmatprep.subr.mxu0 0.0
    %7448 = vmatpush2.msra.mxu0 0.0
    %7449 = vmatprep.subr.mxu0 0.0
    %7450 = vmatpush2.msra.mxu0 0.0
    %7451 = vmatprep.subr.mxu0 0.0
    %7452 = vmatpush2.msra.mxu0 0.0
    %7453 = vmatprep.subr.mxu0 0.0
    %7454 = vmatpush2.msra.mxu0 0.0
    %7455 = vmatprep.mubr.f32.mxu0 0.0
    %7456 = vmatmul.mubr.f32.gmra.mxu0 %v7389
    %v7457 = vpop.f32.mrf.mxu0
    %v7458 = vadd.f32 0.0, %v7457
    %v7459 = vpop.f32.mrf.mxu0
    %7460 = vdwg.mxu0
    %v7461 = vadd.f32 %v1183, %v7458
    %v7463 = vsel %vm800, %v7085, 0
    %7465 = vmatprep.subr.mxu0 0.0
    %7466 = vmatpush1.msra.mxu0 0.0
    %7467 = vmatprep.subr.mxu0 0.0
    %7468 = vmatpush1.msra.mxu0 0.0
    %7469 = vmatprep.subr.mxu0 0.0
    %7470 = vmatpush1.msra.mxu0 0.0
    %7471 = vmatprep.subr.mxu0 0.0
    %7472 = vmatpush1.msra.mxu0 0.0
    %7473 = vmatprep.subr.mxu0 0.0
    %7474 = vmatpush1.msra.mxu0 0.0
    %7475 = vmatprep.subr.mxu0 0.0
    %7476 = vmatpush1.msra.mxu0 0.0
    %7477 = vmatprep.subr.mxu0 0.0
    %7478 = vmatpush1.msra.mxu0 0.0
    %7479 = vmatprep.subr.mxu0 0.0
    %7480 = vmatpush1.msra.mxu0 0.0
    %7481 = vmatprep.subr.mxu0 0.0
    %7482 = vmatpush1.msra.mxu0 0.0
    %7483 = vmatprep.subr.mxu0 0.0
    %7484 = vmatpush1.msra.mxu0 0.0
    %7485 = vmatprep.subr.mxu0 0.0
    %7486 = vmatpush1.msra.mxu0 0.0
    %7487 = vmatprep.subr.mxu0 0.0
    %7488 = vmatpush1.msra.mxu0 0.0
    %7489 = vmatprep.subr.mxu0 0.0
    %7490 = vmatpush1.msra.mxu0 0.0
    %7491 = vmatprep.subr.mxu0 0.0
    %7492 = vmatpush1.msra.mxu0 0.0
    %7493 = vmatprep.subr.mxu0 0.0
    %7494 = vmatpush1.msra.mxu0 %v777
    %7495 = vmatprep.subr.mxu0 0.0
    %7496 = vmatpush1.msra.mxu0 %v776
    %7497 = vmatprep.subr.mxu0 0.0
    %7498 = vmatpush2.msra.mxu0 0.0
    %7499 = vmatprep.subr.mxu0 0.0
    %7500 = vmatpush2.msra.mxu0 0.0
    %7501 = vmatprep.subr.mxu0 0.0
    %7502 = vmatpush2.msra.mxu0 0.0
    %7503 = vmatprep.subr.mxu0 0.0
    %7504 = vmatpush2.msra.mxu0 0.0
    %7505 = vmatprep.subr.mxu0 0.0
    %7506 = vmatpush2.msra.mxu0 0.0
    %7507 = vmatprep.subr.mxu0 0.0
    %7508 = vmatpush2.msra.mxu0 0.0
    %7509 = vmatprep.subr.mxu0 0.0
    %7510 = vmatpush2.msra.mxu0 0.0
    %7511 = vmatprep.subr.mxu0 0.0
    %7512 = vmatpush2.msra.mxu0 0.0
    %7513 = vmatprep.subr.mxu0 0.0
    %7514 = vmatpush2.msra.mxu0 0.0
    %7515 = vmatprep.subr.mxu0 0.0
    %7516 = vmatpush2.msra.mxu0 0.0
    %7517 = vmatprep.subr.mxu0 0.0
    %7518 = vmatpush2.msra.mxu0 0.0
    %7519 = vmatprep.subr.mxu0 0.0
    %7520 = vmatpush2.msra.mxu0 0.0
    %7521 = vmatprep.subr.mxu0 0.0
    %7522 = vmatpush2.msra.mxu0 0.0
    %7523 = vmatprep.subr.mxu0 0.0
    %7524 = vmatpush2.msra.mxu0 0.0
    %7525 = vmatprep.subr.mxu0 0.0
    %7526 = vmatpush2.msra.mxu0 0.0
    %7527 = vmatprep.subr.mxu0 0.0
    %7528 = vmatpush2.msra.mxu0 0.0
    %7529 = vmatprep.mubr.f32.mxu0 0.0
    %7530 = vmatmul.mubr.f32.gmra.mxu0 %v7463
    %v7531 = vpop.f32.mrf.mxu0
    %v7532 = vadd.f32 0.0, %v7531
    %v7533 = vpop.f32.mrf.mxu0
    %7534 = vdwg.mxu0
    %v7535 = vadd.f32 %v7461, %v7532
    %7536 = vmatprep.subr.mxu0 0.0
    %7537 = vmatpush1.msra.mxu0 0.0
    %7538 = vmatprep.subr.mxu0 0.0
    %7539 = vmatpush1.msra.mxu0 0.0
    %7540 = vmatprep.subr.mxu0 0.0
    %7541 = vmatpush1.msra.mxu0 0.0
    %7542 = vmatprep.subr.mxu0 0.0
    %7543 = vmatpush1.msra.mxu0 0.0
    %7544 = vmatprep.subr.mxu0 0.0
    %7545 = vmatpush1.msra.mxu0 0.0
    %7546 = vmatprep.subr.mxu0 0.0
    %7547 = vmatpush1.msra.mxu0 0.0
    %7548 = vmatprep.subr.mxu0 0.0
    %7549 = vmatpush1.msra.mxu0 0.0
    %7550 = vmatprep.subr.mxu0 0.0
    %7551 = vmatpush1.msra.mxu0 0.0
    %7552 = vmatprep.subr.mxu0 0.0
    %7553 = vmatpush1.msra.mxu0 0.0
    %7554 = vmatprep.subr.mxu0 0.0
    %7555 = vmatpush1.msra.mxu0 0.0
    %7556 = vmatprep.subr.mxu0 0.0
    %7557 = vmatpush1.msra.mxu0 0.0
    %7558 = vmatprep.subr.mxu0 0.0
    %7559 = vmatpush1.msra.mxu0 0.0
    %7560 = vmatprep.subr.mxu0 0.0
    %7561 = vmatpush1.msra.mxu0 0.0
    %7562 = vmatprep.subr.mxu0 0.0
    %7563 = vmatpush1.msra.mxu0 0.0
    %7564 = vmatprep.subr.mxu0 0.0
    %7565 = vmatpush1.msra.mxu0 %v769
    %7566 = vmatprep.subr.mxu0 0.0
    %7567 = vmatpush1.msra.mxu0 %v768
    %7568 = vmatprep.subr.mxu0 0.0
    %7569 = vmatpush2.msra.mxu0 0.0
    %7570 = vmatprep.subr.mxu0 0.0
    %7571 = vmatpush2.msra.mxu0 0.0
    %7572 = vmatprep.subr.mxu0 0.0
    %7573 = vmatpush2.msra.mxu0 0.0
    %7574 = vmatprep.subr.mxu0 0.0
    %7575 = vmatpush2.msra.mxu0 0.0
    %7576 = vmatprep.subr.mxu0 0.0
    %7577 = vmatpush2.msra.mxu0 0.0
    %7578 = vmatprep.subr.mxu0 0.0
    %7579 = vmatpush2.msra.mxu0 0.0
    %7580 = vmatprep.subr.mxu0 0.0
    %7581 = vmatpush2.msra.mxu0 0.0
    %7582 = vmatprep.subr.mxu0 0.0
    %7583 = vmatpush2.msra.mxu0 0.0
    %7584 = vmatprep.subr.mxu0 0.0
    %7585 = vmatpush2.msra.mxu0 0.0
    %7586 = vmatprep.subr.mxu0 0.0
    %7587 = vmatpush2.msra.mxu0 0.0
    %7588 = vmatprep.subr.mxu0 0.0
    %7589 = vmatpush2.msra.mxu0 0.0
    %7590 = vmatprep.subr.mxu0 0.0
    %7591 = vmatpush2.msra.mxu0 0.0
    %7592 = vmatprep.subr.mxu0 0.0
    %7593 = vmatpush2.msra.mxu0 0.0
    %7594 = vmatprep.subr.mxu0 0.0
    %7595 = vmatpush2.msra.mxu0 0.0
    %7596 = vmatprep.subr.mxu0 0.0
    %7597 = vmatpush2.msra.mxu0 0.0
    %7598 = vmatprep.subr.mxu0 0.0
    %7599 = vmatpush2.msra.mxu0 0.0
    %7600 = vmatprep.mubr.f32.mxu0 0.0
    %7601 = vmatmul.mubr.f32.gmra.mxu0 %v7389
    %v7602 = vpop.f32.mrf.mxu0
    %v7603 = vadd.f32 0.0, %v7602
    %v7604 = vpop.f32.mrf.mxu0
    %7605 = vdwg.mxu0
    %v7606 = vadd.f32 %v1334, %v7603
    %7607 = vmatprep.subr.mxu0 0.0
    %7608 = vmatpush1.msra.mxu0 0.0
    %7609 = vmatprep.subr.mxu0 0.0
    %7610 = vmatpush1.msra.mxu0 0.0
    %7611 = vmatprep.subr.mxu0 0.0
    %7612 = vmatpush1.msra.mxu0 0.0
    %7613 = vmatprep.subr.mxu0 0.0
    %7614 = vmatpush1.msra.mxu0 0.0
    %7615 = vmatprep.subr.mxu0 0.0
    %7616 = vmatpush1.msra.mxu0 0.0
    %7617 = vmatprep.subr.mxu0 0.0
    %7618 = vmatpush1.msra.mxu0 0.0
    %7619 = vmatprep.subr.mxu0 0.0
    %7620 = vmatpush1.msra.mxu0 0.0
    %7621 = vmatprep.subr.mxu0 0.0
    %7622 = vmatpush1.msra.mxu0 0.0
    %7623 = vmatprep.subr.mxu0 0.0
    %7624 = vmatpush1.msra.mxu0 0.0
    %7625 = vmatprep.subr.mxu0 0.0
    %7626 = vmatpush1.msra.mxu0 0.0
    %7627 = vmatprep.subr.mxu0 0.0
    %7628 = vmatpush1.msra.mxu0 0.0
    %7629 = vmatprep.subr.mxu0 0.0
    %7630 = vmatpush1.msra.mxu0 0.0
    %7631 = vmatprep.subr.mxu0 0.0
    %7632 = vmatpush1.msra.mxu0 0.0
    %7633 = vmatprep.subr.mxu0 0.0
    %7634 = vmatpush1.msra.mxu0 0.0
    %7635 = vmatprep.subr.mxu0 0.0
    %7636 = vmatpush1.msra.mxu0 %v780
    %7637 = vmatprep.subr.mxu0 0.0
    %7638 = vmatpush1.msra.mxu0 %v779
    %7639 = vmatprep.subr.mxu0 0.0
    %7640 = vmatpush2.msra.mxu0 0.0
    %7641 = vmatprep.subr.mxu0 0.0
    %7642 = vmatpush2.msra.mxu0 0.0
    %7643 = vmatprep.subr.mxu0 0.0
    %7644 = vmatpush2.msra.mxu0 0.0
    %7645 = vmatprep.subr.mxu0 0.0
    %7646 = vmatpush2.msra.mxu0 0.0
    %7647 = vmatprep.subr.mxu0 0.0
    %7648 = vmatpush2.msra.mxu0 0.0
    %7649 = vmatprep.subr.mxu0 0.0
    %7650 = vmatpush2.msra.mxu0 0.0
    %7651 = vmatprep.subr.mxu0 0.0
    %7652 = vmatpush2.msra.mxu0 0.0
    %7653 = vmatprep.subr.mxu0 0.0
    %7654 = vmatpush2.msra.mxu0 0.0
    %7655 = vmatprep.subr.mxu0 0.0
    %7656 = vmatpush2.msra.mxu0 0.0
    %7657 = vmatprep.subr.mxu0 0.0
    %7658 = vmatpush2.msra.mxu0 0.0
    %7659 = vmatprep.subr.mxu0 0.0
    %7660 = vmatpush2.msra.mxu0 0.0
    %7661 = vmatprep.subr.mxu0 0.0
    %7662 = vmatpush2.msra.mxu0 0.0
    %7663 = vmatprep.subr.mxu0 0.0
    %7664 = vmatpush2.msra.mxu0 0.0
    %7665 = vmatprep.subr.mxu0 0.0
    %7666 = vmatpush2.msra.mxu0 0.0
    %7667 = vmatprep.subr.mxu0 0.0
    %7668 = vmatpush2.msra.mxu0 0.0
    %7669 = vmatprep.subr.mxu0 0.0
    %7670 = vmatpush2.msra.mxu0 0.0
    %7671 = vmatprep.mubr.f32.mxu0 0.0
    %7672 = vmatmul.mubr.f32.gmra.mxu0 %v7463
    %v7673 = vpop.f32.mrf.mxu0
    %v7674 = vadd.f32 0.0, %v7673
    %v7675 = vpop.f32.mrf.mxu0
    %7676 = vdwg.mxu0
    %v7677 = vadd.f32 %v7606, %v7674
    %7678 = vmatprep.subr.mxu0 0.0
    %7679 = vmatpush1.msra.mxu0 0.0
    %7680 = vmatprep.subr.mxu0 0.0
    %7681 = vmatpush1.msra.mxu0 0.0
    %7682 = vmatprep.subr.mxu0 0.0
    %7683 = vmatpush1.msra.mxu0 0.0
    %7684 = vmatprep.subr.mxu0 0.0
    %7685 = vmatpush1.msra.mxu0 0.0
    %7686 = vmatprep.subr.mxu0 0.0
    %7687 = vmatpush1.msra.mxu0 0.0
    %7688 = vmatprep.subr.mxu0 0.0
    %7689 = vmatpush1.msra.mxu0 0.0
    %7690 = vmatprep.subr.mxu0 0.0
    %7691 = vmatpush1.msra.mxu0 0.0
    %7692 = vmatprep.subr.mxu0 0.0
    %7693 = vmatpush1.msra.mxu0 0.0
    %7694 = vmatprep.subr.mxu0 0.0
    %7695 = vmatpush1.msra.mxu0 0.0
    %7696 = vmatprep.subr.mxu0 0.0
    %7697 = vmatpush1.msra.mxu0 0.0
    %7698 = vmatprep.subr.mxu0 0.0
    %7699 = vmatpush1.msra.mxu0 0.0
    %7700 = vmatprep.subr.mxu0 0.0
    %7701 = vmatpush1.msra.mxu0 0.0
    %7702 = vmatprep.subr.mxu0 0.0
    %7703 = vmatpush1.msra.mxu0 0.0
    %7704 = vmatprep.subr.mxu0 0.0
    %7705 = vmatpush1.msra.mxu0 0.0
    %7706 = vmatprep.subr.mxu0 0.0
    %7707 = vmatpush1.msra.mxu0 %v772
    %7708 = vmatprep.subr.mxu0 0.0
    %7709 = vmatpush1.msra.mxu0 %v771
    %7710 = vmatprep.subr.mxu0 0.0
    %7711 = vmatpush2.msra.mxu0 0.0
    %7712 = vmatprep.subr.mxu0 0.0
    %7713 = vmatpush2.msra.mxu0 0.0
    %7714 = vmatprep.subr.mxu0 0.0
    %7715 = vmatpush2.msra.mxu0 0.0
    %7716 = vmatprep.subr.mxu0 0.0
    %7717 = vmatpush2.msra.mxu0 0.0
    %7718 = vmatprep.subr.mxu0 0.0
    %7719 = vmatpush2.msra.mxu0 0.0
    %7720 = vmatprep.subr.mxu0 0.0
    %7721 = vmatpush2.msra.mxu0 0.0
    %7722 = vmatprep.subr.mxu0 0.0
    %7723 = vmatpush2.msra.mxu0 0.0
    %7724 = vmatprep.subr.mxu0 0.0
    %7725 = vmatpush2.msra.mxu0 0.0
    %7726 = vmatprep.subr.mxu0 0.0
    %7727 = vmatpush2.msra.mxu0 0.0
    %7728 = vmatprep.subr.mxu0 0.0
    %7729 = vmatpush2.msra.mxu0 0.0
    %7730 = vmatprep.subr.mxu0 0.0
    %7731 = vmatpush2.msra.mxu0 0.0
    %7732 = vmatprep.subr.mxu0 0.0
    %7733 = vmatpush2.msra.mxu0 0.0
    %7734 = vmatprep.subr.mxu0 0.0
    %7735 = vmatpush2.msra.mxu0 0.0
    %7736 = vmatprep.subr.mxu0 0.0
    %7737 = vmatpush2.msra.mxu0 0.0
    %7738 = vmatprep.subr.mxu0 0.0
    %7739 = vmatpush2.msra.mxu0 0.0
    %7740 = vmatprep.subr.mxu0 0.0
    %7741 = vmatpush2.msra.mxu0 0.0
    %7742 = vmatprep.mubr.f32.mxu0 0.0
    %7743 = vmatmul.mubr.f32.gmra.mxu0 %v7389
    %v7744 = vpop.f32.mrf.mxu0
    %v7745 = vadd.f32 0.0, %v7744
    %v7746 = vpop.f32.mrf.mxu0
    %7747 = vdwg.mxu0
    %v7748 = vadd.f32 %v1482, %v7745
    %7749 = vmatprep.subr.mxu0 0.0
    %7750 = vmatpush1.msra.mxu0 0.0
    %7751 = vmatprep.subr.mxu0 0.0
    %7752 = vmatpush1.msra.mxu0 0.0
    %7753 = vmatprep.subr.mxu0 0.0
    %7754 = vmatpush1.msra.mxu0 0.0
    %7755 = vmatprep.subr.mxu0 0.0
    %7756 = vmatpush1.msra.mxu0 0.0
    %7757 = vmatprep.subr.mxu0 0.0
    %7758 = vmatpush1.msra.mxu0 0.0
    %7759 = vmatprep.subr.mxu0 0.0
    %7760 = vmatpush1.msra.mxu0 0.0
    %7761 = vmatprep.subr.mxu0 0.0
    %7762 = vmatpush1.msra.mxu0 0.0
    %7763 = vmatprep.subr.mxu0 0.0
    %7764 = vmatpush1.msra.mxu0 0.0
    %7765 = vmatprep.subr.mxu0 0.0
    %7766 = vmatpush1.msra.mxu0 0.0
    %7767 = vmatprep.subr.mxu0 0.0
    %7768 = vmatpush1.msra.mxu0 0.0
    %7769 = vmatprep.subr.mxu0 0.0
    %7770 = vmatpush1.msra.mxu0 0.0
    %7771 = vmatprep.subr.mxu0 0.0
    %7772 = vmatpush1.msra.mxu0 0.0
    %7773 = vmatprep.subr.mxu0 0.0
    %7774 = vmatpush1.msra.mxu0 0.0
    %7775 = vmatprep.subr.mxu0 0.0
    %7776 = vmatpush1.msra.mxu0 0.0
    %7777 = vmatprep.subr.mxu0 0.0
    %7778 = vmatpush1.msra.mxu0 %v783
    %7779 = vmatprep.subr.mxu0 0.0
    %7780 = vmatpush1.msra.mxu0 %v782
    %7781 = vmatprep.subr.mxu0 0.0
    %7782 = vmatpush2.msra.mxu0 0.0
    %7783 = vmatprep.subr.mxu0 0.0
    %7784 = vmatpush2.msra.mxu0 0.0
    %7785 = vmatprep.subr.mxu0 0.0
    %7786 = vmatpush2.msra.mxu0 0.0
    %7787 = vmatprep.subr.mxu0 0.0
    %7788 = vmatpush2.msra.mxu0 0.0
    %7789 = vmatprep.subr.mxu0 0.0
    %7790 = vmatpush2.msra.mxu0 0.0
    %7791 = vmatprep.subr.mxu0 0.0
    %7792 = vmatpush2.msra.mxu0 0.0
    %7793 = vmatprep.subr.mxu0 0.0
    %7794 = vmatpush2.msra.mxu0 0.0
    %7795 = vmatprep.subr.mxu0 0.0
    %7796 = vmatpush2.msra.mxu0 0.0
    %7797 = vmatprep.subr.mxu0 0.0
    %7798 = vmatpush2.msra.mxu0 0.0
    %7799 = vmatprep.subr.mxu0 0.0
    %7800 = vmatpush2.msra.mxu0 0.0
    %7801 = vmatprep.subr.mxu0 0.0
    %7802 = vmatpush2.msra.mxu0 0.0
    %7803 = vmatprep.subr.mxu0 0.0
    %7804 = vmatpush2.msra.mxu0 0.0
    %7805 = vmatprep.subr.mxu0 0.0
    %7806 = vmatpush2.msra.mxu0 0.0
    %7807 = vmatprep.subr.mxu0 0.0
    %7808 = vmatpush2.msra.mxu0 0.0
    %7809 = vmatprep.subr.mxu0 0.0
    %7810 = vmatpush2.msra.mxu0 0.0
    %7811 = vmatprep.subr.mxu0 0.0
    %7812 = vmatpush2.msra.mxu0 0.0
    %7813 = vmatprep.mubr.f32.mxu0 0.0
    %7814 = vmatmul.mubr.f32.gmra.mxu0 %v7463
    %v7815 = vpop.f32.mrf.mxu0
    %v7816 = vadd.f32 0.0, %v7815
    %v7817 = vpop.f32.mrf.mxu0
    %7818 = vdwg.mxu0
    %v7819 = vadd.f32 %v7748, %v7816
    %7820 = vmatprep.subr.mxu0 0.0
    %7821 = vmatpush1.msra.mxu0 0.0
    %7822 = vmatprep.subr.mxu0 0.0
    %7823 = vmatpush1.msra.mxu0 0.0
    %7824 = vmatprep.subr.mxu0 0.0
    %7825 = vmatpush1.msra.mxu0 0.0
    %7826 = vmatprep.subr.mxu0 0.0
    %7827 = vmatpush1.msra.mxu0 0.0
    %7828 = vmatprep.subr.mxu0 0.0
    %7829 = vmatpush1.msra.mxu0 0.0
    %7830 = vmatprep.subr.mxu0 0.0
    %7831 = vmatpush1.msra.mxu0 0.0
    %7832 = vmatprep.subr.mxu0 0.0
    %7833 = vmatpush1.msra.mxu0 0.0
    %7834 = vmatprep.subr.mxu0 0.0
    %7835 = vmatpush1.msra.mxu0 0.0
    %7836 = vmatprep.subr.mxu0 0.0
    %7837 = vmatpush1.msra.mxu0 0.0
    %7838 = vmatprep.subr.mxu0 0.0
    %7839 = vmatpush1.msra.mxu0 0.0
    %7840 = vmatprep.subr.mxu0 0.0
    %7841 = vmatpush1.msra.mxu0 0.0
    %7842 = vmatprep.subr.mxu0 0.0
    %7843 = vmatpush1.msra.mxu0 0.0
    %7844 = vmatprep.subr.mxu0 0.0
    %7845 = vmatpush1.msra.mxu0 0.0
    %7846 = vmatprep.subr.mxu0 0.0
    %7847 = vmatpush1.msra.mxu0 0.0
    %7848 = vmatprep.subr.mxu0 0.0
    %7849 = vmatpush1.msra.mxu0 %v775
    %7850 = vmatprep.subr.mxu0 0.0
    %7851 = vmatpush1.msra.mxu0 %v774
    %7852 = vmatprep.subr.mxu0 0.0
    %7853 = vmatpush2.msra.mxu0 0.0
    %7854 = vmatprep.subr.mxu0 0.0
    %7855 = vmatpush2.msra.mxu0 0.0
    %7856 = vmatprep.subr.mxu0 0.0
    %7857 = vmatpush2.msra.mxu0 0.0
    %7858 = vmatprep.subr.mxu0 0.0
    %7859 = vmatpush2.msra.mxu0 0.0
    %7860 = vmatprep.subr.mxu0 0.0
    %7861 = vmatpush2.msra.mxu0 0.0
    %7862 = vmatprep.subr.mxu0 0.0
    %7863 = vmatpush2.msra.mxu0 0.0
    %7864 = vmatprep.subr.mxu0 0.0
    %7865 = vmatpush2.msra.mxu0 0.0
    %7866 = vmatprep.subr.mxu0 0.0
    %7867 = vmatpush2.msra.mxu0 0.0
    %7868 = vmatprep.subr.mxu0 0.0
    %7869 = vmatpush2.msra.mxu0 0.0
    %7870 = vmatprep.subr.mxu0 0.0
    %7871 = vmatpush2.msra.mxu0 0.0
    %7872 = vmatprep.subr.mxu0 0.0
    %7873 = vmatpush2.msra.mxu0 0.0
    %7874 = vmatprep.subr.mxu0 0.0
    %7875 = vmatpush2.msra.mxu0 0.0
    %7876 = vmatprep.subr.mxu0 0.0
    %7877 = vmatpush2.msra.mxu0 0.0
    %7878 = vmatprep.subr.mxu0 0.0
    %7879 = vmatpush2.msra.mxu0 0.0
    %7880 = vmatprep.subr.mxu0 0.0
    %7881 = vmatpush2.msra.mxu0 0.0
    %7882 = vmatprep.subr.mxu0 0.0
    %7883 = vmatpush2.msra.mxu0 0.0
    %7884 = vmatprep.mubr.f32.mxu0 0.0
    %7885 = vmatmul.mubr.f32.gmra.mxu0 %v7389
    %v7886 = vpop.f32.mrf.mxu0
    %v7887 = vadd.f32 0.0, %v7886
    %v7888 = vpop.f32.mrf.mxu0
    %7889 = vdwg.mxu0
    %v7890 = vadd.f32 %v1630, %v7887
    %7891 = vmatprep.subr.mxu0 0.0
    %7892 = vmatpush1.msra.mxu0 0.0
    %7893 = vmatprep.subr.mxu0 0.0
    %7894 = vmatpush1.msra.mxu0 0.0
    %7895 = vmatprep.subr.mxu0 0.0
    %7896 = vmatpush1.msra.mxu0 0.0
    %7897 = vmatprep.subr.mxu0 0.0
    %7898 = vmatpush1.msra.mxu0 0.0
    %7899 = vmatprep.subr.mxu0 0.0
    %7900 = vmatpush1.msra.mxu0 0.0
    %7901 = vmatprep.subr.mxu0 0.0
    %7902 = vmatpush1.msra.mxu0 0.0
    %7903 = vmatprep.subr.mxu0 0.0
    %7904 = vmatpush1.msra.mxu0 0.0
    %7905 = vmatprep.subr.mxu0 0.0
    %7906 = vmatpush1.msra.mxu0 0.0
    %7907 = vmatprep.subr.mxu0 0.0
    %7908 = vmatpush1.msra.mxu0 0.0
    %7909 = vmatprep.subr.mxu0 0.0
    %7910 = vmatpush1.msra.mxu0 0.0
    %7911 = vmatprep.subr.mxu0 0.0
    %7912 = vmatpush1.msra.mxu0 0.0
    %7913 = vmatprep.subr.mxu0 0.0
    %7914 = vmatpush1.msra.mxu0 0.0
    %7915 = vmatprep.subr.mxu0 0.0
    %7916 = vmatpush1.msra.mxu0 0.0
    %7917 = vmatprep.subr.mxu0 0.0
    %7918 = vmatpush1.msra.mxu0 0.0
    %7919 = vmatprep.subr.mxu0 0.0
    %7920 = vmatpush1.msra.mxu0 %v786
    %7921 = vmatprep.subr.mxu0 0.0
    %7922 = vmatpush1.msra.mxu0 %v785
    %7923 = vmatprep.subr.mxu0 0.0
    %7924 = vmatpush2.msra.mxu0 0.0
    %7925 = vmatprep.subr.mxu0 0.0
    %7926 = vmatpush2.msra.mxu0 0.0
    %7927 = vmatprep.subr.mxu0 0.0
    %7928 = vmatpush2.msra.mxu0 0.0
    %7929 = vmatprep.subr.mxu0 0.0
    %7930 = vmatpush2.msra.mxu0 0.0
    %7931 = vmatprep.subr.mxu0 0.0
    %7932 = vmatpush2.msra.mxu0 0.0
    %7933 = vmatprep.subr.mxu0 0.0
    %7934 = vmatpush2.msra.mxu0 0.0
    %7935 = vmatprep.subr.mxu0 0.0
    %7936 = vmatpush2.msra.mxu0 0.0
    %7937 = vmatprep.subr.mxu0 0.0
    %7938 = vmatpush2.msra.mxu0 0.0
    %7939 = vmatprep.subr.mxu0 0.0
    %7940 = vmatpush2.msra.mxu0 0.0
    %7941 = vmatprep.subr.mxu0 0.0
    %7942 = vmatpush2.msra.mxu0 0.0
    %7943 = vmatprep.subr.mxu0 0.0
    %7944 = vmatpush2.msra.mxu0 0.0
    %7945 = vmatprep.subr.mxu0 0.0
    %7946 = vmatpush2.msra.mxu0 0.0
    %7947 = vmatprep.subr.mxu0 0.0
    %7948 = vmatpush2.msra.mxu0 0.0
    %7949 = vmatprep.subr.mxu0 0.0
    %7950 = vmatpush2.msra.mxu0 0.0
    %7951 = vmatprep.subr.mxu0 0.0
    %7952 = vmatpush2.msra.mxu0 0.0
    %7953 = vmatprep.subr.mxu0 0.0
    %7954 = vmatpush2.msra.mxu0 0.0
    %7955 = vmatprep.mubr.f32.mxu0 0.0
    %7956 = vmatmul.mubr.f32.gmra.mxu0 %v7463
    %v7957 = vpop.f32.mrf.mxu0
    %v7958 = vadd.f32 0.0, %v7957
    %v7959 = vpop.f32.mrf.mxu0
    %7960 = vdwg.mxu0
    %v7961 = vadd.f32 %v7890, %v7958
    %v7962 = vmul.f32 %v7677, 0.5
    %v7963 = vtanh.pop %v7962
    %v7964 = vmul.f32 %v7963, 0.5
    %v7965 = vadd.f32 %v7964, 0.5
    %v7966 = vmul.f32 %v7965, %v7079
    %v7967 = vmul.f32 %v7535, 0.5
    %v7968 = vtanh.pop %v7967
    %v7969 = vmul.f32 %v7968, 0.5
    %v7970 = vadd.f32 %v7969, 0.5
    %v7971 = vtanh.pop %v7819
    %v7972 = vmul.f32 %v7970, %v7971
    %v7973 = vadd.f32 %v7966, %v7972
    %v7974 = vmul.f32 %v7961, 0.5
    %v7975 = vtanh.pop %v7974
    %v7976 = vmul.f32 %v7975, 0.5
    %v7977 = vadd.f32 %v7976, 0.5
    %v7978 = vtanh.pop %v7973
    %v7979 = vmul.f32 %v7977, %v7978
    %v7980 = vld [vmem:[%s9] sm:$0xff]
    %v7981 = vld [vmem:[%s9 + $0x8] sm:$0xff]
    %v7982 = vld [vmem:[%s10] sm:$0x1]
    %v7984 = vlaneseq
    %v7985 = vshrl.u32 %v7984, 7
    %v7986 = vsub.s32 0, %v7985
    %v7987 = vrot.slane %v7982, %v7986
    %v7990 = vsel %vm800, %v7979, 0
    %7992 = vmatprep.subr.mxu0 0.0
    %7993 = vmatpush1.msra.mxu0 0.0
    %7994 = vmatprep.subr.mxu0 0.0
    %7995 = vmatpush1.msra.mxu0 0.0
    %7996 = vmatprep.subr.mxu0 0.0
    %7997 = vmatpush1.msra.mxu0 0.0
    %7998 = vmatprep.subr.mxu0 0.0
    %7999 = vmatpush1.msra.mxu0 0.0
    %8000 = vmatprep.subr.mxu0 0.0
    %8001 = vmatpush1.msra.mxu0 0.0
    %8002 = vmatprep.subr.mxu0 0.0
    %8003 = vmatpush1.msra.mxu0 0.0
    %8004 = vmatprep.subr.mxu0 0.0
    %8005 = vmatpush1.msra.mxu0 0.0
    %8006 = vmatprep.subr.mxu0 0.0
    %8007 = vmatpush1.msra.mxu0 0.0
    %8008 = vmatprep.subr.mxu0 0.0
    %8009 = vmatpush1.msra.mxu0 0.0
    %8010 = vmatprep.subr.mxu0 0.0
    %8011 = vmatpush1.msra.mxu0 0.0
    %8012 = vmatprep.subr.mxu0 0.0
    %8013 = vmatpush1.msra.mxu0 0.0
    %8014 = vmatprep.subr.mxu0 0.0
    %8015 = vmatpush1.msra.mxu0 0.0
    %8016 = vmatprep.subr.mxu0 0.0
    %8017 = vmatpush1.msra.mxu0 0.0
    %8018 = vmatprep.subr.mxu0 0.0
    %8019 = vmatpush1.msra.mxu0 0.0
    %8020 = vmatprep.subr.mxu0 0.0
    %8021 = vmatpush1.msra.mxu0 %v7981
    %8022 = vmatprep.subr.mxu0 0.0
    %8023 = vmatpush1.msra.mxu0 %v7980
    %8024 = vmatprep.subr.mxu0 0.0
    %8025 = vmatpush2.msra.mxu0 0.0
    %8026 = vmatprep.subr.mxu0 0.0
    %8027 = vmatpush2.msra.mxu0 0.0
    %8028 = vmatprep.subr.mxu0 0.0
    %8029 = vmatpush2.msra.mxu0 0.0
    %8030 = vmatprep.subr.mxu0 0.0
    %8031 = vmatpush2.msra.mxu0 0.0
    %8032 = vmatprep.subr.mxu0 0.0
    %8033 = vmatpush2.msra.mxu0 0.0
    %8034 = vmatprep.subr.mxu0 0.0
    %8035 = vmatpush2.msra.mxu0 0.0
    %8036 = vmatprep.subr.mxu0 0.0
    %8037 = vmatpush2.msra.mxu0 0.0
    %8038 = vmatprep.subr.mxu0 0.0
    %8039 = vmatpush2.msra.mxu0 0.0
    %8040 = vmatprep.subr.mxu0 0.0
    %8041 = vmatpush2.msra.mxu0 0.0
    %8042 = vmatprep.subr.mxu0 0.0
    %8043 = vmatpush2.msra.mxu0 0.0
    %8044 = vmatprep.subr.mxu0 0.0
    %8045 = vmatpush2.msra.mxu0 0.0
    %8046 = vmatprep.subr.mxu0 0.0
    %8047 = vmatpush2.msra.mxu0 0.0
    %8048 = vmatprep.subr.mxu0 0.0
    %8049 = vmatpush2.msra.mxu0 0.0
    %8050 = vmatprep.subr.mxu0 0.0
    %8051 = vmatpush2.msra.mxu0 0.0
    %8052 = vmatprep.subr.mxu0 0.0
    %8053 = vmatpush2.msra.mxu0 0.0
    %8054 = vmatprep.subr.mxu0 0.0
    %8055 = vmatpush2.msra.mxu0 0.0
    %8056 = vmatprep.mubr.f32.mxu0 0.0
    %8057 = vmatmul.mubr.f32.gmra.mxu0 %v2099
    %v8058 = vpop.f32.mrf.mxu0
    %v8059 = vadd.f32 %v7987, %v8058
    %v8060 = vpop.f32.mrf.mxu0
    %8061 = vmatprep.mubr.f32.mxu0 0.0
    %8062 = vmatmul.mubr.f32.gmra.mxu0 %v2993
    %v8063 = vpop.f32.mrf.mxu0
    %v8064 = vadd.f32 %v7987, %v8063
    %v8065 = vpop.f32.mrf.mxu0
    %8066 = vmatprep.mubr.f32.mxu0 0.0
    %8067 = vmatmul.mubr.f32.gmra.mxu0 %v3887
    %v8068 = vpop.f32.mrf.mxu0
    %v8069 = vadd.f32 %v7987, %v8068
    %v8070 = vpop.f32.mrf.mxu0
    %8071 = vmatprep.mubr.f32.mxu0 0.0
    %8072 = vmatmul.mubr.f32.gmra.mxu0 %v4781
    %v8073 = vpop.f32.mrf.mxu0
    %v8074 = vadd.f32 %v7987, %v8073
    %v8075 = vpop.f32.mrf.mxu0
    %8076 = vmatprep.mubr.f32.mxu0 0.0
    %8077 = vmatmul.mubr.f32.gmra.mxu0 %v5675
    %v8078 = vpop.f32.mrf.mxu0
    %v8079 = vadd.f32 %v7987, %v8078
    %v8080 = vpop.f32.mrf.mxu0
    %8081 = vmatprep.mubr.f32.mxu0 0.0
    %8082 = vmatmul.mubr.f32.gmra.mxu0 %v6569
    %v8083 = vpop.f32.mrf.mxu0
    %v8084 = vadd.f32 %v7987, %v8083
    %v8085 = vpop.f32.mrf.mxu0
    %8086 = vmatprep.mubr.f32.mxu0 0.0
    %8087 = vmatmul.mubr.f32.gmra.mxu0 %v7463
    %v8088 = vpop.f32.mrf.mxu0
    %v8089 = vadd.f32 %v7987, %v8088
    %v8090 = vpop.f32.mrf.mxu0
    %8091 = vmatprep.mubr.f32.mxu0 0.0
    %8092 = vmatmul.mubr.f32.gmra.mxu0 %v7990
    %v8093 = vpop.f32.mrf.mxu0
    %v8094 = vadd.f32 %v7987, %v8093
    %v8095 = vpop.f32.mrf.mxu0
    %8096 = vdwg.mxu0
    %8097 = vst [vmem:[%s13] sm:$0xff] %v8059
    %8098 = vst [vmem:[%s13 + $0x8] sm:$0xff] %v8064
    %8099 = vst [vmem:[%s13 + $0x10] sm:$0xff] %v8069
    %8100 = vst [vmem:[%s13 + $0x18] sm:$0xff] %v8074
    %8101 = vst [vmem:[%s13 + $0x20] sm:$0xff] %v8079
    %8102 = vst [vmem:[%s13 + $0x28] sm:$0xff] %v8084
    %8103 = vst [vmem:[%s13 + $0x30] sm:$0xff] %v8089
    %8104 = vst [vmem:[%s13 + $0x38] sm:$0xff] %v8094
    %8105 = vst.msk [vmem:[#allocation2] sm:$0xff] %vm800, %v7387
    %s8106 = scalar_lea.vmem [#allocation2], 8
    %8107 = vst.msk [vmem:[%s8106] sm:$0xff] %vm800, %v7979
    %8108 = vst.msk [vmem:[#allocation4] sm:$0xff] %vm800, %v7381
    %s8109 = scalar_lea.vmem [#allocation4], 8
    %8110 = vst.msk [vmem:[%s8109] sm:$0xff] %vm800, %v7973
    // Predicated region
    $region54: #{model_forward.1} parent=1 // pred_check
      _
    $region55: #{model_forward.1} parent=1 // pred_check_branch
      %8112 = sbr.rel (0) target = $region57
    $region56: #{model_forward.1} parent=1 // pred_region
      _
    $region57: #{model_forward.1} parent=1 // pred_fallthru
      _
    // Predicated region
    $region58: #{model_forward.1} parent=1 // pred_check
      _
    $region59: #{model_forward.1} parent=1 // pred_check_branch
      %8114 = sbr.rel (0) target = $region61
    $region60: #{model_forward.1} parent=1 // pred_region
      %s8116 = ssub.s32 256, 256
      %8117 = vsyncadd [#allocation3], %s8116
      %s8118 = sshll.u32 [#allocation2], 4
      %s8119 = int_to_ptr.vmem [resolvable:$true] %s8118
      %8124 = dma.vmem_to_hbm [thread:$0]  %s8119, 256, %s14, [#allocation3], 128, 128, 8
    $region61: #{model_forward.1} parent=1 // pred_fallthru
      _
    // Predicated region
    $region62: #{model_forward.1} parent=1 // pred_check
      _
    $region63: #{model_forward.1} parent=1 // pred_check_branch
      %8126 = sbr.rel (0) target = $region65
    $region64: #{model_forward.1} parent=1 // pred_region
      %s8128 = ssub.s32 256, 256
      %8129 = vsyncadd [#allocation5], %s8128
      %s8130 = sshll.u32 [#allocation4], 4
      %s8131 = int_to_ptr.vmem [resolvable:$true] %s8130
      %8136 = dma.vmem_to_hbm [thread:$0]  %s8131, 256, %s15, [#allocation5], 128, 128, 8
    $region65: #{model_forward.1} parent=1 // pred_fallthru
      _
    // Predicated region
    $region66: #{model_forward.1} parent=1 // pred_check
      _
    $region67: #{model_forward.1} parent=1 // pred_check_branch
      %8138 = sbr.rel (0) target = $region69
    $region68: #{model_forward.1} parent=1 // pred_region
      _
    $region69: #{model_forward.1} parent=1 // pred_fallthru
      _
    // Predicated region
    $region70: #{model_forward.1} parent=1 // pred_check
      _
    $region71: #{model_forward.1} parent=1 // pred_check_branch
      %8140 = sbr.rel (0) target = $region73
    $region72: #{model_forward.1} parent=1 // pred_region
      %8141 = dma.done [#allocation3], 256
    $region73: #{model_forward.1} parent=1 // pred_fallthru
      _
    // Predicated region
    $region74: #{model_forward.1} parent=1 // pred_check
      _
    $region75: #{model_forward.1} parent=1 // pred_check_branch
      %8143 = sbr.rel (0) target = $region77
    $region76: #{model_forward.1} parent=1 // pred_region
      %8144 = dma.done [#allocation5], 256
    $region77: #{model_forward.1} parent=1 // pred_fallthru
      _
    %8145 = vsyncpa [#allocation3], 1
    %8146 = vsyncpa [#allocation5], 1

</llo_original>
